<compile_context>
chip_gen: v7x
topology: tpu7x:2x2x1
jax: 0.10.0
libtpu: 0.0.40
codegen_flags: <defaults>
</compile_context>

<pallas_src>
import functools

import jax
import jax.numpy as jnp
from jax.experimental import pallas as pl
from jax.experimental.pallas import tpu as pltpu


def _pad8(n):
    return ((n + 7) // 8) * 8


# Fused gate lane order (blocks of H): [i_f, i_b, f_f, f_b, o_f, o_b, g_f, g_b].
_FWD_BLK = {"i": 0, "f": 2, "o": 4, "g": 6}
_BWD_BLK = {"i": 1, "f": 3, "o": 5, "g": 7}


# ----------------------------------------------------------------------------
# Row layout of the single packed (rows, 8H) f32 weight slab (all Python ints).
# ----------------------------------------------------------------------------
def build_layout(input_size, H, n_total_layers):
    W = 8 * H
    layers = []
    o = 0
    din = input_size
    for _ in range(n_total_layers):
        dpad = _pad8(din)
        layers.append(dict(dpad=dpad,
                           wxf=o,                      # (dpad, 8H) x-proj, fwd gates
                           wxb=o + dpad,               # (dpad, 8H) x-proj, bwd gates
                           whh=o + 2 * dpad,           # (2H, 8H) block-diag recurrent
                           bf=o + 2 * dpad + 2 * H,    # (1, 8H) fused fwd bias
                           bb=o + 2 * dpad + 2 * H + 8))  # (1, 8H) fused bwd bias
        o += 2 * dpad + 2 * H + 16
        din = 2 * H
    head = dict(fc1=o,                                  # (2H, H)   in cols [:H]
                fc2=o + 2 * H,                          # (H, H//2) in cols [:H//2]
                fc3=o + 2 * H + _pad8(H),               # (H//2, 1) in col  [:1]
                b1=o + 2 * H + _pad8(H) + _pad8(H // 2))
    head["b2"] = head["b1"] + 8
    head["b3"] = head["b1"] + 16
    rows = head["b1"] + 24
    return dict(H=H, W=W, rows=rows, layers=layers, head=head)


# ----------------------------------------------------------------------------
# Fused kernel: 4 bidirectional LSTM layers + MLP head, everything VMEM-resident.
# ----------------------------------------------------------------------------
def make_fused_kernel(T, Bp, layout):
    H = layout["H"]
    H2, H4, H6 = 2 * H, 4 * H, 6 * H

    def kernel(x_ref, slab_ref, o_ref, xgf, xgb, hf, hb):
        f32 = jnp.float32

        def mm(a, b):
            return jnp.dot(a, b, preferred_element_type=f32)

        for l, L in enumerate(layout["layers"]):
            dpad = L["dpad"]
            whh = slab_ref[L["whh"]:L["whh"] + H2, :]          # (2H, 8H) block-diag
            bf = slab_ref[L["bf"]:L["bf"] + 1, :]
            bb = slab_ref[L["bb"]:L["bb"] + 1, :]

            # ---- batched input projection for ALL T steps, both directions ----
            # (off the recurrent critical path; fwd gate lanes live only in xgf,
            #  bwd gate lanes only in xgb, so the biases land exactly once each).
            if l == 0:
                xall = x_ref[...]                              # (T*Bp, dpad)
                xgf[...] = mm(xall, slab_ref[L["wxf"]:L["wxf"] + dpad, :]) + bf
                xgb[...] = mm(xall, slab_ref[L["wxb"]:L["wxb"] + dpad, :]) + bb
            else:
                hf_all = hf[...]                               # (T*Bp, H) fwd half of input
                hb_all = hb[...]                               # (T*Bp, H) bwd half of input
                wxf_f = slab_ref[L["wxf"]:L["wxf"] + H, :]
                wxf_b = slab_ref[L["wxf"] + H:L["wxf"] + H2, :]
                wxb_f = slab_ref[L["wxb"]:L["wxb"] + H, :]
                wxb_b = slab_ref[L["wxb"] + H:L["wxb"] + H2, :]
                xgf[...] = mm(hf_all, wxf_f) + mm(hb_all, wxf_b) + bf
                xgb[...] = mm(hf_all, wxb_f) + mm(hb_all, wxb_b) + bb

            # ---- fused bidirectional recurrence: step s = (fwd t=s, bwd t=T-1-s) ----
            h = jnp.zeros((Bp, H2), f32)                       # [h_fwd | h_bwd]
            c = jnp.zeros((Bp, H2), f32)                       # [c_fwd | c_bwd]
            for s in range(T):
                tf, tb = s, T - 1 - s
                xg = xgf[tf * Bp:(tf + 1) * Bp, :] + xgb[tb * Bp:(tb + 1) * Bp, :]
                if s == 0:
                    gates = xg                                 # h == 0: skip the matmul
                else:
                    gates = xg + mm(h, whh)                    # one MXU pass, both dirs
                sfo = jax.nn.sigmoid(gates[:, :H6])            # i,f,o for both dirs (1 EUP)
                g = jnp.tanh(gates[:, H6:])                    # g for both dirs     (1 EUP)
                c = sfo[:, H2:H4] * c + sfo[:, :H2] * g
                h = sfo[:, H4:H6] * jnp.tanh(c)                # (1 EUP)
                hf[tf * Bp:(tf + 1) * Bp, :] = h[:, :H]
                hb[tb * Bp:(tb + 1) * Bp, :] = h[:, H:]

        # ---- MLP head: eval-mode BN folded into fc weights, dropout = identity ----
        # Only lstm_out2[:, -1, :] is consumed; its bwd half was written at fused s=0.
        hd = layout["head"]
        Hh = H // 2
        hf_last = hf[(T - 1) * Bp:T * Bp, :]
        hb_last = hb[(T - 1) * Bp:T * Bp, :]
        w1f = slab_ref[hd["fc1"]:hd["fc1"] + H, :H]
        w1b = slab_ref[hd["fc1"] + H:hd["fc1"] + H2, :H]
        b1 = slab_ref[hd["b1"]:hd["b1"] + 1, :H]
        w2 = slab_ref[hd["fc2"]:hd["fc2"] + H, :Hh]
        b2 = slab_ref[hd["b2"]:hd["b2"] + 1, :Hh]
        w3 = slab_ref[hd["fc3"]:hd["fc3"] + Hh, :1]
        b3 = slab_ref[hd["b3"]:hd["b3"] + 1, :1]
        h1 = jnp.maximum(mm(hf_last, w1f) + mm(hb_last, w1b) + b1, 0.0)
        h2 = jnp.maximum(mm(h1, w2) + b2, 0.0)
        o_ref[...] = mm(h2, w3) + b3

    return kernel


# ----------------------------------------------------------------------------
# Wrapper: one pallas_call, two resident VMEM inputs (x + packed weight slab).
# ----------------------------------------------------------------------------
def make_forward(layout):
    H = layout["H"]
    dpad0 = layout["layers"][0]["dpad"]
    vmem = pl.BlockSpec(memory_space=pltpu.MemorySpace.VMEM)

    @jax.jit
    def forward(x_btd, slab):
        B, T, D = x_btd.shape
        Bp = _pad8(B)
        # Time-major, pad batch to 8 sublanes and features to the padded Din, then
        # flatten (T, Bp) so every per-step row block is sublane-tile aligned.
        x = jnp.transpose(x_btd, (1, 0, 2))
        x = jnp.pad(x, ((0, 0), (0, Bp - B), (0, dpad0 - D)))
        x = x.reshape(T * Bp, dpad0)
        out = pl.pallas_call(
            make_fused_kernel(T, Bp, layout),
            out_shape=jax.ShapeDtypeStruct((Bp, 1), jnp.float32),
            in_specs=[vmem, vmem],
            out_specs=vmem,
            scratch_shapes=[
                pltpu.VMEM((T * Bp, 8 * H), jnp.float32),   # xgf: fwd-gate x-projections
                pltpu.VMEM((T * Bp, 8 * H), jnp.float32),   # xgb: bwd-gate x-projections
                pltpu.VMEM((T * Bp, H), jnp.float32),       # hf: fwd hidden sequence
                pltpu.VMEM((T * Bp, H), jnp.float32),       # hb: bwd hidden sequence
            ],
        )(x, slab)
        return out[:B]

    return forward


# ----------------------------------------------------------------------------
# Deterministic parameter init (PyTorch-shaped) + packing into the single slab:
#   * gate columns scattered into the fused [i_f,i_b,f_f,f_b,o_f,o_b,g_f,g_b] layout
#   * block-diagonal W_hh for direction fusion, fused b_ih + b_hh biases
#   * eval-mode BatchNorm folded into the following Linear
# ----------------------------------------------------------------------------
def init_params(key, input_size=5, H=32, num_layers=2, eps=1e-5):
    n_total = 2 * num_layers                      # lstm1 stack + lstm2 stack
    layout = build_layout(input_size, H, n_total)
    W = 8 * H
    keys = iter(jax.random.split(key, 256))
    s = H ** -0.5

    def rows(arr, gate):                           # PyTorch packed row order: i, f, g, o
        idx = {"i": 0, "f": 1, "g": 2, "o": 3}[gate]
        return arr[idx * H:(idx + 1) * H]

    def scatter_x(wih, blk):                       # (4H, din) -> (din, 8H)
        out = jnp.zeros((wih.shape[1], W), jnp.float32)
        for gname, b in blk.items():
            out = out.at[:, b * H:(b + 1) * H].set(rows(wih, gname).T)
        return out

    def scatter_h(whh, blk, row_off):              # (4H, H) -> (2H, 8H) block contribution
        out = jnp.zeros((2 * H, W), jnp.float32)
        for gname, b in blk.items():
            out = out.at[row_off:row_off + H, b * H:(b + 1) * H].set(rows(whh, gname).T)
        return out

    def scatter_b(bias, blk):                      # (4H,) -> (1, 8H)
        out = jnp.zeros((1, W), jnp.float32)
        for gname, b in blk.items():
            out = out.at[0, b * H:(b + 1) * H].set(rows(bias, gname))
        return out

    def lstm_dir(din):
        wih = jax.random.uniform(next(keys), (4 * H, din), jnp.float32, -s, s)
        whh = jax.random.uniform(next(keys), (4 * H, H), jnp.float32, -s, s)
        bih = jax.random.uniform(next(keys), (4 * H,), jnp.float32, -s, s)
        bhh = jax.random.uniform(next(keys), (4 * H,), jnp.float32, -s, s)
        return wih, whh, bih + bhh

    slab = jnp.zeros((layout["rows"], W), jnp.float32)
    din = input_size
    for L in layout["layers"]:
        wih_f, whh_f, b_f = lstm_dir(din)
        wih_b, whh_b, b_b = lstm_dir(din)
        slab = slab.at[L["wxf"]:L["wxf"] + din, :].set(scatter_x(wih_f, _FWD_BLK))
        slab = slab.at[L["wxb"]:L["wxb"] + din, :].set(scatter_x(wih_b, _BWD_BLK))
        slab = slab.at[L["whh"]:L["whh"] + 2 * H, :].set(
            scatter_h(whh_f, _FWD_BLK, 0) + scatter_h(whh_b, _BWD_BLK, H))
        slab = slab.at[L["bf"]:L["bf"] + 1, :].set(scatter_b(b_f, _FWD_BLK))
        slab = slab.at[L["bb"]:L["bb"] + 1, :].set(scatter_b(b_b, _BWD_BLK))
        din = 2 * H

    def linear(out_f, in_f):
        bound = in_f ** -0.5
        w = jax.random.uniform(next(keys), (out_f, in_f), jnp.float32, -bound, bound)
        b = jax.random.uniform(next(keys), (out_f,), jnp.float32, -bound, bound)
        return w, b

    def bn_stats(n):
        # PyTorch-init running stats: gamma=1, beta=0, mean=0, var=1.
        # TODO(synk): plumb real trained running stats here before folding.
        return (jnp.ones((n,), jnp.float32), jnp.zeros((n,), jnp.float32),
                jnp.zeros((n,), jnp.float32), jnp.ones((n,), jnp.float32))

    def fold_bn(w, b, gamma, beta, mean, var):
        # fc(bn(x)) = x @ (scale[:,None]*W^T) + (b + W @ shift)
        scale = gamma * jax.lax.rsqrt(var + eps)
        shift = beta - mean * scale
        return (w * scale[None, :]).T, b + w @ shift

    w1, b1 = linear(H, 2 * H)
    w2, b2 = linear(H // 2, H)
    w3, b3 = linear(1, H // 2)
    fc1_wT, fc1_b = fold_bn(w1, b1, *bn_stats(2 * H))
    fc2_wT, fc2_b = fold_bn(w2, b2, *bn_stats(H))
    fc3_wT, fc3_b = fold_bn(w3, b3, *bn_stats(H // 2))

    hd = layout["head"]
    slab = slab.at[hd["fc1"]:hd["fc1"] + 2 * H, :H].set(fc1_wT)
    slab = slab.at[hd["fc2"]:hd["fc2"] + H, :H // 2].set(fc2_wT)
    slab = slab.at[hd["fc3"]:hd["fc3"] + H // 2, :1].set(fc3_wT)
    slab = slab.at[hd["b1"], :H].set(fc1_b)
    slab = slab.at[hd["b2"], :H // 2].set(fc2_b)
    slab = slab.at[hd["b3"], :1].set(fc3_b)
    return slab, layout


if __name__ == "__main__":
    B, T, D_IN, HIDDEN = 2, 8, 5, 32
    key = jax.random.PRNGKey(0)
    pkey, xkey = jax.random.split(key)
    slab, layout = init_params(pkey, input_size=D_IN, H=HIDDEN, num_layers=2)
    x = jax.random.normal(xkey, (B, T, D_IN), jnp.float32)

    fwd = make_forward(layout)
    out = jax.block_until_ready(fwd(x, slab))
    assert out.shape == (B, 1) and out.dtype == jnp.float32
    print("KERNEL_OK")
</pallas_src>

<mosaic_0001>
module attributes {stable_mosaic.version = 11 : i64} {
  func.func @kernel(%arg0: memref<64x8xf32, #tpu.memory_space<vmem>>, %arg1: memref<856x256xf32, #tpu.memory_space<vmem>>, %arg2: memref<8x1xf32, #tpu.memory_space<vmem>>, %arg3: memref<64x256xf32, #tpu.memory_space<vmem>>, %arg4: memref<64x256xf32, #tpu.memory_space<vmem>>, %arg5: memref<64x32xf32, #tpu.memory_space<vmem>>, %arg6: memref<64x32xf32, #tpu.memory_space<vmem>>) attributes {dimension_semantics = [], scalar_prefetch = 0 : i64, scratch_operands = 4 : i64, tpu.core_type = #tpu.core_type<tc>} {
    %c16 = arith.constant 16 : index
    %c0 = arith.constant 0 : index
    %0 = vector.load %arg1[%c16, %c0] : memref<856x256xf32, #tpu.memory_space<vmem>>, vector<64x256xf32>
    %c80 = arith.constant 80 : index
    %c0_0 = arith.constant 0 : index
    %1 = vector.load %arg1[%c80, %c0_0] : memref<856x256xf32, #tpu.memory_space<vmem>>, vector<1x256xf32>
    %c88 = arith.constant 88 : index
    %c0_1 = arith.constant 0 : index
    %2 = vector.load %arg1[%c88, %c0_1] : memref<856x256xf32, #tpu.memory_space<vmem>>, vector<1x256xf32>
    %c0_2 = arith.constant 0 : index
    %c0_3 = arith.constant 0 : index
    %3 = vector.load %arg0[%c0_2, %c0_3] : memref<64x8xf32, #tpu.memory_space<vmem>>, vector<64x8xf32>
    %c0_4 = arith.constant 0 : index
    %c0_5 = arith.constant 0 : index
    %4 = vector.load %arg1[%c0_4, %c0_5] : memref<856x256xf32, #tpu.memory_space<vmem>>, vector<8x256xf32>
    %cst = arith.constant dense<0.000000e+00> : vector<64x256xf32>
    %5 = tpu.matmul %3, %4, %cst {dimension_numbers = #tpu.dot_dimension_numbers<[1], [0], [0], [1], [0, 0, 1, 1], [], []>} : vector<64x8xf32>, vector<8x256xf32>, vector<64x256xf32> -> vector<64x256xf32>
    %6 = vector.broadcast %1 : vector<1x256xf32> to vector<64x256xf32>
    %7 = arith.addf %5, %6 : vector<64x256xf32>
    %c0_6 = arith.constant 0 : index
    %c0_7 = arith.constant 0 : index
    %8 = vector.load %arg3[%c0_6, %c0_7] : memref<64x256xf32, #tpu.memory_space<vmem>>, vector<64x256xf32>
    tpu.vector_store %arg3[%c0_6, %c0_7], %7 {strides = array<i32>} : memref<64x256xf32, #tpu.memory_space<vmem>>, vector<64x256xf32>,
    %c8 = arith.constant 8 : index
    %c0_8 = arith.constant 0 : index
    %9 = vector.load %arg1[%c8, %c0_8] : memref<856x256xf32, #tpu.memory_space<vmem>>, vector<8x256xf32>
    %cst_9 = arith.constant dense<0.000000e+00> : vector<64x256xf32>
    %10 = tpu.matmul %3, %9, %cst_9 {dimension_numbers = #tpu.dot_dimension_numbers<[1], [0], [0], [1], [0, 0, 1, 1], [], []>} : vector<64x8xf32>, vector<8x256xf32>, vector<64x256xf32> -> vector<64x256xf32>
    %11 = vector.broadcast %2 : vector<1x256xf32> to vector<64x256xf32>
    %12 = arith.addf %10, %11 : vector<64x256xf32>
    %c0_10 = arith.constant 0 : index
    %c0_11 = arith.constant 0 : index
    %13 = vector.load %arg4[%c0_10, %c0_11] : memref<64x256xf32, #tpu.memory_space<vmem>>, vector<64x256xf32>
    tpu.vector_store %arg4[%c0_10, %c0_11], %12 {strides = array<i32>} : memref<64x256xf32, #tpu.memory_space<vmem>>, vector<64x256xf32>,
    %cst_12 = arith.constant 0.000000e+00 : f32
    %14 = vector.broadcast %cst_12 : f32 to vector<8x64xf32>
    %c0_13 = arith.constant 0 : index
    %c0_14 = arith.constant 0 : index
    %15 = vector.load %arg3[%c0_13, %c0_14] : memref<64x256xf32, #tpu.memory_space<vmem>>, vector<8x256xf32>
    %c56 = arith.constant 56 : index
    %c0_15 = arith.constant 0 : index
    %16 = vector.load %arg4[%c56, %c0_15] : memref<64x256xf32, #tpu.memory_space<vmem>>, vector<8x256xf32>
    %17 = arith.addf %15, %16 : vector<8x256xf32>
    %18 = vector.extract_strided_slice %17 {offsets = [0, 0], sizes = [8, 192], strides = [1, 1]} : vector<8x256xf32> to vector<8x192xf32>
    %19 = arith.negf %18 : vector<8x192xf32>
    %20 = math.exp %19 : vector<8x192xf32>
    %cst_16 = arith.constant 1.000000e+00 : f32
    %21 = vector.broadcast %cst_16 : f32 to vector<8x192xf32>
    %22 = arith.addf %21, %20 : vector<8x192xf32>
    %23 = arith.divf %21, %22 : vector<8x192xf32>
    %24 = vector.extract_strided_slice %17 {offsets = [0, 192], sizes = [8, 64], strides = [1, 1]} : vector<8x256xf32> to vector<8x64xf32>
    %25 = math.tanh %24 : vector<8x64xf32>
    %26 = vector.extract_strided_slice %23 {offsets = [0, 64], sizes = [8, 64], strides = [1, 1]} : vector<8x192xf32> to vector<8x64xf32>
    %27 = arith.mulf %26, %14 : vector<8x64xf32>
    %28 = vector.extract_strided_slice %23 {offsets = [0, 0], sizes = [8, 64], strides = [1, 1]} : vector<8x192xf32> to vector<8x64xf32>
    %29 = arith.mulf %28, %25 : vector<8x64xf32>
    %30 = arith.addf %27, %29 : vector<8x64xf32>
    %31 = vector.extract_strided_slice %23 {offsets = [0, 128], sizes = [8, 64], strides = [1, 1]} : vector<8x192xf32> to vector<8x64xf32>
    %32 = math.tanh %30 : vector<8x64xf32>
    %33 = arith.mulf %31, %32 : vector<8x64xf32>
    %34 = vector.extract_strided_slice %33 {offsets = [0, 0], sizes = [8, 32], strides = [1, 1]} : vector<8x64xf32> to vector<8x32xf32>
    %c0_17 = arith.constant 0 : index
    %c0_18 = arith.constant 0 : index
    %35 = vector.load %arg5[%c0_17, %c0_18] : memref<64x32xf32, #tpu.memory_space<vmem>>, vector<8x32xf32>
    tpu.vector_store %arg5[%c0_17, %c0_18], %34 {strides = array<i32>} : memref<64x32xf32, #tpu.memory_space<vmem>>, vector<8x32xf32>,
    %36 = vector.extract_strided_slice %33 {offsets = [0, 32], sizes = [8, 32], strides = [1, 1]} : vector<8x64xf32> to vector<8x32xf32>
    %c56_19 = arith.constant 56 : index
    %c0_20 = arith.constant 0 : index
    %37 = vector.load %arg6[%c56_19, %c0_20] : memref<64x32xf32, #tpu.memory_space<vmem>>, vector<8x32xf32>
    tpu.vector_store %arg6[%c56_19, %c0_20], %36 {strides = array<i32>} : memref<64x32xf32, #tpu.memory_space<vmem>>, vector<8x32xf32>,
    %c8_21 = arith.constant 8 : index
    %c0_22 = arith.constant 0 : index
    %38 = vector.load %arg3[%c8_21, %c0_22] : memref<64x256xf32, #tpu.memory_space<vmem>>, vector<8x256xf32>
    %c48 = arith.constant 48 : index
    %c0_23 = arith.constant 0 : index
    %39 = vector.load %arg4[%c48, %c0_23] : memref<64x256xf32, #tpu.memory_space<vmem>>, vector<8x256xf32>
    %40 = arith.addf %38, %39 : vector<8x256xf32>
    %cst_24 = arith.constant dense<0.000000e+00> : vector<8x256xf32>
    %41 = tpu.matmul %33, %0, %cst_24 {dimension_numbers = #tpu.dot_dimension_numbers<[1], [0], [0], [1], [0, 0, 1, 1], [], []>} : vector<8x64xf32>, vector<64x256xf32>, vector<8x256xf32> -> vector<8x256xf32>
    %42 = arith.addf %40, %41 : vector<8x256xf32>
    %43 = vector.extract_strided_slice %42 {offsets = [0, 0], sizes = [8, 192], strides = [1, 1]} : vector<8x256xf32> to vector<8x192xf32>
    %44 = arith.negf %43 : vector<8x192xf32>
    %45 = math.exp %44 : vector<8x192xf32>
    %cst_25 = arith.constant 1.000000e+00 : f32
    %46 = vector.broadcast %cst_25 : f32 to vector<8x192xf32>
    %47 = arith.addf %46, %45 : vector<8x192xf32>
    %48 = arith.divf %46, %47 : vector<8x192xf32>
    %49 = vector.extract_strided_slice %42 {offsets = [0, 192], sizes = [8, 64], strides = [1, 1]} : vector<8x256xf32> to vector<8x64xf32>
    %50 = math.tanh %49 : vector<8x64xf32>
    %51 = vector.extract_strided_slice %48 {offsets = [0, 64], sizes = [8, 64], strides = [1, 1]} : vector<8x192xf32> to vector<8x64xf32>
    %52 = arith.mulf %51, %30 : vector<8x64xf32>
    %53 = vector.extract_strided_slice %48 {offsets = [0, 0], sizes = [8, 64], strides = [1, 1]} : vector<8x192xf32> to vector<8x64xf32>
    %54 = arith.mulf %53, %50 : vector<8x64xf32>
    %55 = arith.addf %52, %54 : vector<8x64xf32>
    %56 = vector.extract_strided_slice %48 {offsets = [0, 128], sizes = [8, 64], strides = [1, 1]} : vector<8x192xf32> to vector<8x64xf32>
    %57 = math.tanh %55 : vector<8x64xf32>
    %58 = arith.mulf %56, %57 : vector<8x64xf32>
    %59 = vector.extract_strided_slice %58 {offsets = [0, 0], sizes = [8, 32], strides = [1, 1]} : vector<8x64xf32> to vector<8x32xf32>
    %c8_26 = arith.constant 8 : index
    %c0_27 = arith.constant 0 : index
    %60 = vector.load %arg5[%c8_26, %c0_27] : memref<64x32xf32, #tpu.memory_space<vmem>>, vector<8x32xf32>
    tpu.vector_store %arg5[%c8_26, %c0_27], %59 {strides = array<i32>} : memref<64x32xf32, #tpu.memory_space<vmem>>, vector<8x32xf32>,
    %61 = vector.extract_strided_slice %58 {offsets = [0, 32], sizes = [8, 32], strides = [1, 1]} : vector<8x64xf32> to vector<8x32xf32>
    %c48_28 = arith.constant 48 : index
    %c0_29 = arith.constant 0 : index
    %62 = vector.load %arg6[%c48_28, %c0_29] : memref<64x32xf32, #tpu.memory_space<vmem>>, vector<8x32xf32>
    tpu.vector_store %arg6[%c48_28, %c0_29], %61 {strides = array<i32>} : memref<64x32xf32, #tpu.memory_space<vmem>>, vector<8x32xf32>,
    %c16_30 = arith.constant 16 : index
    %c0_31 = arith.constant 0 : index
    %63 = vector.load %arg3[%c16_30, %c0_31] : memref<64x256xf32, #tpu.memory_space<vmem>>, vector<8x256xf32>
    %c40 = arith.constant 40 : index
    %c0_32 = arith.constant 0 : index
    %64 = vector.load %arg4[%c40, %c0_32] : memref<64x256xf32, #tpu.memory_space<vmem>>, vector<8x256xf32>
    %65 = arith.addf %63, %64 : vector<8x256xf32>
    %cst_33 = arith.constant dense<0.000000e+00> : vector<8x256xf32>
    %66 = tpu.matmul %58, %0, %cst_33 {dimension_numbers = #tpu.dot_dimension_numbers<[1], [0], [0], [1], [0, 0, 1, 1], [], []>} : vector<8x64xf32>, vector<64x256xf32>, vector<8x256xf32> -> vector<8x256xf32>
    %67 = arith.addf %65, %66 : vector<8x256xf32>
    %68 = vector.extract_strided_slice %67 {offsets = [0, 0], sizes = [8, 192], strides = [1, 1]} : vector<8x256xf32> to vector<8x192xf32>
    %69 = arith.negf %68 : vector<8x192xf32>
    %70 = math.exp %69 : vector<8x192xf32>
    %cst_34 = arith.constant 1.000000e+00 : f32
    %71 = vector.broadcast %cst_34 : f32 to vector<8x192xf32>
    %72 = arith.addf %71, %70 : vector<8x192xf32>
    %73 = arith.divf %71, %72 : vector<8x192xf32>
    %74 = vector.extract_strided_slice %67 {offsets = [0, 192], sizes = [8, 64], strides = [1, 1]} : vector<8x256xf32> to vector<8x64xf32>
    %75 = math.tanh %74 : vector<8x64xf32>
    %76 = vector.extract_strided_slice %73 {offsets = [0, 64], sizes = [8, 64], strides = [1, 1]} : vector<8x192xf32> to vector<8x64xf32>
    %77 = arith.mulf %76, %55 : vector<8x64xf32>
    %78 = vector.extract_strided_slice %73 {offsets = [0, 0], sizes = [8, 64], strides = [1, 1]} : vector<8x192xf32> to vector<8x64xf32>
    %79 = arith.mulf %78, %75 : vector<8x64xf32>
    %80 = arith.addf %77, %79 : vector<8x64xf32>
    %81 = vector.extract_strided_slice %73 {offsets = [0, 128], sizes = [8, 64], strides = [1, 1]} : vector<8x192xf32> to vector<8x64xf32>
    %82 = math.tanh %80 : vector<8x64xf32>
    %83 = arith.mulf %81, %82 : vector<8x64xf32>
    %84 = vector.extract_strided_slice %83 {offsets = [0, 0], sizes = [8, 32], strides = [1, 1]} : vector<8x64xf32> to vector<8x32xf32>
    %c16_35 = arith.constant 16 : index
    %c0_36 = arith.constant 0 : index
    %85 = vector.load %arg5[%c16_35, %c0_36] : memref<64x32xf32, #tpu.memory_space<vmem>>, vector<8x32xf32>
    tpu.vector_store %arg5[%c16_35, %c0_36], %84 {strides = array<i32>} : memref<64x32xf32, #tpu.memory_space<vmem>>, vector<8x32xf32>,
    %86 = vector.extract_strided_slice %83 {offsets = [0, 32], sizes = [8, 32], strides = [1, 1]} : vector<8x64xf32> to vector<8x32xf32>
    %c40_37 = arith.constant 40 : index
    %c0_38 = arith.constant 0 : index
    %87 = vector.load %arg6[%c40_37, %c0_38] : memref<64x32xf32, #tpu.memory_space<vmem>>, vector<8x32xf32>
    tpu.vector_store %arg6[%c40_37, %c0_38], %86 {strides = array<i32>} : memref<64x32xf32, #tpu.memory_space<vmem>>, vector<8x32xf32>,
    %c24 = arith.constant 24 : index
    %c0_39 = arith.constant 0 : index
    %88 = vector.load %arg3[%c24, %c0_39] : memref<64x256xf32, #tpu.memory_space<vmem>>, vector<8x256xf32>
    %c32 = arith.constant 32 : index
    %c0_40 = arith.constant 0 : index
    %89 = vector.load %arg4[%c32, %c0_40] : memref<64x256xf32, #tpu.memory_space<vmem>>, vector<8x256xf32>
    %90 = arith.addf %88, %89 : vector<8x256xf32>
    %cst_41 = arith.constant dense<0.000000e+00> : vector<8x256xf32>
    %91 = tpu.matmul %83, %0, %cst_41 {dimension_numbers = #tpu.dot_dimension_numbers<[1], [0], [0], [1], [0, 0, 1, 1], [], []>} : vector<8x64xf32>, vector<64x256xf32>, vector<8x256xf32> -> vector<8x256xf32>
    %92 = arith.addf %90, %91 : vector<8x256xf32>
    %93 = vector.extract_strided_slice %92 {offsets = [0, 0], sizes = [8, 192], strides = [1, 1]} : vector<8x256xf32> to vector<8x192xf32>
    %94 = arith.negf %93 : vector<8x192xf32>
    %95 = math.exp %94 : vector<8x192xf32>
    %cst_42 = arith.constant 1.000000e+00 : f32
    %96 = vector.broadcast %cst_42 : f32 to vector<8x192xf32>
    %97 = arith.addf %96, %95 : vector<8x192xf32>
    %98 = arith.divf %96, %97 : vector<8x192xf32>
    %99 = vector.extract_strided_slice %92 {offsets = [0, 192], sizes = [8, 64], strides = [1, 1]} : vector<8x256xf32> to vector<8x64xf32>
    %100 = math.tanh %99 : vector<8x64xf32>
    %101 = vector.extract_strided_slice %98 {offsets = [0, 64], sizes = [8, 64], strides = [1, 1]} : vector<8x192xf32> to vector<8x64xf32>
    %102 = arith.mulf %101, %80 : vector<8x64xf32>
    %103 = vector.extract_strided_slice %98 {offsets = [0, 0], sizes = [8, 64], strides = [1, 1]} : vector<8x192xf32> to vector<8x64xf32>
    %104 = arith.mulf %103, %100 : vector<8x64xf32>
    %105 = arith.addf %102, %104 : vector<8x64xf32>
    %106 = vector.extract_strided_slice %98 {offsets = [0, 128], sizes = [8, 64], strides = [1, 1]} : vector<8x192xf32> to vector<8x64xf32>
    %107 = math.tanh %105 : vector<8x64xf32>
    %108 = arith.mulf %106, %107 : vector<8x64xf32>
    %109 = vector.extract_strided_slice %108 {offsets = [0, 0], sizes = [8, 32], strides = [1, 1]} : vector<8x64xf32> to vector<8x32xf32>
    %c24_43 = arith.constant 24 : index
    %c0_44 = arith.constant 0 : index
    %110 = vector.load %arg5[%c24_43, %c0_44] : memref<64x32xf32, #tpu.memory_space<vmem>>, vector<8x32xf32>
    tpu.vector_store %arg5[%c24_43, %c0_44], %109 {strides = array<i32>} : memref<64x32xf32, #tpu.memory_space<vmem>>, vector<8x32xf32>,
    %111 = vector.extract_strided_slice %108 {offsets = [0, 32], sizes = [8, 32], strides = [1, 1]} : vector<8x64xf32> to vector<8x32xf32>
    %c32_45 = arith.constant 32 : index
    %c0_46 = arith.constant 0 : index
    %112 = vector.load %arg6[%c32_45, %c0_46] : memref<64x32xf32, #tpu.memory_space<vmem>>, vector<8x32xf32>
    tpu.vector_store %arg6[%c32_45, %c0_46], %111 {strides = array<i32>} : memref<64x32xf32, #tpu.memory_space<vmem>>, vector<8x32xf32>,
    %c32_47 = arith.constant 32 : index
    %c0_48 = arith.constant 0 : index
    %113 = vector.load %arg3[%c32_47, %c0_48] : memref<64x256xf32, #tpu.memory_space<vmem>>, vector<8x256xf32>
    %c24_49 = arith.constant 24 : index
    %c0_50 = arith.constant 0 : index
    %114 = vector.load %arg4[%c24_49, %c0_50] : memref<64x256xf32, #tpu.memory_space<vmem>>, vector<8x256xf32>
    %115 = arith.addf %113, %114 : vector<8x256xf32>
    %cst_51 = arith.constant dense<0.000000e+00> : vector<8x256xf32>
    %116 = tpu.matmul %108, %0, %cst_51 {dimension_numbers = #tpu.dot_dimension_numbers<[1], [0], [0], [1], [0, 0, 1, 1], [], []>} : vector<8x64xf32>, vector<64x256xf32>, vector<8x256xf32> -> vector<8x256xf32>
    %117 = arith.addf %115, %116 : vector<8x256xf32>
    %118 = vector.extract_strided_slice %117 {offsets = [0, 0], sizes = [8, 192], strides = [1, 1]} : vector<8x256xf32> to vector<8x192xf32>
    %119 = arith.negf %118 : vector<8x192xf32>
    %120 = math.exp %119 : vector<8x192xf32>
    %cst_52 = arith.constant 1.000000e+00 : f32
    %121 = vector.broadcast %cst_52 : f32 to vector<8x192xf32>
    %122 = arith.addf %121, %120 : vector<8x192xf32>
    %123 = arith.divf %121, %122 : vector<8x192xf32>
    %124 = vector.extract_strided_slice %117 {offsets = [0, 192], sizes = [8, 64], strides = [1, 1]} : vector<8x256xf32> to vector<8x64xf32>
    %125 = math.tanh %124 : vector<8x64xf32>
    %126 = vector.extract_strided_slice %123 {offsets = [0, 64], sizes = [8, 64], strides = [1, 1]} : vector<8x192xf32> to vector<8x64xf32>
    %127 = arith.mulf %126, %105 : vector<8x64xf32>
    %128 = vector.extract_strided_slice %123 {offsets = [0, 0], sizes = [8, 64], strides = [1, 1]} : vector<8x192xf32> to vector<8x64xf32>
    %129 = arith.mulf %128, %125 : vector<8x64xf32>
    %130 = arith.addf %127, %129 : vector<8x64xf32>
    %131 = vector.extract_strided_slice %123 {offsets = [0, 128], sizes = [8, 64], strides = [1, 1]} : vector<8x192xf32> to vector<8x64xf32>
    %132 = math.tanh %130 : vector<8x64xf32>
    %133 = arith.mulf %131, %132 : vector<8x64xf32>
    %134 = vector.extract_strided_slice %133 {offsets = [0, 0], sizes = [8, 32], strides = [1, 1]} : vector<8x64xf32> to vector<8x32xf32>
    %c32_53 = arith.constant 32 : index
    %c0_54 = arith.constant 0 : index
    %135 = vector.load %arg5[%c32_53, %c0_54] : memref<64x32xf32, #tpu.memory_space<vmem>>, vector<8x32xf32>
    tpu.vector_store %arg5[%c32_53, %c0_54], %134 {strides = array<i32>} : memref<64x32xf32, #tpu.memory_space<vmem>>, vector<8x32xf32>,
    %136 = vector.extract_strided_slice %133 {offsets = [0, 32], sizes = [8, 32], strides = [1, 1]} : vector<8x64xf32> to vector<8x32xf32>
    %c24_55 = arith.constant 24 : index
    %c0_56 = arith.constant 0 : index
    %137 = vector.load %arg6[%c24_55, %c0_56] : memref<64x32xf32, #tpu.memory_space<vmem>>, vector<8x32xf32>
    tpu.vector_store %arg6[%c24_55, %c0_56], %136 {strides = array<i32>} : memref<64x32xf32, #tpu.memory_space<vmem>>, vector<8x32xf32>,
    %c40_57 = arith.constant 40 : index
    %c0_58 = arith.constant 0 : index
    %138 = vector.load %arg3[%c40_57, %c0_58] : memref<64x256xf32, #tpu.memory_space<vmem>>, vector<8x256xf32>
    %c16_59 = arith.constant 16 : index
    %c0_60 = arith.constant 0 : index
    %139 = vector.load %arg4[%c16_59, %c0_60] : memref<64x256xf32, #tpu.memory_space<vmem>>, vector<8x256xf32>
    %140 = arith.addf %138, %139 : vector<8x256xf32>
    %cst_61 = arith.constant dense<0.000000e+00> : vector<8x256xf32>
    %141 = tpu.matmul %133, %0, %cst_61 {dimension_numbers = #tpu.dot_dimension_numbers<[1], [0], [0], [1], [0, 0, 1, 1], [], []>} : vector<8x64xf32>, vector<64x256xf32>, vector<8x256xf32> -> vector<8x256xf32>
    %142 = arith.addf %140, %141 : vector<8x256xf32>
    %143 = vector.extract_strided_slice %142 {offsets = [0, 0], sizes = [8, 192], strides = [1, 1]} : vector<8x256xf32> to vector<8x192xf32>
    %144 = arith.negf %143 : vector<8x192xf32>
    %145 = math.exp %144 : vector<8x192xf32>
    %cst_62 = arith.constant 1.000000e+00 : f32
    %146 = vector.broadcast %cst_62 : f32 to vector<8x192xf32>
    %147 = arith.addf %146, %145 : vector<8x192xf32>
    %148 = arith.divf %146, %147 : vector<8x192xf32>
    %149 = vector.extract_strided_slice %142 {offsets = [0, 192], sizes = [8, 64], strides = [1, 1]} : vector<8x256xf32> to vector<8x64xf32>
    %150 = math.tanh %149 : vector<8x64xf32>
    %151 = vector.extract_strided_slice %148 {offsets = [0, 64], sizes = [8, 64], strides = [1, 1]} : vector<8x192xf32> to vector<8x64xf32>
    %152 = arith.mulf %151, %130 : vector<8x64xf32>
    %153 = vector.extract_strided_slice %148 {offsets = [0, 0], sizes = [8, 64], strides = [1, 1]} : vector<8x192xf32> to vector<8x64xf32>
    %154 = arith.mulf %153, %150 : vector<8x64xf32>
    %155 = arith.addf %152, %154 : vector<8x64xf32>
    %156 = vector.extract_strided_slice %148 {offsets = [0, 128], sizes = [8, 64], strides = [1, 1]} : vector<8x192xf32> to vector<8x64xf32>
    %157 = math.tanh %155 : vector<8x64xf32>
    %158 = arith.mulf %156, %157 : vector<8x64xf32>
    %159 = vector.extract_strided_slice %158 {offsets = [0, 0], sizes = [8, 32], strides = [1, 1]} : vector<8x64xf32> to vector<8x32xf32>
    %c40_63 = arith.constant 40 : index
    %c0_64 = arith.constant 0 : index
    %160 = vector.load %arg5[%c40_63, %c0_64] : memref<64x32xf32, #tpu.memory_space<vmem>>, vector<8x32xf32>
    tpu.vector_store %arg5[%c40_63, %c0_64], %159 {strides = array<i32>} : memref<64x32xf32, #tpu.memory_space<vmem>>, vector<8x32xf32>,
    %161 = vector.extract_strided_slice %158 {offsets = [0, 32], sizes = [8, 32], strides = [1, 1]} : vector<8x64xf32> to vector<8x32xf32>
    %c16_65 = arith.constant 16 : index
    %c0_66 = arith.constant 0 : index
    %162 = vector.load %arg6[%c16_65, %c0_66] : memref<64x32xf32, #tpu.memory_space<vmem>>, vector<8x32xf32>
    tpu.vector_store %arg6[%c16_65, %c0_66], %161 {strides = array<i32>} : memref<64x32xf32, #tpu.memory_space<vmem>>, vector<8x32xf32>,
    %c48_67 = arith.constant 48 : index
    %c0_68 = arith.constant 0 : index
    %163 = vector.load %arg3[%c48_67, %c0_68] : memref<64x256xf32, #tpu.memory_space<vmem>>, vector<8x256xf32>
    %c8_69 = arith.constant 8 : index
    %c0_70 = arith.constant 0 : index
    %164 = vector.load %arg4[%c8_69, %c0_70] : memref<64x256xf32, #tpu.memory_space<vmem>>, vector<8x256xf32>
    %165 = arith.addf %163, %164 : vector<8x256xf32>
    %cst_71 = arith.constant dense<0.000000e+00> : vector<8x256xf32>
    %166 = tpu.matmul %158, %0, %cst_71 {dimension_numbers = #tpu.dot_dimension_numbers<[1], [0], [0], [1], [0, 0, 1, 1], [], []>} : vector<8x64xf32>, vector<64x256xf32>, vector<8x256xf32> -> vector<8x256xf32>
    %167 = arith.addf %165, %166 : vector<8x256xf32>
    %168 = vector.extract_strided_slice %167 {offsets = [0, 0], sizes = [8, 192], strides = [1, 1]} : vector<8x256xf32> to vector<8x192xf32>
    %169 = arith.negf %168 : vector<8x192xf32>
    %170 = math.exp %169 : vector<8x192xf32>
    %cst_72 = arith.constant 1.000000e+00 : f32
    %171 = vector.broadcast %cst_72 : f32 to vector<8x192xf32>
    %172 = arith.addf %171, %170 : vector<8x192xf32>
    %173 = arith.divf %171, %172 : vector<8x192xf32>
    %174 = vector.extract_strided_slice %167 {offsets = [0, 192], sizes = [8, 64], strides = [1, 1]} : vector<8x256xf32> to vector<8x64xf32>
    %175 = math.tanh %174 : vector<8x64xf32>
    %176 = vector.extract_strided_slice %173 {offsets = [0, 64], sizes = [8, 64], strides = [1, 1]} : vector<8x192xf32> to vector<8x64xf32>
    %177 = arith.mulf %176, %155 : vector<8x64xf32>
    %178 = vector.extract_strided_slice %173 {offsets = [0, 0], sizes = [8, 64], strides = [1, 1]} : vector<8x192xf32> to vector<8x64xf32>
    %179 = arith.mulf %178, %175 : vector<8x64xf32>
    %180 = arith.addf %177, %179 : vector<8x64xf32>
    %181 = vector.extract_strided_slice %173 {offsets = [0, 128], sizes = [8, 64], strides = [1, 1]} : vector<8x192xf32> to vector<8x64xf32>
    %182 = math.tanh %180 : vector<8x64xf32>
    %183 = arith.mulf %181, %182 : vector<8x64xf32>
    %184 = vector.extract_strided_slice %183 {offsets = [0, 0], sizes = [8, 32], strides = [1, 1]} : vector<8x64xf32> to vector<8x32xf32>
    %c48_73 = arith.constant 48 : index
    %c0_74 = arith.constant 0 : index
    %185 = vector.load %arg5[%c48_73, %c0_74] : memref<64x32xf32, #tpu.memory_space<vmem>>, vector<8x32xf32>
    tpu.vector_store %arg5[%c48_73, %c0_74], %184 {strides = array<i32>} : memref<64x32xf32, #tpu.memory_space<vmem>>, vector<8x32xf32>,
    %186 = vector.extract_strided_slice %183 {offsets = [0, 32], sizes = [8, 32], strides = [1, 1]} : vector<8x64xf32> to vector<8x32xf32>
    %c8_75 = arith.constant 8 : index
    %c0_76 = arith.constant 0 : index
    %187 = vector.load %arg6[%c8_75, %c0_76] : memref<64x32xf32, #tpu.memory_space<vmem>>, vector<8x32xf32>
    tpu.vector_store %arg6[%c8_75, %c0_76], %186 {strides = array<i32>} : memref<64x32xf32, #tpu.memory_space<vmem>>, vector<8x32xf32>,
    %c56_77 = arith.constant 56 : index
    %c0_78 = arith.constant 0 : index
    %188 = vector.load %arg3[%c56_77, %c0_78] : memref<64x256xf32, #tpu.memory_space<vmem>>, vector<8x256xf32>
    %c0_79 = arith.constant 0 : index
    %c0_80 = arith.constant 0 : index
    %189 = vector.load %arg4[%c0_79, %c0_80] : memref<64x256xf32, #tpu.memory_space<vmem>>, vector<8x256xf32>
    %190 = arith.addf %188, %189 : vector<8x256xf32>
    %cst_81 = arith.constant dense<0.000000e+00> : vector<8x256xf32>
    %191 = tpu.matmul %183, %0, %cst_81 {dimension_numbers = #tpu.dot_dimension_numbers<[1], [0], [0], [1], [0, 0, 1, 1], [], []>} : vector<8x64xf32>, vector<64x256xf32>, vector<8x256xf32> -> vector<8x256xf32>
    %192 = arith.addf %190, %191 : vector<8x256xf32>
    %193 = vector.extract_strided_slice %192 {offsets = [0, 0], sizes = [8, 192], strides = [1, 1]} : vector<8x256xf32> to vector<8x192xf32>
    %194 = arith.negf %193 : vector<8x192xf32>
    %195 = math.exp %194 : vector<8x192xf32>
    %cst_82 = arith.constant 1.000000e+00 : f32
    %196 = vector.broadcast %cst_82 : f32 to vector<8x192xf32>
    %197 = arith.addf %196, %195 : vector<8x192xf32>
    %198 = arith.divf %196, %197 : vector<8x192xf32>
    %199 = vector.extract_strided_slice %192 {offsets = [0, 192], sizes = [8, 64], strides = [1, 1]} : vector<8x256xf32> to vector<8x64xf32>
    %200 = math.tanh %199 : vector<8x64xf32>
    %201 = vector.extract_strided_slice %198 {offsets = [0, 64], sizes = [8, 64], strides = [1, 1]} : vector<8x192xf32> to vector<8x64xf32>
    %202 = arith.mulf %201, %180 : vector<8x64xf32>
    %203 = vector.extract_strided_slice %198 {offsets = [0, 0], sizes = [8, 64], strides = [1, 1]} : vector<8x192xf32> to vector<8x64xf32>
    %204 = arith.mulf %203, %200 : vector<8x64xf32>
    %205 = arith.addf %202, %204 : vector<8x64xf32>
    %206 = vector.extract_strided_slice %198 {offsets = [0, 128], sizes = [8, 64], strides = [1, 1]} : vector<8x192xf32> to vector<8x64xf32>
    %207 = math.tanh %205 : vector<8x64xf32>
    %208 = arith.mulf %206, %207 : vector<8x64xf32>
    %209 = vector.extract_strided_slice %208 {offsets = [0, 0], sizes = [8, 32], strides = [1, 1]} : vector<8x64xf32> to vector<8x32xf32>
    %c56_83 = arith.constant 56 : index
    %c0_84 = arith.constant 0 : index
    %210 = vector.load %arg5[%c56_83, %c0_84] : memref<64x32xf32, #tpu.memory_space<vmem>>, vector<8x32xf32>
    tpu.vector_store %arg5[%c56_83, %c0_84], %209 {strides = array<i32>} : memref<64x32xf32, #tpu.memory_space<vmem>>, vector<8x32xf32>,
    %211 = vector.extract_strided_slice %208 {offsets = [0, 32], sizes = [8, 32], strides = [1, 1]} : vector<8x64xf32> to vector<8x32xf32>
    %c0_85 = arith.constant 0 : index
    %c0_86 = arith.constant 0 : index
    %212 = vector.load %arg6[%c0_85, %c0_86] : memref<64x32xf32, #tpu.memory_space<vmem>>, vector<8x32xf32>
    tpu.vector_store %arg6[%c0_85, %c0_86], %211 {strides = array<i32>} : memref<64x32xf32, #tpu.memory_space<vmem>>, vector<8x32xf32>,
    %c224 = arith.constant 224 : index
    %c0_87 = arith.constant 0 : index
    %213 = vector.load %arg1[%c224, %c0_87] : memref<856x256xf32, #tpu.memory_space<vmem>>, vector<64x256xf32>
    %c288 = arith.constant 288 : index
    %c0_88 = arith.constant 0 : index
    %214 = vector.load %arg1[%c288, %c0_88] : memref<856x256xf32, #tpu.memory_space<vmem>>, vector<1x256xf32>
    %c296 = arith.constant 296 : index
    %c0_89 = arith.constant 0 : index
    %215 = vector.load %arg1[%c296, %c0_89] : memref<856x256xf32, #tpu.memory_space<vmem>>, vector<1x256xf32>
    %c0_90 = arith.constant 0 : index
    %c0_91 = arith.constant 0 : index
    %216 = vector.load %arg5[%c0_90, %c0_91] : memref<64x32xf32, #tpu.memory_space<vmem>>, vector<64x32xf32>
    %c0_92 = arith.constant 0 : index
    %c0_93 = arith.constant 0 : index
    %217 = vector.load %arg6[%c0_92, %c0_93] : memref<64x32xf32, #tpu.memory_space<vmem>>, vector<64x32xf32>
    %c96 = arith.constant 96 : index
    %c0_94 = arith.constant 0 : index
    %218 = vector.load %arg1[%c96, %c0_94] : memref<856x256xf32, #tpu.memory_space<vmem>>, vector<32x256xf32>
    %c128 = arith.constant 128 : index
    %c0_95 = arith.constant 0 : index
    %219 = vector.load %arg1[%c128, %c0_95] : memref<856x256xf32, #tpu.memory_space<vmem>>, vector<32x256xf32>
    %c160 = arith.constant 160 : index
    %c0_96 = arith.constant 0 : index
    %220 = vector.load %arg1[%c160, %c0_96] : memref<856x256xf32, #tpu.memory_space<vmem>>, vector<32x256xf32>
    %c192 = arith.constant 192 : index
    %c0_97 = arith.constant 0 : index
    %221 = vector.load %arg1[%c192, %c0_97] : memref<856x256xf32, #tpu.memory_space<vmem>>, vector<32x256xf32>
    %cst_98 = arith.constant dense<0.000000e+00> : vector<64x256xf32>
    %222 = tpu.matmul %216, %218, %cst_98 {dimension_numbers = #tpu.dot_dimension_numbers<[1], [0], [0], [1], [0, 0, 1, 1], [], []>} : vector<64x32xf32>, vector<32x256xf32>, vector<64x256xf32> -> vector<64x256xf32>
    %cst_99 = arith.constant dense<0.000000e+00> : vector<64x256xf32>
    %223 = tpu.matmul %217, %219, %cst_99 {dimension_numbers = #tpu.dot_dimension_numbers<[1], [0], [0], [1], [0, 0, 1, 1], [], []>} : vector<64x32xf32>, vector<32x256xf32>, vector<64x256xf32> -> vector<64x256xf32>
    %224 = arith.addf %222, %223 : vector<64x256xf32>
    %225 = vector.broadcast %214 : vector<1x256xf32> to vector<64x256xf32>
    %226 = arith.addf %224, %225 : vector<64x256xf32>
    %c0_100 = arith.constant 0 : index
    %c0_101 = arith.constant 0 : index
    %227 = vector.load %arg3[%c0_100, %c0_101] : memref<64x256xf32, #tpu.memory_space<vmem>>, vector<64x256xf32>
    tpu.vector_store %arg3[%c0_100, %c0_101], %226 {strides = array<i32>} : memref<64x256xf32, #tpu.memory_space<vmem>>, vector<64x256xf32>,
    %cst_102 = arith.constant dense<0.000000e+00> : vector<64x256xf32>
    %228 = tpu.matmul %216, %220, %cst_102 {dimension_numbers = #tpu.dot_dimension_numbers<[1], [0], [0], [1], [0, 0, 1, 1], [], []>} : vector<64x32xf32>, vector<32x256xf32>, vector<64x256xf32> -> vector<64x256xf32>
    %cst_103 = arith.constant dense<0.000000e+00> : vector<64x256xf32>
    %229 = tpu.matmul %217, %221, %cst_103 {dimension_numbers = #tpu.dot_dimension_numbers<[1], [0], [0], [1], [0, 0, 1, 1], [], []>} : vector<64x32xf32>, vector<32x256xf32>, vector<64x256xf32> -> vector<64x256xf32>
    %230 = arith.addf %228, %229 : vector<64x256xf32>
    %231 = vector.broadcast %215 : vector<1x256xf32> to vector<64x256xf32>
    %232 = arith.addf %230, %231 : vector<64x256xf32>
    %c0_104 = arith.constant 0 : index
    %c0_105 = arith.constant 0 : index
    %233 = vector.load %arg4[%c0_104, %c0_105] : memref<64x256xf32, #tpu.memory_space<vmem>>, vector<64x256xf32>
    tpu.vector_store %arg4[%c0_104, %c0_105], %232 {strides = array<i32>} : memref<64x256xf32, #tpu.memory_space<vmem>>, vector<64x256xf32>,
    %cst_106 = arith.constant 0.000000e+00 : f32
    %234 = vector.broadcast %cst_106 : f32 to vector<8x64xf32>
    %c0_107 = arith.constant 0 : index
    %c0_108 = arith.constant 0 : index
    %235 = vector.load %arg3[%c0_107, %c0_108] : memref<64x256xf32, #tpu.memory_space<vmem>>, vector<8x256xf32>
    %c56_109 = arith.constant 56 : index
    %c0_110 = arith.constant 0 : index
    %236 = vector.load %arg4[%c56_109, %c0_110] : memref<64x256xf32, #tpu.memory_space<vmem>>, vector<8x256xf32>
    %237 = arith.addf %235, %236 : vector<8x256xf32>
    %238 = vector.extract_strided_slice %237 {offsets = [0, 0], sizes = [8, 192], strides = [1, 1]} : vector<8x256xf32> to vector<8x192xf32>
    %239 = arith.negf %238 : vector<8x192xf32>
    %240 = math.exp %239 : vector<8x192xf32>
    %cst_111 = arith.constant 1.000000e+00 : f32
    %241 = vector.broadcast %cst_111 : f32 to vector<8x192xf32>
    %242 = arith.addf %241, %240 : vector<8x192xf32>
    %243 = arith.divf %241, %242 : vector<8x192xf32>
    %244 = vector.extract_strided_slice %237 {offsets = [0, 192], sizes = [8, 64], strides = [1, 1]} : vector<8x256xf32> to vector<8x64xf32>
    %245 = math.tanh %244 : vector<8x64xf32>
    %246 = vector.extract_strided_slice %243 {offsets = [0, 64], sizes = [8, 64], strides = [1, 1]} : vector<8x192xf32> to vector<8x64xf32>
    %247 = arith.mulf %246, %234 : vector<8x64xf32>
    %248 = vector.extract_strided_slice %243 {offsets = [0, 0], sizes = [8, 64], strides = [1, 1]} : vector<8x192xf32> to vector<8x64xf32>
    %249 = arith.mulf %248, %245 : vector<8x64xf32>
    %250 = arith.addf %247, %249 : vector<8x64xf32>
    %251 = vector.extract_strided_slice %243 {offsets = [0, 128], sizes = [8, 64], strides = [1, 1]} : vector<8x192xf32> to vector<8x64xf32>
    %252 = math.tanh %250 : vector<8x64xf32>
    %253 = arith.mulf %251, %252 : vector<8x64xf32>
    %254 = vector.extract_strided_slice %253 {offsets = [0, 0], sizes = [8, 32], strides = [1, 1]} : vector<8x64xf32> to vector<8x32xf32>
    %c0_112 = arith.constant 0 : index
    %c0_113 = arith.constant 0 : index
    %255 = vector.load %arg5[%c0_112, %c0_113] : memref<64x32xf32, #tpu.memory_space<vmem>>, vector<8x32xf32>
    tpu.vector_store %arg5[%c0_112, %c0_113], %254 {strides = array<i32>} : memref<64x32xf32, #tpu.memory_space<vmem>>, vector<8x32xf32>,
    %256 = vector.extract_strided_slice %253 {offsets = [0, 32], sizes = [8, 32], strides = [1, 1]} : vector<8x64xf32> to vector<8x32xf32>
    %c56_114 = arith.constant 56 : index
    %c0_115 = arith.constant 0 : index
    %257 = vector.load %arg6[%c56_114, %c0_115] : memref<64x32xf32, #tpu.memory_space<vmem>>, vector<8x32xf32>
    tpu.vector_store %arg6[%c56_114, %c0_115], %256 {strides = array<i32>} : memref<64x32xf32, #tpu.memory_space<vmem>>, vector<8x32xf32>,
    %c8_116 = arith.constant 8 : index
    %c0_117 = arith.constant 0 : index
    %258 = vector.load %arg3[%c8_116, %c0_117] : memref<64x256xf32, #tpu.memory_space<vmem>>, vector<8x256xf32>
    %c48_118 = arith.constant 48 : index
    %c0_119 = arith.constant 0 : index
    %259 = vector.load %arg4[%c48_118, %c0_119] : memref<64x256xf32, #tpu.memory_space<vmem>>, vector<8x256xf32>
    %260 = arith.addf %258, %259 : vector<8x256xf32>
    %cst_120 = arith.constant dense<0.000000e+00> : vector<8x256xf32>
    %261 = tpu.matmul %253, %213, %cst_120 {dimension_numbers = #tpu.dot_dimension_numbers<[1], [0], [0], [1], [0, 0, 1, 1], [], []>} : vector<8x64xf32>, vector<64x256xf32>, vector<8x256xf32> -> vector<8x256xf32>
    %262 = arith.addf %260, %261 : vector<8x256xf32>
    %263 = vector.extract_strided_slice %262 {offsets = [0, 0], sizes = [8, 192], strides = [1, 1]} : vector<8x256xf32> to vector<8x192xf32>
    %264 = arith.negf %263 : vector<8x192xf32>
    %265 = math.exp %264 : vector<8x192xf32>
    %cst_121 = arith.constant 1.000000e+00 : f32
    %266 = vector.broadcast %cst_121 : f32 to vector<8x192xf32>
    %267 = arith.addf %266, %265 : vector<8x192xf32>
    %268 = arith.divf %266, %267 : vector<8x192xf32>
    %269 = vector.extract_strided_slice %262 {offsets = [0, 192], sizes = [8, 64], strides = [1, 1]} : vector<8x256xf32> to vector<8x64xf32>
    %270 = math.tanh %269 : vector<8x64xf32>
    %271 = vector.extract_strided_slice %268 {offsets = [0, 64], sizes = [8, 64], strides = [1, 1]} : vector<8x192xf32> to vector<8x64xf32>
    %272 = arith.mulf %271, %250 : vector<8x64xf32>
    %273 = vector.extract_strided_slice %268 {offsets = [0, 0], sizes = [8, 64], strides = [1, 1]} : vector<8x192xf32> to vector<8x64xf32>
    %274 = arith.mulf %273, %270 : vector<8x64xf32>
    %275 = arith.addf %272, %274 : vector<8x64xf32>
    %276 = vector.extract_strided_slice %268 {offsets = [0, 128], sizes = [8, 64], strides = [1, 1]} : vector<8x192xf32> to vector<8x64xf32>
    %277 = math.tanh %275 : vector<8x64xf32>
    %278 = arith.mulf %276, %277 : vector<8x64xf32>
    %279 = vector.extract_strided_slice %278 {offsets = [0, 0], sizes = [8, 32], strides = [1, 1]} : vector<8x64xf32> to vector<8x32xf32>
    %c8_122 = arith.constant 8 : index
    %c0_123 = arith.constant 0 : index
    %280 = vector.load %arg5[%c8_122, %c0_123] : memref<64x32xf32, #tpu.memory_space<vmem>>, vector<8x32xf32>
    tpu.vector_store %arg5[%c8_122, %c0_123], %279 {strides = array<i32>} : memref<64x32xf32, #tpu.memory_space<vmem>>, vector<8x32xf32>,
    %281 = vector.extract_strided_slice %278 {offsets = [0, 32], sizes = [8, 32], strides = [1, 1]} : vector<8x64xf32> to vector<8x32xf32>
    %c48_124 = arith.constant 48 : index
    %c0_125 = arith.constant 0 : index
    %282 = vector.load %arg6[%c48_124, %c0_125] : memref<64x32xf32, #tpu.memory_space<vmem>>, vector<8x32xf32>
    tpu.vector_store %arg6[%c48_124, %c0_125], %281 {strides = array<i32>} : memref<64x32xf32, #tpu.memory_space<vmem>>, vector<8x32xf32>,
    %c16_126 = arith.constant 16 : index
    %c0_127 = arith.constant 0 : index
    %283 = vector.load %arg3[%c16_126, %c0_127] : memref<64x256xf32, #tpu.memory_space<vmem>>, vector<8x256xf32>
    %c40_128 = arith.constant 40 : index
    %c0_129 = arith.constant 0 : index
    %284 = vector.load %arg4[%c40_128, %c0_129] : memref<64x256xf32, #tpu.memory_space<vmem>>, vector<8x256xf32>
    %285 = arith.addf %283, %284 : vector<8x256xf32>
    %cst_130 = arith.constant dense<0.000000e+00> : vector<8x256xf32>
    %286 = tpu.matmul %278, %213, %cst_130 {dimension_numbers = #tpu.dot_dimension_numbers<[1], [0], [0], [1], [0, 0, 1, 1], [], []>} : vector<8x64xf32>, vector<64x256xf32>, vector<8x256xf32> -> vector<8x256xf32>
    %287 = arith.addf %285, %286 : vector<8x256xf32>
    %288 = vector.extract_strided_slice %287 {offsets = [0, 0], sizes = [8, 192], strides = [1, 1]} : vector<8x256xf32> to vector<8x192xf32>
    %289 = arith.negf %288 : vector<8x192xf32>
    %290 = math.exp %289 : vector<8x192xf32>
    %cst_131 = arith.constant 1.000000e+00 : f32
    %291 = vector.broadcast %cst_131 : f32 to vector<8x192xf32>
    %292 = arith.addf %291, %290 : vector<8x192xf32>
    %293 = arith.divf %291, %292 : vector<8x192xf32>
    %294 = vector.extract_strided_slice %287 {offsets = [0, 192], sizes = [8, 64], strides = [1, 1]} : vector<8x256xf32> to vector<8x64xf32>
    %295 = math.tanh %294 : vector<8x64xf32>
    %296 = vector.extract_strided_slice %293 {offsets = [0, 64], sizes = [8, 64], strides = [1, 1]} : vector<8x192xf32> to vector<8x64xf32>
    %297 = arith.mulf %296, %275 : vector<8x64xf32>
    %298 = vector.extract_strided_slice %293 {offsets = [0, 0], sizes = [8, 64], strides = [1, 1]} : vector<8x192xf32> to vector<8x64xf32>
    %299 = arith.mulf %298, %295 : vector<8x64xf32>
    %300 = arith.addf %297, %299 : vector<8x64xf32>
    %301 = vector.extract_strided_slice %293 {offsets = [0, 128], sizes = [8, 64], strides = [1, 1]} : vector<8x192xf32> to vector<8x64xf32>
    %302 = math.tanh %300 : vector<8x64xf32>
    %303 = arith.mulf %301, %302 : vector<8x64xf32>
    %304 = vector.extract_strided_slice %303 {offsets = [0, 0], sizes = [8, 32], strides = [1, 1]} : vector<8x64xf32> to vector<8x32xf32>
    %c16_132 = arith.constant 16 : index
    %c0_133 = arith.constant 0 : index
    %305 = vector.load %arg5[%c16_132, %c0_133] : memref<64x32xf32, #tpu.memory_space<vmem>>, vector<8x32xf32>
    tpu.vector_store %arg5[%c16_132, %c0_133], %304 {strides = array<i32>} : memref<64x32xf32, #tpu.memory_space<vmem>>, vector<8x32xf32>,
    %306 = vector.extract_strided_slice %303 {offsets = [0, 32], sizes = [8, 32], strides = [1, 1]} : vector<8x64xf32> to vector<8x32xf32>
    %c40_134 = arith.constant 40 : index
    %c0_135 = arith.constant 0 : index
    %307 = vector.load %arg6[%c40_134, %c0_135] : memref<64x32xf32, #tpu.memory_space<vmem>>, vector<8x32xf32>
    tpu.vector_store %arg6[%c40_134, %c0_135], %306 {strides = array<i32>} : memref<64x32xf32, #tpu.memory_space<vmem>>, vector<8x32xf32>,
    %c24_136 = arith.constant 24 : index
    %c0_137 = arith.constant 0 : index
    %308 = vector.load %arg3[%c24_136, %c0_137] : memref<64x256xf32, #tpu.memory_space<vmem>>, vector<8x256xf32>
    %c32_138 = arith.constant 32 : index
    %c0_139 = arith.constant 0 : index
    %309 = vector.load %arg4[%c32_138, %c0_139] : memref<64x256xf32, #tpu.memory_space<vmem>>, vector<8x256xf32>
    %310 = arith.addf %308, %309 : vector<8x256xf32>
    %cst_140 = arith.constant dense<0.000000e+00> : vector<8x256xf32>
    %311 = tpu.matmul %303, %213, %cst_140 {dimension_numbers = #tpu.dot_dimension_numbers<[1], [0], [0], [1], [0, 0, 1, 1], [], []>} : vector<8x64xf32>, vector<64x256xf32>, vector<8x256xf32> -> vector<8x256xf32>
    %312 = arith.addf %310, %311 : vector<8x256xf32>
    %313 = vector.extract_strided_slice %312 {offsets = [0, 0], sizes = [8, 192], strides = [1, 1]} : vector<8x256xf32> to vector<8x192xf32>
    %314 = arith.negf %313 : vector<8x192xf32>
    %315 = math.exp %314 : vector<8x192xf32>
    %cst_141 = arith.constant 1.000000e+00 : f32
    %316 = vector.broadcast %cst_141 : f32 to vector<8x192xf32>
    %317 = arith.addf %316, %315 : vector<8x192xf32>
    %318 = arith.divf %316, %317 : vector<8x192xf32>
    %319 = vector.extract_strided_slice %312 {offsets = [0, 192], sizes = [8, 64], strides = [1, 1]} : vector<8x256xf32> to vector<8x64xf32>
    %320 = math.tanh %319 : vector<8x64xf32>
    %321 = vector.extract_strided_slice %318 {offsets = [0, 64], sizes = [8, 64], strides = [1, 1]} : vector<8x192xf32> to vector<8x64xf32>
    %322 = arith.mulf %321, %300 : vector<8x64xf32>
    %323 = vector.extract_strided_slice %318 {offsets = [0, 0], sizes = [8, 64], strides = [1, 1]} : vector<8x192xf32> to vector<8x64xf32>
    %324 = arith.mulf %323, %320 : vector<8x64xf32>
    %325 = arith.addf %322, %324 : vector<8x64xf32>
    %326 = vector.extract_strided_slice %318 {offsets = [0, 128], sizes = [8, 64], strides = [1, 1]} : vector<8x192xf32> to vector<8x64xf32>
    %327 = math.tanh %325 : vector<8x64xf32>
    %328 = arith.mulf %326, %327 : vector<8x64xf32>
    %329 = vector.extract_strided_slice %328 {offsets = [0, 0], sizes = [8, 32], strides = [1, 1]} : vector<8x64xf32> to vector<8x32xf32>
    %c24_142 = arith.constant 24 : index
    %c0_143 = arith.constant 0 : index
    %330 = vector.load %arg5[%c24_142, %c0_143] : memref<64x32xf32, #tpu.memory_space<vmem>>, vector<8x32xf32>
    tpu.vector_store %arg5[%c24_142, %c0_143], %329 {strides = array<i32>} : memref<64x32xf32, #tpu.memory_space<vmem>>, vector<8x32xf32>,
    %331 = vector.extract_strided_slice %328 {offsets = [0, 32], sizes = [8, 32], strides = [1, 1]} : vector<8x64xf32> to vector<8x32xf32>
    %c32_144 = arith.constant 32 : index
    %c0_145 = arith.constant 0 : index
    %332 = vector.load %arg6[%c32_144, %c0_145] : memref<64x32xf32, #tpu.memory_space<vmem>>, vector<8x32xf32>
    tpu.vector_store %arg6[%c32_144, %c0_145], %331 {strides = array<i32>} : memref<64x32xf32, #tpu.memory_space<vmem>>, vector<8x32xf32>,
    %c32_146 = arith.constant 32 : index
    %c0_147 = arith.constant 0 : index
    %333 = vector.load %arg3[%c32_146, %c0_147] : memref<64x256xf32, #tpu.memory_space<vmem>>, vector<8x256xf32>
    %c24_148 = arith.constant 24 : index
    %c0_149 = arith.constant 0 : index
    %334 = vector.load %arg4[%c24_148, %c0_149] : memref<64x256xf32, #tpu.memory_space<vmem>>, vector<8x256xf32>
    %335 = arith.addf %333, %334 : vector<8x256xf32>
    %cst_150 = arith.constant dense<0.000000e+00> : vector<8x256xf32>
    %336 = tpu.matmul %328, %213, %cst_150 {dimension_numbers = #tpu.dot_dimension_numbers<[1], [0], [0], [1], [0, 0, 1, 1], [], []>} : vector<8x64xf32>, vector<64x256xf32>, vector<8x256xf32> -> vector<8x256xf32>
    %337 = arith.addf %335, %336 : vector<8x256xf32>
    %338 = vector.extract_strided_slice %337 {offsets = [0, 0], sizes = [8, 192], strides = [1, 1]} : vector<8x256xf32> to vector<8x192xf32>
    %339 = arith.negf %338 : vector<8x192xf32>
    %340 = math.exp %339 : vector<8x192xf32>
    %cst_151 = arith.constant 1.000000e+00 : f32
    %341 = vector.broadcast %cst_151 : f32 to vector<8x192xf32>
    %342 = arith.addf %341, %340 : vector<8x192xf32>
    %343 = arith.divf %341, %342 : vector<8x192xf32>
    %344 = vector.extract_strided_slice %337 {offsets = [0, 192], sizes = [8, 64], strides = [1, 1]} : vector<8x256xf32> to vector<8x64xf32>
    %345 = math.tanh %344 : vector<8x64xf32>
    %346 = vector.extract_strided_slice %343 {offsets = [0, 64], sizes = [8, 64], strides = [1, 1]} : vector<8x192xf32> to vector<8x64xf32>
    %347 = arith.mulf %346, %325 : vector<8x64xf32>
    %348 = vector.extract_strided_slice %343 {offsets = [0, 0], sizes = [8, 64], strides = [1, 1]} : vector<8x192xf32> to vector<8x64xf32>
    %349 = arith.mulf %348, %345 : vector<8x64xf32>
    %350 = arith.addf %347, %349 : vector<8x64xf32>
    %351 = vector.extract_strided_slice %343 {offsets = [0, 128], sizes = [8, 64], strides = [1, 1]} : vector<8x192xf32> to vector<8x64xf32>
    %352 = math.tanh %350 : vector<8x64xf32>
    %353 = arith.mulf %351, %352 : vector<8x64xf32>
    %354 = vector.extract_strided_slice %353 {offsets = [0, 0], sizes = [8, 32], strides = [1, 1]} : vector<8x64xf32> to vector<8x32xf32>
    %c32_152 = arith.constant 32 : index
    %c0_153 = arith.constant 0 : index
    %355 = vector.load %arg5[%c32_152, %c0_153] : memref<64x32xf32, #tpu.memory_space<vmem>>, vector<8x32xf32>
    tpu.vector_store %arg5[%c32_152, %c0_153], %354 {strides = array<i32>} : memref<64x32xf32, #tpu.memory_space<vmem>>, vector<8x32xf32>,
    %356 = vector.extract_strided_slice %353 {offsets = [0, 32], sizes = [8, 32], strides = [1, 1]} : vector<8x64xf32> to vector<8x32xf32>
    %c24_154 = arith.constant 24 : index
    %c0_155 = arith.constant 0 : index
    %357 = vector.load %arg6[%c24_154, %c0_155] : memref<64x32xf32, #tpu.memory_space<vmem>>, vector<8x32xf32>
    tpu.vector_store %arg6[%c24_154, %c0_155], %356 {strides = array<i32>} : memref<64x32xf32, #tpu.memory_space<vmem>>, vector<8x32xf32>,
    %c40_156 = arith.constant 40 : index
    %c0_157 = arith.constant 0 : index
    %358 = vector.load %arg3[%c40_156, %c0_157] : memref<64x256xf32, #tpu.memory_space<vmem>>, vector<8x256xf32>
    %c16_158 = arith.constant 16 : index
    %c0_159 = arith.constant 0 : index
    %359 = vector.load %arg4[%c16_158, %c0_159] : memref<64x256xf32, #tpu.memory_space<vmem>>, vector<8x256xf32>
    %360 = arith.addf %358, %359 : vector<8x256xf32>
    %cst_160 = arith.constant dense<0.000000e+00> : vector<8x256xf32>
    %361 = tpu.matmul %353, %213, %cst_160 {dimension_numbers = #tpu.dot_dimension_numbers<[1], [0], [0], [1], [0, 0, 1, 1], [], []>} : vector<8x64xf32>, vector<64x256xf32>, vector<8x256xf32> -> vector<8x256xf32>
    %362 = arith.addf %360, %361 : vector<8x256xf32>
    %363 = vector.extract_strided_slice %362 {offsets = [0, 0], sizes = [8, 192], strides = [1, 1]} : vector<8x256xf32> to vector<8x192xf32>
    %364 = arith.negf %363 : vector<8x192xf32>
    %365 = math.exp %364 : vector<8x192xf32>
    %cst_161 = arith.constant 1.000000e+00 : f32
    %366 = vector.broadcast %cst_161 : f32 to vector<8x192xf32>
    %367 = arith.addf %366, %365 : vector<8x192xf32>
    %368 = arith.divf %366, %367 : vector<8x192xf32>
    %369 = vector.extract_strided_slice %362 {offsets = [0, 192], sizes = [8, 64], strides = [1, 1]} : vector<8x256xf32> to vector<8x64xf32>
    %370 = math.tanh %369 : vector<8x64xf32>
    %371 = vector.extract_strided_slice %368 {offsets = [0, 64], sizes = [8, 64], strides = [1, 1]} : vector<8x192xf32> to vector<8x64xf32>
    %372 = arith.mulf %371, %350 : vector<8x64xf32>
    %373 = vector.extract_strided_slice %368 {offsets = [0, 0], sizes = [8, 64], strides = [1, 1]} : vector<8x192xf32> to vector<8x64xf32>
    %374 = arith.mulf %373, %370 : vector<8x64xf32>
    %375 = arith.addf %372, %374 : vector<8x64xf32>
    %376 = vector.extract_strided_slice %368 {offsets = [0, 128], sizes = [8, 64], strides = [1, 1]} : vector<8x192xf32> to vector<8x64xf32>
    %377 = math.tanh %375 : vector<8x64xf32>
    %378 = arith.mulf %376, %377 : vector<8x64xf32>
    %379 = vector.extract_strided_slice %378 {offsets = [0, 0], sizes = [8, 32], strides = [1, 1]} : vector<8x64xf32> to vector<8x32xf32>
    %c40_162 = arith.constant 40 : index
    %c0_163 = arith.constant 0 : index
    %380 = vector.load %arg5[%c40_162, %c0_163] : memref<64x32xf32, #tpu.memory_space<vmem>>, vector<8x32xf32>
    tpu.vector_store %arg5[%c40_162, %c0_163], %379 {strides = array<i32>} : memref<64x32xf32, #tpu.memory_space<vmem>>, vector<8x32xf32>,
    %381 = vector.extract_strided_slice %378 {offsets = [0, 32], sizes = [8, 32], strides = [1, 1]} : vector<8x64xf32> to vector<8x32xf32>
    %c16_164 = arith.constant 16 : index
    %c0_165 = arith.constant 0 : index
    %382 = vector.load %arg6[%c16_164, %c0_165] : memref<64x32xf32, #tpu.memory_space<vmem>>, vector<8x32xf32>
    tpu.vector_store %arg6[%c16_164, %c0_165], %381 {strides = array<i32>} : memref<64x32xf32, #tpu.memory_space<vmem>>, vector<8x32xf32>,
    %c48_166 = arith.constant 48 : index
    %c0_167 = arith.constant 0 : index
    %383 = vector.load %arg3[%c48_166, %c0_167] : memref<64x256xf32, #tpu.memory_space<vmem>>, vector<8x256xf32>
    %c8_168 = arith.constant 8 : index
    %c0_169 = arith.constant 0 : index
    %384 = vector.load %arg4[%c8_168, %c0_169] : memref<64x256xf32, #tpu.memory_space<vmem>>, vector<8x256xf32>
    %385 = arith.addf %383, %384 : vector<8x256xf32>
    %cst_170 = arith.constant dense<0.000000e+00> : vector<8x256xf32>
    %386 = tpu.matmul %378, %213, %cst_170 {dimension_numbers = #tpu.dot_dimension_numbers<[1], [0], [0], [1], [0, 0, 1, 1], [], []>} : vector<8x64xf32>, vector<64x256xf32>, vector<8x256xf32> -> vector<8x256xf32>
    %387 = arith.addf %385, %386 : vector<8x256xf32>
    %388 = vector.extract_strided_slice %387 {offsets = [0, 0], sizes = [8, 192], strides = [1, 1]} : vector<8x256xf32> to vector<8x192xf32>
    %389 = arith.negf %388 : vector<8x192xf32>
    %390 = math.exp %389 : vector<8x192xf32>
    %cst_171 = arith.constant 1.000000e+00 : f32
    %391 = vector.broadcast %cst_171 : f32 to vector<8x192xf32>
    %392 = arith.addf %391, %390 : vector<8x192xf32>
    %393 = arith.divf %391, %392 : vector<8x192xf32>
    %394 = vector.extract_strided_slice %387 {offsets = [0, 192], sizes = [8, 64], strides = [1, 1]} : vector<8x256xf32> to vector<8x64xf32>
    %395 = math.tanh %394 : vector<8x64xf32>
    %396 = vector.extract_strided_slice %393 {offsets = [0, 64], sizes = [8, 64], strides = [1, 1]} : vector<8x192xf32> to vector<8x64xf32>
    %397 = arith.mulf %396, %375 : vector<8x64xf32>
    %398 = vector.extract_strided_slice %393 {offsets = [0, 0], sizes = [8, 64], strides = [1, 1]} : vector<8x192xf32> to vector<8x64xf32>
    %399 = arith.mulf %398, %395 : vector<8x64xf32>
    %400 = arith.addf %397, %399 : vector<8x64xf32>
    %401 = vector.extract_strided_slice %393 {offsets = [0, 128], sizes = [8, 64], strides = [1, 1]} : vector<8x192xf32> to vector<8x64xf32>
    %402 = math.tanh %400 : vector<8x64xf32>
    %403 = arith.mulf %401, %402 : vector<8x64xf32>
    %404 = vector.extract_strided_slice %403 {offsets = [0, 0], sizes = [8, 32], strides = [1, 1]} : vector<8x64xf32> to vector<8x32xf32>
    %c48_172 = arith.constant 48 : index
    %c0_173 = arith.constant 0 : index
    %405 = vector.load %arg5[%c48_172, %c0_173] : memref<64x32xf32, #tpu.memory_space<vmem>>, vector<8x32xf32>
    tpu.vector_store %arg5[%c48_172, %c0_173], %404 {strides = array<i32>} : memref<64x32xf32, #tpu.memory_space<vmem>>, vector<8x32xf32>,
    %406 = vector.extract_strided_slice %403 {offsets = [0, 32], sizes = [8, 32], strides = [1, 1]} : vector<8x64xf32> to vector<8x32xf32>
    %c8_174 = arith.constant 8 : index
    %c0_175 = arith.constant 0 : index
    %407 = vector.load %arg6[%c8_174, %c0_175] : memref<64x32xf32, #tpu.memory_space<vmem>>, vector<8x32xf32>
    tpu.vector_store %arg6[%c8_174, %c0_175], %406 {strides = array<i32>} : memref<64x32xf32, #tpu.memory_space<vmem>>, vector<8x32xf32>,
    %c56_176 = arith.constant 56 : index
    %c0_177 = arith.constant 0 : index
    %408 = vector.load %arg3[%c56_176, %c0_177] : memref<64x256xf32, #tpu.memory_space<vmem>>, vector<8x256xf32>
    %c0_178 = arith.constant 0 : index
    %c0_179 = arith.constant 0 : index
    %409 = vector.load %arg4[%c0_178, %c0_179] : memref<64x256xf32, #tpu.memory_space<vmem>>, vector<8x256xf32>
    %410 = arith.addf %408, %409 : vector<8x256xf32>
    %cst_180 = arith.constant dense<0.000000e+00> : vector<8x256xf32>
    %411 = tpu.matmul %403, %213, %cst_180 {dimension_numbers = #tpu.dot_dimension_numbers<[1], [0], [0], [1], [0, 0, 1, 1], [], []>} : vector<8x64xf32>, vector<64x256xf32>, vector<8x256xf32> -> vector<8x256xf32>
    %412 = arith.addf %410, %411 : vector<8x256xf32>
    %413 = vector.extract_strided_slice %412 {offsets = [0, 0], sizes = [8, 192], strides = [1, 1]} : vector<8x256xf32> to vector<8x192xf32>
    %414 = arith.negf %413 : vector<8x192xf32>
    %415 = math.exp %414 : vector<8x192xf32>
    %cst_181 = arith.constant 1.000000e+00 : f32
    %416 = vector.broadcast %cst_181 : f32 to vector<8x192xf32>
    %417 = arith.addf %416, %415 : vector<8x192xf32>
    %418 = arith.divf %416, %417 : vector<8x192xf32>
    %419 = vector.extract_strided_slice %412 {offsets = [0, 192], sizes = [8, 64], strides = [1, 1]} : vector<8x256xf32> to vector<8x64xf32>
    %420 = math.tanh %419 : vector<8x64xf32>
    %421 = vector.extract_strided_slice %418 {offsets = [0, 64], sizes = [8, 64], strides = [1, 1]} : vector<8x192xf32> to vector<8x64xf32>
    %422 = arith.mulf %421, %400 : vector<8x64xf32>
    %423 = vector.extract_strided_slice %418 {offsets = [0, 0], sizes = [8, 64], strides = [1, 1]} : vector<8x192xf32> to vector<8x64xf32>
    %424 = arith.mulf %423, %420 : vector<8x64xf32>
    %425 = arith.addf %422, %424 : vector<8x64xf32>
    %426 = vector.extract_strided_slice %418 {offsets = [0, 128], sizes = [8, 64], strides = [1, 1]} : vector<8x192xf32> to vector<8x64xf32>
    %427 = math.tanh %425 : vector<8x64xf32>
    %428 = arith.mulf %426, %427 : vector<8x64xf32>
    %429 = vector.extract_strided_slice %428 {offsets = [0, 0], sizes = [8, 32], strides = [1, 1]} : vector<8x64xf32> to vector<8x32xf32>
    %c56_182 = arith.constant 56 : index
    %c0_183 = arith.constant 0 : index
    %430 = vector.load %arg5[%c56_182, %c0_183] : memref<64x32xf32, #tpu.memory_space<vmem>>, vector<8x32xf32>
    tpu.vector_store %arg5[%c56_182, %c0_183], %429 {strides = array<i32>} : memref<64x32xf32, #tpu.memory_space<vmem>>, vector<8x32xf32>,
    %431 = vector.extract_strided_slice %428 {offsets = [0, 32], sizes = [8, 32], strides = [1, 1]} : vector<8x64xf32> to vector<8x32xf32>
    %c0_184 = arith.constant 0 : index
    %c0_185 = arith.constant 0 : index
    %432 = vector.load %arg6[%c0_184, %c0_185] : memref<64x32xf32, #tpu.memory_space<vmem>>, vector<8x32xf32>
    tpu.vector_store %arg6[%c0_184, %c0_185], %431 {strides = array<i32>} : memref<64x32xf32, #tpu.memory_space<vmem>>, vector<8x32xf32>,
    %c432 = arith.constant 432 : index
    %c0_186 = arith.constant 0 : index
    %433 = vector.load %arg1[%c432, %c0_186] : memref<856x256xf32, #tpu.memory_space<vmem>>, vector<64x256xf32>
    %c496 = arith.constant 496 : index
    %c0_187 = arith.constant 0 : index
    %434 = vector.load %arg1[%c496, %c0_187] : memref<856x256xf32, #tpu.memory_space<vmem>>, vector<1x256xf32>
    %c504 = arith.constant 504 : index
    %c0_188 = arith.constant 0 : index
    %435 = vector.load %arg1[%c504, %c0_188] : memref<856x256xf32, #tpu.memory_space<vmem>>, vector<1x256xf32>
    %c0_189 = arith.constant 0 : index
    %c0_190 = arith.constant 0 : index
    %436 = vector.load %arg5[%c0_189, %c0_190] : memref<64x32xf32, #tpu.memory_space<vmem>>, vector<64x32xf32>
    %c0_191 = arith.constant 0 : index
    %c0_192 = arith.constant 0 : index
    %437 = vector.load %arg6[%c0_191, %c0_192] : memref<64x32xf32, #tpu.memory_space<vmem>>, vector<64x32xf32>
    %c304 = arith.constant 304 : index
    %c0_193 = arith.constant 0 : index
    %438 = vector.load %arg1[%c304, %c0_193] : memref<856x256xf32, #tpu.memory_space<vmem>>, vector<32x256xf32>
    %c336 = arith.constant 336 : index
    %c0_194 = arith.constant 0 : index
    %439 = vector.load %arg1[%c336, %c0_194] : memref<856x256xf32, #tpu.memory_space<vmem>>, vector<32x256xf32>
    %c368 = arith.constant 368 : index
    %c0_195 = arith.constant 0 : index
    %440 = vector.load %arg1[%c368, %c0_195] : memref<856x256xf32, #tpu.memory_space<vmem>>, vector<32x256xf32>
    %c400 = arith.constant 400 : index
    %c0_196 = arith.constant 0 : index
    %441 = vector.load %arg1[%c400, %c0_196] : memref<856x256xf32, #tpu.memory_space<vmem>>, vector<32x256xf32>
    %cst_197 = arith.constant dense<0.000000e+00> : vector<64x256xf32>
    %442 = tpu.matmul %436, %438, %cst_197 {dimension_numbers = #tpu.dot_dimension_numbers<[1], [0], [0], [1], [0, 0, 1, 1], [], []>} : vector<64x32xf32>, vector<32x256xf32>, vector<64x256xf32> -> vector<64x256xf32>
    %cst_198 = arith.constant dense<0.000000e+00> : vector<64x256xf32>
    %443 = tpu.matmul %437, %439, %cst_198 {dimension_numbers = #tpu.dot_dimension_numbers<[1], [0], [0], [1], [0, 0, 1, 1], [], []>} : vector<64x32xf32>, vector<32x256xf32>, vector<64x256xf32> -> vector<64x256xf32>
    %444 = arith.addf %442, %443 : vector<64x256xf32>
    %445 = vector.broadcast %434 : vector<1x256xf32> to vector<64x256xf32>
    %446 = arith.addf %444, %445 : vector<64x256xf32>
    %c0_199 = arith.constant 0 : index
    %c0_200 = arith.constant 0 : index
    %447 = vector.load %arg3[%c0_199, %c0_200] : memref<64x256xf32, #tpu.memory_space<vmem>>, vector<64x256xf32>
    tpu.vector_store %arg3[%c0_199, %c0_200], %446 {strides = array<i32>} : memref<64x256xf32, #tpu.memory_space<vmem>>, vector<64x256xf32>,
    %cst_201 = arith.constant dense<0.000000e+00> : vector<64x256xf32>
    %448 = tpu.matmul %436, %440, %cst_201 {dimension_numbers = #tpu.dot_dimension_numbers<[1], [0], [0], [1], [0, 0, 1, 1], [], []>} : vector<64x32xf32>, vector<32x256xf32>, vector<64x256xf32> -> vector<64x256xf32>
    %cst_202 = arith.constant dense<0.000000e+00> : vector<64x256xf32>
    %449 = tpu.matmul %437, %441, %cst_202 {dimension_numbers = #tpu.dot_dimension_numbers<[1], [0], [0], [1], [0, 0, 1, 1], [], []>} : vector<64x32xf32>, vector<32x256xf32>, vector<64x256xf32> -> vector<64x256xf32>
    %450 = arith.addf %448, %449 : vector<64x256xf32>
    %451 = vector.broadcast %435 : vector<1x256xf32> to vector<64x256xf32>
    %452 = arith.addf %450, %451 : vector<64x256xf32>
    %c0_203 = arith.constant 0 : index
    %c0_204 = arith.constant 0 : index
    %453 = vector.load %arg4[%c0_203, %c0_204] : memref<64x256xf32, #tpu.memory_space<vmem>>, vector<64x256xf32>
    tpu.vector_store %arg4[%c0_203, %c0_204], %452 {strides = array<i32>} : memref<64x256xf32, #tpu.memory_space<vmem>>, vector<64x256xf32>,
    %cst_205 = arith.constant 0.000000e+00 : f32
    %454 = vector.broadcast %cst_205 : f32 to vector<8x64xf32>
    %c0_206 = arith.constant 0 : index
    %c0_207 = arith.constant 0 : index
    %455 = vector.load %arg3[%c0_206, %c0_207] : memref<64x256xf32, #tpu.memory_space<vmem>>, vector<8x256xf32>
    %c56_208 = arith.constant 56 : index
    %c0_209 = arith.constant 0 : index
    %456 = vector.load %arg4[%c56_208, %c0_209] : memref<64x256xf32, #tpu.memory_space<vmem>>, vector<8x256xf32>
    %457 = arith.addf %455, %456 : vector<8x256xf32>
    %458 = vector.extract_strided_slice %457 {offsets = [0, 0], sizes = [8, 192], strides = [1, 1]} : vector<8x256xf32> to vector<8x192xf32>
    %459 = arith.negf %458 : vector<8x192xf32>
    %460 = math.exp %459 : vector<8x192xf32>
    %cst_210 = arith.constant 1.000000e+00 : f32
    %461 = vector.broadcast %cst_210 : f32 to vector<8x192xf32>
    %462 = arith.addf %461, %460 : vector<8x192xf32>
    %463 = arith.divf %461, %462 : vector<8x192xf32>
    %464 = vector.extract_strided_slice %457 {offsets = [0, 192], sizes = [8, 64], strides = [1, 1]} : vector<8x256xf32> to vector<8x64xf32>
    %465 = math.tanh %464 : vector<8x64xf32>
    %466 = vector.extract_strided_slice %463 {offsets = [0, 64], sizes = [8, 64], strides = [1, 1]} : vector<8x192xf32> to vector<8x64xf32>
    %467 = arith.mulf %466, %454 : vector<8x64xf32>
    %468 = vector.extract_strided_slice %463 {offsets = [0, 0], sizes = [8, 64], strides = [1, 1]} : vector<8x192xf32> to vector<8x64xf32>
    %469 = arith.mulf %468, %465 : vector<8x64xf32>
    %470 = arith.addf %467, %469 : vector<8x64xf32>
    %471 = vector.extract_strided_slice %463 {offsets = [0, 128], sizes = [8, 64], strides = [1, 1]} : vector<8x192xf32> to vector<8x64xf32>
    %472 = math.tanh %470 : vector<8x64xf32>
    %473 = arith.mulf %471, %472 : vector<8x64xf32>
    %474 = vector.extract_strided_slice %473 {offsets = [0, 0], sizes = [8, 32], strides = [1, 1]} : vector<8x64xf32> to vector<8x32xf32>
    %c0_211 = arith.constant 0 : index
    %c0_212 = arith.constant 0 : index
    %475 = vector.load %arg5[%c0_211, %c0_212] : memref<64x32xf32, #tpu.memory_space<vmem>>, vector<8x32xf32>
    tpu.vector_store %arg5[%c0_211, %c0_212], %474 {strides = array<i32>} : memref<64x32xf32, #tpu.memory_space<vmem>>, vector<8x32xf32>,
    %476 = vector.extract_strided_slice %473 {offsets = [0, 32], sizes = [8, 32], strides = [1, 1]} : vector<8x64xf32> to vector<8x32xf32>
    %c56_213 = arith.constant 56 : index
    %c0_214 = arith.constant 0 : index
    %477 = vector.load %arg6[%c56_213, %c0_214] : memref<64x32xf32, #tpu.memory_space<vmem>>, vector<8x32xf32>
    tpu.vector_store %arg6[%c56_213, %c0_214], %476 {strides = array<i32>} : memref<64x32xf32, #tpu.memory_space<vmem>>, vector<8x32xf32>,
    %c8_215 = arith.constant 8 : index
    %c0_216 = arith.constant 0 : index
    %478 = vector.load %arg3[%c8_215, %c0_216] : memref<64x256xf32, #tpu.memory_space<vmem>>, vector<8x256xf32>
    %c48_217 = arith.constant 48 : index
    %c0_218 = arith.constant 0 : index
    %479 = vector.load %arg4[%c48_217, %c0_218] : memref<64x256xf32, #tpu.memory_space<vmem>>, vector<8x256xf32>
    %480 = arith.addf %478, %479 : vector<8x256xf32>
    %cst_219 = arith.constant dense<0.000000e+00> : vector<8x256xf32>
    %481 = tpu.matmul %473, %433, %cst_219 {dimension_numbers = #tpu.dot_dimension_numbers<[1], [0], [0], [1], [0, 0, 1, 1], [], []>} : vector<8x64xf32>, vector<64x256xf32>, vector<8x256xf32> -> vector<8x256xf32>
    %482 = arith.addf %480, %481 : vector<8x256xf32>
    %483 = vector.extract_strided_slice %482 {offsets = [0, 0], sizes = [8, 192], strides = [1, 1]} : vector<8x256xf32> to vector<8x192xf32>
    %484 = arith.negf %483 : vector<8x192xf32>
    %485 = math.exp %484 : vector<8x192xf32>
    %cst_220 = arith.constant 1.000000e+00 : f32
    %486 = vector.broadcast %cst_220 : f32 to vector<8x192xf32>
    %487 = arith.addf %486, %485 : vector<8x192xf32>
    %488 = arith.divf %486, %487 : vector<8x192xf32>
    %489 = vector.extract_strided_slice %482 {offsets = [0, 192], sizes = [8, 64], strides = [1, 1]} : vector<8x256xf32> to vector<8x64xf32>
    %490 = math.tanh %489 : vector<8x64xf32>
    %491 = vector.extract_strided_slice %488 {offsets = [0, 64], sizes = [8, 64], strides = [1, 1]} : vector<8x192xf32> to vector<8x64xf32>
    %492 = arith.mulf %491, %470 : vector<8x64xf32>
    %493 = vector.extract_strided_slice %488 {offsets = [0, 0], sizes = [8, 64], strides = [1, 1]} : vector<8x192xf32> to vector<8x64xf32>
    %494 = arith.mulf %493, %490 : vector<8x64xf32>
    %495 = arith.addf %492, %494 : vector<8x64xf32>
    %496 = vector.extract_strided_slice %488 {offsets = [0, 128], sizes = [8, 64], strides = [1, 1]} : vector<8x192xf32> to vector<8x64xf32>
    %497 = math.tanh %495 : vector<8x64xf32>
    %498 = arith.mulf %496, %497 : vector<8x64xf32>
    %499 = vector.extract_strided_slice %498 {offsets = [0, 0], sizes = [8, 32], strides = [1, 1]} : vector<8x64xf32> to vector<8x32xf32>
    %c8_221 = arith.constant 8 : index
    %c0_222 = arith.constant 0 : index
    %500 = vector.load %arg5[%c8_221, %c0_222] : memref<64x32xf32, #tpu.memory_space<vmem>>, vector<8x32xf32>
    tpu.vector_store %arg5[%c8_221, %c0_222], %499 {strides = array<i32>} : memref<64x32xf32, #tpu.memory_space<vmem>>, vector<8x32xf32>,
    %501 = vector.extract_strided_slice %498 {offsets = [0, 32], sizes = [8, 32], strides = [1, 1]} : vector<8x64xf32> to vector<8x32xf32>
    %c48_223 = arith.constant 48 : index
    %c0_224 = arith.constant 0 : index
    %502 = vector.load %arg6[%c48_223, %c0_224] : memref<64x32xf32, #tpu.memory_space<vmem>>, vector<8x32xf32>
    tpu.vector_store %arg6[%c48_223, %c0_224], %501 {strides = array<i32>} : memref<64x32xf32, #tpu.memory_space<vmem>>, vector<8x32xf32>,
    %c16_225 = arith.constant 16 : index
    %c0_226 = arith.constant 0 : index
    %503 = vector.load %arg3[%c16_225, %c0_226] : memref<64x256xf32, #tpu.memory_space<vmem>>, vector<8x256xf32>
    %c40_227 = arith.constant 40 : index
    %c0_228 = arith.constant 0 : index
    %504 = vector.load %arg4[%c40_227, %c0_228] : memref<64x256xf32, #tpu.memory_space<vmem>>, vector<8x256xf32>
    %505 = arith.addf %503, %504 : vector<8x256xf32>
    %cst_229 = arith.constant dense<0.000000e+00> : vector<8x256xf32>
    %506 = tpu.matmul %498, %433, %cst_229 {dimension_numbers = #tpu.dot_dimension_numbers<[1], [0], [0], [1], [0, 0, 1, 1], [], []>} : vector<8x64xf32>, vector<64x256xf32>, vector<8x256xf32> -> vector<8x256xf32>
    %507 = arith.addf %505, %506 : vector<8x256xf32>
    %508 = vector.extract_strided_slice %507 {offsets = [0, 0], sizes = [8, 192], strides = [1, 1]} : vector<8x256xf32> to vector<8x192xf32>
    %509 = arith.negf %508 : vector<8x192xf32>
    %510 = math.exp %509 : vector<8x192xf32>
    %cst_230 = arith.constant 1.000000e+00 : f32
    %511 = vector.broadcast %cst_230 : f32 to vector<8x192xf32>
    %512 = arith.addf %511, %510 : vector<8x192xf32>
    %513 = arith.divf %511, %512 : vector<8x192xf32>
    %514 = vector.extract_strided_slice %507 {offsets = [0, 192], sizes = [8, 64], strides = [1, 1]} : vector<8x256xf32> to vector<8x64xf32>
    %515 = math.tanh %514 : vector<8x64xf32>
    %516 = vector.extract_strided_slice %513 {offsets = [0, 64], sizes = [8, 64], strides = [1, 1]} : vector<8x192xf32> to vector<8x64xf32>
    %517 = arith.mulf %516, %495 : vector<8x64xf32>
    %518 = vector.extract_strided_slice %513 {offsets = [0, 0], sizes = [8, 64], strides = [1, 1]} : vector<8x192xf32> to vector<8x64xf32>
    %519 = arith.mulf %518, %515 : vector<8x64xf32>
    %520 = arith.addf %517, %519 : vector<8x64xf32>
    %521 = vector.extract_strided_slice %513 {offsets = [0, 128], sizes = [8, 64], strides = [1, 1]} : vector<8x192xf32> to vector<8x64xf32>
    %522 = math.tanh %520 : vector<8x64xf32>
    %523 = arith.mulf %521, %522 : vector<8x64xf32>
    %524 = vector.extract_strided_slice %523 {offsets = [0, 0], sizes = [8, 32], strides = [1, 1]} : vector<8x64xf32> to vector<8x32xf32>
    %c16_231 = arith.constant 16 : index
    %c0_232 = arith.constant 0 : index
    %525 = vector.load %arg5[%c16_231, %c0_232] : memref<64x32xf32, #tpu.memory_space<vmem>>, vector<8x32xf32>
    tpu.vector_store %arg5[%c16_231, %c0_232], %524 {strides = array<i32>} : memref<64x32xf32, #tpu.memory_space<vmem>>, vector<8x32xf32>,
    %526 = vector.extract_strided_slice %523 {offsets = [0, 32], sizes = [8, 32], strides = [1, 1]} : vector<8x64xf32> to vector<8x32xf32>
    %c40_233 = arith.constant 40 : index
    %c0_234 = arith.constant 0 : index
    %527 = vector.load %arg6[%c40_233, %c0_234] : memref<64x32xf32, #tpu.memory_space<vmem>>, vector<8x32xf32>
    tpu.vector_store %arg6[%c40_233, %c0_234], %526 {strides = array<i32>} : memref<64x32xf32, #tpu.memory_space<vmem>>, vector<8x32xf32>,
    %c24_235 = arith.constant 24 : index
    %c0_236 = arith.constant 0 : index
    %528 = vector.load %arg3[%c24_235, %c0_236] : memref<64x256xf32, #tpu.memory_space<vmem>>, vector<8x256xf32>
    %c32_237 = arith.constant 32 : index
    %c0_238 = arith.constant 0 : index
    %529 = vector.load %arg4[%c32_237, %c0_238] : memref<64x256xf32, #tpu.memory_space<vmem>>, vector<8x256xf32>
    %530 = arith.addf %528, %529 : vector<8x256xf32>
    %cst_239 = arith.constant dense<0.000000e+00> : vector<8x256xf32>
    %531 = tpu.matmul %523, %433, %cst_239 {dimension_numbers = #tpu.dot_dimension_numbers<[1], [0], [0], [1], [0, 0, 1, 1], [], []>} : vector<8x64xf32>, vector<64x256xf32>, vector<8x256xf32> -> vector<8x256xf32>
    %532 = arith.addf %530, %531 : vector<8x256xf32>
    %533 = vector.extract_strided_slice %532 {offsets = [0, 0], sizes = [8, 192], strides = [1, 1]} : vector<8x256xf32> to vector<8x192xf32>
    %534 = arith.negf %533 : vector<8x192xf32>
    %535 = math.exp %534 : vector<8x192xf32>
    %cst_240 = arith.constant 1.000000e+00 : f32
    %536 = vector.broadcast %cst_240 : f32 to vector<8x192xf32>
    %537 = arith.addf %536, %535 : vector<8x192xf32>
    %538 = arith.divf %536, %537 : vector<8x192xf32>
    %539 = vector.extract_strided_slice %532 {offsets = [0, 192], sizes = [8, 64], strides = [1, 1]} : vector<8x256xf32> to vector<8x64xf32>
    %540 = math.tanh %539 : vector<8x64xf32>
    %541 = vector.extract_strided_slice %538 {offsets = [0, 64], sizes = [8, 64], strides = [1, 1]} : vector<8x192xf32> to vector<8x64xf32>
    %542 = arith.mulf %541, %520 : vector<8x64xf32>
    %543 = vector.extract_strided_slice %538 {offsets = [0, 0], sizes = [8, 64], strides = [1, 1]} : vector<8x192xf32> to vector<8x64xf32>
    %544 = arith.mulf %543, %540 : vector<8x64xf32>
    %545 = arith.addf %542, %544 : vector<8x64xf32>
    %546 = vector.extract_strided_slice %538 {offsets = [0, 128], sizes = [8, 64], strides = [1, 1]} : vector<8x192xf32> to vector<8x64xf32>
    %547 = math.tanh %545 : vector<8x64xf32>
    %548 = arith.mulf %546, %547 : vector<8x64xf32>
    %549 = vector.extract_strided_slice %548 {offsets = [0, 0], sizes = [8, 32], strides = [1, 1]} : vector<8x64xf32> to vector<8x32xf32>
    %c24_241 = arith.constant 24 : index
    %c0_242 = arith.constant 0 : index
    %550 = vector.load %arg5[%c24_241, %c0_242] : memref<64x32xf32, #tpu.memory_space<vmem>>, vector<8x32xf32>
    tpu.vector_store %arg5[%c24_241, %c0_242], %549 {strides = array<i32>} : memref<64x32xf32, #tpu.memory_space<vmem>>, vector<8x32xf32>,
    %551 = vector.extract_strided_slice %548 {offsets = [0, 32], sizes = [8, 32], strides = [1, 1]} : vector<8x64xf32> to vector<8x32xf32>
    %c32_243 = arith.constant 32 : index
    %c0_244 = arith.constant 0 : index
    %552 = vector.load %arg6[%c32_243, %c0_244] : memref<64x32xf32, #tpu.memory_space<vmem>>, vector<8x32xf32>
    tpu.vector_store %arg6[%c32_243, %c0_244], %551 {strides = array<i32>} : memref<64x32xf32, #tpu.memory_space<vmem>>, vector<8x32xf32>,
    %c32_245 = arith.constant 32 : index
    %c0_246 = arith.constant 0 : index
    %553 = vector.load %arg3[%c32_245, %c0_246] : memref<64x256xf32, #tpu.memory_space<vmem>>, vector<8x256xf32>
    %c24_247 = arith.constant 24 : index
    %c0_248 = arith.constant 0 : index
    %554 = vector.load %arg4[%c24_247, %c0_248] : memref<64x256xf32, #tpu.memory_space<vmem>>, vector<8x256xf32>
    %555 = arith.addf %553, %554 : vector<8x256xf32>
    %cst_249 = arith.constant dense<0.000000e+00> : vector<8x256xf32>
    %556 = tpu.matmul %548, %433, %cst_249 {dimension_numbers = #tpu.dot_dimension_numbers<[1], [0], [0], [1], [0, 0, 1, 1], [], []>} : vector<8x64xf32>, vector<64x256xf32>, vector<8x256xf32> -> vector<8x256xf32>
    %557 = arith.addf %555, %556 : vector<8x256xf32>
    %558 = vector.extract_strided_slice %557 {offsets = [0, 0], sizes = [8, 192], strides = [1, 1]} : vector<8x256xf32> to vector<8x192xf32>
    %559 = arith.negf %558 : vector<8x192xf32>
    %560 = math.exp %559 : vector<8x192xf32>
    %cst_250 = arith.constant 1.000000e+00 : f32
    %561 = vector.broadcast %cst_250 : f32 to vector<8x192xf32>
    %562 = arith.addf %561, %560 : vector<8x192xf32>
    %563 = arith.divf %561, %562 : vector<8x192xf32>
    %564 = vector.extract_strided_slice %557 {offsets = [0, 192], sizes = [8, 64], strides = [1, 1]} : vector<8x256xf32> to vector<8x64xf32>
    %565 = math.tanh %564 : vector<8x64xf32>
    %566 = vector.extract_strided_slice %563 {offsets = [0, 64], sizes = [8, 64], strides = [1, 1]} : vector<8x192xf32> to vector<8x64xf32>
    %567 = arith.mulf %566, %545 : vector<8x64xf32>
    %568 = vector.extract_strided_slice %563 {offsets = [0, 0], sizes = [8, 64], strides = [1, 1]} : vector<8x192xf32> to vector<8x64xf32>
    %569 = arith.mulf %568, %565 : vector<8x64xf32>
    %570 = arith.addf %567, %569 : vector<8x64xf32>
    %571 = vector.extract_strided_slice %563 {offsets = [0, 128], sizes = [8, 64], strides = [1, 1]} : vector<8x192xf32> to vector<8x64xf32>
    %572 = math.tanh %570 : vector<8x64xf32>
    %573 = arith.mulf %571, %572 : vector<8x64xf32>
    %574 = vector.extract_strided_slice %573 {offsets = [0, 0], sizes = [8, 32], strides = [1, 1]} : vector<8x64xf32> to vector<8x32xf32>
    %c32_251 = arith.constant 32 : index
    %c0_252 = arith.constant 0 : index
    %575 = vector.load %arg5[%c32_251, %c0_252] : memref<64x32xf32, #tpu.memory_space<vmem>>, vector<8x32xf32>
    tpu.vector_store %arg5[%c32_251, %c0_252], %574 {strides = array<i32>} : memref<64x32xf32, #tpu.memory_space<vmem>>, vector<8x32xf32>,
    %576 = vector.extract_strided_slice %573 {offsets = [0, 32], sizes = [8, 32], strides = [1, 1]} : vector<8x64xf32> to vector<8x32xf32>
    %c24_253 = arith.constant 24 : index
    %c0_254 = arith.constant 0 : index
    %577 = vector.load %arg6[%c24_253, %c0_254] : memref<64x32xf32, #tpu.memory_space<vmem>>, vector<8x32xf32>
    tpu.vector_store %arg6[%c24_253, %c0_254], %576 {strides = array<i32>} : memref<64x32xf32, #tpu.memory_space<vmem>>, vector<8x32xf32>,
    %c40_255 = arith.constant 40 : index
    %c0_256 = arith.constant 0 : index
    %578 = vector.load %arg3[%c40_255, %c0_256] : memref<64x256xf32, #tpu.memory_space<vmem>>, vector<8x256xf32>
    %c16_257 = arith.constant 16 : index
    %c0_258 = arith.constant 0 : index
    %579 = vector.load %arg4[%c16_257, %c0_258] : memref<64x256xf32, #tpu.memory_space<vmem>>, vector<8x256xf32>
    %580 = arith.addf %578, %579 : vector<8x256xf32>
    %cst_259 = arith.constant dense<0.000000e+00> : vector<8x256xf32>
    %581 = tpu.matmul %573, %433, %cst_259 {dimension_numbers = #tpu.dot_dimension_numbers<[1], [0], [0], [1], [0, 0, 1, 1], [], []>} : vector<8x64xf32>, vector<64x256xf32>, vector<8x256xf32> -> vector<8x256xf32>
    %582 = arith.addf %580, %581 : vector<8x256xf32>
    %583 = vector.extract_strided_slice %582 {offsets = [0, 0], sizes = [8, 192], strides = [1, 1]} : vector<8x256xf32> to vector<8x192xf32>
    %584 = arith.negf %583 : vector<8x192xf32>
    %585 = math.exp %584 : vector<8x192xf32>
    %cst_260 = arith.constant 1.000000e+00 : f32
    %586 = vector.broadcast %cst_260 : f32 to vector<8x192xf32>
    %587 = arith.addf %586, %585 : vector<8x192xf32>
    %588 = arith.divf %586, %587 : vector<8x192xf32>
    %589 = vector.extract_strided_slice %582 {offsets = [0, 192], sizes = [8, 64], strides = [1, 1]} : vector<8x256xf32> to vector<8x64xf32>
    %590 = math.tanh %589 : vector<8x64xf32>
    %591 = vector.extract_strided_slice %588 {offsets = [0, 64], sizes = [8, 64], strides = [1, 1]} : vector<8x192xf32> to vector<8x64xf32>
    %592 = arith.mulf %591, %570 : vector<8x64xf32>
    %593 = vector.extract_strided_slice %588 {offsets = [0, 0], sizes = [8, 64], strides = [1, 1]} : vector<8x192xf32> to vector<8x64xf32>
    %594 = arith.mulf %593, %590 : vector<8x64xf32>
    %595 = arith.addf %592, %594 : vector<8x64xf32>
    %596 = vector.extract_strided_slice %588 {offsets = [0, 128], sizes = [8, 64], strides = [1, 1]} : vector<8x192xf32> to vector<8x64xf32>
    %597 = math.tanh %595 : vector<8x64xf32>
    %598 = arith.mulf %596, %597 : vector<8x64xf32>
    %599 = vector.extract_strided_slice %598 {offsets = [0, 0], sizes = [8, 32], strides = [1, 1]} : vector<8x64xf32> to vector<8x32xf32>
    %c40_261 = arith.constant 40 : index
    %c0_262 = arith.constant 0 : index
    %600 = vector.load %arg5[%c40_261, %c0_262] : memref<64x32xf32, #tpu.memory_space<vmem>>, vector<8x32xf32>
    tpu.vector_store %arg5[%c40_261, %c0_262], %599 {strides = array<i32>} : memref<64x32xf32, #tpu.memory_space<vmem>>, vector<8x32xf32>,
    %601 = vector.extract_strided_slice %598 {offsets = [0, 32], sizes = [8, 32], strides = [1, 1]} : vector<8x64xf32> to vector<8x32xf32>
    %c16_263 = arith.constant 16 : index
    %c0_264 = arith.constant 0 : index
    %602 = vector.load %arg6[%c16_263, %c0_264] : memref<64x32xf32, #tpu.memory_space<vmem>>, vector<8x32xf32>
    tpu.vector_store %arg6[%c16_263, %c0_264], %601 {strides = array<i32>} : memref<64x32xf32, #tpu.memory_space<vmem>>, vector<8x32xf32>,
    %c48_265 = arith.constant 48 : index
    %c0_266 = arith.constant 0 : index
    %603 = vector.load %arg3[%c48_265, %c0_266] : memref<64x256xf32, #tpu.memory_space<vmem>>, vector<8x256xf32>
    %c8_267 = arith.constant 8 : index
    %c0_268 = arith.constant 0 : index
    %604 = vector.load %arg4[%c8_267, %c0_268] : memref<64x256xf32, #tpu.memory_space<vmem>>, vector<8x256xf32>
    %605 = arith.addf %603, %604 : vector<8x256xf32>
    %cst_269 = arith.constant dense<0.000000e+00> : vector<8x256xf32>
    %606 = tpu.matmul %598, %433, %cst_269 {dimension_numbers = #tpu.dot_dimension_numbers<[1], [0], [0], [1], [0, 0, 1, 1], [], []>} : vector<8x64xf32>, vector<64x256xf32>, vector<8x256xf32> -> vector<8x256xf32>
    %607 = arith.addf %605, %606 : vector<8x256xf32>
    %608 = vector.extract_strided_slice %607 {offsets = [0, 0], sizes = [8, 192], strides = [1, 1]} : vector<8x256xf32> to vector<8x192xf32>
    %609 = arith.negf %608 : vector<8x192xf32>
    %610 = math.exp %609 : vector<8x192xf32>
    %cst_270 = arith.constant 1.000000e+00 : f32
    %611 = vector.broadcast %cst_270 : f32 to vector<8x192xf32>
    %612 = arith.addf %611, %610 : vector<8x192xf32>
    %613 = arith.divf %611, %612 : vector<8x192xf32>
    %614 = vector.extract_strided_slice %607 {offsets = [0, 192], sizes = [8, 64], strides = [1, 1]} : vector<8x256xf32> to vector<8x64xf32>
    %615 = math.tanh %614 : vector<8x64xf32>
    %616 = vector.extract_strided_slice %613 {offsets = [0, 64], sizes = [8, 64], strides = [1, 1]} : vector<8x192xf32> to vector<8x64xf32>
    %617 = arith.mulf %616, %595 : vector<8x64xf32>
    %618 = vector.extract_strided_slice %613 {offsets = [0, 0], sizes = [8, 64], strides = [1, 1]} : vector<8x192xf32> to vector<8x64xf32>
    %619 = arith.mulf %618, %615 : vector<8x64xf32>
    %620 = arith.addf %617, %619 : vector<8x64xf32>
    %621 = vector.extract_strided_slice %613 {offsets = [0, 128], sizes = [8, 64], strides = [1, 1]} : vector<8x192xf32> to vector<8x64xf32>
    %622 = math.tanh %620 : vector<8x64xf32>
    %623 = arith.mulf %621, %622 : vector<8x64xf32>
    %624 = vector.extract_strided_slice %623 {offsets = [0, 0], sizes = [8, 32], strides = [1, 1]} : vector<8x64xf32> to vector<8x32xf32>
    %c48_271 = arith.constant 48 : index
    %c0_272 = arith.constant 0 : index
    %625 = vector.load %arg5[%c48_271, %c0_272] : memref<64x32xf32, #tpu.memory_space<vmem>>, vector<8x32xf32>
    tpu.vector_store %arg5[%c48_271, %c0_272], %624 {strides = array<i32>} : memref<64x32xf32, #tpu.memory_space<vmem>>, vector<8x32xf32>,
    %626 = vector.extract_strided_slice %623 {offsets = [0, 32], sizes = [8, 32], strides = [1, 1]} : vector<8x64xf32> to vector<8x32xf32>
    %c8_273 = arith.constant 8 : index
    %c0_274 = arith.constant 0 : index
    %627 = vector.load %arg6[%c8_273, %c0_274] : memref<64x32xf32, #tpu.memory_space<vmem>>, vector<8x32xf32>
    tpu.vector_store %arg6[%c8_273, %c0_274], %626 {strides = array<i32>} : memref<64x32xf32, #tpu.memory_space<vmem>>, vector<8x32xf32>,
    %c56_275 = arith.constant 56 : index
    %c0_276 = arith.constant 0 : index
    %628 = vector.load %arg3[%c56_275, %c0_276] : memref<64x256xf32, #tpu.memory_space<vmem>>, vector<8x256xf32>
    %c0_277 = arith.constant 0 : index
    %c0_278 = arith.constant 0 : index
    %629 = vector.load %arg4[%c0_277, %c0_278] : memref<64x256xf32, #tpu.memory_space<vmem>>, vector<8x256xf32>
    %630 = arith.addf %628, %629 : vector<8x256xf32>
    %cst_279 = arith.constant dense<0.000000e+00> : vector<8x256xf32>
    %631 = tpu.matmul %623, %433, %cst_279 {dimension_numbers = #tpu.dot_dimension_numbers<[1], [0], [0], [1], [0, 0, 1, 1], [], []>} : vector<8x64xf32>, vector<64x256xf32>, vector<8x256xf32> -> vector<8x256xf32>
    %632 = arith.addf %630, %631 : vector<8x256xf32>
    %633 = vector.extract_strided_slice %632 {offsets = [0, 0], sizes = [8, 192], strides = [1, 1]} : vector<8x256xf32> to vector<8x192xf32>
    %634 = arith.negf %633 : vector<8x192xf32>
    %635 = math.exp %634 : vector<8x192xf32>
    %cst_280 = arith.constant 1.000000e+00 : f32
    %636 = vector.broadcast %cst_280 : f32 to vector<8x192xf32>
    %637 = arith.addf %636, %635 : vector<8x192xf32>
    %638 = arith.divf %636, %637 : vector<8x192xf32>
    %639 = vector.extract_strided_slice %632 {offsets = [0, 192], sizes = [8, 64], strides = [1, 1]} : vector<8x256xf32> to vector<8x64xf32>
    %640 = math.tanh %639 : vector<8x64xf32>
    %641 = vector.extract_strided_slice %638 {offsets = [0, 64], sizes = [8, 64], strides = [1, 1]} : vector<8x192xf32> to vector<8x64xf32>
    %642 = arith.mulf %641, %620 : vector<8x64xf32>
    %643 = vector.extract_strided_slice %638 {offsets = [0, 0], sizes = [8, 64], strides = [1, 1]} : vector<8x192xf32> to vector<8x64xf32>
    %644 = arith.mulf %643, %640 : vector<8x64xf32>
    %645 = arith.addf %642, %644 : vector<8x64xf32>
    %646 = vector.extract_strided_slice %638 {offsets = [0, 128], sizes = [8, 64], strides = [1, 1]} : vector<8x192xf32> to vector<8x64xf32>
    %647 = math.tanh %645 : vector<8x64xf32>
    %648 = arith.mulf %646, %647 : vector<8x64xf32>
    %649 = vector.extract_strided_slice %648 {offsets = [0, 0], sizes = [8, 32], strides = [1, 1]} : vector<8x64xf32> to vector<8x32xf32>
    %c56_281 = arith.constant 56 : index
    %c0_282 = arith.constant 0 : index
    %650 = vector.load %arg5[%c56_281, %c0_282] : memref<64x32xf32, #tpu.memory_space<vmem>>, vector<8x32xf32>
    tpu.vector_store %arg5[%c56_281, %c0_282], %649 {strides = array<i32>} : memref<64x32xf32, #tpu.memory_space<vmem>>, vector<8x32xf32>,
    %651 = vector.extract_strided_slice %648 {offsets = [0, 32], sizes = [8, 32], strides = [1, 1]} : vector<8x64xf32> to vector<8x32xf32>
    %c0_283 = arith.constant 0 : index
    %c0_284 = arith.constant 0 : index
    %652 = vector.load %arg6[%c0_283, %c0_284] : memref<64x32xf32, #tpu.memory_space<vmem>>, vector<8x32xf32>
    tpu.vector_store %arg6[%c0_283, %c0_284], %651 {strides = array<i32>} : memref<64x32xf32, #tpu.memory_space<vmem>>, vector<8x32xf32>,
    %c640 = arith.constant 640 : index
    %c0_285 = arith.constant 0 : index
    %653 = vector.load %arg1[%c640, %c0_285] : memref<856x256xf32, #tpu.memory_space<vmem>>, vector<64x256xf32>
    %c704 = arith.constant 704 : index
    %c0_286 = arith.constant 0 : index
    %654 = vector.load %arg1[%c704, %c0_286] : memref<856x256xf32, #tpu.memory_space<vmem>>, vector<1x256xf32>
    %c712 = arith.constant 712 : index
    %c0_287 = arith.constant 0 : index
    %655 = vector.load %arg1[%c712, %c0_287] : memref<856x256xf32, #tpu.memory_space<vmem>>, vector<1x256xf32>
    %c0_288 = arith.constant 0 : index
    %c0_289 = arith.constant 0 : index
    %656 = vector.load %arg5[%c0_288, %c0_289] : memref<64x32xf32, #tpu.memory_space<vmem>>, vector<64x32xf32>
    %c0_290 = arith.constant 0 : index
    %c0_291 = arith.constant 0 : index
    %657 = vector.load %arg6[%c0_290, %c0_291] : memref<64x32xf32, #tpu.memory_space<vmem>>, vector<64x32xf32>
    %c512 = arith.constant 512 : index
    %c0_292 = arith.constant 0 : index
    %658 = vector.load %arg1[%c512, %c0_292] : memref<856x256xf32, #tpu.memory_space<vmem>>, vector<32x256xf32>
    %c544 = arith.constant 544 : index
    %c0_293 = arith.constant 0 : index
    %659 = vector.load %arg1[%c544, %c0_293] : memref<856x256xf32, #tpu.memory_space<vmem>>, vector<32x256xf32>
    %c576 = arith.constant 576 : index
    %c0_294 = arith.constant 0 : index
    %660 = vector.load %arg1[%c576, %c0_294] : memref<856x256xf32, #tpu.memory_space<vmem>>, vector<32x256xf32>
    %c608 = arith.constant 608 : index
    %c0_295 = arith.constant 0 : index
    %661 = vector.load %arg1[%c608, %c0_295] : memref<856x256xf32, #tpu.memory_space<vmem>>, vector<32x256xf32>
    %cst_296 = arith.constant dense<0.000000e+00> : vector<64x256xf32>
    %662 = tpu.matmul %656, %658, %cst_296 {dimension_numbers = #tpu.dot_dimension_numbers<[1], [0], [0], [1], [0, 0, 1, 1], [], []>} : vector<64x32xf32>, vector<32x256xf32>, vector<64x256xf32> -> vector<64x256xf32>
    %cst_297 = arith.constant dense<0.000000e+00> : vector<64x256xf32>
    %663 = tpu.matmul %657, %659, %cst_297 {dimension_numbers = #tpu.dot_dimension_numbers<[1], [0], [0], [1], [0, 0, 1, 1], [], []>} : vector<64x32xf32>, vector<32x256xf32>, vector<64x256xf32> -> vector<64x256xf32>
    %664 = arith.addf %662, %663 : vector<64x256xf32>
    %665 = vector.broadcast %654 : vector<1x256xf32> to vector<64x256xf32>
    %666 = arith.addf %664, %665 : vector<64x256xf32>
    %c0_298 = arith.constant 0 : index
    %c0_299 = arith.constant 0 : index
    %667 = vector.load %arg3[%c0_298, %c0_299] : memref<64x256xf32, #tpu.memory_space<vmem>>, vector<64x256xf32>
    tpu.vector_store %arg3[%c0_298, %c0_299], %666 {strides = array<i32>} : memref<64x256xf32, #tpu.memory_space<vmem>>, vector<64x256xf32>,
    %cst_300 = arith.constant dense<0.000000e+00> : vector<64x256xf32>
    %668 = tpu.matmul %656, %660, %cst_300 {dimension_numbers = #tpu.dot_dimension_numbers<[1], [0], [0], [1], [0, 0, 1, 1], [], []>} : vector<64x32xf32>, vector<32x256xf32>, vector<64x256xf32> -> vector<64x256xf32>
    %cst_301 = arith.constant dense<0.000000e+00> : vector<64x256xf32>
    %669 = tpu.matmul %657, %661, %cst_301 {dimension_numbers = #tpu.dot_dimension_numbers<[1], [0], [0], [1], [0, 0, 1, 1], [], []>} : vector<64x32xf32>, vector<32x256xf32>, vector<64x256xf32> -> vector<64x256xf32>
    %670 = arith.addf %668, %669 : vector<64x256xf32>
    %671 = vector.broadcast %655 : vector<1x256xf32> to vector<64x256xf32>
    %672 = arith.addf %670, %671 : vector<64x256xf32>
    %c0_302 = arith.constant 0 : index
    %c0_303 = arith.constant 0 : index
    %673 = vector.load %arg4[%c0_302, %c0_303] : memref<64x256xf32, #tpu.memory_space<vmem>>, vector<64x256xf32>
    tpu.vector_store %arg4[%c0_302, %c0_303], %672 {strides = array<i32>} : memref<64x256xf32, #tpu.memory_space<vmem>>, vector<64x256xf32>,
    %cst_304 = arith.constant 0.000000e+00 : f32
    %674 = vector.broadcast %cst_304 : f32 to vector<8x64xf32>
    %c0_305 = arith.constant 0 : index
    %c0_306 = arith.constant 0 : index
    %675 = vector.load %arg3[%c0_305, %c0_306] : memref<64x256xf32, #tpu.memory_space<vmem>>, vector<8x256xf32>
    %c56_307 = arith.constant 56 : index
    %c0_308 = arith.constant 0 : index
    %676 = vector.load %arg4[%c56_307, %c0_308] : memref<64x256xf32, #tpu.memory_space<vmem>>, vector<8x256xf32>
    %677 = arith.addf %675, %676 : vector<8x256xf32>
    %678 = vector.extract_strided_slice %677 {offsets = [0, 0], sizes = [8, 192], strides = [1, 1]} : vector<8x256xf32> to vector<8x192xf32>
    %679 = arith.negf %678 : vector<8x192xf32>
    %680 = math.exp %679 : vector<8x192xf32>
    %cst_309 = arith.constant 1.000000e+00 : f32
    %681 = vector.broadcast %cst_309 : f32 to vector<8x192xf32>
    %682 = arith.addf %681, %680 : vector<8x192xf32>
    %683 = arith.divf %681, %682 : vector<8x192xf32>
    %684 = vector.extract_strided_slice %677 {offsets = [0, 192], sizes = [8, 64], strides = [1, 1]} : vector<8x256xf32> to vector<8x64xf32>
    %685 = math.tanh %684 : vector<8x64xf32>
    %686 = vector.extract_strided_slice %683 {offsets = [0, 64], sizes = [8, 64], strides = [1, 1]} : vector<8x192xf32> to vector<8x64xf32>
    %687 = arith.mulf %686, %674 : vector<8x64xf32>
    %688 = vector.extract_strided_slice %683 {offsets = [0, 0], sizes = [8, 64], strides = [1, 1]} : vector<8x192xf32> to vector<8x64xf32>
    %689 = arith.mulf %688, %685 : vector<8x64xf32>
    %690 = arith.addf %687, %689 : vector<8x64xf32>
    %691 = vector.extract_strided_slice %683 {offsets = [0, 128], sizes = [8, 64], strides = [1, 1]} : vector<8x192xf32> to vector<8x64xf32>
    %692 = math.tanh %690 : vector<8x64xf32>
    %693 = arith.mulf %691, %692 : vector<8x64xf32>
    %694 = vector.extract_strided_slice %693 {offsets = [0, 0], sizes = [8, 32], strides = [1, 1]} : vector<8x64xf32> to vector<8x32xf32>
    %c0_310 = arith.constant 0 : index
    %c0_311 = arith.constant 0 : index
    %695 = vector.load %arg5[%c0_310, %c0_311] : memref<64x32xf32, #tpu.memory_space<vmem>>, vector<8x32xf32>
    tpu.vector_store %arg5[%c0_310, %c0_311], %694 {strides = array<i32>} : memref<64x32xf32, #tpu.memory_space<vmem>>, vector<8x32xf32>,
    %696 = vector.extract_strided_slice %693 {offsets = [0, 32], sizes = [8, 32], strides = [1, 1]} : vector<8x64xf32> to vector<8x32xf32>
    %c56_312 = arith.constant 56 : index
    %c0_313 = arith.constant 0 : index
    %697 = vector.load %arg6[%c56_312, %c0_313] : memref<64x32xf32, #tpu.memory_space<vmem>>, vector<8x32xf32>
    tpu.vector_store %arg6[%c56_312, %c0_313], %696 {strides = array<i32>} : memref<64x32xf32, #tpu.memory_space<vmem>>, vector<8x32xf32>,
    %c8_314 = arith.constant 8 : index
    %c0_315 = arith.constant 0 : index
    %698 = vector.load %arg3[%c8_314, %c0_315] : memref<64x256xf32, #tpu.memory_space<vmem>>, vector<8x256xf32>
    %c48_316 = arith.constant 48 : index
    %c0_317 = arith.constant 0 : index
    %699 = vector.load %arg4[%c48_316, %c0_317] : memref<64x256xf32, #tpu.memory_space<vmem>>, vector<8x256xf32>
    %700 = arith.addf %698, %699 : vector<8x256xf32>
    %cst_318 = arith.constant dense<0.000000e+00> : vector<8x256xf32>
    %701 = tpu.matmul %693, %653, %cst_318 {dimension_numbers = #tpu.dot_dimension_numbers<[1], [0], [0], [1], [0, 0, 1, 1], [], []>} : vector<8x64xf32>, vector<64x256xf32>, vector<8x256xf32> -> vector<8x256xf32>
    %702 = arith.addf %700, %701 : vector<8x256xf32>
    %703 = vector.extract_strided_slice %702 {offsets = [0, 0], sizes = [8, 192], strides = [1, 1]} : vector<8x256xf32> to vector<8x192xf32>
    %704 = arith.negf %703 : vector<8x192xf32>
    %705 = math.exp %704 : vector<8x192xf32>
    %cst_319 = arith.constant 1.000000e+00 : f32
    %706 = vector.broadcast %cst_319 : f32 to vector<8x192xf32>
    %707 = arith.addf %706, %705 : vector<8x192xf32>
    %708 = arith.divf %706, %707 : vector<8x192xf32>
    %709 = vector.extract_strided_slice %702 {offsets = [0, 192], sizes = [8, 64], strides = [1, 1]} : vector<8x256xf32> to vector<8x64xf32>
    %710 = math.tanh %709 : vector<8x64xf32>
    %711 = vector.extract_strided_slice %708 {offsets = [0, 64], sizes = [8, 64], strides = [1, 1]} : vector<8x192xf32> to vector<8x64xf32>
    %712 = arith.mulf %711, %690 : vector<8x64xf32>
    %713 = vector.extract_strided_slice %708 {offsets = [0, 0], sizes = [8, 64], strides = [1, 1]} : vector<8x192xf32> to vector<8x64xf32>
    %714 = arith.mulf %713, %710 : vector<8x64xf32>
    %715 = arith.addf %712, %714 : vector<8x64xf32>
    %716 = vector.extract_strided_slice %708 {offsets = [0, 128], sizes = [8, 64], strides = [1, 1]} : vector<8x192xf32> to vector<8x64xf32>
    %717 = math.tanh %715 : vector<8x64xf32>
    %718 = arith.mulf %716, %717 : vector<8x64xf32>
    %719 = vector.extract_strided_slice %718 {offsets = [0, 0], sizes = [8, 32], strides = [1, 1]} : vector<8x64xf32> to vector<8x32xf32>
    %c8_320 = arith.constant 8 : index
    %c0_321 = arith.constant 0 : index
    %720 = vector.load %arg5[%c8_320, %c0_321] : memref<64x32xf32, #tpu.memory_space<vmem>>, vector<8x32xf32>
    tpu.vector_store %arg5[%c8_320, %c0_321], %719 {strides = array<i32>} : memref<64x32xf32, #tpu.memory_space<vmem>>, vector<8x32xf32>,
    %721 = vector.extract_strided_slice %718 {offsets = [0, 32], sizes = [8, 32], strides = [1, 1]} : vector<8x64xf32> to vector<8x32xf32>
    %c48_322 = arith.constant 48 : index
    %c0_323 = arith.constant 0 : index
    %722 = vector.load %arg6[%c48_322, %c0_323] : memref<64x32xf32, #tpu.memory_space<vmem>>, vector<8x32xf32>
    tpu.vector_store %arg6[%c48_322, %c0_323], %721 {strides = array<i32>} : memref<64x32xf32, #tpu.memory_space<vmem>>, vector<8x32xf32>,
    %c16_324 = arith.constant 16 : index
    %c0_325 = arith.constant 0 : index
    %723 = vector.load %arg3[%c16_324, %c0_325] : memref<64x256xf32, #tpu.memory_space<vmem>>, vector<8x256xf32>
    %c40_326 = arith.constant 40 : index
    %c0_327 = arith.constant 0 : index
    %724 = vector.load %arg4[%c40_326, %c0_327] : memref<64x256xf32, #tpu.memory_space<vmem>>, vector<8x256xf32>
    %725 = arith.addf %723, %724 : vector<8x256xf32>
    %cst_328 = arith.constant dense<0.000000e+00> : vector<8x256xf32>
    %726 = tpu.matmul %718, %653, %cst_328 {dimension_numbers = #tpu.dot_dimension_numbers<[1], [0], [0], [1], [0, 0, 1, 1], [], []>} : vector<8x64xf32>, vector<64x256xf32>, vector<8x256xf32> -> vector<8x256xf32>
    %727 = arith.addf %725, %726 : vector<8x256xf32>
    %728 = vector.extract_strided_slice %727 {offsets = [0, 0], sizes = [8, 192], strides = [1, 1]} : vector<8x256xf32> to vector<8x192xf32>
    %729 = arith.negf %728 : vector<8x192xf32>
    %730 = math.exp %729 : vector<8x192xf32>
    %cst_329 = arith.constant 1.000000e+00 : f32
    %731 = vector.broadcast %cst_329 : f32 to vector<8x192xf32>
    %732 = arith.addf %731, %730 : vector<8x192xf32>
    %733 = arith.divf %731, %732 : vector<8x192xf32>
    %734 = vector.extract_strided_slice %727 {offsets = [0, 192], sizes = [8, 64], strides = [1, 1]} : vector<8x256xf32> to vector<8x64xf32>
    %735 = math.tanh %734 : vector<8x64xf32>
    %736 = vector.extract_strided_slice %733 {offsets = [0, 64], sizes = [8, 64], strides = [1, 1]} : vector<8x192xf32> to vector<8x64xf32>
    %737 = arith.mulf %736, %715 : vector<8x64xf32>
    %738 = vector.extract_strided_slice %733 {offsets = [0, 0], sizes = [8, 64], strides = [1, 1]} : vector<8x192xf32> to vector<8x64xf32>
    %739 = arith.mulf %738, %735 : vector<8x64xf32>
    %740 = arith.addf %737, %739 : vector<8x64xf32>
    %741 = vector.extract_strided_slice %733 {offsets = [0, 128], sizes = [8, 64], strides = [1, 1]} : vector<8x192xf32> to vector<8x64xf32>
    %742 = math.tanh %740 : vector<8x64xf32>
    %743 = arith.mulf %741, %742 : vector<8x64xf32>
    %744 = vector.extract_strided_slice %743 {offsets = [0, 0], sizes = [8, 32], strides = [1, 1]} : vector<8x64xf32> to vector<8x32xf32>
    %c16_330 = arith.constant 16 : index
    %c0_331 = arith.constant 0 : index
    %745 = vector.load %arg5[%c16_330, %c0_331] : memref<64x32xf32, #tpu.memory_space<vmem>>, vector<8x32xf32>
    tpu.vector_store %arg5[%c16_330, %c0_331], %744 {strides = array<i32>} : memref<64x32xf32, #tpu.memory_space<vmem>>, vector<8x32xf32>,
    %746 = vector.extract_strided_slice %743 {offsets = [0, 32], sizes = [8, 32], strides = [1, 1]} : vector<8x64xf32> to vector<8x32xf32>
    %c40_332 = arith.constant 40 : index
    %c0_333 = arith.constant 0 : index
    %747 = vector.load %arg6[%c40_332, %c0_333] : memref<64x32xf32, #tpu.memory_space<vmem>>, vector<8x32xf32>
    tpu.vector_store %arg6[%c40_332, %c0_333], %746 {strides = array<i32>} : memref<64x32xf32, #tpu.memory_space<vmem>>, vector<8x32xf32>,
    %c24_334 = arith.constant 24 : index
    %c0_335 = arith.constant 0 : index
    %748 = vector.load %arg3[%c24_334, %c0_335] : memref<64x256xf32, #tpu.memory_space<vmem>>, vector<8x256xf32>
    %c32_336 = arith.constant 32 : index
    %c0_337 = arith.constant 0 : index
    %749 = vector.load %arg4[%c32_336, %c0_337] : memref<64x256xf32, #tpu.memory_space<vmem>>, vector<8x256xf32>
    %750 = arith.addf %748, %749 : vector<8x256xf32>
    %cst_338 = arith.constant dense<0.000000e+00> : vector<8x256xf32>
    %751 = tpu.matmul %743, %653, %cst_338 {dimension_numbers = #tpu.dot_dimension_numbers<[1], [0], [0], [1], [0, 0, 1, 1], [], []>} : vector<8x64xf32>, vector<64x256xf32>, vector<8x256xf32> -> vector<8x256xf32>
    %752 = arith.addf %750, %751 : vector<8x256xf32>
    %753 = vector.extract_strided_slice %752 {offsets = [0, 0], sizes = [8, 192], strides = [1, 1]} : vector<8x256xf32> to vector<8x192xf32>
    %754 = arith.negf %753 : vector<8x192xf32>
    %755 = math.exp %754 : vector<8x192xf32>
    %cst_339 = arith.constant 1.000000e+00 : f32
    %756 = vector.broadcast %cst_339 : f32 to vector<8x192xf32>
    %757 = arith.addf %756, %755 : vector<8x192xf32>
    %758 = arith.divf %756, %757 : vector<8x192xf32>
    %759 = vector.extract_strided_slice %752 {offsets = [0, 192], sizes = [8, 64], strides = [1, 1]} : vector<8x256xf32> to vector<8x64xf32>
    %760 = math.tanh %759 : vector<8x64xf32>
    %761 = vector.extract_strided_slice %758 {offsets = [0, 64], sizes = [8, 64], strides = [1, 1]} : vector<8x192xf32> to vector<8x64xf32>
    %762 = arith.mulf %761, %740 : vector<8x64xf32>
    %763 = vector.extract_strided_slice %758 {offsets = [0, 0], sizes = [8, 64], strides = [1, 1]} : vector<8x192xf32> to vector<8x64xf32>
    %764 = arith.mulf %763, %760 : vector<8x64xf32>
    %765 = arith.addf %762, %764 : vector<8x64xf32>
    %766 = vector.extract_strided_slice %758 {offsets = [0, 128], sizes = [8, 64], strides = [1, 1]} : vector<8x192xf32> to vector<8x64xf32>
    %767 = math.tanh %765 : vector<8x64xf32>
    %768 = arith.mulf %766, %767 : vector<8x64xf32>
    %769 = vector.extract_strided_slice %768 {offsets = [0, 0], sizes = [8, 32], strides = [1, 1]} : vector<8x64xf32> to vector<8x32xf32>
    %c24_340 = arith.constant 24 : index
    %c0_341 = arith.constant 0 : index
    %770 = vector.load %arg5[%c24_340, %c0_341] : memref<64x32xf32, #tpu.memory_space<vmem>>, vector<8x32xf32>
    tpu.vector_store %arg5[%c24_340, %c0_341], %769 {strides = array<i32>} : memref<64x32xf32, #tpu.memory_space<vmem>>, vector<8x32xf32>,
    %771 = vector.extract_strided_slice %768 {offsets = [0, 32], sizes = [8, 32], strides = [1, 1]} : vector<8x64xf32> to vector<8x32xf32>
    %c32_342 = arith.constant 32 : index
    %c0_343 = arith.constant 0 : index
    %772 = vector.load %arg6[%c32_342, %c0_343] : memref<64x32xf32, #tpu.memory_space<vmem>>, vector<8x32xf32>
    tpu.vector_store %arg6[%c32_342, %c0_343], %771 {strides = array<i32>} : memref<64x32xf32, #tpu.memory_space<vmem>>, vector<8x32xf32>,
    %c32_344 = arith.constant 32 : index
    %c0_345 = arith.constant 0 : index
    %773 = vector.load %arg3[%c32_344, %c0_345] : memref<64x256xf32, #tpu.memory_space<vmem>>, vector<8x256xf32>
    %c24_346 = arith.constant 24 : index
    %c0_347 = arith.constant 0 : index
    %774 = vector.load %arg4[%c24_346, %c0_347] : memref<64x256xf32, #tpu.memory_space<vmem>>, vector<8x256xf32>
    %775 = arith.addf %773, %774 : vector<8x256xf32>
    %cst_348 = arith.constant dense<0.000000e+00> : vector<8x256xf32>
    %776 = tpu.matmul %768, %653, %cst_348 {dimension_numbers = #tpu.dot_dimension_numbers<[1], [0], [0], [1], [0, 0, 1, 1], [], []>} : vector<8x64xf32>, vector<64x256xf32>, vector<8x256xf32> -> vector<8x256xf32>
    %777 = arith.addf %775, %776 : vector<8x256xf32>
    %778 = vector.extract_strided_slice %777 {offsets = [0, 0], sizes = [8, 192], strides = [1, 1]} : vector<8x256xf32> to vector<8x192xf32>
    %779 = arith.negf %778 : vector<8x192xf32>
    %780 = math.exp %779 : vector<8x192xf32>
    %cst_349 = arith.constant 1.000000e+00 : f32
    %781 = vector.broadcast %cst_349 : f32 to vector<8x192xf32>
    %782 = arith.addf %781, %780 : vector<8x192xf32>
    %783 = arith.divf %781, %782 : vector<8x192xf32>
    %784 = vector.extract_strided_slice %777 {offsets = [0, 192], sizes = [8, 64], strides = [1, 1]} : vector<8x256xf32> to vector<8x64xf32>
    %785 = math.tanh %784 : vector<8x64xf32>
    %786 = vector.extract_strided_slice %783 {offsets = [0, 64], sizes = [8, 64], strides = [1, 1]} : vector<8x192xf32> to vector<8x64xf32>
    %787 = arith.mulf %786, %765 : vector<8x64xf32>
    %788 = vector.extract_strided_slice %783 {offsets = [0, 0], sizes = [8, 64], strides = [1, 1]} : vector<8x192xf32> to vector<8x64xf32>
    %789 = arith.mulf %788, %785 : vector<8x64xf32>
    %790 = arith.addf %787, %789 : vector<8x64xf32>
    %791 = vector.extract_strided_slice %783 {offsets = [0, 128], sizes = [8, 64], strides = [1, 1]} : vector<8x192xf32> to vector<8x64xf32>
    %792 = math.tanh %790 : vector<8x64xf32>
    %793 = arith.mulf %791, %792 : vector<8x64xf32>
    %794 = vector.extract_strided_slice %793 {offsets = [0, 0], sizes = [8, 32], strides = [1, 1]} : vector<8x64xf32> to vector<8x32xf32>
    %c32_350 = arith.constant 32 : index
    %c0_351 = arith.constant 0 : index
    %795 = vector.load %arg5[%c32_350, %c0_351] : memref<64x32xf32, #tpu.memory_space<vmem>>, vector<8x32xf32>
    tpu.vector_store %arg5[%c32_350, %c0_351], %794 {strides = array<i32>} : memref<64x32xf32, #tpu.memory_space<vmem>>, vector<8x32xf32>,
    %796 = vector.extract_strided_slice %793 {offsets = [0, 32], sizes = [8, 32], strides = [1, 1]} : vector<8x64xf32> to vector<8x32xf32>
    %c24_352 = arith.constant 24 : index
    %c0_353 = arith.constant 0 : index
    %797 = vector.load %arg6[%c24_352, %c0_353] : memref<64x32xf32, #tpu.memory_space<vmem>>, vector<8x32xf32>
    tpu.vector_store %arg6[%c24_352, %c0_353], %796 {strides = array<i32>} : memref<64x32xf32, #tpu.memory_space<vmem>>, vector<8x32xf32>,
    %c40_354 = arith.constant 40 : index
    %c0_355 = arith.constant 0 : index
    %798 = vector.load %arg3[%c40_354, %c0_355] : memref<64x256xf32, #tpu.memory_space<vmem>>, vector<8x256xf32>
    %c16_356 = arith.constant 16 : index
    %c0_357 = arith.constant 0 : index
    %799 = vector.load %arg4[%c16_356, %c0_357] : memref<64x256xf32, #tpu.memory_space<vmem>>, vector<8x256xf32>
    %800 = arith.addf %798, %799 : vector<8x256xf32>
    %cst_358 = arith.constant dense<0.000000e+00> : vector<8x256xf32>
    %801 = tpu.matmul %793, %653, %cst_358 {dimension_numbers = #tpu.dot_dimension_numbers<[1], [0], [0], [1], [0, 0, 1, 1], [], []>} : vector<8x64xf32>, vector<64x256xf32>, vector<8x256xf32> -> vector<8x256xf32>
    %802 = arith.addf %800, %801 : vector<8x256xf32>
    %803 = vector.extract_strided_slice %802 {offsets = [0, 0], sizes = [8, 192], strides = [1, 1]} : vector<8x256xf32> to vector<8x192xf32>
    %804 = arith.negf %803 : vector<8x192xf32>
    %805 = math.exp %804 : vector<8x192xf32>
    %cst_359 = arith.constant 1.000000e+00 : f32
    %806 = vector.broadcast %cst_359 : f32 to vector<8x192xf32>
    %807 = arith.addf %806, %805 : vector<8x192xf32>
    %808 = arith.divf %806, %807 : vector<8x192xf32>
    %809 = vector.extract_strided_slice %802 {offsets = [0, 192], sizes = [8, 64], strides = [1, 1]} : vector<8x256xf32> to vector<8x64xf32>
    %810 = math.tanh %809 : vector<8x64xf32>
    %811 = vector.extract_strided_slice %808 {offsets = [0, 64], sizes = [8, 64], strides = [1, 1]} : vector<8x192xf32> to vector<8x64xf32>
    %812 = arith.mulf %811, %790 : vector<8x64xf32>
    %813 = vector.extract_strided_slice %808 {offsets = [0, 0], sizes = [8, 64], strides = [1, 1]} : vector<8x192xf32> to vector<8x64xf32>
    %814 = arith.mulf %813, %810 : vector<8x64xf32>
    %815 = arith.addf %812, %814 : vector<8x64xf32>
    %816 = vector.extract_strided_slice %808 {offsets = [0, 128], sizes = [8, 64], strides = [1, 1]} : vector<8x192xf32> to vector<8x64xf32>
    %817 = math.tanh %815 : vector<8x64xf32>
    %818 = arith.mulf %816, %817 : vector<8x64xf32>
    %819 = vector.extract_strided_slice %818 {offsets = [0, 0], sizes = [8, 32], strides = [1, 1]} : vector<8x64xf32> to vector<8x32xf32>
    %c40_360 = arith.constant 40 : index
    %c0_361 = arith.constant 0 : index
    %820 = vector.load %arg5[%c40_360, %c0_361] : memref<64x32xf32, #tpu.memory_space<vmem>>, vector<8x32xf32>
    tpu.vector_store %arg5[%c40_360, %c0_361], %819 {strides = array<i32>} : memref<64x32xf32, #tpu.memory_space<vmem>>, vector<8x32xf32>,
    %821 = vector.extract_strided_slice %818 {offsets = [0, 32], sizes = [8, 32], strides = [1, 1]} : vector<8x64xf32> to vector<8x32xf32>
    %c16_362 = arith.constant 16 : index
    %c0_363 = arith.constant 0 : index
    %822 = vector.load %arg6[%c16_362, %c0_363] : memref<64x32xf32, #tpu.memory_space<vmem>>, vector<8x32xf32>
    tpu.vector_store %arg6[%c16_362, %c0_363], %821 {strides = array<i32>} : memref<64x32xf32, #tpu.memory_space<vmem>>, vector<8x32xf32>,
    %c48_364 = arith.constant 48 : index
    %c0_365 = arith.constant 0 : index
    %823 = vector.load %arg3[%c48_364, %c0_365] : memref<64x256xf32, #tpu.memory_space<vmem>>, vector<8x256xf32>
    %c8_366 = arith.constant 8 : index
    %c0_367 = arith.constant 0 : index
    %824 = vector.load %arg4[%c8_366, %c0_367] : memref<64x256xf32, #tpu.memory_space<vmem>>, vector<8x256xf32>
    %825 = arith.addf %823, %824 : vector<8x256xf32>
    %cst_368 = arith.constant dense<0.000000e+00> : vector<8x256xf32>
    %826 = tpu.matmul %818, %653, %cst_368 {dimension_numbers = #tpu.dot_dimension_numbers<[1], [0], [0], [1], [0, 0, 1, 1], [], []>} : vector<8x64xf32>, vector<64x256xf32>, vector<8x256xf32> -> vector<8x256xf32>
    %827 = arith.addf %825, %826 : vector<8x256xf32>
    %828 = vector.extract_strided_slice %827 {offsets = [0, 0], sizes = [8, 192], strides = [1, 1]} : vector<8x256xf32> to vector<8x192xf32>
    %829 = arith.negf %828 : vector<8x192xf32>
    %830 = math.exp %829 : vector<8x192xf32>
    %cst_369 = arith.constant 1.000000e+00 : f32
    %831 = vector.broadcast %cst_369 : f32 to vector<8x192xf32>
    %832 = arith.addf %831, %830 : vector<8x192xf32>
    %833 = arith.divf %831, %832 : vector<8x192xf32>
    %834 = vector.extract_strided_slice %827 {offsets = [0, 192], sizes = [8, 64], strides = [1, 1]} : vector<8x256xf32> to vector<8x64xf32>
    %835 = math.tanh %834 : vector<8x64xf32>
    %836 = vector.extract_strided_slice %833 {offsets = [0, 64], sizes = [8, 64], strides = [1, 1]} : vector<8x192xf32> to vector<8x64xf32>
    %837 = arith.mulf %836, %815 : vector<8x64xf32>
    %838 = vector.extract_strided_slice %833 {offsets = [0, 0], sizes = [8, 64], strides = [1, 1]} : vector<8x192xf32> to vector<8x64xf32>
    %839 = arith.mulf %838, %835 : vector<8x64xf32>
    %840 = arith.addf %837, %839 : vector<8x64xf32>
    %841 = vector.extract_strided_slice %833 {offsets = [0, 128], sizes = [8, 64], strides = [1, 1]} : vector<8x192xf32> to vector<8x64xf32>
    %842 = math.tanh %840 : vector<8x64xf32>
    %843 = arith.mulf %841, %842 : vector<8x64xf32>
    %844 = vector.extract_strided_slice %843 {offsets = [0, 0], sizes = [8, 32], strides = [1, 1]} : vector<8x64xf32> to vector<8x32xf32>
    %c48_370 = arith.constant 48 : index
    %c0_371 = arith.constant 0 : index
    %845 = vector.load %arg5[%c48_370, %c0_371] : memref<64x32xf32, #tpu.memory_space<vmem>>, vector<8x32xf32>
    tpu.vector_store %arg5[%c48_370, %c0_371], %844 {strides = array<i32>} : memref<64x32xf32, #tpu.memory_space<vmem>>, vector<8x32xf32>,
    %846 = vector.extract_strided_slice %843 {offsets = [0, 32], sizes = [8, 32], strides = [1, 1]} : vector<8x64xf32> to vector<8x32xf32>
    %c8_372 = arith.constant 8 : index
    %c0_373 = arith.constant 0 : index
    %847 = vector.load %arg6[%c8_372, %c0_373] : memref<64x32xf32, #tpu.memory_space<vmem>>, vector<8x32xf32>
    tpu.vector_store %arg6[%c8_372, %c0_373], %846 {strides = array<i32>} : memref<64x32xf32, #tpu.memory_space<vmem>>, vector<8x32xf32>,
    %c56_374 = arith.constant 56 : index
    %c0_375 = arith.constant 0 : index
    %848 = vector.load %arg3[%c56_374, %c0_375] : memref<64x256xf32, #tpu.memory_space<vmem>>, vector<8x256xf32>
    %c0_376 = arith.constant 0 : index
    %c0_377 = arith.constant 0 : index
    %849 = vector.load %arg4[%c0_376, %c0_377] : memref<64x256xf32, #tpu.memory_space<vmem>>, vector<8x256xf32>
    %850 = arith.addf %848, %849 : vector<8x256xf32>
    %cst_378 = arith.constant dense<0.000000e+00> : vector<8x256xf32>
    %851 = tpu.matmul %843, %653, %cst_378 {dimension_numbers = #tpu.dot_dimension_numbers<[1], [0], [0], [1], [0, 0, 1, 1], [], []>} : vector<8x64xf32>, vector<64x256xf32>, vector<8x256xf32> -> vector<8x256xf32>
    %852 = arith.addf %850, %851 : vector<8x256xf32>
    %853 = vector.extract_strided_slice %852 {offsets = [0, 0], sizes = [8, 192], strides = [1, 1]} : vector<8x256xf32> to vector<8x192xf32>
    %854 = arith.negf %853 : vector<8x192xf32>
    %855 = math.exp %854 : vector<8x192xf32>
    %cst_379 = arith.constant 1.000000e+00 : f32
    %856 = vector.broadcast %cst_379 : f32 to vector<8x192xf32>
    %857 = arith.addf %856, %855 : vector<8x192xf32>
    %858 = arith.divf %856, %857 : vector<8x192xf32>
    %859 = vector.extract_strided_slice %852 {offsets = [0, 192], sizes = [8, 64], strides = [1, 1]} : vector<8x256xf32> to vector<8x64xf32>
    %860 = math.tanh %859 : vector<8x64xf32>
    %861 = vector.extract_strided_slice %858 {offsets = [0, 64], sizes = [8, 64], strides = [1, 1]} : vector<8x192xf32> to vector<8x64xf32>
    %862 = arith.mulf %861, %840 : vector<8x64xf32>
    %863 = vector.extract_strided_slice %858 {offsets = [0, 0], sizes = [8, 64], strides = [1, 1]} : vector<8x192xf32> to vector<8x64xf32>
    %864 = arith.mulf %863, %860 : vector<8x64xf32>
    %865 = arith.addf %862, %864 : vector<8x64xf32>
    %866 = vector.extract_strided_slice %858 {offsets = [0, 128], sizes = [8, 64], strides = [1, 1]} : vector<8x192xf32> to vector<8x64xf32>
    %867 = math.tanh %865 : vector<8x64xf32>
    %868 = arith.mulf %866, %867 : vector<8x64xf32>
    %869 = vector.extract_strided_slice %868 {offsets = [0, 0], sizes = [8, 32], strides = [1, 1]} : vector<8x64xf32> to vector<8x32xf32>
    %c56_380 = arith.constant 56 : index
    %c0_381 = arith.constant 0 : index
    %870 = vector.load %arg5[%c56_380, %c0_381] : memref<64x32xf32, #tpu.memory_space<vmem>>, vector<8x32xf32>
    tpu.vector_store %arg5[%c56_380, %c0_381], %869 {strides = array<i32>} : memref<64x32xf32, #tpu.memory_space<vmem>>, vector<8x32xf32>,
    %871 = vector.extract_strided_slice %868 {offsets = [0, 32], sizes = [8, 32], strides = [1, 1]} : vector<8x64xf32> to vector<8x32xf32>
    %c0_382 = arith.constant 0 : index
    %c0_383 = arith.constant 0 : index
    %872 = vector.load %arg6[%c0_382, %c0_383] : memref<64x32xf32, #tpu.memory_space<vmem>>, vector<8x32xf32>
    tpu.vector_store %arg6[%c0_382, %c0_383], %871 {strides = array<i32>} : memref<64x32xf32, #tpu.memory_space<vmem>>, vector<8x32xf32>,
    %c56_384 = arith.constant 56 : index
    %c0_385 = arith.constant 0 : index
    %873 = vector.load %arg5[%c56_384, %c0_385] : memref<64x32xf32, #tpu.memory_space<vmem>>, vector<8x32xf32>
    %c56_386 = arith.constant 56 : index
    %c0_387 = arith.constant 0 : index
    %874 = vector.load %arg6[%c56_386, %c0_387] : memref<64x32xf32, #tpu.memory_space<vmem>>, vector<8x32xf32>
    %c720 = arith.constant 720 : index
    %c0_388 = arith.constant 0 : index
    %875 = vector.load %arg1[%c720, %c0_388] : memref<856x256xf32, #tpu.memory_space<vmem>>, vector<32x32xf32>
    %c752 = arith.constant 752 : index
    %c0_389 = arith.constant 0 : index
    %876 = vector.load %arg1[%c752, %c0_389] : memref<856x256xf32, #tpu.memory_space<vmem>>, vector<32x32xf32>
    %c832 = arith.constant 832 : index
    %c0_390 = arith.constant 0 : index
    %877 = vector.load %arg1[%c832, %c0_390] : memref<856x256xf32, #tpu.memory_space<vmem>>, vector<1x32xf32>
    %c784 = arith.constant 784 : index
    %c0_391 = arith.constant 0 : index
    %878 = vector.load %arg1[%c784, %c0_391] : memref<856x256xf32, #tpu.memory_space<vmem>>, vector<32x16xf32>
    %c840 = arith.constant 840 : index
    %c0_392 = arith.constant 0 : index
    %879 = vector.load %arg1[%c840, %c0_392] : memref<856x256xf32, #tpu.memory_space<vmem>>, vector<1x16xf32>
    %c816 = arith.constant 816 : index
    %c0_393 = arith.constant 0 : index
    %880 = vector.load %arg1[%c816, %c0_393] : memref<856x256xf32, #tpu.memory_space<vmem>>, vector<16x1xf32>
    %c848 = arith.constant 848 : index
    %c0_394 = arith.constant 0 : index
    %881 = vector.load %arg1[%c848, %c0_394] : memref<856x256xf32, #tpu.memory_space<vmem>>, vector<1x1xf32>
    %cst_395 = arith.constant dense<0.000000e+00> : vector<8x32xf32>
    %882 = tpu.matmul %873, %875, %cst_395 {dimension_numbers = #tpu.dot_dimension_numbers<[1], [0], [0], [1], [0, 0, 1, 1], [], []>} : vector<8x32xf32>, vector<32x32xf32>, vector<8x32xf32> -> vector<8x32xf32>
    %cst_396 = arith.constant dense<0.000000e+00> : vector<8x32xf32>
    %883 = tpu.matmul %874, %876, %cst_396 {dimension_numbers = #tpu.dot_dimension_numbers<[1], [0], [0], [1], [0, 0, 1, 1], [], []>} : vector<8x32xf32>, vector<32x32xf32>, vector<8x32xf32> -> vector<8x32xf32>
    %884 = arith.addf %882, %883 : vector<8x32xf32>
    %885 = vector.broadcast %877 : vector<1x32xf32> to vector<8x32xf32>
    %886 = arith.addf %884, %885 : vector<8x32xf32>
    %cst_397 = arith.constant 0.000000e+00 : f32
    %887 = vector.broadcast %cst_397 : f32 to vector<8x32xf32>
    %888 = arith.maximumf %886, %887 : vector<8x32xf32>
    %cst_398 = arith.constant dense<0.000000e+00> : vector<8x16xf32>
    %889 = tpu.matmul %888, %878, %cst_398 {dimension_numbers = #tpu.dot_dimension_numbers<[1], [0], [0], [1], [0, 0, 1, 1], [], []>} : vector<8x32xf32>, vector<32x16xf32>, vector<8x16xf32> -> vector<8x16xf32>
    %890 = vector.broadcast %879 : vector<1x16xf32> to vector<8x16xf32>
    %891 = arith.addf %889, %890 : vector<8x16xf32>
    %cst_399 = arith.constant 0.000000e+00 : f32
    %892 = vector.broadcast %cst_399 : f32 to vector<8x16xf32>
    %893 = arith.maximumf %891, %892 : vector<8x16xf32>
    %cst_400 = arith.constant dense<0.000000e+00> : vector<8x1xf32>
    %894 = tpu.matmul %893, %880, %cst_400 {dimension_numbers = #tpu.dot_dimension_numbers<[1], [0], [0], [1], [0, 0, 1, 1], [], []>} : vector<8x16xf32>, vector<16x1xf32>, vector<8x1xf32> -> vector<8x1xf32>
    %895 = vector.broadcast %881 : vector<1x1xf32> to vector<8x1xf32>
    %896 = arith.addf %894, %895 : vector<8x1xf32>
    %c0_401 = arith.constant 0 : index
    %c0_402 = arith.constant 0 : index
    %897 = vector.load %arg2[%c0_401, %c0_402] : memref<8x1xf32, #tpu.memory_space<vmem>>, vector<8x1xf32>
    tpu.vector_store %arg2[%c0_401, %c0_402], %896 {strides = array<i32>} : memref<8x1xf32, #tpu.memory_space<vmem>>, vector<8x1xf32>,
    return
  }
}

</mosaic_0001>

<llo_original>
// kernel: forward.1
$region0: #{forward.1}
  #allocation0 [shape = 'u32[]', space=smem, size = 0x4, offset = 0x4, fixed_abs, tag = 'smem constant byte address 0x4 - core index']
  #allocation1 [shape = 'u32[144,128]{1,0:T(1,128)}', space=vmem, size = 0x12000, scoped, tag = 'internal scratch']
  #allocation2 [shape = 'f32[64,256]{1,0:T(8,128)}', space=vmem, size = 0x10000, scoped, tag = 'scratch operand']
  #allocation3 [shape = 'f32[64,256]{1,0:T(8,128)}', space=vmem, size = 0x10000, scoped, tag = 'scratch operand']
  #allocation4 [shape = 'f32[64,32]{1,0:T(8,128)}', space=vmem, size = 0x8000, scoped, tag = 'scratch operand']
  #allocation5 [shape = 'f32[64,32]{1,0:T(8,128)}', space=vmem, size = 0x8000, scoped, tag = 'scratch operand']
  %s0 = inlined_call_operand.vmem [shape: f32[64,8], index: 0, kind: input, shape index: {}]
  %s1 = inlined_call_operand.hbm [shape: f32[856,256], index: 1, kind: input, shape index: {}]
  %s2 = inlined_call_operand.vmem [shape: f32[8,1], index: 2, kind: output, shape index: {}]
  %s3 = sld [smem:[#allocation0]]
  $region22: #{forward.1} parent=0
    _
  %s5 = ssub.s32 1, %s3
  %s6 = scalar_select 0, %s5, %s3
  $region1: #{forward.1} parent=0
    #allocation6 [shape = 'u8[876544]{0}', space=vmem, size = 0xd6000, scoped, tag = 'input window, operand 1, single buffered']
    #allocation7 [shape = 's32[1]{0}', space=sflag, size = 0x4, scoped, tag = 'scoped memory for forward.1']
    %7 = vsyncpa [#allocation7], 0
    // Predicated region
    $region2: #{forward.1} parent=1 // pred_check
      _
    $region3: #{forward.1} parent=1 // pred_check_branch
      %9 = sbr.rel (0) target = $region5
    $region4: #{forward.1} parent=1 // pred_region
      _
    $region5: #{forward.1} parent=1 // pred_fallthru
      _
    // Predicated region
    $region6: #{forward.1} parent=1 // pred_check
      _
    $region7: #{forward.1} parent=1 // pred_check_branch
      %11 = sbr.rel (0) target = $region9
    $region8: #{forward.1} parent=1 // pred_region
      %s13 = ssub.s32 27392, 27392
      %14 = vsyncadd [#allocation7], %s13
      %s15 = sshll.u32 [#allocation6], 4
      %s16 = int_to_ptr.vmem [resolvable:$true] %s15
      %21 = dma.hbm_to_vmem [thread:$0]  %s1, 27392, %s16, [#allocation7], 256, 256, 16
    $region9: #{forward.1} parent=1 // pred_fallthru
      _
    // Predicated region
    $region10: #{forward.1} parent=1 // pred_check
      _
    $region11: #{forward.1} parent=1 // pred_check_branch
      %23 = sbr.rel (0) target = $region13
    $region12: #{forward.1} parent=1 // pred_region
      %24 = dma.done [#allocation7], 27392
    $region13: #{forward.1} parent=1 // pred_fallthru
      _
    %v25 = vld [vmem:[#allocation6 + $0x20] sm:$0xff]
    %v26 = vld [vmem:[#allocation6 + $0x28] sm:$0xff]
    %v27 = vld [vmem:[#allocation6 + $0x30] sm:$0xff]
    %v28 = vld [vmem:[#allocation6 + $0x38] sm:$0xff]
    %v29 = vld [vmem:[#allocation6 + $0x40] sm:$0xff]
    %v30 = vld [vmem:[#allocation6 + $0x48] sm:$0xff]
    %v31 = vld [vmem:[#allocation6 + $0x50] sm:$0xff]
    %v32 = vld [vmem:[#allocation6 + $0x58] sm:$0xff]
    %v33 = vld [vmem:[#allocation6 + $0x60] sm:$0xff]
    %v34 = vld [vmem:[#allocation6 + $0x68] sm:$0xff]
    %v35 = vld [vmem:[#allocation6 + $0x70] sm:$0xff]
    %v36 = vld [vmem:[#allocation6 + $0x78] sm:$0xff]
    %v37 = vld [vmem:[#allocation6 + $0x80] sm:$0xff]
    %v38 = vld [vmem:[#allocation6 + $0x88] sm:$0xff]
    %v39 = vld [vmem:[#allocation6 + $0x90] sm:$0xff]
    %v40 = vld [vmem:[#allocation6 + $0x98] sm:$0xff]
    %s41 = scalar_lea.vmem [#allocation6], 160
    %v42 = vld [vmem:[%s41] ss:$8 sm:$0x3]
    %s43 = scalar_lea.vmem [#allocation6], 176
    %v44 = vld [vmem:[%s43] ss:$8 sm:$0x3]
    %v45 = vld [vmem:[%s0] sm:$0xff]
    %v46 = vld [vmem:[%s0 + $0x8] sm:$0xff]
    %v47 = vld [vmem:[%s0 + $0x10] sm:$0xff]
    %v48 = vld [vmem:[%s0 + $0x18] sm:$0xff]
    %v49 = vld [vmem:[%s0 + $0x20] sm:$0xff]
    %v50 = vld [vmem:[%s0 + $0x28] sm:$0xff]
    %v51 = vld [vmem:[%s0 + $0x30] sm:$0xff]
    %v52 = vld [vmem:[%s0 + $0x38] sm:$0xff]
    %v53 = vld [vmem:[#allocation6] sm:$0xff]
    %v54 = vld [vmem:[#allocation6 + $0x8] sm:$0xff]
    %v56 = vlaneseq
    %v57 = vshrl.u32 %v56, 7
    %v58 = vsub.s32 0, %v57
    %v59 = vrot.slane %v42, %v58
    %v60 = vlaneseq
    %v61 = vshrl.u32 %v60, 7
    %v62 = vsub.s32 1, %v61
    %v63 = vrot.slane %v42, %v62
    %vm66 = vcmask 64512
    %v68 = vsel %vm66, %v45, 0
    %v71 = vsel %vm66, %v46, 0
    %v74 = vsel %vm66, %v47, 0
    %v77 = vsel %vm66, %v48, 0
    %v80 = vsel %vm66, %v49, 0
    %v83 = vsel %vm66, %v50, 0
    %v86 = vsel %vm66, %v51, 0
    %v89 = vsel %vm66, %v52, 0
    %91 = vmatprep.subr.mxu0 %v54
    %92 = vmatpush1.msra.mxu0 %v53
    %93 = vmatprep.subr.mxu0 0.0
    %94 = vmatpush1.msra.mxu0 0.0
    %95 = vmatprep.subr.mxu0 0.0
    %96 = vmatpush1.msra.mxu0 0.0
    %97 = vmatprep.subr.mxu0 0.0
    %98 = vmatpush1.msra.mxu0 0.0
    %99 = vmatprep.subr.mxu0 0.0
    %100 = vmatpush1.msra.mxu0 0.0
    %101 = vmatprep.subr.mxu0 0.0
    %102 = vmatpush1.msra.mxu0 0.0
    %103 = vmatprep.subr.mxu0 0.0
    %104 = vmatpush1.msra.mxu0 0.0
    %105 = vmatprep.subr.mxu0 0.0
    %106 = vmatpush1.msra.mxu0 0.0
    %107 = vmatprep.subr.mxu0 0.0
    %108 = vmatpush1.msra.mxu0 0.0
    %109 = vmatprep.subr.mxu0 0.0
    %110 = vmatpush1.msra.mxu0 0.0
    %111 = vmatprep.subr.mxu0 0.0
    %112 = vmatpush1.msra.mxu0 0.0
    %113 = vmatprep.subr.mxu0 0.0
    %114 = vmatpush1.msra.mxu0 0.0
    %115 = vmatprep.subr.mxu0 0.0
    %116 = vmatpush1.msra.mxu0 0.0
    %117 = vmatprep.subr.mxu0 0.0
    %118 = vmatpush1.msra.mxu0 0.0
    %119 = vmatprep.subr.mxu0 0.0
    %120 = vmatpush1.msra.mxu0 0.0
    %121 = vmatprep.subr.mxu0 0.0
    %122 = vmatpush1.msra.mxu0 0.0
    %123 = vmatprep.subr.mxu0 0.0
    %124 = vmatpush1.msra.mxu0 0.0
    %125 = vmatprep.subr.mxu0 0.0
    %126 = vmatpush1.msra.mxu0 0.0
    %127 = vmatprep.subr.mxu0 0.0
    %128 = vmatpush1.msra.mxu0 0.0
    %129 = vmatprep.subr.mxu0 0.0
    %130 = vmatpush1.msra.mxu0 0.0
    %131 = vmatprep.subr.mxu0 0.0
    %132 = vmatpush1.msra.mxu0 0.0
    %133 = vmatprep.subr.mxu0 0.0
    %134 = vmatpush1.msra.mxu0 0.0
    %135 = vmatprep.subr.mxu0 0.0
    %136 = vmatpush1.msra.mxu0 0.0
    %137 = vmatprep.subr.mxu0 0.0
    %138 = vmatpush1.msra.mxu0 0.0
    %139 = vmatprep.subr.mxu0 0.0
    %140 = vmatpush1.msra.mxu0 0.0
    %141 = vmatprep.subr.mxu0 0.0
    %142 = vmatpush1.msra.mxu0 0.0
    %143 = vmatprep.subr.mxu0 0.0
    %144 = vmatpush1.msra.mxu0 0.0
    %145 = vmatprep.subr.mxu0 0.0
    %146 = vmatpush1.msra.mxu0 0.0
    %147 = vmatprep.subr.mxu0 0.0
    %148 = vmatpush1.msra.mxu0 0.0
    %149 = vmatprep.subr.mxu0 0.0
    %150 = vmatpush1.msra.mxu0 0.0
    %151 = vmatprep.subr.mxu0 0.0
    %152 = vmatpush1.msra.mxu0 0.0
    %153 = vmatprep.subr.mxu0 0.0
    %154 = vmatpush1.msra.mxu0 0.0
    %155 = vmatprep.mubr.f32.mxu0 0.0
    %156 = vmatmul.mubr.f32.gmra.mrb[0].mxu0 %v68
    %v157 = vpop.f32.mrb[0].mxu0
    %v158 = vadd.f32 %v59, %v157
    %v159 = vpop.f32.mrb[0].mxu0
    %v160 = vadd.f32 %v63, %v159
    %161 = vmatprep.mubr.f32.mxu0 0.0
    %162 = vmatmul.mubr.f32.gmra.mrb[0].mxu0 %v71
    %v163 = vpop.f32.mrb[0].mxu0
    %v164 = vadd.f32 %v59, %v163
    %v165 = vpop.f32.mrb[0].mxu0
    %v166 = vadd.f32 %v63, %v165
    %167 = vmatprep.mubr.f32.mxu0 0.0
    %168 = vmatmul.mubr.f32.gmra.mrb[0].mxu0 %v74
    %v169 = vpop.f32.mrb[0].mxu0
    %v170 = vadd.f32 %v59, %v169
    %v171 = vpop.f32.mrb[0].mxu0
    %v172 = vadd.f32 %v63, %v171
    %173 = vmatprep.mubr.f32.mxu0 0.0
    %174 = vmatmul.mubr.f32.gmra.mrb[0].mxu0 %v77
    %v175 = vpop.f32.mrb[0].mxu0
    %v176 = vadd.f32 %v59, %v175
    %v177 = vpop.f32.mrb[0].mxu0
    %v178 = vadd.f32 %v63, %v177
    %179 = vmatprep.mubr.f32.mxu0 0.0
    %180 = vmatmul.mubr.f32.gmra.mrb[0].mxu0 %v80
    %v181 = vpop.f32.mrb[0].mxu0
    %v182 = vadd.f32 %v59, %v181
    %v183 = vpop.f32.mrb[0].mxu0
    %v184 = vadd.f32 %v63, %v183
    %185 = vmatprep.mubr.f32.mxu0 0.0
    %186 = vmatmul.mubr.f32.gmra.mrb[0].mxu0 %v83
    %v187 = vpop.f32.mrb[0].mxu0
    %v188 = vadd.f32 %v59, %v187
    %v189 = vpop.f32.mrb[0].mxu0
    %v190 = vadd.f32 %v63, %v189
    %191 = vmatprep.mubr.f32.mxu0 0.0
    %192 = vmatmul.mubr.f32.gmra.mrb[0].mxu0 %v86
    %v193 = vpop.f32.mrb[0].mxu0
    %v194 = vadd.f32 %v59, %v193
    %v195 = vpop.f32.mrb[0].mxu0
    %v196 = vadd.f32 %v63, %v195
    %197 = vmatprep.mubr.f32.mxu0 0.0
    %198 = vmatmul.mubr.f32.gmra.mrb[0].mxu0 %v89
    %v199 = vpop.f32.mrb[0].mxu0
    %v200 = vadd.f32 %v59, %v199
    %v201 = vpop.f32.mrb[0].mxu0
    %v202 = vadd.f32 %v63, %v201
    %203 = vdwg.mxu0
    %204 = vst [vmem:[#allocation2] sm:$0xff] %v158
    %205 = vst [vmem:[#allocation2 + $0x8] sm:$0xff] %v160
    %206 = vst [vmem:[#allocation2 + $0x10] sm:$0xff] %v164
    %207 = vst [vmem:[#allocation2 + $0x18] sm:$0xff] %v166
    %208 = vst [vmem:[#allocation2 + $0x20] sm:$0xff] %v170
    %209 = vst [vmem:[#allocation2 + $0x28] sm:$0xff] %v172
    %210 = vst [vmem:[#allocation2 + $0x30] sm:$0xff] %v176
    %211 = vst [vmem:[#allocation2 + $0x38] sm:$0xff] %v178
    %212 = vst [vmem:[#allocation2 + $0x40] sm:$0xff] %v182
    %213 = vst [vmem:[#allocation2 + $0x48] sm:$0xff] %v184
    %214 = vst [vmem:[#allocation2 + $0x50] sm:$0xff] %v188
    %215 = vst [vmem:[#allocation2 + $0x58] sm:$0xff] %v190
    %216 = vst [vmem:[#allocation2 + $0x60] sm:$0xff] %v194
    %217 = vst [vmem:[#allocation2 + $0x68] sm:$0xff] %v196
    %218 = vst [vmem:[#allocation2 + $0x70] sm:$0xff] %v200
    %219 = vst [vmem:[#allocation2 + $0x78] sm:$0xff] %v202
    %v220 = vld [vmem:[#allocation6 + $0x10] sm:$0xff]
    %v221 = vld [vmem:[#allocation6 + $0x18] sm:$0xff]
    %v223 = vlaneseq
    %v224 = vshrl.u32 %v223, 7
    %v225 = vsub.s32 0, %v224
    %v226 = vrot.slane %v44, %v225
    %v227 = vlaneseq
    %v228 = vshrl.u32 %v227, 7
    %v229 = vsub.s32 1, %v228
    %v230 = vrot.slane %v44, %v229
    %233 = vmatprep.subr.mxu0 %v221
    %234 = vmatpush1.msra.mxu0 %v220
    %235 = vmatprep.subr.mxu0 0.0
    %236 = vmatpush1.msra.mxu0 0.0
    %237 = vmatprep.subr.mxu0 0.0
    %238 = vmatpush1.msra.mxu0 0.0
    %239 = vmatprep.subr.mxu0 0.0
    %240 = vmatpush1.msra.mxu0 0.0
    %241 = vmatprep.subr.mxu0 0.0
    %242 = vmatpush1.msra.mxu0 0.0
    %243 = vmatprep.subr.mxu0 0.0
    %244 = vmatpush1.msra.mxu0 0.0
    %245 = vmatprep.subr.mxu0 0.0
    %246 = vmatpush1.msra.mxu0 0.0
    %247 = vmatprep.subr.mxu0 0.0
    %248 = vmatpush1.msra.mxu0 0.0
    %249 = vmatprep.subr.mxu0 0.0
    %250 = vmatpush1.msra.mxu0 0.0
    %251 = vmatprep.subr.mxu0 0.0
    %252 = vmatpush1.msra.mxu0 0.0
    %253 = vmatprep.subr.mxu0 0.0
    %254 = vmatpush1.msra.mxu0 0.0
    %255 = vmatprep.subr.mxu0 0.0
    %256 = vmatpush1.msra.mxu0 0.0
    %257 = vmatprep.subr.mxu0 0.0
    %258 = vmatpush1.msra.mxu0 0.0
    %259 = vmatprep.subr.mxu0 0.0
    %260 = vmatpush1.msra.mxu0 0.0
    %261 = vmatprep.subr.mxu0 0.0
    %262 = vmatpush1.msra.mxu0 0.0
    %263 = vmatprep.subr.mxu0 0.0
    %264 = vmatpush1.msra.mxu0 0.0
    %265 = vmatprep.subr.mxu0 0.0
    %266 = vmatpush1.msra.mxu0 0.0
    %267 = vmatprep.subr.mxu0 0.0
    %268 = vmatpush1.msra.mxu0 0.0
    %269 = vmatprep.subr.mxu0 0.0
    %270 = vmatpush1.msra.mxu0 0.0
    %271 = vmatprep.subr.mxu0 0.0
    %272 = vmatpush1.msra.mxu0 0.0
    %273 = vmatprep.subr.mxu0 0.0
    %274 = vmatpush1.msra.mxu0 0.0
    %275 = vmatprep.subr.mxu0 0.0
    %276 = vmatpush1.msra.mxu0 0.0
    %277 = vmatprep.subr.mxu0 0.0
    %278 = vmatpush1.msra.mxu0 0.0
    %279 = vmatprep.subr.mxu0 0.0
    %280 = vmatpush1.msra.mxu0 0.0
    %281 = vmatprep.subr.mxu0 0.0
    %282 = vmatpush1.msra.mxu0 0.0
    %283 = vmatprep.subr.mxu0 0.0
    %284 = vmatpush1.msra.mxu0 0.0
    %285 = vmatprep.subr.mxu0 0.0
    %286 = vmatpush1.msra.mxu0 0.0
    %287 = vmatprep.subr.mxu0 0.0
    %288 = vmatpush1.msra.mxu0 0.0
    %289 = vmatprep.subr.mxu0 0.0
    %290 = vmatpush1.msra.mxu0 0.0
    %291 = vmatprep.subr.mxu0 0.0
    %292 = vmatpush1.msra.mxu0 0.0
    %293 = vmatprep.subr.mxu0 0.0
    %294 = vmatpush1.msra.mxu0 0.0
    %295 = vmatprep.subr.mxu0 0.0
    %296 = vmatpush1.msra.mxu0 0.0
    %297 = vmatprep.mubr.f32.mxu0 0.0
    %298 = vmatmul.mubr.f32.gmra.mrb[0].mxu0 %v68
    %v299 = vpop.f32.mrb[0].mxu0
    %v300 = vadd.f32 %v226, %v299
    %v301 = vpop.f32.mrb[0].mxu0
    %v302 = vadd.f32 %v230, %v301
    %303 = vmatprep.mubr.f32.mxu0 0.0
    %304 = vmatmul.mubr.f32.gmra.mrb[0].mxu0 %v71
    %v305 = vpop.f32.mrb[0].mxu0
    %v306 = vadd.f32 %v226, %v305
    %v307 = vpop.f32.mrb[0].mxu0
    %v308 = vadd.f32 %v230, %v307
    %309 = vmatprep.mubr.f32.mxu0 0.0
    %310 = vmatmul.mubr.f32.gmra.mrb[0].mxu0 %v74
    %v311 = vpop.f32.mrb[0].mxu0
    %v312 = vadd.f32 %v226, %v311
    %v313 = vpop.f32.mrb[0].mxu0
    %v314 = vadd.f32 %v230, %v313
    %315 = vmatprep.mubr.f32.mxu0 0.0
    %316 = vmatmul.mubr.f32.gmra.mrb[0].mxu0 %v77
    %v317 = vpop.f32.mrb[0].mxu0
    %v318 = vadd.f32 %v226, %v317
    %v319 = vpop.f32.mrb[0].mxu0
    %v320 = vadd.f32 %v230, %v319
    %321 = vmatprep.mubr.f32.mxu0 0.0
    %322 = vmatmul.mubr.f32.gmra.mrb[0].mxu0 %v80
    %v323 = vpop.f32.mrb[0].mxu0
    %v324 = vadd.f32 %v226, %v323
    %v325 = vpop.f32.mrb[0].mxu0
    %v326 = vadd.f32 %v230, %v325
    %327 = vmatprep.mubr.f32.mxu0 0.0
    %328 = vmatmul.mubr.f32.gmra.mrb[0].mxu0 %v83
    %v329 = vpop.f32.mrb[0].mxu0
    %v330 = vadd.f32 %v226, %v329
    %v331 = vpop.f32.mrb[0].mxu0
    %v332 = vadd.f32 %v230, %v331
    %333 = vmatprep.mubr.f32.mxu0 0.0
    %334 = vmatmul.mubr.f32.gmra.mrb[0].mxu0 %v86
    %v335 = vpop.f32.mrb[0].mxu0
    %v336 = vadd.f32 %v226, %v335
    %v337 = vpop.f32.mrb[0].mxu0
    %v338 = vadd.f32 %v230, %v337
    %339 = vmatprep.mubr.f32.mxu0 0.0
    %340 = vmatmul.mubr.f32.gmra.mrb[0].mxu0 %v89
    %v341 = vpop.f32.mrb[0].mxu0
    %v342 = vadd.f32 %v226, %v341
    %v343 = vpop.f32.mrb[0].mxu0
    %v344 = vadd.f32 %v230, %v343
    %345 = vdwg.mxu0
    %346 = vst [vmem:[#allocation3] sm:$0xff] %v300
    %347 = vst [vmem:[#allocation3 + $0x8] sm:$0xff] %v302
    %348 = vst [vmem:[#allocation3 + $0x10] sm:$0xff] %v306
    %349 = vst [vmem:[#allocation3 + $0x18] sm:$0xff] %v308
    %350 = vst [vmem:[#allocation3 + $0x20] sm:$0xff] %v312
    %351 = vst [vmem:[#allocation3 + $0x28] sm:$0xff] %v314
    %352 = vst [vmem:[#allocation3 + $0x30] sm:$0xff] %v318
    %353 = vst [vmem:[#allocation3 + $0x38] sm:$0xff] %v320
    %354 = vst [vmem:[#allocation3 + $0x40] sm:$0xff] %v324
    %355 = vst [vmem:[#allocation3 + $0x48] sm:$0xff] %v326
    %356 = vst [vmem:[#allocation3 + $0x50] sm:$0xff] %v330
    %357 = vst [vmem:[#allocation3 + $0x58] sm:$0xff] %v332
    %358 = vst [vmem:[#allocation3 + $0x60] sm:$0xff] %v336
    %359 = vst [vmem:[#allocation3 + $0x68] sm:$0xff] %v338
    %360 = vst [vmem:[#allocation3 + $0x70] sm:$0xff] %v342
    %361 = vst [vmem:[#allocation3 + $0x78] sm:$0xff] %v344
    %v362 = vld [vmem:[#allocation2] sm:$0xff]
    %v363 = vld [vmem:[#allocation2 + $0x8] sm:$0xff]
    %v364 = vld [vmem:[#allocation3 + $0x70] sm:$0xff]
    %v365 = vld [vmem:[#allocation3 + $0x78] sm:$0xff]
    %v366 = vadd.f32 %v362, %v364
    %v367 = vadd.f32 %v363, %v365
    %v368 = vxor.u32 %v366, 2147483648
    %v369 = vxor.u32 %v367, 2147483648
    %v370 = vmul.f32 %v368, 1.442695
    %v371 = vpow.pop %v370
    %v372 = vmul.f32 %v369, 1.442695
    %v373 = vpow.pop %v372
    %v374 = vadd.f32 %v371, 1.0
    %v375 = vadd.f32 %v373, 1.0
    %v376 = vrcp.pop %v374
    %v377 = vmul.f32 1.0, %v376
    %v378 = vrcp.pop %v375
    %v379 = vmul.f32 1.0, %v378
    %v380 = vtanh.pop %v367
    %v381 = vmul.f32 %v377, 0.0
    %383 = vrot.lane.b32.xlu0 %v380, 64
    %v384 = vpop.permute.xlu0 %383
    %v386 = vmul.f32 %v377, %v384
    %388 = vrot.lane.b32.xlu0 %v386, 64
    %v389 = vpop.permute.xlu0 %388
    %v391 = vadd.f32 %v381, %v389
    %v392 = vtanh.pop %v391
    %394 = vrot.lane.b32.xlu0 %v392, 64
    %v395 = vpop.permute.xlu0 %394
    %v397 = vmul.f32 %v379, %v395
    %vm398 = vcmask 261120
    %399 = vst.msk [vmem:[#allocation4] sm:$0xff] %vm398, %v397
    %401 = vrot.lane.b32.xlu0 %v397, 96
    %v402 = vpop.permute.xlu0 %401
    %404 = vst.msk [vmem:[#allocation5 + $0x38] sm:$0xff] %vm398, %v402
    %v405 = vld [vmem:[#allocation2 + $0x10] sm:$0xff]
    %v406 = vld [vmem:[#allocation2 + $0x18] sm:$0xff]
    %v407 = vld [vmem:[#allocation3 + $0x60] sm:$0xff]
    %v408 = vld [vmem:[#allocation3 + $0x68] sm:$0xff]
    %v409 = vadd.f32 %v405, %v407
    %v410 = vadd.f32 %v406, %v408
    %vm411 = vcmask 523264
    %v412 = vsel %vm411, %v397, 0
    %414 = vmatprep.subr.mxu0 %v26
    %415 = vmatpush1.msra.mxu0 %v25
    %416 = vmatprep.subr.mxu0 %v28
    %417 = vmatpush1.msra.mxu0 %v27
    %418 = vmatprep.subr.mxu0 %v30
    %419 = vmatpush1.msra.mxu0 %v29
    %420 = vmatprep.subr.mxu0 %v32
    %421 = vmatpush1.msra.mxu0 %v31
    %422 = vmatprep.subr.mxu0 %v34
    %423 = vmatpush1.msra.mxu0 %v33
    %424 = vmatprep.subr.mxu0 %v36
    %425 = vmatpush1.msra.mxu0 %v35
    %426 = vmatprep.subr.mxu0 %v38
    %427 = vmatpush1.msra.mxu0 %v37
    %428 = vmatprep.subr.mxu0 %v40
    %429 = vmatpush1.msra.mxu0 %v39
    %430 = vmatprep.subr.mxu0 0.0
    %431 = vmatpush1.msra.mxu0 0.0
    %432 = vmatprep.subr.mxu0 0.0
    %433 = vmatpush1.msra.mxu0 0.0
    %434 = vmatprep.subr.mxu0 0.0
    %435 = vmatpush1.msra.mxu0 0.0
    %436 = vmatprep.subr.mxu0 0.0
    %437 = vmatpush1.msra.mxu0 0.0
    %438 = vmatprep.subr.mxu0 0.0
    %439 = vmatpush1.msra.mxu0 0.0
    %440 = vmatprep.subr.mxu0 0.0
    %441 = vmatpush1.msra.mxu0 0.0
    %442 = vmatprep.subr.mxu0 0.0
    %443 = vmatpush1.msra.mxu0 0.0
    %444 = vmatprep.subr.mxu0 0.0
    %445 = vmatpush1.msra.mxu0 0.0
    %446 = vmatprep.subr.mxu0 0.0
    %447 = vmatpush1.msra.mxu0 0.0
    %448 = vmatprep.subr.mxu0 0.0
    %449 = vmatpush1.msra.mxu0 0.0
    %450 = vmatprep.subr.mxu0 0.0
    %451 = vmatpush1.msra.mxu0 0.0
    %452 = vmatprep.subr.mxu0 0.0
    %453 = vmatpush1.msra.mxu0 0.0
    %454 = vmatprep.subr.mxu0 0.0
    %455 = vmatpush1.msra.mxu0 0.0
    %456 = vmatprep.subr.mxu0 0.0
    %457 = vmatpush1.msra.mxu0 0.0
    %458 = vmatprep.subr.mxu0 0.0
    %459 = vmatpush1.msra.mxu0 0.0
    %460 = vmatprep.subr.mxu0 0.0
    %461 = vmatpush1.msra.mxu0 0.0
    %462 = vmatprep.subr.mxu0 0.0
    %463 = vmatpush1.msra.mxu0 0.0
    %464 = vmatprep.subr.mxu0 0.0
    %465 = vmatpush1.msra.mxu0 0.0
    %466 = vmatprep.subr.mxu0 0.0
    %467 = vmatpush1.msra.mxu0 0.0
    %468 = vmatprep.subr.mxu0 0.0
    %469 = vmatpush1.msra.mxu0 0.0
    %470 = vmatprep.subr.mxu0 0.0
    %471 = vmatpush1.msra.mxu0 0.0
    %472 = vmatprep.subr.mxu0 0.0
    %473 = vmatpush1.msra.mxu0 0.0
    %474 = vmatprep.subr.mxu0 0.0
    %475 = vmatpush1.msra.mxu0 0.0
    %476 = vmatprep.subr.mxu0 0.0
    %477 = vmatpush1.msra.mxu0 0.0
    %478 = vmatprep.mubr.f32.mxu0 0.0
    %479 = vmatmul.mubr.f32.gmra.mrb[0].mxu0 %v412
    %v480 = vpop.f32.mrb[0].mxu0
    %v481 = vadd.f32 0.0, %v480
    %v482 = vpop.f32.mrb[0].mxu0
    %v483 = vadd.f32 0.0, %v482
    %484 = vdwg.mxu0
    %v485 = vadd.f32 %v409, %v481
    %v486 = vadd.f32 %v410, %v483
    %v487 = vxor.u32 %v485, 2147483648
    %v488 = vxor.u32 %v486, 2147483648
    %v489 = vmul.f32 %v487, 1.442695
    %v490 = vpow.pop %v489
    %v491 = vmul.f32 %v488, 1.442695
    %v492 = vpow.pop %v491
    %v493 = vadd.f32 %v490, 1.0
    %v494 = vadd.f32 %v492, 1.0
    %v495 = vrcp.pop %v493
    %v496 = vmul.f32 1.0, %v495
    %v497 = vrcp.pop %v494
    %v498 = vmul.f32 1.0, %v497
    %v499 = vtanh.pop %v486
    %v500 = vmul.f32 %v496, %v391
    %502 = vrot.lane.b32.xlu0 %v499, 64
    %v503 = vpop.permute.xlu0 %502
    %v505 = vmul.f32 %v496, %v503
    %507 = vrot.lane.b32.xlu0 %v505, 64
    %v508 = vpop.permute.xlu0 %507
    %v510 = vadd.f32 %v500, %v508
    %v511 = vtanh.pop %v510
    %513 = vrot.lane.b32.xlu0 %v511, 64
    %v514 = vpop.permute.xlu0 %513
    %v516 = vmul.f32 %v498, %v514
    %517 = vst.msk [vmem:[#allocation4 + $0x8] sm:$0xff] %vm398, %v516
    %519 = vrot.lane.b32.xlu0 %v516, 96
    %v520 = vpop.permute.xlu0 %519
    %522 = vst.msk [vmem:[#allocation5 + $0x30] sm:$0xff] %vm398, %v520
    %v523 = vld [vmem:[#allocation2 + $0x20] sm:$0xff]
    %v524 = vld [vmem:[#allocation2 + $0x28] sm:$0xff]
    %v525 = vld [vmem:[#allocation3 + $0x50] sm:$0xff]
    %v526 = vld [vmem:[#allocation3 + $0x58] sm:$0xff]
    %v527 = vadd.f32 %v523, %v525
    %v528 = vadd.f32 %v524, %v526
    %v529 = vsel %vm411, %v516, 0
    %531 = vmatprep.subr.mxu0 %v26
    %532 = vmatpush1.msra.mxu0 %v25
    %533 = vmatprep.subr.mxu0 %v28
    %534 = vmatpush1.msra.mxu0 %v27
    %535 = vmatprep.subr.mxu0 %v30
    %536 = vmatpush1.msra.mxu0 %v29
    %537 = vmatprep.subr.mxu0 %v32
    %538 = vmatpush1.msra.mxu0 %v31
    %539 = vmatprep.subr.mxu0 %v34
    %540 = vmatpush1.msra.mxu0 %v33
    %541 = vmatprep.subr.mxu0 %v36
    %542 = vmatpush1.msra.mxu0 %v35
    %543 = vmatprep.subr.mxu0 %v38
    %544 = vmatpush1.msra.mxu0 %v37
    %545 = vmatprep.subr.mxu0 %v40
    %546 = vmatpush1.msra.mxu0 %v39
    %547 = vmatprep.subr.mxu0 0.0
    %548 = vmatpush1.msra.mxu0 0.0
    %549 = vmatprep.subr.mxu0 0.0
    %550 = vmatpush1.msra.mxu0 0.0
    %551 = vmatprep.subr.mxu0 0.0
    %552 = vmatpush1.msra.mxu0 0.0
    %553 = vmatprep.subr.mxu0 0.0
    %554 = vmatpush1.msra.mxu0 0.0
    %555 = vmatprep.subr.mxu0 0.0
    %556 = vmatpush1.msra.mxu0 0.0
    %557 = vmatprep.subr.mxu0 0.0
    %558 = vmatpush1.msra.mxu0 0.0
    %559 = vmatprep.subr.mxu0 0.0
    %560 = vmatpush1.msra.mxu0 0.0
    %561 = vmatprep.subr.mxu0 0.0
    %562 = vmatpush1.msra.mxu0 0.0
    %563 = vmatprep.subr.mxu0 0.0
    %564 = vmatpush1.msra.mxu0 0.0
    %565 = vmatprep.subr.mxu0 0.0
    %566 = vmatpush1.msra.mxu0 0.0
    %567 = vmatprep.subr.mxu0 0.0
    %568 = vmatpush1.msra.mxu0 0.0
    %569 = vmatprep.subr.mxu0 0.0
    %570 = vmatpush1.msra.mxu0 0.0
    %571 = vmatprep.subr.mxu0 0.0
    %572 = vmatpush1.msra.mxu0 0.0
    %573 = vmatprep.subr.mxu0 0.0
    %574 = vmatpush1.msra.mxu0 0.0
    %575 = vmatprep.subr.mxu0 0.0
    %576 = vmatpush1.msra.mxu0 0.0
    %577 = vmatprep.subr.mxu0 0.0
    %578 = vmatpush1.msra.mxu0 0.0
    %579 = vmatprep.subr.mxu0 0.0
    %580 = vmatpush1.msra.mxu0 0.0
    %581 = vmatprep.subr.mxu0 0.0
    %582 = vmatpush1.msra.mxu0 0.0
    %583 = vmatprep.subr.mxu0 0.0
    %584 = vmatpush1.msra.mxu0 0.0
    %585 = vmatprep.subr.mxu0 0.0
    %586 = vmatpush1.msra.mxu0 0.0
    %587 = vmatprep.subr.mxu0 0.0
    %588 = vmatpush1.msra.mxu0 0.0
    %589 = vmatprep.subr.mxu0 0.0
    %590 = vmatpush1.msra.mxu0 0.0
    %591 = vmatprep.subr.mxu0 0.0
    %592 = vmatpush1.msra.mxu0 0.0
    %593 = vmatprep.subr.mxu0 0.0
    %594 = vmatpush1.msra.mxu0 0.0
    %595 = vmatprep.mubr.f32.mxu0 0.0
    %596 = vmatmul.mubr.f32.gmra.mrb[0].mxu0 %v529
    %v597 = vpop.f32.mrb[0].mxu0
    %v598 = vadd.f32 0.0, %v597
    %v599 = vpop.f32.mrb[0].mxu0
    %v600 = vadd.f32 0.0, %v599
    %601 = vdwg.mxu0
    %v602 = vadd.f32 %v527, %v598
    %v603 = vadd.f32 %v528, %v600
    %v604 = vxor.u32 %v602, 2147483648
    %v605 = vxor.u32 %v603, 2147483648
    %v606 = vmul.f32 %v604, 1.442695
    %v607 = vpow.pop %v606
    %v608 = vmul.f32 %v605, 1.442695
    %v609 = vpow.pop %v608
    %v610 = vadd.f32 %v607, 1.0
    %v611 = vadd.f32 %v609, 1.0
    %v612 = vrcp.pop %v610
    %v613 = vmul.f32 1.0, %v612
    %v614 = vrcp.pop %v611
    %v615 = vmul.f32 1.0, %v614
    %v616 = vtanh.pop %v603
    %v617 = vmul.f32 %v613, %v510
    %619 = vrot.lane.b32.xlu0 %v616, 64
    %v620 = vpop.permute.xlu0 %619
    %v622 = vmul.f32 %v613, %v620
    %624 = vrot.lane.b32.xlu0 %v622, 64
    %v625 = vpop.permute.xlu0 %624
    %v627 = vadd.f32 %v617, %v625
    %v628 = vtanh.pop %v627
    %630 = vrot.lane.b32.xlu0 %v628, 64
    %v631 = vpop.permute.xlu0 %630
    %v633 = vmul.f32 %v615, %v631
    %634 = vst.msk [vmem:[#allocation4 + $0x10] sm:$0xff] %vm398, %v633
    %636 = vrot.lane.b32.xlu0 %v633, 96
    %v637 = vpop.permute.xlu0 %636
    %639 = vst.msk [vmem:[#allocation5 + $0x28] sm:$0xff] %vm398, %v637
    %v640 = vld [vmem:[#allocation2 + $0x30] sm:$0xff]
    %v641 = vld [vmem:[#allocation2 + $0x38] sm:$0xff]
    %v642 = vld [vmem:[#allocation3 + $0x40] sm:$0xff]
    %v643 = vld [vmem:[#allocation3 + $0x48] sm:$0xff]
    %v644 = vadd.f32 %v640, %v642
    %v645 = vadd.f32 %v641, %v643
    %v646 = vsel %vm411, %v633, 0
    %648 = vmatprep.subr.mxu0 %v26
    %649 = vmatpush1.msra.mxu0 %v25
    %650 = vmatprep.subr.mxu0 %v28
    %651 = vmatpush1.msra.mxu0 %v27
    %652 = vmatprep.subr.mxu0 %v30
    %653 = vmatpush1.msra.mxu0 %v29
    %654 = vmatprep.subr.mxu0 %v32
    %655 = vmatpush1.msra.mxu0 %v31
    %656 = vmatprep.subr.mxu0 %v34
    %657 = vmatpush1.msra.mxu0 %v33
    %658 = vmatprep.subr.mxu0 %v36
    %659 = vmatpush1.msra.mxu0 %v35
    %660 = vmatprep.subr.mxu0 %v38
    %661 = vmatpush1.msra.mxu0 %v37
    %662 = vmatprep.subr.mxu0 %v40
    %663 = vmatpush1.msra.mxu0 %v39
    %664 = vmatprep.subr.mxu0 0.0
    %665 = vmatpush1.msra.mxu0 0.0
    %666 = vmatprep.subr.mxu0 0.0
    %667 = vmatpush1.msra.mxu0 0.0
    %668 = vmatprep.subr.mxu0 0.0
    %669 = vmatpush1.msra.mxu0 0.0
    %670 = vmatprep.subr.mxu0 0.0
    %671 = vmatpush1.msra.mxu0 0.0
    %672 = vmatprep.subr.mxu0 0.0
    %673 = vmatpush1.msra.mxu0 0.0
    %674 = vmatprep.subr.mxu0 0.0
    %675 = vmatpush1.msra.mxu0 0.0
    %676 = vmatprep.subr.mxu0 0.0
    %677 = vmatpush1.msra.mxu0 0.0
    %678 = vmatprep.subr.mxu0 0.0
    %679 = vmatpush1.msra.mxu0 0.0
    %680 = vmatprep.subr.mxu0 0.0
    %681 = vmatpush1.msra.mxu0 0.0
    %682 = vmatprep.subr.mxu0 0.0
    %683 = vmatpush1.msra.mxu0 0.0
    %684 = vmatprep.subr.mxu0 0.0
    %685 = vmatpush1.msra.mxu0 0.0
    %686 = vmatprep.subr.mxu0 0.0
    %687 = vmatpush1.msra.mxu0 0.0
    %688 = vmatprep.subr.mxu0 0.0
    %689 = vmatpush1.msra.mxu0 0.0
    %690 = vmatprep.subr.mxu0 0.0
    %691 = vmatpush1.msra.mxu0 0.0
    %692 = vmatprep.subr.mxu0 0.0
    %693 = vmatpush1.msra.mxu0 0.0
    %694 = vmatprep.subr.mxu0 0.0
    %695 = vmatpush1.msra.mxu0 0.0
    %696 = vmatprep.subr.mxu0 0.0
    %697 = vmatpush1.msra.mxu0 0.0
    %698 = vmatprep.subr.mxu0 0.0
    %699 = vmatpush1.msra.mxu0 0.0
    %700 = vmatprep.subr.mxu0 0.0
    %701 = vmatpush1.msra.mxu0 0.0
    %702 = vmatprep.subr.mxu0 0.0
    %703 = vmatpush1.msra.mxu0 0.0
    %704 = vmatprep.subr.mxu0 0.0
    %705 = vmatpush1.msra.mxu0 0.0
    %706 = vmatprep.subr.mxu0 0.0
    %707 = vmatpush1.msra.mxu0 0.0
    %708 = vmatprep.subr.mxu0 0.0
    %709 = vmatpush1.msra.mxu0 0.0
    %710 = vmatprep.subr.mxu0 0.0
    %711 = vmatpush1.msra.mxu0 0.0
    %712 = vmatprep.mubr.f32.mxu0 0.0
    %713 = vmatmul.mubr.f32.gmra.mrb[0].mxu0 %v646
    %v714 = vpop.f32.mrb[0].mxu0
    %v715 = vadd.f32 0.0, %v714
    %v716 = vpop.f32.mrb[0].mxu0
    %v717 = vadd.f32 0.0, %v716
    %718 = vdwg.mxu0
    %v719 = vadd.f32 %v644, %v715
    %v720 = vadd.f32 %v645, %v717
    %v721 = vxor.u32 %v719, 2147483648
    %v722 = vxor.u32 %v720, 2147483648
    %v723 = vmul.f32 %v721, 1.442695
    %v724 = vpow.pop %v723
    %v725 = vmul.f32 %v722, 1.442695
    %v726 = vpow.pop %v725
    %v727 = vadd.f32 %v724, 1.0
    %v728 = vadd.f32 %v726, 1.0
    %v729 = vrcp.pop %v727
    %v730 = vmul.f32 1.0, %v729
    %v731 = vrcp.pop %v728
    %v732 = vmul.f32 1.0, %v731
    %v733 = vtanh.pop %v720
    %v734 = vmul.f32 %v730, %v627
    %736 = vrot.lane.b32.xlu0 %v733, 64
    %v737 = vpop.permute.xlu0 %736
    %v739 = vmul.f32 %v730, %v737
    %741 = vrot.lane.b32.xlu0 %v739, 64
    %v742 = vpop.permute.xlu0 %741
    %v744 = vadd.f32 %v734, %v742
    %v745 = vtanh.pop %v744
    %747 = vrot.lane.b32.xlu0 %v745, 64
    %v748 = vpop.permute.xlu0 %747
    %v750 = vmul.f32 %v732, %v748
    %751 = vst.msk [vmem:[#allocation4 + $0x18] sm:$0xff] %vm398, %v750
    %753 = vrot.lane.b32.xlu0 %v750, 96
    %v754 = vpop.permute.xlu0 %753
    %756 = vst.msk [vmem:[#allocation5 + $0x20] sm:$0xff] %vm398, %v754
    %v757 = vld [vmem:[#allocation2 + $0x40] sm:$0xff]
    %v758 = vld [vmem:[#allocation2 + $0x48] sm:$0xff]
    %v759 = vld [vmem:[#allocation3 + $0x30] sm:$0xff]
    %v760 = vld [vmem:[#allocation3 + $0x38] sm:$0xff]
    %v761 = vadd.f32 %v757, %v759
    %v762 = vadd.f32 %v758, %v760
    %v763 = vsel %vm411, %v750, 0
    %765 = vmatprep.subr.mxu0 %v26
    %766 = vmatpush1.msra.mxu0 %v25
    %767 = vmatprep.subr.mxu0 %v28
    %768 = vmatpush1.msra.mxu0 %v27
    %769 = vmatprep.subr.mxu0 %v30
    %770 = vmatpush1.msra.mxu0 %v29
    %771 = vmatprep.subr.mxu0 %v32
    %772 = vmatpush1.msra.mxu0 %v31
    %773 = vmatprep.subr.mxu0 %v34
    %774 = vmatpush1.msra.mxu0 %v33
    %775 = vmatprep.subr.mxu0 %v36
    %776 = vmatpush1.msra.mxu0 %v35
    %777 = vmatprep.subr.mxu0 %v38
    %778 = vmatpush1.msra.mxu0 %v37
    %779 = vmatprep.subr.mxu0 %v40
    %780 = vmatpush1.msra.mxu0 %v39
    %781 = vmatprep.subr.mxu0 0.0
    %782 = vmatpush1.msra.mxu0 0.0
    %783 = vmatprep.subr.mxu0 0.0
    %784 = vmatpush1.msra.mxu0 0.0
    %785 = vmatprep.subr.mxu0 0.0
    %786 = vmatpush1.msra.mxu0 0.0
    %787 = vmatprep.subr.mxu0 0.0
    %788 = vmatpush1.msra.mxu0 0.0
    %789 = vmatprep.subr.mxu0 0.0
    %790 = vmatpush1.msra.mxu0 0.0
    %791 = vmatprep.subr.mxu0 0.0
    %792 = vmatpush1.msra.mxu0 0.0
    %793 = vmatprep.subr.mxu0 0.0
    %794 = vmatpush1.msra.mxu0 0.0
    %795 = vmatprep.subr.mxu0 0.0
    %796 = vmatpush1.msra.mxu0 0.0
    %797 = vmatprep.subr.mxu0 0.0
    %798 = vmatpush1.msra.mxu0 0.0
    %799 = vmatprep.subr.mxu0 0.0
    %800 = vmatpush1.msra.mxu0 0.0
    %801 = vmatprep.subr.mxu0 0.0
    %802 = vmatpush1.msra.mxu0 0.0
    %803 = vmatprep.subr.mxu0 0.0
    %804 = vmatpush1.msra.mxu0 0.0
    %805 = vmatprep.subr.mxu0 0.0
    %806 = vmatpush1.msra.mxu0 0.0
    %807 = vmatprep.subr.mxu0 0.0
    %808 = vmatpush1.msra.mxu0 0.0
    %809 = vmatprep.subr.mxu0 0.0
    %810 = vmatpush1.msra.mxu0 0.0
    %811 = vmatprep.subr.mxu0 0.0
    %812 = vmatpush1.msra.mxu0 0.0
    %813 = vmatprep.subr.mxu0 0.0
    %814 = vmatpush1.msra.mxu0 0.0
    %815 = vmatprep.subr.mxu0 0.0
    %816 = vmatpush1.msra.mxu0 0.0
    %817 = vmatprep.subr.mxu0 0.0
    %818 = vmatpush1.msra.mxu0 0.0
    %819 = vmatprep.subr.mxu0 0.0
    %820 = vmatpush1.msra.mxu0 0.0
    %821 = vmatprep.subr.mxu0 0.0
    %822 = vmatpush1.msra.mxu0 0.0
    %823 = vmatprep.subr.mxu0 0.0
    %824 = vmatpush1.msra.mxu0 0.0
    %825 = vmatprep.subr.mxu0 0.0
    %826 = vmatpush1.msra.mxu0 0.0
    %827 = vmatprep.subr.mxu0 0.0
    %828 = vmatpush1.msra.mxu0 0.0
    %829 = vmatprep.mubr.f32.mxu0 0.0
    %830 = vmatmul.mubr.f32.gmra.mrb[0].mxu0 %v763
    %v831 = vpop.f32.mrb[0].mxu0
    %v832 = vadd.f32 0.0, %v831
    %v833 = vpop.f32.mrb[0].mxu0
    %v834 = vadd.f32 0.0, %v833
    %835 = vdwg.mxu0
    %v836 = vadd.f32 %v761, %v832
    %v837 = vadd.f32 %v762, %v834
    %v838 = vxor.u32 %v836, 2147483648
    %v839 = vxor.u32 %v837, 2147483648
    %v840 = vmul.f32 %v838, 1.442695
    %v841 = vpow.pop %v840
    %v842 = vmul.f32 %v839, 1.442695
    %v843 = vpow.pop %v842
    %v844 = vadd.f32 %v841, 1.0
    %v845 = vadd.f32 %v843, 1.0
    %v846 = vrcp.pop %v844
    %v847 = vmul.f32 1.0, %v846
    %v848 = vrcp.pop %v845
    %v849 = vmul.f32 1.0, %v848
    %v850 = vtanh.pop %v837
    %v851 = vmul.f32 %v847, %v744
    %853 = vrot.lane.b32.xlu0 %v850, 64
    %v854 = vpop.permute.xlu0 %853
    %v856 = vmul.f32 %v847, %v854
    %858 = vrot.lane.b32.xlu0 %v856, 64
    %v859 = vpop.permute.xlu0 %858
    %v861 = vadd.f32 %v851, %v859
    %v862 = vtanh.pop %v861
    %864 = vrot.lane.b32.xlu0 %v862, 64
    %v865 = vpop.permute.xlu0 %864
    %v867 = vmul.f32 %v849, %v865
    %868 = vst.msk [vmem:[#allocation4 + $0x20] sm:$0xff] %vm398, %v867
    %870 = vrot.lane.b32.xlu0 %v867, 96
    %v871 = vpop.permute.xlu0 %870
    %873 = vst.msk [vmem:[#allocation5 + $0x18] sm:$0xff] %vm398, %v871
    %v874 = vld [vmem:[#allocation2 + $0x50] sm:$0xff]
    %v875 = vld [vmem:[#allocation2 + $0x58] sm:$0xff]
    %v876 = vld [vmem:[#allocation3 + $0x20] sm:$0xff]
    %v877 = vld [vmem:[#allocation3 + $0x28] sm:$0xff]
    %v878 = vadd.f32 %v874, %v876
    %v879 = vadd.f32 %v875, %v877
    %v880 = vsel %vm411, %v867, 0
    %882 = vmatprep.subr.mxu0 %v26
    %883 = vmatpush1.msra.mxu0 %v25
    %884 = vmatprep.subr.mxu0 %v28
    %885 = vmatpush1.msra.mxu0 %v27
    %886 = vmatprep.subr.mxu0 %v30
    %887 = vmatpush1.msra.mxu0 %v29
    %888 = vmatprep.subr.mxu0 %v32
    %889 = vmatpush1.msra.mxu0 %v31
    %890 = vmatprep.subr.mxu0 %v34
    %891 = vmatpush1.msra.mxu0 %v33
    %892 = vmatprep.subr.mxu0 %v36
    %893 = vmatpush1.msra.mxu0 %v35
    %894 = vmatprep.subr.mxu0 %v38
    %895 = vmatpush1.msra.mxu0 %v37
    %896 = vmatprep.subr.mxu0 %v40
    %897 = vmatpush1.msra.mxu0 %v39
    %898 = vmatprep.subr.mxu0 0.0
    %899 = vmatpush1.msra.mxu0 0.0
    %900 = vmatprep.subr.mxu0 0.0
    %901 = vmatpush1.msra.mxu0 0.0
    %902 = vmatprep.subr.mxu0 0.0
    %903 = vmatpush1.msra.mxu0 0.0
    %904 = vmatprep.subr.mxu0 0.0
    %905 = vmatpush1.msra.mxu0 0.0
    %906 = vmatprep.subr.mxu0 0.0
    %907 = vmatpush1.msra.mxu0 0.0
    %908 = vmatprep.subr.mxu0 0.0
    %909 = vmatpush1.msra.mxu0 0.0
    %910 = vmatprep.subr.mxu0 0.0
    %911 = vmatpush1.msra.mxu0 0.0
    %912 = vmatprep.subr.mxu0 0.0
    %913 = vmatpush1.msra.mxu0 0.0
    %914 = vmatprep.subr.mxu0 0.0
    %915 = vmatpush1.msra.mxu0 0.0
    %916 = vmatprep.subr.mxu0 0.0
    %917 = vmatpush1.msra.mxu0 0.0
    %918 = vmatprep.subr.mxu0 0.0
    %919 = vmatpush1.msra.mxu0 0.0
    %920 = vmatprep.subr.mxu0 0.0
    %921 = vmatpush1.msra.mxu0 0.0
    %922 = vmatprep.subr.mxu0 0.0
    %923 = vmatpush1.msra.mxu0 0.0
    %924 = vmatprep.subr.mxu0 0.0
    %925 = vmatpush1.msra.mxu0 0.0
    %926 = vmatprep.subr.mxu0 0.0
    %927 = vmatpush1.msra.mxu0 0.0
    %928 = vmatprep.subr.mxu0 0.0
    %929 = vmatpush1.msra.mxu0 0.0
    %930 = vmatprep.subr.mxu0 0.0
    %931 = vmatpush1.msra.mxu0 0.0
    %932 = vmatprep.subr.mxu0 0.0
    %933 = vmatpush1.msra.mxu0 0.0
    %934 = vmatprep.subr.mxu0 0.0
    %935 = vmatpush1.msra.mxu0 0.0
    %936 = vmatprep.subr.mxu0 0.0
    %937 = vmatpush1.msra.mxu0 0.0
    %938 = vmatprep.subr.mxu0 0.0
    %939 = vmatpush1.msra.mxu0 0.0
    %940 = vmatprep.subr.mxu0 0.0
    %941 = vmatpush1.msra.mxu0 0.0
    %942 = vmatprep.subr.mxu0 0.0
    %943 = vmatpush1.msra.mxu0 0.0
    %944 = vmatprep.subr.mxu0 0.0
    %945 = vmatpush1.msra.mxu0 0.0
    %946 = vmatprep.mubr.f32.mxu0 0.0
    %947 = vmatmul.mubr.f32.gmra.mrb[0].mxu0 %v880
    %v948 = vpop.f32.mrb[0].mxu0
    %v949 = vadd.f32 0.0, %v948
    %v950 = vpop.f32.mrb[0].mxu0
    %v951 = vadd.f32 0.0, %v950
    %952 = vdwg.mxu0
    %v953 = vadd.f32 %v878, %v949
    %v954 = vadd.f32 %v879, %v951
    %v955 = vxor.u32 %v953, 2147483648
    %v956 = vxor.u32 %v954, 2147483648
    %v957 = vmul.f32 %v955, 1.442695
    %v958 = vpow.pop %v957
    %v959 = vmul.f32 %v956, 1.442695
    %v960 = vpow.pop %v959
    %v961 = vadd.f32 %v958, 1.0
    %v962 = vadd.f32 %v960, 1.0
    %v963 = vrcp.pop %v961
    %v964 = vmul.f32 1.0, %v963
    %v965 = vrcp.pop %v962
    %v966 = vmul.f32 1.0, %v965
    %v967 = vtanh.pop %v954
    %v968 = vmul.f32 %v964, %v861
    %970 = vrot.lane.b32.xlu0 %v967, 64
    %v971 = vpop.permute.xlu0 %970
    %v973 = vmul.f32 %v964, %v971
    %975 = vrot.lane.b32.xlu0 %v973, 64
    %v976 = vpop.permute.xlu0 %975
    %v978 = vadd.f32 %v968, %v976
    %v979 = vtanh.pop %v978
    %981 = vrot.lane.b32.xlu0 %v979, 64
    %v982 = vpop.permute.xlu0 %981
    %v984 = vmul.f32 %v966, %v982
    %985 = vst.msk [vmem:[#allocation4 + $0x28] sm:$0xff] %vm398, %v984
    %987 = vrot.lane.b32.xlu0 %v984, 96
    %v988 = vpop.permute.xlu0 %987
    %990 = vst.msk [vmem:[#allocation5 + $0x10] sm:$0xff] %vm398, %v988
    %v991 = vld [vmem:[#allocation2 + $0x60] sm:$0xff]
    %v992 = vld [vmem:[#allocation2 + $0x68] sm:$0xff]
    %v993 = vld [vmem:[#allocation3 + $0x10] sm:$0xff]
    %v994 = vld [vmem:[#allocation3 + $0x18] sm:$0xff]
    %v995 = vadd.f32 %v991, %v993
    %v996 = vadd.f32 %v992, %v994
    %v997 = vsel %vm411, %v984, 0
    %999 = vmatprep.subr.mxu0 %v26
    %1000 = vmatpush1.msra.mxu0 %v25
    %1001 = vmatprep.subr.mxu0 %v28
    %1002 = vmatpush1.msra.mxu0 %v27
    %1003 = vmatprep.subr.mxu0 %v30
    %1004 = vmatpush1.msra.mxu0 %v29
    %1005 = vmatprep.subr.mxu0 %v32
    %1006 = vmatpush1.msra.mxu0 %v31
    %1007 = vmatprep.subr.mxu0 %v34
    %1008 = vmatpush1.msra.mxu0 %v33
    %1009 = vmatprep.subr.mxu0 %v36
    %1010 = vmatpush1.msra.mxu0 %v35
    %1011 = vmatprep.subr.mxu0 %v38
    %1012 = vmatpush1.msra.mxu0 %v37
    %1013 = vmatprep.subr.mxu0 %v40
    %1014 = vmatpush1.msra.mxu0 %v39
    %1015 = vmatprep.subr.mxu0 0.0
    %1016 = vmatpush1.msra.mxu0 0.0
    %1017 = vmatprep.subr.mxu0 0.0
    %1018 = vmatpush1.msra.mxu0 0.0
    %1019 = vmatprep.subr.mxu0 0.0
    %1020 = vmatpush1.msra.mxu0 0.0
    %1021 = vmatprep.subr.mxu0 0.0
    %1022 = vmatpush1.msra.mxu0 0.0
    %1023 = vmatprep.subr.mxu0 0.0
    %1024 = vmatpush1.msra.mxu0 0.0
    %1025 = vmatprep.subr.mxu0 0.0
    %1026 = vmatpush1.msra.mxu0 0.0
    %1027 = vmatprep.subr.mxu0 0.0
    %1028 = vmatpush1.msra.mxu0 0.0
    %1029 = vmatprep.subr.mxu0 0.0
    %1030 = vmatpush1.msra.mxu0 0.0
    %1031 = vmatprep.subr.mxu0 0.0
    %1032 = vmatpush1.msra.mxu0 0.0
    %1033 = vmatprep.subr.mxu0 0.0
    %1034 = vmatpush1.msra.mxu0 0.0
    %1035 = vmatprep.subr.mxu0 0.0
    %1036 = vmatpush1.msra.mxu0 0.0
    %1037 = vmatprep.subr.mxu0 0.0
    %1038 = vmatpush1.msra.mxu0 0.0
    %1039 = vmatprep.subr.mxu0 0.0
    %1040 = vmatpush1.msra.mxu0 0.0
    %1041 = vmatprep.subr.mxu0 0.0
    %1042 = vmatpush1.msra.mxu0 0.0
    %1043 = vmatprep.subr.mxu0 0.0
    %1044 = vmatpush1.msra.mxu0 0.0
    %1045 = vmatprep.subr.mxu0 0.0
    %1046 = vmatpush1.msra.mxu0 0.0
    %1047 = vmatprep.subr.mxu0 0.0
    %1048 = vmatpush1.msra.mxu0 0.0
    %1049 = vmatprep.subr.mxu0 0.0
    %1050 = vmatpush1.msra.mxu0 0.0
    %1051 = vmatprep.subr.mxu0 0.0
    %1052 = vmatpush1.msra.mxu0 0.0
    %1053 = vmatprep.subr.mxu0 0.0
    %1054 = vmatpush1.msra.mxu0 0.0
    %1055 = vmatprep.subr.mxu0 0.0
    %1056 = vmatpush1.msra.mxu0 0.0
    %1057 = vmatprep.subr.mxu0 0.0
    %1058 = vmatpush1.msra.mxu0 0.0
    %1059 = vmatprep.subr.mxu0 0.0
    %1060 = vmatpush1.msra.mxu0 0.0
    %1061 = vmatprep.subr.mxu0 0.0
    %1062 = vmatpush1.msra.mxu0 0.0
    %1063 = vmatprep.mubr.f32.mxu0 0.0
    %1064 = vmatmul.mubr.f32.gmra.mrb[0].mxu0 %v997
    %v1065 = vpop.f32.mrb[0].mxu0
    %v1066 = vadd.f32 0.0, %v1065
    %v1067 = vpop.f32.mrb[0].mxu0
    %v1068 = vadd.f32 0.0, %v1067
    %1069 = vdwg.mxu0
    %v1070 = vadd.f32 %v995, %v1066
    %v1071 = vadd.f32 %v996, %v1068
    %v1072 = vxor.u32 %v1070, 2147483648
    %v1073 = vxor.u32 %v1071, 2147483648
    %v1074 = vmul.f32 %v1072, 1.442695
    %v1075 = vpow.pop %v1074
    %v1076 = vmul.f32 %v1073, 1.442695
    %v1077 = vpow.pop %v1076
    %v1078 = vadd.f32 %v1075, 1.0
    %v1079 = vadd.f32 %v1077, 1.0
    %v1080 = vrcp.pop %v1078
    %v1081 = vmul.f32 1.0, %v1080
    %v1082 = vrcp.pop %v1079
    %v1083 = vmul.f32 1.0, %v1082
    %v1084 = vtanh.pop %v1071
    %v1085 = vmul.f32 %v1081, %v978
    %1087 = vrot.lane.b32.xlu0 %v1084, 64
    %v1088 = vpop.permute.xlu0 %1087
    %v1090 = vmul.f32 %v1081, %v1088
    %1092 = vrot.lane.b32.xlu0 %v1090, 64
    %v1093 = vpop.permute.xlu0 %1092
    %v1095 = vadd.f32 %v1085, %v1093
    %v1096 = vtanh.pop %v1095
    %1098 = vrot.lane.b32.xlu0 %v1096, 64
    %v1099 = vpop.permute.xlu0 %1098
    %v1101 = vmul.f32 %v1083, %v1099
    %1102 = vst.msk [vmem:[#allocation4 + $0x30] sm:$0xff] %vm398, %v1101
    %1104 = vrot.lane.b32.xlu0 %v1101, 96
    %v1105 = vpop.permute.xlu0 %1104
    %1107 = vst.msk [vmem:[#allocation5 + $0x8] sm:$0xff] %vm398, %v1105
    %v1108 = vld [vmem:[#allocation2 + $0x70] sm:$0xff]
    %v1109 = vld [vmem:[#allocation2 + $0x78] sm:$0xff]
    %v1110 = vld [vmem:[#allocation3] sm:$0xff]
    %v1111 = vld [vmem:[#allocation3 + $0x8] sm:$0xff]
    %v1112 = vadd.f32 %v1108, %v1110
    %v1113 = vadd.f32 %v1109, %v1111
    %v1114 = vsel %vm411, %v1101, 0
    %1116 = vmatprep.subr.mxu0 %v26
    %1117 = vmatpush1.msra.mxu0 %v25
    %1118 = vmatprep.subr.mxu0 %v28
    %1119 = vmatpush1.msra.mxu0 %v27
    %1120 = vmatprep.subr.mxu0 %v30
    %1121 = vmatpush1.msra.mxu0 %v29
    %1122 = vmatprep.subr.mxu0 %v32
    %1123 = vmatpush1.msra.mxu0 %v31
    %1124 = vmatprep.subr.mxu0 %v34
    %1125 = vmatpush1.msra.mxu0 %v33
    %1126 = vmatprep.subr.mxu0 %v36
    %1127 = vmatpush1.msra.mxu0 %v35
    %1128 = vmatprep.subr.mxu0 %v38
    %1129 = vmatpush1.msra.mxu0 %v37
    %1130 = vmatprep.subr.mxu0 %v40
    %1131 = vmatpush1.msra.mxu0 %v39
    %1132 = vmatprep.subr.mxu0 0.0
    %1133 = vmatpush1.msra.mxu0 0.0
    %1134 = vmatprep.subr.mxu0 0.0
    %1135 = vmatpush1.msra.mxu0 0.0
    %1136 = vmatprep.subr.mxu0 0.0
    %1137 = vmatpush1.msra.mxu0 0.0
    %1138 = vmatprep.subr.mxu0 0.0
    %1139 = vmatpush1.msra.mxu0 0.0
    %1140 = vmatprep.subr.mxu0 0.0
    %1141 = vmatpush1.msra.mxu0 0.0
    %1142 = vmatprep.subr.mxu0 0.0
    %1143 = vmatpush1.msra.mxu0 0.0
    %1144 = vmatprep.subr.mxu0 0.0
    %1145 = vmatpush1.msra.mxu0 0.0
    %1146 = vmatprep.subr.mxu0 0.0
    %1147 = vmatpush1.msra.mxu0 0.0
    %1148 = vmatprep.subr.mxu0 0.0
    %1149 = vmatpush1.msra.mxu0 0.0
    %1150 = vmatprep.subr.mxu0 0.0
    %1151 = vmatpush1.msra.mxu0 0.0
    %1152 = vmatprep.subr.mxu0 0.0
    %1153 = vmatpush1.msra.mxu0 0.0
    %1154 = vmatprep.subr.mxu0 0.0
    %1155 = vmatpush1.msra.mxu0 0.0
    %1156 = vmatprep.subr.mxu0 0.0
    %1157 = vmatpush1.msra.mxu0 0.0
    %1158 = vmatprep.subr.mxu0 0.0
    %1159 = vmatpush1.msra.mxu0 0.0
    %1160 = vmatprep.subr.mxu0 0.0
    %1161 = vmatpush1.msra.mxu0 0.0
    %1162 = vmatprep.subr.mxu0 0.0
    %1163 = vmatpush1.msra.mxu0 0.0
    %1164 = vmatprep.subr.mxu0 0.0
    %1165 = vmatpush1.msra.mxu0 0.0
    %1166 = vmatprep.subr.mxu0 0.0
    %1167 = vmatpush1.msra.mxu0 0.0
    %1168 = vmatprep.subr.mxu0 0.0
    %1169 = vmatpush1.msra.mxu0 0.0
    %1170 = vmatprep.subr.mxu0 0.0
    %1171 = vmatpush1.msra.mxu0 0.0
    %1172 = vmatprep.subr.mxu0 0.0
    %1173 = vmatpush1.msra.mxu0 0.0
    %1174 = vmatprep.subr.mxu0 0.0
    %1175 = vmatpush1.msra.mxu0 0.0
    %1176 = vmatprep.subr.mxu0 0.0
    %1177 = vmatpush1.msra.mxu0 0.0
    %1178 = vmatprep.subr.mxu0 0.0
    %1179 = vmatpush1.msra.mxu0 0.0
    %1180 = vmatprep.mubr.f32.mxu0 0.0
    %1181 = vmatmul.mubr.f32.gmra.mrb[0].mxu0 %v1114
    %v1182 = vpop.f32.mrb[0].mxu0
    %v1183 = vadd.f32 0.0, %v1182
    %v1184 = vpop.f32.mrb[0].mxu0
    %v1185 = vadd.f32 0.0, %v1184
    %1186 = vdwg.mxu0
    %v1187 = vadd.f32 %v1112, %v1183
    %v1188 = vadd.f32 %v1113, %v1185
    %v1189 = vxor.u32 %v1187, 2147483648
    %v1190 = vxor.u32 %v1188, 2147483648
    %v1191 = vmul.f32 %v1189, 1.442695
    %v1192 = vpow.pop %v1191
    %v1193 = vmul.f32 %v1190, 1.442695
    %v1194 = vpow.pop %v1193
    %v1195 = vadd.f32 %v1192, 1.0
    %v1196 = vadd.f32 %v1194, 1.0
    %v1197 = vrcp.pop %v1195
    %v1198 = vmul.f32 1.0, %v1197
    %v1199 = vrcp.pop %v1196
    %v1200 = vmul.f32 1.0, %v1199
    %v1201 = vtanh.pop %v1188
    %v1202 = vmul.f32 %v1198, %v1095
    %1204 = vrot.lane.b32.xlu0 %v1201, 64
    %v1205 = vpop.permute.xlu0 %1204
    %v1207 = vmul.f32 %v1198, %v1205
    %1209 = vrot.lane.b32.xlu0 %v1207, 64
    %v1210 = vpop.permute.xlu0 %1209
    %v1212 = vadd.f32 %v1202, %v1210
    %v1213 = vtanh.pop %v1212
    %1215 = vrot.lane.b32.xlu0 %v1213, 64
    %v1216 = vpop.permute.xlu0 %1215
    %v1218 = vmul.f32 %v1200, %v1216
    %1219 = vst.msk [vmem:[#allocation4 + $0x38] sm:$0xff] %vm398, %v1218
    %1221 = vrot.lane.b32.xlu0 %v1218, 96
    %v1222 = vpop.permute.xlu0 %1221
    %1224 = vst.msk [vmem:[#allocation5] sm:$0xff] %vm398, %v1222
    %v1225 = vld [vmem:[#allocation6 + $0x1c0] sm:$0xff]
    %v1226 = vld [vmem:[#allocation6 + $0x1c8] sm:$0xff]
    %v1227 = vld [vmem:[#allocation6 + $0x1d0] sm:$0xff]
    %v1228 = vld [vmem:[#allocation6 + $0x1d8] sm:$0xff]
    %v1229 = vld [vmem:[#allocation6 + $0x1e0] sm:$0xff]
    %v1230 = vld [vmem:[#allocation6 + $0x1e8] sm:$0xff]
    %v1231 = vld [vmem:[#allocation6 + $0x1f0] sm:$0xff]
    %v1232 = vld [vmem:[#allocation6 + $0x1f8] sm:$0xff]
    %v1233 = vld [vmem:[#allocation6 + $0x200] sm:$0xff]
    %v1234 = vld [vmem:[#allocation6 + $0x208] sm:$0xff]
    %v1235 = vld [vmem:[#allocation6 + $0x210] sm:$0xff]
    %v1236 = vld [vmem:[#allocation6 + $0x218] sm:$0xff]
    %v1237 = vld [vmem:[#allocation6 + $0x220] sm:$0xff]
    %v1238 = vld [vmem:[#allocation6 + $0x228] sm:$0xff]
    %v1239 = vld [vmem:[#allocation6 + $0x230] sm:$0xff]
    %v1240 = vld [vmem:[#allocation6 + $0x238] sm:$0xff]
    %s1241 = scalar_lea.vmem [#allocation6], 576
    %v1242 = vld [vmem:[%s1241] ss:$8 sm:$0x3]
    %s1243 = scalar_lea.vmem [#allocation6], 592
    %v1244 = vld [vmem:[%s1243] ss:$8 sm:$0x3]
    %v1245 = vld [vmem:[#allocation4] sm:$0xff]
    %v1246 = vld [vmem:[#allocation4 + $0x8] sm:$0xff]
    %v1247 = vld [vmem:[#allocation4 + $0x10] sm:$0xff]
    %v1248 = vld [vmem:[#allocation4 + $0x18] sm:$0xff]
    %v1249 = vld [vmem:[#allocation4 + $0x20] sm:$0xff]
    %v1250 = vld [vmem:[#allocation4 + $0x28] sm:$0xff]
    %v1251 = vld [vmem:[#allocation4 + $0x30] sm:$0xff]
    %v1252 = vld [vmem:[#allocation4 + $0x38] sm:$0xff]
    %v1253 = vld [vmem:[#allocation5] sm:$0xff]
    %v1254 = vld [vmem:[#allocation5 + $0x8] sm:$0xff]
    %v1255 = vld [vmem:[#allocation5 + $0x10] sm:$0xff]
    %v1256 = vld [vmem:[#allocation5 + $0x18] sm:$0xff]
    %v1257 = vld [vmem:[#allocation5 + $0x20] sm:$0xff]
    %v1258 = vld [vmem:[#allocation5 + $0x28] sm:$0xff]
    %v1259 = vld [vmem:[#allocation5 + $0x30] sm:$0xff]
    %v1260 = vld [vmem:[#allocation5 + $0x38] sm:$0xff]
    %v1261 = vld [vmem:[#allocation6 + $0xc0] sm:$0xff]
    %v1262 = vld [vmem:[#allocation6 + $0xc8] sm:$0xff]
    %v1263 = vld [vmem:[#allocation6 + $0xd0] sm:$0xff]
    %v1264 = vld [vmem:[#allocation6 + $0xd8] sm:$0xff]
    %v1265 = vld [vmem:[#allocation6 + $0xe0] sm:$0xff]
    %v1266 = vld [vmem:[#allocation6 + $0xe8] sm:$0xff]
    %v1267 = vld [vmem:[#allocation6 + $0xf0] sm:$0xff]
    %v1268 = vld [vmem:[#allocation6 + $0xf8] sm:$0xff]
    %v1269 = vld [vmem:[#allocation6 + $0x100] sm:$0xff]
    %v1270 = vld [vmem:[#allocation6 + $0x108] sm:$0xff]
    %v1271 = vld [vmem:[#allocation6 + $0x110] sm:$0xff]
    %v1272 = vld [vmem:[#allocation6 + $0x118] sm:$0xff]
    %v1273 = vld [vmem:[#allocation6 + $0x120] sm:$0xff]
    %v1274 = vld [vmem:[#allocation6 + $0x128] sm:$0xff]
    %v1275 = vld [vmem:[#allocation6 + $0x130] sm:$0xff]
    %v1276 = vld [vmem:[#allocation6 + $0x138] sm:$0xff]
    %v1277 = vld [vmem:[#allocation6 + $0x140] sm:$0xff]
    %v1278 = vld [vmem:[#allocation6 + $0x148] sm:$0xff]
    %v1279 = vld [vmem:[#allocation6 + $0x150] sm:$0xff]
    %v1280 = vld [vmem:[#allocation6 + $0x158] sm:$0xff]
    %v1281 = vld [vmem:[#allocation6 + $0x160] sm:$0xff]
    %v1282 = vld [vmem:[#allocation6 + $0x168] sm:$0xff]
    %v1283 = vld [vmem:[#allocation6 + $0x170] sm:$0xff]
    %v1284 = vld [vmem:[#allocation6 + $0x178] sm:$0xff]
    %v1285 = vld [vmem:[#allocation6 + $0x180] sm:$0xff]
    %v1286 = vld [vmem:[#allocation6 + $0x188] sm:$0xff]
    %v1287 = vld [vmem:[#allocation6 + $0x190] sm:$0xff]
    %v1288 = vld [vmem:[#allocation6 + $0x198] sm:$0xff]
    %v1289 = vld [vmem:[#allocation6 + $0x1a0] sm:$0xff]
    %v1290 = vld [vmem:[#allocation6 + $0x1a8] sm:$0xff]
    %v1291 = vld [vmem:[#allocation6 + $0x1b0] sm:$0xff]
    %v1292 = vld [vmem:[#allocation6 + $0x1b8] sm:$0xff]
    %v1294 = vsel %vm398, %v1253, 0
    %v1297 = vsel %vm398, %v1254, 0
    %v1300 = vsel %vm398, %v1255, 0
    %v1303 = vsel %vm398, %v1256, 0
    %v1306 = vsel %vm398, %v1257, 0
    %v1309 = vsel %vm398, %v1258, 0
    %v1312 = vsel %vm398, %v1259, 0
    %v1315 = vsel %vm398, %v1260, 0
    %1317 = vmatprep.subr.mxu0 %v1270
    %1318 = vmatpush1.msra.mxu0 %v1269
    %1319 = vmatprep.subr.mxu0 %v1272
    %1320 = vmatpush1.msra.mxu0 %v1271
    %1321 = vmatprep.subr.mxu0 %v1274
    %1322 = vmatpush1.msra.mxu0 %v1273
    %1323 = vmatprep.subr.mxu0 %v1276
    %1324 = vmatpush1.msra.mxu0 %v1275
    %1325 = vmatprep.subr.mxu0 0.0
    %1326 = vmatpush1.msra.mxu0 0.0
    %1327 = vmatprep.subr.mxu0 0.0
    %1328 = vmatpush1.msra.mxu0 0.0
    %1329 = vmatprep.subr.mxu0 0.0
    %1330 = vmatpush1.msra.mxu0 0.0
    %1331 = vmatprep.subr.mxu0 0.0
    %1332 = vmatpush1.msra.mxu0 0.0
    %1333 = vmatprep.subr.mxu0 0.0
    %1334 = vmatpush1.msra.mxu0 0.0
    %1335 = vmatprep.subr.mxu0 0.0
    %1336 = vmatpush1.msra.mxu0 0.0
    %1337 = vmatprep.subr.mxu0 0.0
    %1338 = vmatpush1.msra.mxu0 0.0
    %1339 = vmatprep.subr.mxu0 0.0
    %1340 = vmatpush1.msra.mxu0 0.0
    %1341 = vmatprep.subr.mxu0 0.0
    %1342 = vmatpush1.msra.mxu0 0.0
    %1343 = vmatprep.subr.mxu0 0.0
    %1344 = vmatpush1.msra.mxu0 0.0
    %1345 = vmatprep.subr.mxu0 0.0
    %1346 = vmatpush1.msra.mxu0 0.0
    %1347 = vmatprep.subr.mxu0 0.0
    %1348 = vmatpush1.msra.mxu0 0.0
    %1349 = vmatprep.subr.mxu0 0.0
    %1350 = vmatpush1.msra.mxu0 0.0
    %1351 = vmatprep.subr.mxu0 0.0
    %1352 = vmatpush1.msra.mxu0 0.0
    %1353 = vmatprep.subr.mxu0 0.0
    %1354 = vmatpush1.msra.mxu0 0.0
    %1355 = vmatprep.subr.mxu0 0.0
    %1356 = vmatpush1.msra.mxu0 0.0
    %1357 = vmatprep.subr.mxu0 0.0
    %1358 = vmatpush1.msra.mxu0 0.0
    %1359 = vmatprep.subr.mxu0 0.0
    %1360 = vmatpush1.msra.mxu0 0.0
    %1361 = vmatprep.subr.mxu0 0.0
    %1362 = vmatpush1.msra.mxu0 0.0
    %1363 = vmatprep.subr.mxu0 0.0
    %1364 = vmatpush1.msra.mxu0 0.0
    %1365 = vmatprep.subr.mxu0 0.0
    %1366 = vmatpush1.msra.mxu0 0.0
    %1367 = vmatprep.subr.mxu0 0.0
    %1368 = vmatpush1.msra.mxu0 0.0
    %1369 = vmatprep.subr.mxu0 0.0
    %1370 = vmatpush1.msra.mxu0 0.0
    %1371 = vmatprep.subr.mxu0 0.0
    %1372 = vmatpush1.msra.mxu0 0.0
    %1373 = vmatprep.subr.mxu0 0.0
    %1374 = vmatpush1.msra.mxu0 0.0
    %1375 = vmatprep.subr.mxu0 0.0
    %1376 = vmatpush1.msra.mxu0 0.0
    %1377 = vmatprep.subr.mxu0 0.0
    %1378 = vmatpush1.msra.mxu0 0.0
    %1379 = vmatprep.subr.mxu0 0.0
    %1380 = vmatpush1.msra.mxu0 0.0
    %1381 = vmatprep.mubr.f32.mxu0 0.0
    %1382 = vmatmul.mubr.f32.gmra.mrb[0].mxu0 %v1294
    %v1383 = vpop.f32.mrb[0].mxu0
    %v1384 = vadd.f32 0.0, %v1383
    %v1385 = vpop.f32.mrb[0].mxu0
    %v1386 = vadd.f32 0.0, %v1385
    %1387 = vmatprep.mubr.f32.mxu0 0.0
    %1388 = vmatmul.mubr.f32.gmra.mrb[0].mxu0 %v1297
    %v1389 = vpop.f32.mrb[0].mxu0
    %v1390 = vadd.f32 0.0, %v1389
    %v1391 = vpop.f32.mrb[0].mxu0
    %v1392 = vadd.f32 0.0, %v1391
    %1393 = vmatprep.mubr.f32.mxu0 0.0
    %1394 = vmatmul.mubr.f32.gmra.mrb[0].mxu0 %v1300
    %v1395 = vpop.f32.mrb[0].mxu0
    %v1396 = vadd.f32 0.0, %v1395
    %v1397 = vpop.f32.mrb[0].mxu0
    %v1398 = vadd.f32 0.0, %v1397
    %1399 = vmatprep.mubr.f32.mxu0 0.0
    %1400 = vmatmul.mubr.f32.gmra.mrb[0].mxu0 %v1303
    %v1401 = vpop.f32.mrb[0].mxu0
    %v1402 = vadd.f32 0.0, %v1401
    %v1403 = vpop.f32.mrb[0].mxu0
    %v1404 = vadd.f32 0.0, %v1403
    %1405 = vmatprep.mubr.f32.mxu0 0.0
    %1406 = vmatmul.mubr.f32.gmra.mrb[0].mxu0 %v1306
    %v1407 = vpop.f32.mrb[0].mxu0
    %v1408 = vadd.f32 0.0, %v1407
    %v1409 = vpop.f32.mrb[0].mxu0
    %v1410 = vadd.f32 0.0, %v1409
    %1411 = vmatprep.mubr.f32.mxu0 0.0
    %1412 = vmatmul.mubr.f32.gmra.mrb[0].mxu0 %v1309
    %v1413 = vpop.f32.mrb[0].mxu0
    %v1414 = vadd.f32 0.0, %v1413
    %v1415 = vpop.f32.mrb[0].mxu0
    %v1416 = vadd.f32 0.0, %v1415
    %1417 = vmatprep.mubr.f32.mxu0 0.0
    %1418 = vmatmul.mubr.f32.gmra.mrb[0].mxu0 %v1312
    %v1419 = vpop.f32.mrb[0].mxu0
    %v1420 = vadd.f32 0.0, %v1419
    %v1421 = vpop.f32.mrb[0].mxu0
    %v1422 = vadd.f32 0.0, %v1421
    %1423 = vmatprep.mubr.f32.mxu0 0.0
    %1424 = vmatmul.mubr.f32.gmra.mrb[0].mxu0 %v1315
    %v1425 = vpop.f32.mrb[0].mxu0
    %v1426 = vadd.f32 0.0, %v1425
    %v1427 = vpop.f32.mrb[0].mxu0
    %v1428 = vadd.f32 0.0, %v1427
    %1429 = vdwg.mxu0
    %v1431 = vsel %vm398, %v1245, 0
    %v1434 = vsel %vm398, %v1246, 0
    %v1437 = vsel %vm398, %v1247, 0
    %v1440 = vsel %vm398, %v1248, 0
    %v1443 = vsel %vm398, %v1249, 0
    %v1446 = vsel %vm398, %v1250, 0
    %v1449 = vsel %vm398, %v1251, 0
    %v1452 = vsel %vm398, %v1252, 0
    %1454 = vmatprep.subr.mxu0 %v1262
    %1455 = vmatpush1.msra.mxu0 %v1261
    %1456 = vmatprep.subr.mxu0 %v1264
    %1457 = vmatpush1.msra.mxu0 %v1263
    %1458 = vmatprep.subr.mxu0 %v1266
    %1459 = vmatpush1.msra.mxu0 %v1265
    %1460 = vmatprep.subr.mxu0 %v1268
    %1461 = vmatpush1.msra.mxu0 %v1267
    %1462 = vmatprep.subr.mxu0 0.0
    %1463 = vmatpush1.msra.mxu0 0.0
    %1464 = vmatprep.subr.mxu0 0.0
    %1465 = vmatpush1.msra.mxu0 0.0
    %1466 = vmatprep.subr.mxu0 0.0
    %1467 = vmatpush1.msra.mxu0 0.0
    %1468 = vmatprep.subr.mxu0 0.0
    %1469 = vmatpush1.msra.mxu0 0.0
    %1470 = vmatprep.subr.mxu0 0.0
    %1471 = vmatpush1.msra.mxu0 0.0
    %1472 = vmatprep.subr.mxu0 0.0
    %1473 = vmatpush1.msra.mxu0 0.0
    %1474 = vmatprep.subr.mxu0 0.0
    %1475 = vmatpush1.msra.mxu0 0.0
    %1476 = vmatprep.subr.mxu0 0.0
    %1477 = vmatpush1.msra.mxu0 0.0
    %1478 = vmatprep.subr.mxu0 0.0
    %1479 = vmatpush1.msra.mxu0 0.0
    %1480 = vmatprep.subr.mxu0 0.0
    %1481 = vmatpush1.msra.mxu0 0.0
    %1482 = vmatprep.subr.mxu0 0.0
    %1483 = vmatpush1.msra.mxu0 0.0
    %1484 = vmatprep.subr.mxu0 0.0
    %1485 = vmatpush1.msra.mxu0 0.0
    %1486 = vmatprep.subr.mxu0 0.0
    %1487 = vmatpush1.msra.mxu0 0.0
    %1488 = vmatprep.subr.mxu0 0.0
    %1489 = vmatpush1.msra.mxu0 0.0
    %1490 = vmatprep.subr.mxu0 0.0
    %1491 = vmatpush1.msra.mxu0 0.0
    %1492 = vmatprep.subr.mxu0 0.0
    %1493 = vmatpush1.msra.mxu0 0.0
    %1494 = vmatprep.subr.mxu0 0.0
    %1495 = vmatpush1.msra.mxu0 0.0
    %1496 = vmatprep.subr.mxu0 0.0
    %1497 = vmatpush1.msra.mxu0 0.0
    %1498 = vmatprep.subr.mxu0 0.0
    %1499 = vmatpush1.msra.mxu0 0.0
    %1500 = vmatprep.subr.mxu0 0.0
    %1501 = vmatpush1.msra.mxu0 0.0
    %1502 = vmatprep.subr.mxu0 0.0
    %1503 = vmatpush1.msra.mxu0 0.0
    %1504 = vmatprep.subr.mxu0 0.0
    %1505 = vmatpush1.msra.mxu0 0.0
    %1506 = vmatprep.subr.mxu0 0.0
    %1507 = vmatpush1.msra.mxu0 0.0
    %1508 = vmatprep.subr.mxu0 0.0
    %1509 = vmatpush1.msra.mxu0 0.0
    %1510 = vmatprep.subr.mxu0 0.0
    %1511 = vmatpush1.msra.mxu0 0.0
    %1512 = vmatprep.subr.mxu0 0.0
    %1513 = vmatpush1.msra.mxu0 0.0
    %1514 = vmatprep.subr.mxu0 0.0
    %1515 = vmatpush1.msra.mxu0 0.0
    %1516 = vmatprep.subr.mxu0 0.0
    %1517 = vmatpush1.msra.mxu0 0.0
    %1518 = vmatprep.mubr.f32.mxu0 0.0
    %1519 = vmatmul.mubr.f32.gmra.mrb[0].mxu0 %v1431
    %v1520 = vpop.f32.mrb[0].mxu0
    %v1521 = vadd.f32 %v1384, %v1520
    %v1522 = vpop.f32.mrb[0].mxu0
    %v1523 = vadd.f32 %v1386, %v1522
    %1524 = vmatprep.mubr.f32.mxu0 0.0
    %1525 = vmatmul.mubr.f32.gmra.mrb[0].mxu0 %v1434
    %v1526 = vpop.f32.mrb[0].mxu0
    %v1527 = vadd.f32 %v1390, %v1526
    %v1528 = vpop.f32.mrb[0].mxu0
    %v1529 = vadd.f32 %v1392, %v1528
    %1530 = vmatprep.mubr.f32.mxu0 0.0
    %1531 = vmatmul.mubr.f32.gmra.mrb[0].mxu0 %v1437
    %v1532 = vpop.f32.mrb[0].mxu0
    %v1533 = vadd.f32 %v1396, %v1532
    %v1534 = vpop.f32.mrb[0].mxu0
    %v1535 = vadd.f32 %v1398, %v1534
    %1536 = vmatprep.mubr.f32.mxu0 0.0
    %1537 = vmatmul.mubr.f32.gmra.mrb[0].mxu0 %v1440
    %v1538 = vpop.f32.mrb[0].mxu0
    %v1539 = vadd.f32 %v1402, %v1538
    %v1540 = vpop.f32.mrb[0].mxu0
    %v1541 = vadd.f32 %v1404, %v1540
    %1542 = vmatprep.mubr.f32.mxu0 0.0
    %1543 = vmatmul.mubr.f32.gmra.mrb[0].mxu0 %v1443
    %v1544 = vpop.f32.mrb[0].mxu0
    %v1545 = vadd.f32 %v1408, %v1544
    %v1546 = vpop.f32.mrb[0].mxu0
    %v1547 = vadd.f32 %v1410, %v1546
    %1548 = vmatprep.mubr.f32.mxu0 0.0
    %1549 = vmatmul.mubr.f32.gmra.mrb[0].mxu0 %v1446
    %v1550 = vpop.f32.mrb[0].mxu0
    %v1551 = vadd.f32 %v1414, %v1550
    %v1552 = vpop.f32.mrb[0].mxu0
    %v1553 = vadd.f32 %v1416, %v1552
    %1554 = vmatprep.mubr.f32.mxu0 0.0
    %1555 = vmatmul.mubr.f32.gmra.mrb[0].mxu0 %v1449
    %v1556 = vpop.f32.mrb[0].mxu0
    %v1557 = vadd.f32 %v1420, %v1556
    %v1558 = vpop.f32.mrb[0].mxu0
    %v1559 = vadd.f32 %v1422, %v1558
    %1560 = vmatprep.mubr.f32.mxu0 0.0
    %1561 = vmatmul.mubr.f32.gmra.mrb[0].mxu0 %v1452
    %v1562 = vpop.f32.mrb[0].mxu0
    %v1563 = vadd.f32 %v1426, %v1562
    %v1564 = vpop.f32.mrb[0].mxu0
    %v1565 = vadd.f32 %v1428, %v1564
    %1566 = vdwg.mxu0
    %v1568 = vlaneseq
    %v1569 = vshrl.u32 %v1568, 7
    %v1570 = vsub.s32 0, %v1569
    %v1571 = vrot.slane %v1242, %v1570
    %v1572 = vlaneseq
    %v1573 = vshrl.u32 %v1572, 7
    %v1574 = vsub.s32 1, %v1573
    %v1575 = vrot.slane %v1242, %v1574
    %v1578 = vadd.f32 %v1521, %v1571
    %v1579 = vadd.f32 %v1523, %v1575
    %v1580 = vadd.f32 %v1527, %v1571
    %v1581 = vadd.f32 %v1529, %v1575
    %v1582 = vadd.f32 %v1533, %v1571
    %v1583 = vadd.f32 %v1535, %v1575
    %v1584 = vadd.f32 %v1539, %v1571
    %v1585 = vadd.f32 %v1541, %v1575
    %v1586 = vadd.f32 %v1545, %v1571
    %v1587 = vadd.f32 %v1547, %v1575
    %v1588 = vadd.f32 %v1551, %v1571
    %v1589 = vadd.f32 %v1553, %v1575
    %v1590 = vadd.f32 %v1557, %v1571
    %v1591 = vadd.f32 %v1559, %v1575
    %v1592 = vadd.f32 %v1563, %v1571
    %v1593 = vadd.f32 %v1565, %v1575
    %1594 = vst [vmem:[#allocation2] sm:$0xff] %v1578
    %1595 = vst [vmem:[#allocation2 + $0x8] sm:$0xff] %v1579
    %1596 = vst [vmem:[#allocation2 + $0x10] sm:$0xff] %v1580
    %1597 = vst [vmem:[#allocation2 + $0x18] sm:$0xff] %v1581
    %1598 = vst [vmem:[#allocation2 + $0x20] sm:$0xff] %v1582
    %1599 = vst [vmem:[#allocation2 + $0x28] sm:$0xff] %v1583
    %1600 = vst [vmem:[#allocation2 + $0x30] sm:$0xff] %v1584
    %1601 = vst [vmem:[#allocation2 + $0x38] sm:$0xff] %v1585
    %1602 = vst [vmem:[#allocation2 + $0x40] sm:$0xff] %v1586
    %1603 = vst [vmem:[#allocation2 + $0x48] sm:$0xff] %v1587
    %1604 = vst [vmem:[#allocation2 + $0x50] sm:$0xff] %v1588
    %1605 = vst [vmem:[#allocation2 + $0x58] sm:$0xff] %v1589
    %1606 = vst [vmem:[#allocation2 + $0x60] sm:$0xff] %v1590
    %1607 = vst [vmem:[#allocation2 + $0x68] sm:$0xff] %v1591
    %1608 = vst [vmem:[#allocation2 + $0x70] sm:$0xff] %v1592
    %1609 = vst [vmem:[#allocation2 + $0x78] sm:$0xff] %v1593
    %1610 = vmatprep.subr.mxu0 %v1286
    %1611 = vmatpush1.msra.mxu0 %v1285
    %1612 = vmatprep.subr.mxu0 %v1288
    %1613 = vmatpush1.msra.mxu0 %v1287
    %1614 = vmatprep.subr.mxu0 %v1290
    %1615 = vmatpush1.msra.mxu0 %v1289
    %1616 = vmatprep.subr.mxu0 %v1292
    %1617 = vmatpush1.msra.mxu0 %v1291
    %1618 = vmatprep.subr.mxu0 0.0
    %1619 = vmatpush1.msra.mxu0 0.0
    %1620 = vmatprep.subr.mxu0 0.0
    %1621 = vmatpush1.msra.mxu0 0.0
    %1622 = vmatprep.subr.mxu0 0.0
    %1623 = vmatpush1.msra.mxu0 0.0
    %1624 = vmatprep.subr.mxu0 0.0
    %1625 = vmatpush1.msra.mxu0 0.0
    %1626 = vmatprep.subr.mxu0 0.0
    %1627 = vmatpush1.msra.mxu0 0.0
    %1628 = vmatprep.subr.mxu0 0.0
    %1629 = vmatpush1.msra.mxu0 0.0
    %1630 = vmatprep.subr.mxu0 0.0
    %1631 = vmatpush1.msra.mxu0 0.0
    %1632 = vmatprep.subr.mxu0 0.0
    %1633 = vmatpush1.msra.mxu0 0.0
    %1634 = vmatprep.subr.mxu0 0.0
    %1635 = vmatpush1.msra.mxu0 0.0
    %1636 = vmatprep.subr.mxu0 0.0
    %1637 = vmatpush1.msra.mxu0 0.0
    %1638 = vmatprep.subr.mxu0 0.0
    %1639 = vmatpush1.msra.mxu0 0.0
    %1640 = vmatprep.subr.mxu0 0.0
    %1641 = vmatpush1.msra.mxu0 0.0
    %1642 = vmatprep.subr.mxu0 0.0
    %1643 = vmatpush1.msra.mxu0 0.0
    %1644 = vmatprep.subr.mxu0 0.0
    %1645 = vmatpush1.msra.mxu0 0.0
    %1646 = vmatprep.subr.mxu0 0.0
    %1647 = vmatpush1.msra.mxu0 0.0
    %1648 = vmatprep.subr.mxu0 0.0
    %1649 = vmatpush1.msra.mxu0 0.0
    %1650 = vmatprep.subr.mxu0 0.0
    %1651 = vmatpush1.msra.mxu0 0.0
    %1652 = vmatprep.subr.mxu0 0.0
    %1653 = vmatpush1.msra.mxu0 0.0
    %1654 = vmatprep.subr.mxu0 0.0
    %1655 = vmatpush1.msra.mxu0 0.0
    %1656 = vmatprep.subr.mxu0 0.0
    %1657 = vmatpush1.msra.mxu0 0.0
    %1658 = vmatprep.subr.mxu0 0.0
    %1659 = vmatpush1.msra.mxu0 0.0
    %1660 = vmatprep.subr.mxu0 0.0
    %1661 = vmatpush1.msra.mxu0 0.0
    %1662 = vmatprep.subr.mxu0 0.0
    %1663 = vmatpush1.msra.mxu0 0.0
    %1664 = vmatprep.subr.mxu0 0.0
    %1665 = vmatpush1.msra.mxu0 0.0
    %1666 = vmatprep.subr.mxu0 0.0
    %1667 = vmatpush1.msra.mxu0 0.0
    %1668 = vmatprep.subr.mxu0 0.0
    %1669 = vmatpush1.msra.mxu0 0.0
    %1670 = vmatprep.subr.mxu0 0.0
    %1671 = vmatpush1.msra.mxu0 0.0
    %1672 = vmatprep.subr.mxu0 0.0
    %1673 = vmatpush1.msra.mxu0 0.0
    %1674 = vmatprep.mubr.f32.mxu0 0.0
    %1675 = vmatmul.mubr.f32.gmra.mrb[0].mxu0 %v1294
    %v1676 = vpop.f32.mrb[0].mxu0
    %v1677 = vadd.f32 0.0, %v1676
    %v1678 = vpop.f32.mrb[0].mxu0
    %v1679 = vadd.f32 0.0, %v1678
    %1680 = vmatprep.mubr.f32.mxu0 0.0
    %1681 = vmatmul.mubr.f32.gmra.mrb[0].mxu0 %v1297
    %v1682 = vpop.f32.mrb[0].mxu0
    %v1683 = vadd.f32 0.0, %v1682
    %v1684 = vpop.f32.mrb[0].mxu0
    %v1685 = vadd.f32 0.0, %v1684
    %1686 = vmatprep.mubr.f32.mxu0 0.0
    %1687 = vmatmul.mubr.f32.gmra.mrb[0].mxu0 %v1300
    %v1688 = vpop.f32.mrb[0].mxu0
    %v1689 = vadd.f32 0.0, %v1688
    %v1690 = vpop.f32.mrb[0].mxu0
    %v1691 = vadd.f32 0.0, %v1690
    %1692 = vmatprep.mubr.f32.mxu0 0.0
    %1693 = vmatmul.mubr.f32.gmra.mrb[0].mxu0 %v1303
    %v1694 = vpop.f32.mrb[0].mxu0
    %v1695 = vadd.f32 0.0, %v1694
    %v1696 = vpop.f32.mrb[0].mxu0
    %v1697 = vadd.f32 0.0, %v1696
    %1698 = vmatprep.mubr.f32.mxu0 0.0
    %1699 = vmatmul.mubr.f32.gmra.mrb[0].mxu0 %v1306
    %v1700 = vpop.f32.mrb[0].mxu0
    %v1701 = vadd.f32 0.0, %v1700
    %v1702 = vpop.f32.mrb[0].mxu0
    %v1703 = vadd.f32 0.0, %v1702
    %1704 = vmatprep.mubr.f32.mxu0 0.0
    %1705 = vmatmul.mubr.f32.gmra.mrb[0].mxu0 %v1309
    %v1706 = vpop.f32.mrb[0].mxu0
    %v1707 = vadd.f32 0.0, %v1706
    %v1708 = vpop.f32.mrb[0].mxu0
    %v1709 = vadd.f32 0.0, %v1708
    %1710 = vmatprep.mubr.f32.mxu0 0.0
    %1711 = vmatmul.mubr.f32.gmra.mrb[0].mxu0 %v1312
    %v1712 = vpop.f32.mrb[0].mxu0
    %v1713 = vadd.f32 0.0, %v1712
    %v1714 = vpop.f32.mrb[0].mxu0
    %v1715 = vadd.f32 0.0, %v1714
    %1716 = vmatprep.mubr.f32.mxu0 0.0
    %1717 = vmatmul.mubr.f32.gmra.mrb[0].mxu0 %v1315
    %v1718 = vpop.f32.mrb[0].mxu0
    %v1719 = vadd.f32 0.0, %v1718
    %v1720 = vpop.f32.mrb[0].mxu0
    %v1721 = vadd.f32 0.0, %v1720
    %1722 = vdwg.mxu0
    %1723 = vmatprep.subr.mxu0 %v1278
    %1724 = vmatpush1.msra.mxu0 %v1277
    %1725 = vmatprep.subr.mxu0 %v1280
    %1726 = vmatpush1.msra.mxu0 %v1279
    %1727 = vmatprep.subr.mxu0 %v1282
    %1728 = vmatpush1.msra.mxu0 %v1281
    %1729 = vmatprep.subr.mxu0 %v1284
    %1730 = vmatpush1.msra.mxu0 %v1283
    %1731 = vmatprep.subr.mxu0 0.0
    %1732 = vmatpush1.msra.mxu0 0.0
    %1733 = vmatprep.subr.mxu0 0.0
    %1734 = vmatpush1.msra.mxu0 0.0
    %1735 = vmatprep.subr.mxu0 0.0
    %1736 = vmatpush1.msra.mxu0 0.0
    %1737 = vmatprep.subr.mxu0 0.0
    %1738 = vmatpush1.msra.mxu0 0.0
    %1739 = vmatprep.subr.mxu0 0.0
    %1740 = vmatpush1.msra.mxu0 0.0
    %1741 = vmatprep.subr.mxu0 0.0
    %1742 = vmatpush1.msra.mxu0 0.0
    %1743 = vmatprep.subr.mxu0 0.0
    %1744 = vmatpush1.msra.mxu0 0.0
    %1745 = vmatprep.subr.mxu0 0.0
    %1746 = vmatpush1.msra.mxu0 0.0
    %1747 = vmatprep.subr.mxu0 0.0
    %1748 = vmatpush1.msra.mxu0 0.0
    %1749 = vmatprep.subr.mxu0 0.0
    %1750 = vmatpush1.msra.mxu0 0.0
    %1751 = vmatprep.subr.mxu0 0.0
    %1752 = vmatpush1.msra.mxu0 0.0
    %1753 = vmatprep.subr.mxu0 0.0
    %1754 = vmatpush1.msra.mxu0 0.0
    %1755 = vmatprep.subr.mxu0 0.0
    %1756 = vmatpush1.msra.mxu0 0.0
    %1757 = vmatprep.subr.mxu0 0.0
    %1758 = vmatpush1.msra.mxu0 0.0
    %1759 = vmatprep.subr.mxu0 0.0
    %1760 = vmatpush1.msra.mxu0 0.0
    %1761 = vmatprep.subr.mxu0 0.0
    %1762 = vmatpush1.msra.mxu0 0.0
    %1763 = vmatprep.subr.mxu0 0.0
    %1764 = vmatpush1.msra.mxu0 0.0
    %1765 = vmatprep.subr.mxu0 0.0
    %1766 = vmatpush1.msra.mxu0 0.0
    %1767 = vmatprep.subr.mxu0 0.0
    %1768 = vmatpush1.msra.mxu0 0.0
    %1769 = vmatprep.subr.mxu0 0.0
    %1770 = vmatpush1.msra.mxu0 0.0
    %1771 = vmatprep.subr.mxu0 0.0
    %1772 = vmatpush1.msra.mxu0 0.0
    %1773 = vmatprep.subr.mxu0 0.0
    %1774 = vmatpush1.msra.mxu0 0.0
    %1775 = vmatprep.subr.mxu0 0.0
    %1776 = vmatpush1.msra.mxu0 0.0
    %1777 = vmatprep.subr.mxu0 0.0
    %1778 = vmatpush1.msra.mxu0 0.0
    %1779 = vmatprep.subr.mxu0 0.0
    %1780 = vmatpush1.msra.mxu0 0.0
    %1781 = vmatprep.subr.mxu0 0.0
    %1782 = vmatpush1.msra.mxu0 0.0
    %1783 = vmatprep.subr.mxu0 0.0
    %1784 = vmatpush1.msra.mxu0 0.0
    %1785 = vmatprep.subr.mxu0 0.0
    %1786 = vmatpush1.msra.mxu0 0.0
    %1787 = vmatprep.mubr.f32.mxu0 0.0
    %1788 = vmatmul.mubr.f32.gmra.mrb[0].mxu0 %v1431
    %v1789 = vpop.f32.mrb[0].mxu0
    %v1790 = vadd.f32 %v1677, %v1789
    %v1791 = vpop.f32.mrb[0].mxu0
    %v1792 = vadd.f32 %v1679, %v1791
    %1793 = vmatprep.mubr.f32.mxu0 0.0
    %1794 = vmatmul.mubr.f32.gmra.mrb[0].mxu0 %v1434
    %v1795 = vpop.f32.mrb[0].mxu0
    %v1796 = vadd.f32 %v1683, %v1795
    %v1797 = vpop.f32.mrb[0].mxu0
    %v1798 = vadd.f32 %v1685, %v1797
    %1799 = vmatprep.mubr.f32.mxu0 0.0
    %1800 = vmatmul.mubr.f32.gmra.mrb[0].mxu0 %v1437
    %v1801 = vpop.f32.mrb[0].mxu0
    %v1802 = vadd.f32 %v1689, %v1801
    %v1803 = vpop.f32.mrb[0].mxu0
    %v1804 = vadd.f32 %v1691, %v1803
    %1805 = vmatprep.mubr.f32.mxu0 0.0
    %1806 = vmatmul.mubr.f32.gmra.mrb[0].mxu0 %v1440
    %v1807 = vpop.f32.mrb[0].mxu0
    %v1808 = vadd.f32 %v1695, %v1807
    %v1809 = vpop.f32.mrb[0].mxu0
    %v1810 = vadd.f32 %v1697, %v1809
    %1811 = vmatprep.mubr.f32.mxu0 0.0
    %1812 = vmatmul.mubr.f32.gmra.mrb[0].mxu0 %v1443
    %v1813 = vpop.f32.mrb[0].mxu0
    %v1814 = vadd.f32 %v1701, %v1813
    %v1815 = vpop.f32.mrb[0].mxu0
    %v1816 = vadd.f32 %v1703, %v1815
    %1817 = vmatprep.mubr.f32.mxu0 0.0
    %1818 = vmatmul.mubr.f32.gmra.mrb[0].mxu0 %v1446
    %v1819 = vpop.f32.mrb[0].mxu0
    %v1820 = vadd.f32 %v1707, %v1819
    %v1821 = vpop.f32.mrb[0].mxu0
    %v1822 = vadd.f32 %v1709, %v1821
    %1823 = vmatprep.mubr.f32.mxu0 0.0
    %1824 = vmatmul.mubr.f32.gmra.mrb[0].mxu0 %v1449
    %v1825 = vpop.f32.mrb[0].mxu0
    %v1826 = vadd.f32 %v1713, %v1825
    %v1827 = vpop.f32.mrb[0].mxu0
    %v1828 = vadd.f32 %v1715, %v1827
    %1829 = vmatprep.mubr.f32.mxu0 0.0
    %1830 = vmatmul.mubr.f32.gmra.mrb[0].mxu0 %v1452
    %v1831 = vpop.f32.mrb[0].mxu0
    %v1832 = vadd.f32 %v1719, %v1831
    %v1833 = vpop.f32.mrb[0].mxu0
    %v1834 = vadd.f32 %v1721, %v1833
    %1835 = vdwg.mxu0
    %v1837 = vlaneseq
    %v1838 = vshrl.u32 %v1837, 7
    %v1839 = vsub.s32 0, %v1838
    %v1840 = vrot.slane %v1244, %v1839
    %v1841 = vlaneseq
    %v1842 = vshrl.u32 %v1841, 7
    %v1843 = vsub.s32 1, %v1842
    %v1844 = vrot.slane %v1244, %v1843
    %v1847 = vadd.f32 %v1790, %v1840
    %v1848 = vadd.f32 %v1792, %v1844
    %v1849 = vadd.f32 %v1796, %v1840
    %v1850 = vadd.f32 %v1798, %v1844
    %v1851 = vadd.f32 %v1802, %v1840
    %v1852 = vadd.f32 %v1804, %v1844
    %v1853 = vadd.f32 %v1808, %v1840
    %v1854 = vadd.f32 %v1810, %v1844
    %v1855 = vadd.f32 %v1814, %v1840
    %v1856 = vadd.f32 %v1816, %v1844
    %v1857 = vadd.f32 %v1820, %v1840
    %v1858 = vadd.f32 %v1822, %v1844
    %v1859 = vadd.f32 %v1826, %v1840
    %v1860 = vadd.f32 %v1828, %v1844
    %v1861 = vadd.f32 %v1832, %v1840
    %v1862 = vadd.f32 %v1834, %v1844
    %1863 = vst [vmem:[#allocation3] sm:$0xff] %v1847
    %1864 = vst [vmem:[#allocation3 + $0x8] sm:$0xff] %v1848
    %1865 = vst [vmem:[#allocation3 + $0x10] sm:$0xff] %v1849
    %1866 = vst [vmem:[#allocation3 + $0x18] sm:$0xff] %v1850
    %1867 = vst [vmem:[#allocation3 + $0x20] sm:$0xff] %v1851
    %1868 = vst [vmem:[#allocation3 + $0x28] sm:$0xff] %v1852
    %1869 = vst [vmem:[#allocation3 + $0x30] sm:$0xff] %v1853
    %1870 = vst [vmem:[#allocation3 + $0x38] sm:$0xff] %v1854
    %1871 = vst [vmem:[#allocation3 + $0x40] sm:$0xff] %v1855
    %1872 = vst [vmem:[#allocation3 + $0x48] sm:$0xff] %v1856
    %1873 = vst [vmem:[#allocation3 + $0x50] sm:$0xff] %v1857
    %1874 = vst [vmem:[#allocation3 + $0x58] sm:$0xff] %v1858
    %1875 = vst [vmem:[#allocation3 + $0x60] sm:$0xff] %v1859
    %1876 = vst [vmem:[#allocation3 + $0x68] sm:$0xff] %v1860
    %1877 = vst [vmem:[#allocation3 + $0x70] sm:$0xff] %v1861
    %1878 = vst [vmem:[#allocation3 + $0x78] sm:$0xff] %v1862
    %v1879 = vld [vmem:[#allocation2] sm:$0xff]
    %v1880 = vld [vmem:[#allocation2 + $0x8] sm:$0xff]
    %v1881 = vld [vmem:[#allocation3 + $0x70] sm:$0xff]
    %v1882 = vld [vmem:[#allocation3 + $0x78] sm:$0xff]
    %v1883 = vadd.f32 %v1879, %v1881
    %v1884 = vadd.f32 %v1880, %v1882
    %v1885 = vxor.u32 %v1883, 2147483648
    %v1886 = vxor.u32 %v1884, 2147483648
    %v1887 = vmul.f32 %v1885, 1.442695
    %v1888 = vpow.pop %v1887
    %v1889 = vmul.f32 %v1886, 1.442695
    %v1890 = vpow.pop %v1889
    %v1891 = vadd.f32 %v1888, 1.0
    %v1892 = vadd.f32 %v1890, 1.0
    %v1893 = vrcp.pop %v1891
    %v1894 = vmul.f32 1.0, %v1893
    %v1895 = vrcp.pop %v1892
    %v1896 = vmul.f32 1.0, %v1895
    %v1897 = vtanh.pop %v1884
    %v1898 = vmul.f32 %v1894, 0.0
    %1900 = vrot.lane.b32.xlu0 %v1897, 64
    %v1901 = vpop.permute.xlu0 %1900
    %v1903 = vmul.f32 %v1894, %v1901
    %1905 = vrot.lane.b32.xlu0 %v1903, 64
    %v1906 = vpop.permute.xlu0 %1905
    %v1908 = vadd.f32 %v1898, %v1906
    %v1909 = vtanh.pop %v1908
    %1911 = vrot.lane.b32.xlu0 %v1909, 64
    %v1912 = vpop.permute.xlu0 %1911
    %v1914 = vmul.f32 %v1896, %v1912
    %1915 = vst.msk [vmem:[#allocation4] sm:$0xff] %vm398, %v1914
    %1917 = vrot.lane.b32.xlu0 %v1914, 96
    %v1918 = vpop.permute.xlu0 %1917
    %1920 = vst.msk [vmem:[#allocation5 + $0x38] sm:$0xff] %vm398, %v1918
    %v1921 = vld [vmem:[#allocation2 + $0x10] sm:$0xff]
    %v1922 = vld [vmem:[#allocation2 + $0x18] sm:$0xff]
    %v1923 = vld [vmem:[#allocation3 + $0x60] sm:$0xff]
    %v1924 = vld [vmem:[#allocation3 + $0x68] sm:$0xff]
    %v1925 = vadd.f32 %v1921, %v1923
    %v1926 = vadd.f32 %v1922, %v1924
    %v1927 = vsel %vm411, %v1914, 0
    %1929 = vmatprep.subr.mxu0 %v1226
    %1930 = vmatpush1.msra.mxu0 %v1225
    %1931 = vmatprep.subr.mxu0 %v1228
    %1932 = vmatpush1.msra.mxu0 %v1227
    %1933 = vmatprep.subr.mxu0 %v1230
    %1934 = vmatpush1.msra.mxu0 %v1229
    %1935 = vmatprep.subr.mxu0 %v1232
    %1936 = vmatpush1.msra.mxu0 %v1231
    %1937 = vmatprep.subr.mxu0 %v1234
    %1938 = vmatpush1.msra.mxu0 %v1233
    %1939 = vmatprep.subr.mxu0 %v1236
    %1940 = vmatpush1.msra.mxu0 %v1235
    %1941 = vmatprep.subr.mxu0 %v1238
    %1942 = vmatpush1.msra.mxu0 %v1237
    %1943 = vmatprep.subr.mxu0 %v1240
    %1944 = vmatpush1.msra.mxu0 %v1239
    %1945 = vmatprep.subr.mxu0 0.0
    %1946 = vmatpush1.msra.mxu0 0.0
    %1947 = vmatprep.subr.mxu0 0.0
    %1948 = vmatpush1.msra.mxu0 0.0
    %1949 = vmatprep.subr.mxu0 0.0
    %1950 = vmatpush1.msra.mxu0 0.0
    %1951 = vmatprep.subr.mxu0 0.0
    %1952 = vmatpush1.msra.mxu0 0.0
    %1953 = vmatprep.subr.mxu0 0.0
    %1954 = vmatpush1.msra.mxu0 0.0
    %1955 = vmatprep.subr.mxu0 0.0
    %1956 = vmatpush1.msra.mxu0 0.0
    %1957 = vmatprep.subr.mxu0 0.0
    %1958 = vmatpush1.msra.mxu0 0.0
    %1959 = vmatprep.subr.mxu0 0.0
    %1960 = vmatpush1.msra.mxu0 0.0
    %1961 = vmatprep.subr.mxu0 0.0
    %1962 = vmatpush1.msra.mxu0 0.0
    %1963 = vmatprep.subr.mxu0 0.0
    %1964 = vmatpush1.msra.mxu0 0.0
    %1965 = vmatprep.subr.mxu0 0.0
    %1966 = vmatpush1.msra.mxu0 0.0
    %1967 = vmatprep.subr.mxu0 0.0
    %1968 = vmatpush1.msra.mxu0 0.0
    %1969 = vmatprep.subr.mxu0 0.0
    %1970 = vmatpush1.msra.mxu0 0.0
    %1971 = vmatprep.subr.mxu0 0.0
    %1972 = vmatpush1.msra.mxu0 0.0
    %1973 = vmatprep.subr.mxu0 0.0
    %1974 = vmatpush1.msra.mxu0 0.0
    %1975 = vmatprep.subr.mxu0 0.0
    %1976 = vmatpush1.msra.mxu0 0.0
    %1977 = vmatprep.subr.mxu0 0.0
    %1978 = vmatpush1.msra.mxu0 0.0
    %1979 = vmatprep.subr.mxu0 0.0
    %1980 = vmatpush1.msra.mxu0 0.0
    %1981 = vmatprep.subr.mxu0 0.0
    %1982 = vmatpush1.msra.mxu0 0.0
    %1983 = vmatprep.subr.mxu0 0.0
    %1984 = vmatpush1.msra.mxu0 0.0
    %1985 = vmatprep.subr.mxu0 0.0
    %1986 = vmatpush1.msra.mxu0 0.0
    %1987 = vmatprep.subr.mxu0 0.0
    %1988 = vmatpush1.msra.mxu0 0.0
    %1989 = vmatprep.subr.mxu0 0.0
    %1990 = vmatpush1.msra.mxu0 0.0
    %1991 = vmatprep.subr.mxu0 0.0
    %1992 = vmatpush1.msra.mxu0 0.0
    %1993 = vmatprep.mubr.f32.mxu0 0.0
    %1994 = vmatmul.mubr.f32.gmra.mrb[0].mxu0 %v1927
    %v1995 = vpop.f32.mrb[0].mxu0
    %v1996 = vadd.f32 0.0, %v1995
    %v1997 = vpop.f32.mrb[0].mxu0
    %v1998 = vadd.f32 0.0, %v1997
    %1999 = vdwg.mxu0
    %v2000 = vadd.f32 %v1925, %v1996
    %v2001 = vadd.f32 %v1926, %v1998
    %v2002 = vxor.u32 %v2000, 2147483648
    %v2003 = vxor.u32 %v2001, 2147483648
    %v2004 = vmul.f32 %v2002, 1.442695
    %v2005 = vpow.pop %v2004
    %v2006 = vmul.f32 %v2003, 1.442695
    %v2007 = vpow.pop %v2006
    %v2008 = vadd.f32 %v2005, 1.0
    %v2009 = vadd.f32 %v2007, 1.0
    %v2010 = vrcp.pop %v2008
    %v2011 = vmul.f32 1.0, %v2010
    %v2012 = vrcp.pop %v2009
    %v2013 = vmul.f32 1.0, %v2012
    %v2014 = vtanh.pop %v2001
    %v2015 = vmul.f32 %v2011, %v1908
    %2017 = vrot.lane.b32.xlu0 %v2014, 64
    %v2018 = vpop.permute.xlu0 %2017
    %v2020 = vmul.f32 %v2011, %v2018
    %2022 = vrot.lane.b32.xlu0 %v2020, 64
    %v2023 = vpop.permute.xlu0 %2022
    %v2025 = vadd.f32 %v2015, %v2023
    %v2026 = vtanh.pop %v2025
    %2028 = vrot.lane.b32.xlu0 %v2026, 64
    %v2029 = vpop.permute.xlu0 %2028
    %v2031 = vmul.f32 %v2013, %v2029
    %2032 = vst.msk [vmem:[#allocation4 + $0x8] sm:$0xff] %vm398, %v2031
    %2034 = vrot.lane.b32.xlu0 %v2031, 96
    %v2035 = vpop.permute.xlu0 %2034
    %2037 = vst.msk [vmem:[#allocation5 + $0x30] sm:$0xff] %vm398, %v2035
    %v2038 = vld [vmem:[#allocation2 + $0x20] sm:$0xff]
    %v2039 = vld [vmem:[#allocation2 + $0x28] sm:$0xff]
    %v2040 = vld [vmem:[#allocation3 + $0x50] sm:$0xff]
    %v2041 = vld [vmem:[#allocation3 + $0x58] sm:$0xff]
    %v2042 = vadd.f32 %v2038, %v2040
    %v2043 = vadd.f32 %v2039, %v2041
    %v2044 = vsel %vm411, %v2031, 0
    %2046 = vmatprep.subr.mxu0 %v1226
    %2047 = vmatpush1.msra.mxu0 %v1225
    %2048 = vmatprep.subr.mxu0 %v1228
    %2049 = vmatpush1.msra.mxu0 %v1227
    %2050 = vmatprep.subr.mxu0 %v1230
    %2051 = vmatpush1.msra.mxu0 %v1229
    %2052 = vmatprep.subr.mxu0 %v1232
    %2053 = vmatpush1.msra.mxu0 %v1231
    %2054 = vmatprep.subr.mxu0 %v1234
    %2055 = vmatpush1.msra.mxu0 %v1233
    %2056 = vmatprep.subr.mxu0 %v1236
    %2057 = vmatpush1.msra.mxu0 %v1235
    %2058 = vmatprep.subr.mxu0 %v1238
    %2059 = vmatpush1.msra.mxu0 %v1237
    %2060 = vmatprep.subr.mxu0 %v1240
    %2061 = vmatpush1.msra.mxu0 %v1239
    %2062 = vmatprep.subr.mxu0 0.0
    %2063 = vmatpush1.msra.mxu0 0.0
    %2064 = vmatprep.subr.mxu0 0.0
    %2065 = vmatpush1.msra.mxu0 0.0
    %2066 = vmatprep.subr.mxu0 0.0
    %2067 = vmatpush1.msra.mxu0 0.0
    %2068 = vmatprep.subr.mxu0 0.0
    %2069 = vmatpush1.msra.mxu0 0.0
    %2070 = vmatprep.subr.mxu0 0.0
    %2071 = vmatpush1.msra.mxu0 0.0
    %2072 = vmatprep.subr.mxu0 0.0
    %2073 = vmatpush1.msra.mxu0 0.0
    %2074 = vmatprep.subr.mxu0 0.0
    %2075 = vmatpush1.msra.mxu0 0.0
    %2076 = vmatprep.subr.mxu0 0.0
    %2077 = vmatpush1.msra.mxu0 0.0
    %2078 = vmatprep.subr.mxu0 0.0
    %2079 = vmatpush1.msra.mxu0 0.0
    %2080 = vmatprep.subr.mxu0 0.0
    %2081 = vmatpush1.msra.mxu0 0.0
    %2082 = vmatprep.subr.mxu0 0.0
    %2083 = vmatpush1.msra.mxu0 0.0
    %2084 = vmatprep.subr.mxu0 0.0
    %2085 = vmatpush1.msra.mxu0 0.0
    %2086 = vmatprep.subr.mxu0 0.0
    %2087 = vmatpush1.msra.mxu0 0.0
    %2088 = vmatprep.subr.mxu0 0.0
    %2089 = vmatpush1.msra.mxu0 0.0
    %2090 = vmatprep.subr.mxu0 0.0
    %2091 = vmatpush1.msra.mxu0 0.0
    %2092 = vmatprep.subr.mxu0 0.0
    %2093 = vmatpush1.msra.mxu0 0.0
    %2094 = vmatprep.subr.mxu0 0.0
    %2095 = vmatpush1.msra.mxu0 0.0
    %2096 = vmatprep.subr.mxu0 0.0
    %2097 = vmatpush1.msra.mxu0 0.0
    %2098 = vmatprep.subr.mxu0 0.0
    %2099 = vmatpush1.msra.mxu0 0.0
    %2100 = vmatprep.subr.mxu0 0.0
    %2101 = vmatpush1.msra.mxu0 0.0
    %2102 = vmatprep.subr.mxu0 0.0
    %2103 = vmatpush1.msra.mxu0 0.0
    %2104 = vmatprep.subr.mxu0 0.0
    %2105 = vmatpush1.msra.mxu0 0.0
    %2106 = vmatprep.subr.mxu0 0.0
    %2107 = vmatpush1.msra.mxu0 0.0
    %2108 = vmatprep.subr.mxu0 0.0
    %2109 = vmatpush1.msra.mxu0 0.0
    %2110 = vmatprep.mubr.f32.mxu0 0.0
    %2111 = vmatmul.mubr.f32.gmra.mrb[0].mxu0 %v2044
    %v2112 = vpop.f32.mrb[0].mxu0
    %v2113 = vadd.f32 0.0, %v2112
    %v2114 = vpop.f32.mrb[0].mxu0
    %v2115 = vadd.f32 0.0, %v2114
    %2116 = vdwg.mxu0
    %v2117 = vadd.f32 %v2042, %v2113
    %v2118 = vadd.f32 %v2043, %v2115
    %v2119 = vxor.u32 %v2117, 2147483648
    %v2120 = vxor.u32 %v2118, 2147483648
    %v2121 = vmul.f32 %v2119, 1.442695
    %v2122 = vpow.pop %v2121
    %v2123 = vmul.f32 %v2120, 1.442695
    %v2124 = vpow.pop %v2123
    %v2125 = vadd.f32 %v2122, 1.0
    %v2126 = vadd.f32 %v2124, 1.0
    %v2127 = vrcp.pop %v2125
    %v2128 = vmul.f32 1.0, %v2127
    %v2129 = vrcp.pop %v2126
    %v2130 = vmul.f32 1.0, %v2129
    %v2131 = vtanh.pop %v2118
    %v2132 = vmul.f32 %v2128, %v2025
    %2134 = vrot.lane.b32.xlu0 %v2131, 64
    %v2135 = vpop.permute.xlu0 %2134
    %v2137 = vmul.f32 %v2128, %v2135
    %2139 = vrot.lane.b32.xlu0 %v2137, 64
    %v2140 = vpop.permute.xlu0 %2139
    %v2142 = vadd.f32 %v2132, %v2140
    %v2143 = vtanh.pop %v2142
    %2145 = vrot.lane.b32.xlu0 %v2143, 64
    %v2146 = vpop.permute.xlu0 %2145
    %v2148 = vmul.f32 %v2130, %v2146
    %2149 = vst.msk [vmem:[#allocation4 + $0x10] sm:$0xff] %vm398, %v2148
    %2151 = vrot.lane.b32.xlu0 %v2148, 96
    %v2152 = vpop.permute.xlu0 %2151
    %2154 = vst.msk [vmem:[#allocation5 + $0x28] sm:$0xff] %vm398, %v2152
    %v2155 = vld [vmem:[#allocation2 + $0x30] sm:$0xff]
    %v2156 = vld [vmem:[#allocation2 + $0x38] sm:$0xff]
    %v2157 = vld [vmem:[#allocation3 + $0x40] sm:$0xff]
    %v2158 = vld [vmem:[#allocation3 + $0x48] sm:$0xff]
    %v2159 = vadd.f32 %v2155, %v2157
    %v2160 = vadd.f32 %v2156, %v2158
    %v2161 = vsel %vm411, %v2148, 0
    %2163 = vmatprep.subr.mxu0 %v1226
    %2164 = vmatpush1.msra.mxu0 %v1225
    %2165 = vmatprep.subr.mxu0 %v1228
    %2166 = vmatpush1.msra.mxu0 %v1227
    %2167 = vmatprep.subr.mxu0 %v1230
    %2168 = vmatpush1.msra.mxu0 %v1229
    %2169 = vmatprep.subr.mxu0 %v1232
    %2170 = vmatpush1.msra.mxu0 %v1231
    %2171 = vmatprep.subr.mxu0 %v1234
    %2172 = vmatpush1.msra.mxu0 %v1233
    %2173 = vmatprep.subr.mxu0 %v1236
    %2174 = vmatpush1.msra.mxu0 %v1235
    %2175 = vmatprep.subr.mxu0 %v1238
    %2176 = vmatpush1.msra.mxu0 %v1237
    %2177 = vmatprep.subr.mxu0 %v1240
    %2178 = vmatpush1.msra.mxu0 %v1239
    %2179 = vmatprep.subr.mxu0 0.0
    %2180 = vmatpush1.msra.mxu0 0.0
    %2181 = vmatprep.subr.mxu0 0.0
    %2182 = vmatpush1.msra.mxu0 0.0
    %2183 = vmatprep.subr.mxu0 0.0
    %2184 = vmatpush1.msra.mxu0 0.0
    %2185 = vmatprep.subr.mxu0 0.0
    %2186 = vmatpush1.msra.mxu0 0.0
    %2187 = vmatprep.subr.mxu0 0.0
    %2188 = vmatpush1.msra.mxu0 0.0
    %2189 = vmatprep.subr.mxu0 0.0
    %2190 = vmatpush1.msra.mxu0 0.0
    %2191 = vmatprep.subr.mxu0 0.0
    %2192 = vmatpush1.msra.mxu0 0.0
    %2193 = vmatprep.subr.mxu0 0.0
    %2194 = vmatpush1.msra.mxu0 0.0
    %2195 = vmatprep.subr.mxu0 0.0
    %2196 = vmatpush1.msra.mxu0 0.0
    %2197 = vmatprep.subr.mxu0 0.0
    %2198 = vmatpush1.msra.mxu0 0.0
    %2199 = vmatprep.subr.mxu0 0.0
    %2200 = vmatpush1.msra.mxu0 0.0
    %2201 = vmatprep.subr.mxu0 0.0
    %2202 = vmatpush1.msra.mxu0 0.0
    %2203 = vmatprep.subr.mxu0 0.0
    %2204 = vmatpush1.msra.mxu0 0.0
    %2205 = vmatprep.subr.mxu0 0.0
    %2206 = vmatpush1.msra.mxu0 0.0
    %2207 = vmatprep.subr.mxu0 0.0
    %2208 = vmatpush1.msra.mxu0 0.0
    %2209 = vmatprep.subr.mxu0 0.0
    %2210 = vmatpush1.msra.mxu0 0.0
    %2211 = vmatprep.subr.mxu0 0.0
    %2212 = vmatpush1.msra.mxu0 0.0
    %2213 = vmatprep.subr.mxu0 0.0
    %2214 = vmatpush1.msra.mxu0 0.0
    %2215 = vmatprep.subr.mxu0 0.0
    %2216 = vmatpush1.msra.mxu0 0.0
    %2217 = vmatprep.subr.mxu0 0.0
    %2218 = vmatpush1.msra.mxu0 0.0
    %2219 = vmatprep.subr.mxu0 0.0
    %2220 = vmatpush1.msra.mxu0 0.0
    %2221 = vmatprep.subr.mxu0 0.0
    %2222 = vmatpush1.msra.mxu0 0.0
    %2223 = vmatprep.subr.mxu0 0.0
    %2224 = vmatpush1.msra.mxu0 0.0
    %2225 = vmatprep.subr.mxu0 0.0
    %2226 = vmatpush1.msra.mxu0 0.0
    %2227 = vmatprep.mubr.f32.mxu0 0.0
    %2228 = vmatmul.mubr.f32.gmra.mrb[0].mxu0 %v2161
    %v2229 = vpop.f32.mrb[0].mxu0
    %v2230 = vadd.f32 0.0, %v2229
    %v2231 = vpop.f32.mrb[0].mxu0
    %v2232 = vadd.f32 0.0, %v2231
    %2233 = vdwg.mxu0
    %v2234 = vadd.f32 %v2159, %v2230
    %v2235 = vadd.f32 %v2160, %v2232
    %v2236 = vxor.u32 %v2234, 2147483648
    %v2237 = vxor.u32 %v2235, 2147483648
    %v2238 = vmul.f32 %v2236, 1.442695
    %v2239 = vpow.pop %v2238
    %v2240 = vmul.f32 %v2237, 1.442695
    %v2241 = vpow.pop %v2240
    %v2242 = vadd.f32 %v2239, 1.0
    %v2243 = vadd.f32 %v2241, 1.0
    %v2244 = vrcp.pop %v2242
    %v2245 = vmul.f32 1.0, %v2244
    %v2246 = vrcp.pop %v2243
    %v2247 = vmul.f32 1.0, %v2246
    %v2248 = vtanh.pop %v2235
    %v2249 = vmul.f32 %v2245, %v2142
    %2251 = vrot.lane.b32.xlu0 %v2248, 64
    %v2252 = vpop.permute.xlu0 %2251
    %v2254 = vmul.f32 %v2245, %v2252
    %2256 = vrot.lane.b32.xlu0 %v2254, 64
    %v2257 = vpop.permute.xlu0 %2256
    %v2259 = vadd.f32 %v2249, %v2257
    %v2260 = vtanh.pop %v2259
    %2262 = vrot.lane.b32.xlu0 %v2260, 64
    %v2263 = vpop.permute.xlu0 %2262
    %v2265 = vmul.f32 %v2247, %v2263
    %2266 = vst.msk [vmem:[#allocation4 + $0x18] sm:$0xff] %vm398, %v2265
    %2268 = vrot.lane.b32.xlu0 %v2265, 96
    %v2269 = vpop.permute.xlu0 %2268
    %2271 = vst.msk [vmem:[#allocation5 + $0x20] sm:$0xff] %vm398, %v2269
    %v2272 = vld [vmem:[#allocation2 + $0x40] sm:$0xff]
    %v2273 = vld [vmem:[#allocation2 + $0x48] sm:$0xff]
    %v2274 = vld [vmem:[#allocation3 + $0x30] sm:$0xff]
    %v2275 = vld [vmem:[#allocation3 + $0x38] sm:$0xff]
    %v2276 = vadd.f32 %v2272, %v2274
    %v2277 = vadd.f32 %v2273, %v2275
    %v2278 = vsel %vm411, %v2265, 0
    %2280 = vmatprep.subr.mxu0 %v1226
    %2281 = vmatpush1.msra.mxu0 %v1225
    %2282 = vmatprep.subr.mxu0 %v1228
    %2283 = vmatpush1.msra.mxu0 %v1227
    %2284 = vmatprep.subr.mxu0 %v1230
    %2285 = vmatpush1.msra.mxu0 %v1229
    %2286 = vmatprep.subr.mxu0 %v1232
    %2287 = vmatpush1.msra.mxu0 %v1231
    %2288 = vmatprep.subr.mxu0 %v1234
    %2289 = vmatpush1.msra.mxu0 %v1233
    %2290 = vmatprep.subr.mxu0 %v1236
    %2291 = vmatpush1.msra.mxu0 %v1235
    %2292 = vmatprep.subr.mxu0 %v1238
    %2293 = vmatpush1.msra.mxu0 %v1237
    %2294 = vmatprep.subr.mxu0 %v1240
    %2295 = vmatpush1.msra.mxu0 %v1239
    %2296 = vmatprep.subr.mxu0 0.0
    %2297 = vmatpush1.msra.mxu0 0.0
    %2298 = vmatprep.subr.mxu0 0.0
    %2299 = vmatpush1.msra.mxu0 0.0
    %2300 = vmatprep.subr.mxu0 0.0
    %2301 = vmatpush1.msra.mxu0 0.0
    %2302 = vmatprep.subr.mxu0 0.0
    %2303 = vmatpush1.msra.mxu0 0.0
    %2304 = vmatprep.subr.mxu0 0.0
    %2305 = vmatpush1.msra.mxu0 0.0
    %2306 = vmatprep.subr.mxu0 0.0
    %2307 = vmatpush1.msra.mxu0 0.0
    %2308 = vmatprep.subr.mxu0 0.0
    %2309 = vmatpush1.msra.mxu0 0.0
    %2310 = vmatprep.subr.mxu0 0.0
    %2311 = vmatpush1.msra.mxu0 0.0
    %2312 = vmatprep.subr.mxu0 0.0
    %2313 = vmatpush1.msra.mxu0 0.0
    %2314 = vmatprep.subr.mxu0 0.0
    %2315 = vmatpush1.msra.mxu0 0.0
    %2316 = vmatprep.subr.mxu0 0.0
    %2317 = vmatpush1.msra.mxu0 0.0
    %2318 = vmatprep.subr.mxu0 0.0
    %2319 = vmatpush1.msra.mxu0 0.0
    %2320 = vmatprep.subr.mxu0 0.0
    %2321 = vmatpush1.msra.mxu0 0.0
    %2322 = vmatprep.subr.mxu0 0.0
    %2323 = vmatpush1.msra.mxu0 0.0
    %2324 = vmatprep.subr.mxu0 0.0
    %2325 = vmatpush1.msra.mxu0 0.0
    %2326 = vmatprep.subr.mxu0 0.0
    %2327 = vmatpush1.msra.mxu0 0.0
    %2328 = vmatprep.subr.mxu0 0.0
    %2329 = vmatpush1.msra.mxu0 0.0
    %2330 = vmatprep.subr.mxu0 0.0
    %2331 = vmatpush1.msra.mxu0 0.0
    %2332 = vmatprep.subr.mxu0 0.0
    %2333 = vmatpush1.msra.mxu0 0.0
    %2334 = vmatprep.subr.mxu0 0.0
    %2335 = vmatpush1.msra.mxu0 0.0
    %2336 = vmatprep.subr.mxu0 0.0
    %2337 = vmatpush1.msra.mxu0 0.0
    %2338 = vmatprep.subr.mxu0 0.0
    %2339 = vmatpush1.msra.mxu0 0.0
    %2340 = vmatprep.subr.mxu0 0.0
    %2341 = vmatpush1.msra.mxu0 0.0
    %2342 = vmatprep.subr.mxu0 0.0
    %2343 = vmatpush1.msra.mxu0 0.0
    %2344 = vmatprep.mubr.f32.mxu0 0.0
    %2345 = vmatmul.mubr.f32.gmra.mrb[0].mxu0 %v2278
    %v2346 = vpop.f32.mrb[0].mxu0
    %v2347 = vadd.f32 0.0, %v2346
    %v2348 = vpop.f32.mrb[0].mxu0
    %v2349 = vadd.f32 0.0, %v2348
    %2350 = vdwg.mxu0
    %v2351 = vadd.f32 %v2276, %v2347
    %v2352 = vadd.f32 %v2277, %v2349
    %v2353 = vxor.u32 %v2351, 2147483648
    %v2354 = vxor.u32 %v2352, 2147483648
    %v2355 = vmul.f32 %v2353, 1.442695
    %v2356 = vpow.pop %v2355
    %v2357 = vmul.f32 %v2354, 1.442695
    %v2358 = vpow.pop %v2357
    %v2359 = vadd.f32 %v2356, 1.0
    %v2360 = vadd.f32 %v2358, 1.0
    %v2361 = vrcp.pop %v2359
    %v2362 = vmul.f32 1.0, %v2361
    %v2363 = vrcp.pop %v2360
    %v2364 = vmul.f32 1.0, %v2363
    %v2365 = vtanh.pop %v2352
    %v2366 = vmul.f32 %v2362, %v2259
    %2368 = vrot.lane.b32.xlu0 %v2365, 64
    %v2369 = vpop.permute.xlu0 %2368
    %v2371 = vmul.f32 %v2362, %v2369
    %2373 = vrot.lane.b32.xlu0 %v2371, 64
    %v2374 = vpop.permute.xlu0 %2373
    %v2376 = vadd.f32 %v2366, %v2374
    %v2377 = vtanh.pop %v2376
    %2379 = vrot.lane.b32.xlu0 %v2377, 64
    %v2380 = vpop.permute.xlu0 %2379
    %v2382 = vmul.f32 %v2364, %v2380
    %2383 = vst.msk [vmem:[#allocation4 + $0x20] sm:$0xff] %vm398, %v2382
    %2385 = vrot.lane.b32.xlu0 %v2382, 96
    %v2386 = vpop.permute.xlu0 %2385
    %2388 = vst.msk [vmem:[#allocation5 + $0x18] sm:$0xff] %vm398, %v2386
    %v2389 = vld [vmem:[#allocation2 + $0x50] sm:$0xff]
    %v2390 = vld [vmem:[#allocation2 + $0x58] sm:$0xff]
    %v2391 = vld [vmem:[#allocation3 + $0x20] sm:$0xff]
    %v2392 = vld [vmem:[#allocation3 + $0x28] sm:$0xff]
    %v2393 = vadd.f32 %v2389, %v2391
    %v2394 = vadd.f32 %v2390, %v2392
    %v2395 = vsel %vm411, %v2382, 0
    %2397 = vmatprep.subr.mxu0 %v1226
    %2398 = vmatpush1.msra.mxu0 %v1225
    %2399 = vmatprep.subr.mxu0 %v1228
    %2400 = vmatpush1.msra.mxu0 %v1227
    %2401 = vmatprep.subr.mxu0 %v1230
    %2402 = vmatpush1.msra.mxu0 %v1229
    %2403 = vmatprep.subr.mxu0 %v1232
    %2404 = vmatpush1.msra.mxu0 %v1231
    %2405 = vmatprep.subr.mxu0 %v1234
    %2406 = vmatpush1.msra.mxu0 %v1233
    %2407 = vmatprep.subr.mxu0 %v1236
    %2408 = vmatpush1.msra.mxu0 %v1235
    %2409 = vmatprep.subr.mxu0 %v1238
    %2410 = vmatpush1.msra.mxu0 %v1237
    %2411 = vmatprep.subr.mxu0 %v1240
    %2412 = vmatpush1.msra.mxu0 %v1239
    %2413 = vmatprep.subr.mxu0 0.0
    %2414 = vmatpush1.msra.mxu0 0.0
    %2415 = vmatprep.subr.mxu0 0.0
    %2416 = vmatpush1.msra.mxu0 0.0
    %2417 = vmatprep.subr.mxu0 0.0
    %2418 = vmatpush1.msra.mxu0 0.0
    %2419 = vmatprep.subr.mxu0 0.0
    %2420 = vmatpush1.msra.mxu0 0.0
    %2421 = vmatprep.subr.mxu0 0.0
    %2422 = vmatpush1.msra.mxu0 0.0
    %2423 = vmatprep.subr.mxu0 0.0
    %2424 = vmatpush1.msra.mxu0 0.0
    %2425 = vmatprep.subr.mxu0 0.0
    %2426 = vmatpush1.msra.mxu0 0.0
    %2427 = vmatprep.subr.mxu0 0.0
    %2428 = vmatpush1.msra.mxu0 0.0
    %2429 = vmatprep.subr.mxu0 0.0
    %2430 = vmatpush1.msra.mxu0 0.0
    %2431 = vmatprep.subr.mxu0 0.0
    %2432 = vmatpush1.msra.mxu0 0.0
    %2433 = vmatprep.subr.mxu0 0.0
    %2434 = vmatpush1.msra.mxu0 0.0
    %2435 = vmatprep.subr.mxu0 0.0
    %2436 = vmatpush1.msra.mxu0 0.0
    %2437 = vmatprep.subr.mxu0 0.0
    %2438 = vmatpush1.msra.mxu0 0.0
    %2439 = vmatprep.subr.mxu0 0.0
    %2440 = vmatpush1.msra.mxu0 0.0
    %2441 = vmatprep.subr.mxu0 0.0
    %2442 = vmatpush1.msra.mxu0 0.0
    %2443 = vmatprep.subr.mxu0 0.0
    %2444 = vmatpush1.msra.mxu0 0.0
    %2445 = vmatprep.subr.mxu0 0.0
    %2446 = vmatpush1.msra.mxu0 0.0
    %2447 = vmatprep.subr.mxu0 0.0
    %2448 = vmatpush1.msra.mxu0 0.0
    %2449 = vmatprep.subr.mxu0 0.0
    %2450 = vmatpush1.msra.mxu0 0.0
    %2451 = vmatprep.subr.mxu0 0.0
    %2452 = vmatpush1.msra.mxu0 0.0
    %2453 = vmatprep.subr.mxu0 0.0
    %2454 = vmatpush1.msra.mxu0 0.0
    %2455 = vmatprep.subr.mxu0 0.0
    %2456 = vmatpush1.msra.mxu0 0.0
    %2457 = vmatprep.subr.mxu0 0.0
    %2458 = vmatpush1.msra.mxu0 0.0
    %2459 = vmatprep.subr.mxu0 0.0
    %2460 = vmatpush1.msra.mxu0 0.0
    %2461 = vmatprep.mubr.f32.mxu0 0.0
    %2462 = vmatmul.mubr.f32.gmra.mrb[0].mxu0 %v2395
    %v2463 = vpop.f32.mrb[0].mxu0
    %v2464 = vadd.f32 0.0, %v2463
    %v2465 = vpop.f32.mrb[0].mxu0
    %v2466 = vadd.f32 0.0, %v2465
    %2467 = vdwg.mxu0
    %v2468 = vadd.f32 %v2393, %v2464
    %v2469 = vadd.f32 %v2394, %v2466
    %v2470 = vxor.u32 %v2468, 2147483648
    %v2471 = vxor.u32 %v2469, 2147483648
    %v2472 = vmul.f32 %v2470, 1.442695
    %v2473 = vpow.pop %v2472
    %v2474 = vmul.f32 %v2471, 1.442695
    %v2475 = vpow.pop %v2474
    %v2476 = vadd.f32 %v2473, 1.0
    %v2477 = vadd.f32 %v2475, 1.0
    %v2478 = vrcp.pop %v2476
    %v2479 = vmul.f32 1.0, %v2478
    %v2480 = vrcp.pop %v2477
    %v2481 = vmul.f32 1.0, %v2480
    %v2482 = vtanh.pop %v2469
    %v2483 = vmul.f32 %v2479, %v2376
    %2485 = vrot.lane.b32.xlu0 %v2482, 64
    %v2486 = vpop.permute.xlu0 %2485
    %v2488 = vmul.f32 %v2479, %v2486
    %2490 = vrot.lane.b32.xlu0 %v2488, 64
    %v2491 = vpop.permute.xlu0 %2490
    %v2493 = vadd.f32 %v2483, %v2491
    %v2494 = vtanh.pop %v2493
    %2496 = vrot.lane.b32.xlu0 %v2494, 64
    %v2497 = vpop.permute.xlu0 %2496
    %v2499 = vmul.f32 %v2481, %v2497
    %2500 = vst.msk [vmem:[#allocation4 + $0x28] sm:$0xff] %vm398, %v2499
    %2502 = vrot.lane.b32.xlu0 %v2499, 96
    %v2503 = vpop.permute.xlu0 %2502
    %2505 = vst.msk [vmem:[#allocation5 + $0x10] sm:$0xff] %vm398, %v2503
    %v2506 = vld [vmem:[#allocation2 + $0x60] sm:$0xff]
    %v2507 = vld [vmem:[#allocation2 + $0x68] sm:$0xff]
    %v2508 = vld [vmem:[#allocation3 + $0x10] sm:$0xff]
    %v2509 = vld [vmem:[#allocation3 + $0x18] sm:$0xff]
    %v2510 = vadd.f32 %v2506, %v2508
    %v2511 = vadd.f32 %v2507, %v2509
    %v2512 = vsel %vm411, %v2499, 0
    %2514 = vmatprep.subr.mxu0 %v1226
    %2515 = vmatpush1.msra.mxu0 %v1225
    %2516 = vmatprep.subr.mxu0 %v1228
    %2517 = vmatpush1.msra.mxu0 %v1227
    %2518 = vmatprep.subr.mxu0 %v1230
    %2519 = vmatpush1.msra.mxu0 %v1229
    %2520 = vmatprep.subr.mxu0 %v1232
    %2521 = vmatpush1.msra.mxu0 %v1231
    %2522 = vmatprep.subr.mxu0 %v1234
    %2523 = vmatpush1.msra.mxu0 %v1233
    %2524 = vmatprep.subr.mxu0 %v1236
    %2525 = vmatpush1.msra.mxu0 %v1235
    %2526 = vmatprep.subr.mxu0 %v1238
    %2527 = vmatpush1.msra.mxu0 %v1237
    %2528 = vmatprep.subr.mxu0 %v1240
    %2529 = vmatpush1.msra.mxu0 %v1239
    %2530 = vmatprep.subr.mxu0 0.0
    %2531 = vmatpush1.msra.mxu0 0.0
    %2532 = vmatprep.subr.mxu0 0.0
    %2533 = vmatpush1.msra.mxu0 0.0
    %2534 = vmatprep.subr.mxu0 0.0
    %2535 = vmatpush1.msra.mxu0 0.0
    %2536 = vmatprep.subr.mxu0 0.0
    %2537 = vmatpush1.msra.mxu0 0.0
    %2538 = vmatprep.subr.mxu0 0.0
    %2539 = vmatpush1.msra.mxu0 0.0
    %2540 = vmatprep.subr.mxu0 0.0
    %2541 = vmatpush1.msra.mxu0 0.0
    %2542 = vmatprep.subr.mxu0 0.0
    %2543 = vmatpush1.msra.mxu0 0.0
    %2544 = vmatprep.subr.mxu0 0.0
    %2545 = vmatpush1.msra.mxu0 0.0
    %2546 = vmatprep.subr.mxu0 0.0
    %2547 = vmatpush1.msra.mxu0 0.0
    %2548 = vmatprep.subr.mxu0 0.0
    %2549 = vmatpush1.msra.mxu0 0.0
    %2550 = vmatprep.subr.mxu0 0.0
    %2551 = vmatpush1.msra.mxu0 0.0
    %2552 = vmatprep.subr.mxu0 0.0
    %2553 = vmatpush1.msra.mxu0 0.0
    %2554 = vmatprep.subr.mxu0 0.0
    %2555 = vmatpush1.msra.mxu0 0.0
    %2556 = vmatprep.subr.mxu0 0.0
    %2557 = vmatpush1.msra.mxu0 0.0
    %2558 = vmatprep.subr.mxu0 0.0
    %2559 = vmatpush1.msra.mxu0 0.0
    %2560 = vmatprep.subr.mxu0 0.0
    %2561 = vmatpush1.msra.mxu0 0.0
    %2562 = vmatprep.subr.mxu0 0.0
    %2563 = vmatpush1.msra.mxu0 0.0
    %2564 = vmatprep.subr.mxu0 0.0
    %2565 = vmatpush1.msra.mxu0 0.0
    %2566 = vmatprep.subr.mxu0 0.0
    %2567 = vmatpush1.msra.mxu0 0.0
    %2568 = vmatprep.subr.mxu0 0.0
    %2569 = vmatpush1.msra.mxu0 0.0
    %2570 = vmatprep.subr.mxu0 0.0
    %2571 = vmatpush1.msra.mxu0 0.0
    %2572 = vmatprep.subr.mxu0 0.0
    %2573 = vmatpush1.msra.mxu0 0.0
    %2574 = vmatprep.subr.mxu0 0.0
    %2575 = vmatpush1.msra.mxu0 0.0
    %2576 = vmatprep.subr.mxu0 0.0
    %2577 = vmatpush1.msra.mxu0 0.0
    %2578 = vmatprep.mubr.f32.mxu0 0.0
    %2579 = vmatmul.mubr.f32.gmra.mrb[0].mxu0 %v2512
    %v2580 = vpop.f32.mrb[0].mxu0
    %v2581 = vadd.f32 0.0, %v2580
    %v2582 = vpop.f32.mrb[0].mxu0
    %v2583 = vadd.f32 0.0, %v2582
    %2584 = vdwg.mxu0
    %v2585 = vadd.f32 %v2510, %v2581
    %v2586 = vadd.f32 %v2511, %v2583
    %v2587 = vxor.u32 %v2585, 2147483648
    %v2588 = vxor.u32 %v2586, 2147483648
    %v2589 = vmul.f32 %v2587, 1.442695
    %v2590 = vpow.pop %v2589
    %v2591 = vmul.f32 %v2588, 1.442695
    %v2592 = vpow.pop %v2591
    %v2593 = vadd.f32 %v2590, 1.0
    %v2594 = vadd.f32 %v2592, 1.0
    %v2595 = vrcp.pop %v2593
    %v2596 = vmul.f32 1.0, %v2595
    %v2597 = vrcp.pop %v2594
    %v2598 = vmul.f32 1.0, %v2597
    %v2599 = vtanh.pop %v2586
    %v2600 = vmul.f32 %v2596, %v2493
    %2602 = vrot.lane.b32.xlu0 %v2599, 64
    %v2603 = vpop.permute.xlu0 %2602
    %v2605 = vmul.f32 %v2596, %v2603
    %2607 = vrot.lane.b32.xlu0 %v2605, 64
    %v2608 = vpop.permute.xlu0 %2607
    %v2610 = vadd.f32 %v2600, %v2608
    %v2611 = vtanh.pop %v2610
    %2613 = vrot.lane.b32.xlu0 %v2611, 64
    %v2614 = vpop.permute.xlu0 %2613
    %v2616 = vmul.f32 %v2598, %v2614
    %2617 = vst.msk [vmem:[#allocation4 + $0x30] sm:$0xff] %vm398, %v2616
    %2619 = vrot.lane.b32.xlu0 %v2616, 96
    %v2620 = vpop.permute.xlu0 %2619
    %2622 = vst.msk [vmem:[#allocation5 + $0x8] sm:$0xff] %vm398, %v2620
    %v2623 = vld [vmem:[#allocation2 + $0x70] sm:$0xff]
    %v2624 = vld [vmem:[#allocation2 + $0x78] sm:$0xff]
    %v2625 = vld [vmem:[#allocation3] sm:$0xff]
    %v2626 = vld [vmem:[#allocation3 + $0x8] sm:$0xff]
    %v2627 = vadd.f32 %v2623, %v2625
    %v2628 = vadd.f32 %v2624, %v2626
    %v2629 = vsel %vm411, %v2616, 0
    %2631 = vmatprep.subr.mxu0 %v1226
    %2632 = vmatpush1.msra.mxu0 %v1225
    %2633 = vmatprep.subr.mxu0 %v1228
    %2634 = vmatpush1.msra.mxu0 %v1227
    %2635 = vmatprep.subr.mxu0 %v1230
    %2636 = vmatpush1.msra.mxu0 %v1229
    %2637 = vmatprep.subr.mxu0 %v1232
    %2638 = vmatpush1.msra.mxu0 %v1231
    %2639 = vmatprep.subr.mxu0 %v1234
    %2640 = vmatpush1.msra.mxu0 %v1233
    %2641 = vmatprep.subr.mxu0 %v1236
    %2642 = vmatpush1.msra.mxu0 %v1235
    %2643 = vmatprep.subr.mxu0 %v1238
    %2644 = vmatpush1.msra.mxu0 %v1237
    %2645 = vmatprep.subr.mxu0 %v1240
    %2646 = vmatpush1.msra.mxu0 %v1239
    %2647 = vmatprep.subr.mxu0 0.0
    %2648 = vmatpush1.msra.mxu0 0.0
    %2649 = vmatprep.subr.mxu0 0.0
    %2650 = vmatpush1.msra.mxu0 0.0
    %2651 = vmatprep.subr.mxu0 0.0
    %2652 = vmatpush1.msra.mxu0 0.0
    %2653 = vmatprep.subr.mxu0 0.0
    %2654 = vmatpush1.msra.mxu0 0.0
    %2655 = vmatprep.subr.mxu0 0.0
    %2656 = vmatpush1.msra.mxu0 0.0
    %2657 = vmatprep.subr.mxu0 0.0
    %2658 = vmatpush1.msra.mxu0 0.0
    %2659 = vmatprep.subr.mxu0 0.0
    %2660 = vmatpush1.msra.mxu0 0.0
    %2661 = vmatprep.subr.mxu0 0.0
    %2662 = vmatpush1.msra.mxu0 0.0
    %2663 = vmatprep.subr.mxu0 0.0
    %2664 = vmatpush1.msra.mxu0 0.0
    %2665 = vmatprep.subr.mxu0 0.0
    %2666 = vmatpush1.msra.mxu0 0.0
    %2667 = vmatprep.subr.mxu0 0.0
    %2668 = vmatpush1.msra.mxu0 0.0
    %2669 = vmatprep.subr.mxu0 0.0
    %2670 = vmatpush1.msra.mxu0 0.0
    %2671 = vmatprep.subr.mxu0 0.0
    %2672 = vmatpush1.msra.mxu0 0.0
    %2673 = vmatprep.subr.mxu0 0.0
    %2674 = vmatpush1.msra.mxu0 0.0
    %2675 = vmatprep.subr.mxu0 0.0
    %2676 = vmatpush1.msra.mxu0 0.0
    %2677 = vmatprep.subr.mxu0 0.0
    %2678 = vmatpush1.msra.mxu0 0.0
    %2679 = vmatprep.subr.mxu0 0.0
    %2680 = vmatpush1.msra.mxu0 0.0
    %2681 = vmatprep.subr.mxu0 0.0
    %2682 = vmatpush1.msra.mxu0 0.0
    %2683 = vmatprep.subr.mxu0 0.0
    %2684 = vmatpush1.msra.mxu0 0.0
    %2685 = vmatprep.subr.mxu0 0.0
    %2686 = vmatpush1.msra.mxu0 0.0
    %2687 = vmatprep.subr.mxu0 0.0
    %2688 = vmatpush1.msra.mxu0 0.0
    %2689 = vmatprep.subr.mxu0 0.0
    %2690 = vmatpush1.msra.mxu0 0.0
    %2691 = vmatprep.subr.mxu0 0.0
    %2692 = vmatpush1.msra.mxu0 0.0
    %2693 = vmatprep.subr.mxu0 0.0
    %2694 = vmatpush1.msra.mxu0 0.0
    %2695 = vmatprep.mubr.f32.mxu0 0.0
    %2696 = vmatmul.mubr.f32.gmra.mrb[0].mxu0 %v2629
    %v2697 = vpop.f32.mrb[0].mxu0
    %v2698 = vadd.f32 0.0, %v2697
    %v2699 = vpop.f32.mrb[0].mxu0
    %v2700 = vadd.f32 0.0, %v2699
    %2701 = vdwg.mxu0
    %v2702 = vadd.f32 %v2627, %v2698
    %v2703 = vadd.f32 %v2628, %v2700
    %v2704 = vxor.u32 %v2702, 2147483648
    %v2705 = vxor.u32 %v2703, 2147483648
    %v2706 = vmul.f32 %v2704, 1.442695
    %v2707 = vpow.pop %v2706
    %v2708 = vmul.f32 %v2705, 1.442695
    %v2709 = vpow.pop %v2708
    %v2710 = vadd.f32 %v2707, 1.0
    %v2711 = vadd.f32 %v2709, 1.0
    %v2712 = vrcp.pop %v2710
    %v2713 = vmul.f32 1.0, %v2712
    %v2714 = vrcp.pop %v2711
    %v2715 = vmul.f32 1.0, %v2714
    %v2716 = vtanh.pop %v2703
    %v2717 = vmul.f32 %v2713, %v2610
    %2719 = vrot.lane.b32.xlu0 %v2716, 64
    %v2720 = vpop.permute.xlu0 %2719
    %v2722 = vmul.f32 %v2713, %v2720
    %2724 = vrot.lane.b32.xlu0 %v2722, 64
    %v2725 = vpop.permute.xlu0 %2724
    %v2727 = vadd.f32 %v2717, %v2725
    %v2728 = vtanh.pop %v2727
    %2730 = vrot.lane.b32.xlu0 %v2728, 64
    %v2731 = vpop.permute.xlu0 %2730
    %v2733 = vmul.f32 %v2715, %v2731
    %2734 = vst.msk [vmem:[#allocation4 + $0x38] sm:$0xff] %vm398, %v2733
    %2736 = vrot.lane.b32.xlu0 %v2733, 96
    %v2737 = vpop.permute.xlu0 %2736
    %2739 = vst.msk [vmem:[#allocation5] sm:$0xff] %vm398, %v2737
    %v2740 = vld [vmem:[#allocation6 + $0x360] sm:$0xff]
    %v2741 = vld [vmem:[#allocation6 + $0x368] sm:$0xff]
    %v2742 = vld [vmem:[#allocation6 + $0x370] sm:$0xff]
    %v2743 = vld [vmem:[#allocation6 + $0x378] sm:$0xff]
    %v2744 = vld [vmem:[#allocation6 + $0x380] sm:$0xff]
    %v2745 = vld [vmem:[#allocation6 + $0x388] sm:$0xff]
    %v2746 = vld [vmem:[#allocation6 + $0x390] sm:$0xff]
    %v2747 = vld [vmem:[#allocation6 + $0x398] sm:$0xff]
    %v2748 = vld [vmem:[#allocation6 + $0x3a0] sm:$0xff]
    %v2749 = vld [vmem:[#allocation6 + $0x3a8] sm:$0xff]
    %v2750 = vld [vmem:[#allocation6 + $0x3b0] sm:$0xff]
    %v2751 = vld [vmem:[#allocation6 + $0x3b8] sm:$0xff]
    %v2752 = vld [vmem:[#allocation6 + $0x3c0] sm:$0xff]
    %v2753 = vld [vmem:[#allocation6 + $0x3c8] sm:$0xff]
    %v2754 = vld [vmem:[#allocation6 + $0x3d0] sm:$0xff]
    %v2755 = vld [vmem:[#allocation6 + $0x3d8] sm:$0xff]
    %s2756 = scalar_lea.vmem [#allocation6], 992
    %v2757 = vld [vmem:[%s2756] ss:$8 sm:$0x3]
    %s2758 = scalar_lea.vmem [#allocation6], 1008
    %v2759 = vld [vmem:[%s2758] ss:$8 sm:$0x3]
    %v2760 = vld [vmem:[#allocation4] sm:$0xff]
    %v2761 = vld [vmem:[#allocation4 + $0x8] sm:$0xff]
    %v2762 = vld [vmem:[#allocation4 + $0x10] sm:$0xff]
    %v2763 = vld [vmem:[#allocation4 + $0x18] sm:$0xff]
    %v2764 = vld [vmem:[#allocation4 + $0x20] sm:$0xff]
    %v2765 = vld [vmem:[#allocation4 + $0x28] sm:$0xff]
    %v2766 = vld [vmem:[#allocation4 + $0x30] sm:$0xff]
    %v2767 = vld [vmem:[#allocation4 + $0x38] sm:$0xff]
    %v2768 = vld [vmem:[#allocation5] sm:$0xff]
    %v2769 = vld [vmem:[#allocation5 + $0x8] sm:$0xff]
    %v2770 = vld [vmem:[#allocation5 + $0x10] sm:$0xff]
    %v2771 = vld [vmem:[#allocation5 + $0x18] sm:$0xff]
    %v2772 = vld [vmem:[#allocation5 + $0x20] sm:$0xff]
    %v2773 = vld [vmem:[#allocation5 + $0x28] sm:$0xff]
    %v2774 = vld [vmem:[#allocation5 + $0x30] sm:$0xff]
    %v2775 = vld [vmem:[#allocation5 + $0x38] sm:$0xff]
    %v2776 = vld [vmem:[#allocation6 + $0x260] sm:$0xff]
    %v2777 = vld [vmem:[#allocation6 + $0x268] sm:$0xff]
    %v2778 = vld [vmem:[#allocation6 + $0x270] sm:$0xff]
    %v2779 = vld [vmem:[#allocation6 + $0x278] sm:$0xff]
    %v2780 = vld [vmem:[#allocation6 + $0x280] sm:$0xff]
    %v2781 = vld [vmem:[#allocation6 + $0x288] sm:$0xff]
    %v2782 = vld [vmem:[#allocation6 + $0x290] sm:$0xff]
    %v2783 = vld [vmem:[#allocation6 + $0x298] sm:$0xff]
    %v2784 = vld [vmem:[#allocation6 + $0x2a0] sm:$0xff]
    %v2785 = vld [vmem:[#allocation6 + $0x2a8] sm:$0xff]
    %v2786 = vld [vmem:[#allocation6 + $0x2b0] sm:$0xff]
    %v2787 = vld [vmem:[#allocation6 + $0x2b8] sm:$0xff]
    %v2788 = vld [vmem:[#allocation6 + $0x2c0] sm:$0xff]
    %v2789 = vld [vmem:[#allocation6 + $0x2c8] sm:$0xff]
    %v2790 = vld [vmem:[#allocation6 + $0x2d0] sm:$0xff]
    %v2791 = vld [vmem:[#allocation6 + $0x2d8] sm:$0xff]
    %v2792 = vld [vmem:[#allocation6 + $0x2e0] sm:$0xff]
    %v2793 = vld [vmem:[#allocation6 + $0x2e8] sm:$0xff]
    %v2794 = vld [vmem:[#allocation6 + $0x2f0] sm:$0xff]
    %v2795 = vld [vmem:[#allocation6 + $0x2f8] sm:$0xff]
    %v2796 = vld [vmem:[#allocation6 + $0x300] sm:$0xff]
    %v2797 = vld [vmem:[#allocation6 + $0x308] sm:$0xff]
    %v2798 = vld [vmem:[#allocation6 + $0x310] sm:$0xff]
    %v2799 = vld [vmem:[#allocation6 + $0x318] sm:$0xff]
    %v2800 = vld [vmem:[#allocation6 + $0x320] sm:$0xff]
    %v2801 = vld [vmem:[#allocation6 + $0x328] sm:$0xff]
    %v2802 = vld [vmem:[#allocation6 + $0x330] sm:$0xff]
    %v2803 = vld [vmem:[#allocation6 + $0x338] sm:$0xff]
    %v2804 = vld [vmem:[#allocation6 + $0x340] sm:$0xff]
    %v2805 = vld [vmem:[#allocation6 + $0x348] sm:$0xff]
    %v2806 = vld [vmem:[#allocation6 + $0x350] sm:$0xff]
    %v2807 = vld [vmem:[#allocation6 + $0x358] sm:$0xff]
    %v2809 = vsel %vm398, %v2768, 0
    %v2812 = vsel %vm398, %v2769, 0
    %v2815 = vsel %vm398, %v2770, 0
    %v2818 = vsel %vm398, %v2771, 0
    %v2821 = vsel %vm398, %v2772, 0
    %v2824 = vsel %vm398, %v2773, 0
    %v2827 = vsel %vm398, %v2774, 0
    %v2830 = vsel %vm398, %v2775, 0
    %2832 = vmatprep.subr.mxu0 %v2785
    %2833 = vmatpush1.msra.mxu0 %v2784
    %2834 = vmatprep.subr.mxu0 %v2787
    %2835 = vmatpush1.msra.mxu0 %v2786
    %2836 = vmatprep.subr.mxu0 %v2789
    %2837 = vmatpush1.msra.mxu0 %v2788
    %2838 = vmatprep.subr.mxu0 %v2791
    %2839 = vmatpush1.msra.mxu0 %v2790
    %2840 = vmatprep.subr.mxu0 0.0
    %2841 = vmatpush1.msra.mxu0 0.0
    %2842 = vmatprep.subr.mxu0 0.0
    %2843 = vmatpush1.msra.mxu0 0.0
    %2844 = vmatprep.subr.mxu0 0.0
    %2845 = vmatpush1.msra.mxu0 0.0
    %2846 = vmatprep.subr.mxu0 0.0
    %2847 = vmatpush1.msra.mxu0 0.0
    %2848 = vmatprep.subr.mxu0 0.0
    %2849 = vmatpush1.msra.mxu0 0.0
    %2850 = vmatprep.subr.mxu0 0.0
    %2851 = vmatpush1.msra.mxu0 0.0
    %2852 = vmatprep.subr.mxu0 0.0
    %2853 = vmatpush1.msra.mxu0 0.0
    %2854 = vmatprep.subr.mxu0 0.0
    %2855 = vmatpush1.msra.mxu0 0.0
    %2856 = vmatprep.subr.mxu0 0.0
    %2857 = vmatpush1.msra.mxu0 0.0
    %2858 = vmatprep.subr.mxu0 0.0
    %2859 = vmatpush1.msra.mxu0 0.0
    %2860 = vmatprep.subr.mxu0 0.0
    %2861 = vmatpush1.msra.mxu0 0.0
    %2862 = vmatprep.subr.mxu0 0.0
    %2863 = vmatpush1.msra.mxu0 0.0
    %2864 = vmatprep.subr.mxu0 0.0
    %2865 = vmatpush1.msra.mxu0 0.0
    %2866 = vmatprep.subr.mxu0 0.0
    %2867 = vmatpush1.msra.mxu0 0.0
    %2868 = vmatprep.subr.mxu0 0.0
    %2869 = vmatpush1.msra.mxu0 0.0
    %2870 = vmatprep.subr.mxu0 0.0
    %2871 = vmatpush1.msra.mxu0 0.0
    %2872 = vmatprep.subr.mxu0 0.0
    %2873 = vmatpush1.msra.mxu0 0.0
    %2874 = vmatprep.subr.mxu0 0.0
    %2875 = vmatpush1.msra.mxu0 0.0
    %2876 = vmatprep.subr.mxu0 0.0
    %2877 = vmatpush1.msra.mxu0 0.0
    %2878 = vmatprep.subr.mxu0 0.0
    %2879 = vmatpush1.msra.mxu0 0.0
    %2880 = vmatprep.subr.mxu0 0.0
    %2881 = vmatpush1.msra.mxu0 0.0
    %2882 = vmatprep.subr.mxu0 0.0
    %2883 = vmatpush1.msra.mxu0 0.0
    %2884 = vmatprep.subr.mxu0 0.0
    %2885 = vmatpush1.msra.mxu0 0.0
    %2886 = vmatprep.subr.mxu0 0.0
    %2887 = vmatpush1.msra.mxu0 0.0
    %2888 = vmatprep.subr.mxu0 0.0
    %2889 = vmatpush1.msra.mxu0 0.0
    %2890 = vmatprep.subr.mxu0 0.0
    %2891 = vmatpush1.msra.mxu0 0.0
    %2892 = vmatprep.subr.mxu0 0.0
    %2893 = vmatpush1.msra.mxu0 0.0
    %2894 = vmatprep.subr.mxu0 0.0
    %2895 = vmatpush1.msra.mxu0 0.0
    %2896 = vmatprep.mubr.f32.mxu0 0.0
    %2897 = vmatmul.mubr.f32.gmra.mrb[0].mxu0 %v2809
    %v2898 = vpop.f32.mrb[0].mxu0
    %v2899 = vadd.f32 0.0, %v2898
    %v2900 = vpop.f32.mrb[0].mxu0
    %v2901 = vadd.f32 0.0, %v2900
    %2902 = vmatprep.mubr.f32.mxu0 0.0
    %2903 = vmatmul.mubr.f32.gmra.mrb[0].mxu0 %v2812
    %v2904 = vpop.f32.mrb[0].mxu0
    %v2905 = vadd.f32 0.0, %v2904
    %v2906 = vpop.f32.mrb[0].mxu0
    %v2907 = vadd.f32 0.0, %v2906
    %2908 = vmatprep.mubr.f32.mxu0 0.0
    %2909 = vmatmul.mubr.f32.gmra.mrb[0].mxu0 %v2815
    %v2910 = vpop.f32.mrb[0].mxu0
    %v2911 = vadd.f32 0.0, %v2910
    %v2912 = vpop.f32.mrb[0].mxu0
    %v2913 = vadd.f32 0.0, %v2912
    %2914 = vmatprep.mubr.f32.mxu0 0.0
    %2915 = vmatmul.mubr.f32.gmra.mrb[0].mxu0 %v2818
    %v2916 = vpop.f32.mrb[0].mxu0
    %v2917 = vadd.f32 0.0, %v2916
    %v2918 = vpop.f32.mrb[0].mxu0
    %v2919 = vadd.f32 0.0, %v2918
    %2920 = vmatprep.mubr.f32.mxu0 0.0
    %2921 = vmatmul.mubr.f32.gmra.mrb[0].mxu0 %v2821
    %v2922 = vpop.f32.mrb[0].mxu0
    %v2923 = vadd.f32 0.0, %v2922
    %v2924 = vpop.f32.mrb[0].mxu0
    %v2925 = vadd.f32 0.0, %v2924
    %2926 = vmatprep.mubr.f32.mxu0 0.0
    %2927 = vmatmul.mubr.f32.gmra.mrb[0].mxu0 %v2824
    %v2928 = vpop.f32.mrb[0].mxu0
    %v2929 = vadd.f32 0.0, %v2928
    %v2930 = vpop.f32.mrb[0].mxu0
    %v2931 = vadd.f32 0.0, %v2930
    %2932 = vmatprep.mubr.f32.mxu0 0.0
    %2933 = vmatmul.mubr.f32.gmra.mrb[0].mxu0 %v2827
    %v2934 = vpop.f32.mrb[0].mxu0
    %v2935 = vadd.f32 0.0, %v2934
    %v2936 = vpop.f32.mrb[0].mxu0
    %v2937 = vadd.f32 0.0, %v2936
    %2938 = vmatprep.mubr.f32.mxu0 0.0
    %2939 = vmatmul.mubr.f32.gmra.mrb[0].mxu0 %v2830
    %v2940 = vpop.f32.mrb[0].mxu0
    %v2941 = vadd.f32 0.0, %v2940
    %v2942 = vpop.f32.mrb[0].mxu0
    %v2943 = vadd.f32 0.0, %v2942
    %2944 = vdwg.mxu0
    %v2946 = vsel %vm398, %v2760, 0
    %v2949 = vsel %vm398, %v2761, 0
    %v2952 = vsel %vm398, %v2762, 0
    %v2955 = vsel %vm398, %v2763, 0
    %v2958 = vsel %vm398, %v2764, 0
    %v2961 = vsel %vm398, %v2765, 0
    %v2964 = vsel %vm398, %v2766, 0
    %v2967 = vsel %vm398, %v2767, 0
    %2969 = vmatprep.subr.mxu0 %v2777
    %2970 = vmatpush1.msra.mxu0 %v2776
    %2971 = vmatprep.subr.mxu0 %v2779
    %2972 = vmatpush1.msra.mxu0 %v2778
    %2973 = vmatprep.subr.mxu0 %v2781
    %2974 = vmatpush1.msra.mxu0 %v2780
    %2975 = vmatprep.subr.mxu0 %v2783
    %2976 = vmatpush1.msra.mxu0 %v2782
    %2977 = vmatprep.subr.mxu0 0.0
    %2978 = vmatpush1.msra.mxu0 0.0
    %2979 = vmatprep.subr.mxu0 0.0
    %2980 = vmatpush1.msra.mxu0 0.0
    %2981 = vmatprep.subr.mxu0 0.0
    %2982 = vmatpush1.msra.mxu0 0.0
    %2983 = vmatprep.subr.mxu0 0.0
    %2984 = vmatpush1.msra.mxu0 0.0
    %2985 = vmatprep.subr.mxu0 0.0
    %2986 = vmatpush1.msra.mxu0 0.0
    %2987 = vmatprep.subr.mxu0 0.0
    %2988 = vmatpush1.msra.mxu0 0.0
    %2989 = vmatprep.subr.mxu0 0.0
    %2990 = vmatpush1.msra.mxu0 0.0
    %2991 = vmatprep.subr.mxu0 0.0
    %2992 = vmatpush1.msra.mxu0 0.0
    %2993 = vmatprep.subr.mxu0 0.0
    %2994 = vmatpush1.msra.mxu0 0.0
    %2995 = vmatprep.subr.mxu0 0.0
    %2996 = vmatpush1.msra.mxu0 0.0
    %2997 = vmatprep.subr.mxu0 0.0
    %2998 = vmatpush1.msra.mxu0 0.0
    %2999 = vmatprep.subr.mxu0 0.0
    %3000 = vmatpush1.msra.mxu0 0.0
    %3001 = vmatprep.subr.mxu0 0.0
    %3002 = vmatpush1.msra.mxu0 0.0
    %3003 = vmatprep.subr.mxu0 0.0
    %3004 = vmatpush1.msra.mxu0 0.0
    %3005 = vmatprep.subr.mxu0 0.0
    %3006 = vmatpush1.msra.mxu0 0.0
    %3007 = vmatprep.subr.mxu0 0.0
    %3008 = vmatpush1.msra.mxu0 0.0
    %3009 = vmatprep.subr.mxu0 0.0
    %3010 = vmatpush1.msra.mxu0 0.0
    %3011 = vmatprep.subr.mxu0 0.0
    %3012 = vmatpush1.msra.mxu0 0.0
    %3013 = vmatprep.subr.mxu0 0.0
    %3014 = vmatpush1.msra.mxu0 0.0
    %3015 = vmatprep.subr.mxu0 0.0
    %3016 = vmatpush1.msra.mxu0 0.0
    %3017 = vmatprep.subr.mxu0 0.0
    %3018 = vmatpush1.msra.mxu0 0.0
    %3019 = vmatprep.subr.mxu0 0.0
    %3020 = vmatpush1.msra.mxu0 0.0
    %3021 = vmatprep.subr.mxu0 0.0
    %3022 = vmatpush1.msra.mxu0 0.0
    %3023 = vmatprep.subr.mxu0 0.0
    %3024 = vmatpush1.msra.mxu0 0.0
    %3025 = vmatprep.subr.mxu0 0.0
    %3026 = vmatpush1.msra.mxu0 0.0
    %3027 = vmatprep.subr.mxu0 0.0
    %3028 = vmatpush1.msra.mxu0 0.0
    %3029 = vmatprep.subr.mxu0 0.0
    %3030 = vmatpush1.msra.mxu0 0.0
    %3031 = vmatprep.subr.mxu0 0.0
    %3032 = vmatpush1.msra.mxu0 0.0
    %3033 = vmatprep.mubr.f32.mxu0 0.0
    %3034 = vmatmul.mubr.f32.gmra.mrb[0].mxu0 %v2946
    %v3035 = vpop.f32.mrb[0].mxu0
    %v3036 = vadd.f32 %v2899, %v3035
    %v3037 = vpop.f32.mrb[0].mxu0
    %v3038 = vadd.f32 %v2901, %v3037
    %3039 = vmatprep.mubr.f32.mxu0 0.0
    %3040 = vmatmul.mubr.f32.gmra.mrb[0].mxu0 %v2949
    %v3041 = vpop.f32.mrb[0].mxu0
    %v3042 = vadd.f32 %v2905, %v3041
    %v3043 = vpop.f32.mrb[0].mxu0
    %v3044 = vadd.f32 %v2907, %v3043
    %3045 = vmatprep.mubr.f32.mxu0 0.0
    %3046 = vmatmul.mubr.f32.gmra.mrb[0].mxu0 %v2952
    %v3047 = vpop.f32.mrb[0].mxu0
    %v3048 = vadd.f32 %v2911, %v3047
    %v3049 = vpop.f32.mrb[0].mxu0
    %v3050 = vadd.f32 %v2913, %v3049
    %3051 = vmatprep.mubr.f32.mxu0 0.0
    %3052 = vmatmul.mubr.f32.gmra.mrb[0].mxu0 %v2955
    %v3053 = vpop.f32.mrb[0].mxu0
    %v3054 = vadd.f32 %v2917, %v3053
    %v3055 = vpop.f32.mrb[0].mxu0
    %v3056 = vadd.f32 %v2919, %v3055
    %3057 = vmatprep.mubr.f32.mxu0 0.0
    %3058 = vmatmul.mubr.f32.gmra.mrb[0].mxu0 %v2958
    %v3059 = vpop.f32.mrb[0].mxu0
    %v3060 = vadd.f32 %v2923, %v3059
    %v3061 = vpop.f32.mrb[0].mxu0
    %v3062 = vadd.f32 %v2925, %v3061
    %3063 = vmatprep.mubr.f32.mxu0 0.0
    %3064 = vmatmul.mubr.f32.gmra.mrb[0].mxu0 %v2961
    %v3065 = vpop.f32.mrb[0].mxu0
    %v3066 = vadd.f32 %v2929, %v3065
    %v3067 = vpop.f32.mrb[0].mxu0
    %v3068 = vadd.f32 %v2931, %v3067
    %3069 = vmatprep.mubr.f32.mxu0 0.0
    %3070 = vmatmul.mubr.f32.gmra.mrb[0].mxu0 %v2964
    %v3071 = vpop.f32.mrb[0].mxu0
    %v3072 = vadd.f32 %v2935, %v3071
    %v3073 = vpop.f32.mrb[0].mxu0
    %v3074 = vadd.f32 %v2937, %v3073
    %3075 = vmatprep.mubr.f32.mxu0 0.0
    %3076 = vmatmul.mubr.f32.gmra.mrb[0].mxu0 %v2967
    %v3077 = vpop.f32.mrb[0].mxu0
    %v3078 = vadd.f32 %v2941, %v3077
    %v3079 = vpop.f32.mrb[0].mxu0
    %v3080 = vadd.f32 %v2943, %v3079
    %3081 = vdwg.mxu0
    %v3083 = vlaneseq
    %v3084 = vshrl.u32 %v3083, 7
    %v3085 = vsub.s32 0, %v3084
    %v3086 = vrot.slane %v2757, %v3085
    %v3087 = vlaneseq
    %v3088 = vshrl.u32 %v3087, 7
    %v3089 = vsub.s32 1, %v3088
    %v3090 = vrot.slane %v2757, %v3089
    %v3093 = vadd.f32 %v3036, %v3086
    %v3094 = vadd.f32 %v3038, %v3090
    %v3095 = vadd.f32 %v3042, %v3086
    %v3096 = vadd.f32 %v3044, %v3090
    %v3097 = vadd.f32 %v3048, %v3086
    %v3098 = vadd.f32 %v3050, %v3090
    %v3099 = vadd.f32 %v3054, %v3086
    %v3100 = vadd.f32 %v3056, %v3090
    %v3101 = vadd.f32 %v3060, %v3086
    %v3102 = vadd.f32 %v3062, %v3090
    %v3103 = vadd.f32 %v3066, %v3086
    %v3104 = vadd.f32 %v3068, %v3090
    %v3105 = vadd.f32 %v3072, %v3086
    %v3106 = vadd.f32 %v3074, %v3090
    %v3107 = vadd.f32 %v3078, %v3086
    %v3108 = vadd.f32 %v3080, %v3090
    %3109 = vst [vmem:[#allocation2] sm:$0xff] %v3093
    %3110 = vst [vmem:[#allocation2 + $0x8] sm:$0xff] %v3094
    %3111 = vst [vmem:[#allocation2 + $0x10] sm:$0xff] %v3095
    %3112 = vst [vmem:[#allocation2 + $0x18] sm:$0xff] %v3096
    %3113 = vst [vmem:[#allocation2 + $0x20] sm:$0xff] %v3097
    %3114 = vst [vmem:[#allocation2 + $0x28] sm:$0xff] %v3098
    %3115 = vst [vmem:[#allocation2 + $0x30] sm:$0xff] %v3099
    %3116 = vst [vmem:[#allocation2 + $0x38] sm:$0xff] %v3100
    %3117 = vst [vmem:[#allocation2 + $0x40] sm:$0xff] %v3101
    %3118 = vst [vmem:[#allocation2 + $0x48] sm:$0xff] %v3102
    %3119 = vst [vmem:[#allocation2 + $0x50] sm:$0xff] %v3103
    %3120 = vst [vmem:[#allocation2 + $0x58] sm:$0xff] %v3104
    %3121 = vst [vmem:[#allocation2 + $0x60] sm:$0xff] %v3105
    %3122 = vst [vmem:[#allocation2 + $0x68] sm:$0xff] %v3106
    %3123 = vst [vmem:[#allocation2 + $0x70] sm:$0xff] %v3107
    %3124 = vst [vmem:[#allocation2 + $0x78] sm:$0xff] %v3108
    %3125 = vmatprep.subr.mxu0 %v2801
    %3126 = vmatpush1.msra.mxu0 %v2800
    %3127 = vmatprep.subr.mxu0 %v2803
    %3128 = vmatpush1.msra.mxu0 %v2802
    %3129 = vmatprep.subr.mxu0 %v2805
    %3130 = vmatpush1.msra.mxu0 %v2804
    %3131 = vmatprep.subr.mxu0 %v2807
    %3132 = vmatpush1.msra.mxu0 %v2806
    %3133 = vmatprep.subr.mxu0 0.0
    %3134 = vmatpush1.msra.mxu0 0.0
    %3135 = vmatprep.subr.mxu0 0.0
    %3136 = vmatpush1.msra.mxu0 0.0
    %3137 = vmatprep.subr.mxu0 0.0
    %3138 = vmatpush1.msra.mxu0 0.0
    %3139 = vmatprep.subr.mxu0 0.0
    %3140 = vmatpush1.msra.mxu0 0.0
    %3141 = vmatprep.subr.mxu0 0.0
    %3142 = vmatpush1.msra.mxu0 0.0
    %3143 = vmatprep.subr.mxu0 0.0
    %3144 = vmatpush1.msra.mxu0 0.0
    %3145 = vmatprep.subr.mxu0 0.0
    %3146 = vmatpush1.msra.mxu0 0.0
    %3147 = vmatprep.subr.mxu0 0.0
    %3148 = vmatpush1.msra.mxu0 0.0
    %3149 = vmatprep.subr.mxu0 0.0
    %3150 = vmatpush1.msra.mxu0 0.0
    %3151 = vmatprep.subr.mxu0 0.0
    %3152 = vmatpush1.msra.mxu0 0.0
    %3153 = vmatprep.subr.mxu0 0.0
    %3154 = vmatpush1.msra.mxu0 0.0
    %3155 = vmatprep.subr.mxu0 0.0
    %3156 = vmatpush1.msra.mxu0 0.0
    %3157 = vmatprep.subr.mxu0 0.0
    %3158 = vmatpush1.msra.mxu0 0.0
    %3159 = vmatprep.subr.mxu0 0.0
    %3160 = vmatpush1.msra.mxu0 0.0
    %3161 = vmatprep.subr.mxu0 0.0
    %3162 = vmatpush1.msra.mxu0 0.0
    %3163 = vmatprep.subr.mxu0 0.0
    %3164 = vmatpush1.msra.mxu0 0.0
    %3165 = vmatprep.subr.mxu0 0.0
    %3166 = vmatpush1.msra.mxu0 0.0
    %3167 = vmatprep.subr.mxu0 0.0
    %3168 = vmatpush1.msra.mxu0 0.0
    %3169 = vmatprep.subr.mxu0 0.0
    %3170 = vmatpush1.msra.mxu0 0.0
    %3171 = vmatprep.subr.mxu0 0.0
    %3172 = vmatpush1.msra.mxu0 0.0
    %3173 = vmatprep.subr.mxu0 0.0
    %3174 = vmatpush1.msra.mxu0 0.0
    %3175 = vmatprep.subr.mxu0 0.0
    %3176 = vmatpush1.msra.mxu0 0.0
    %3177 = vmatprep.subr.mxu0 0.0
    %3178 = vmatpush1.msra.mxu0 0.0
    %3179 = vmatprep.subr.mxu0 0.0
    %3180 = vmatpush1.msra.mxu0 0.0
    %3181 = vmatprep.subr.mxu0 0.0
    %3182 = vmatpush1.msra.mxu0 0.0
    %3183 = vmatprep.subr.mxu0 0.0
    %3184 = vmatpush1.msra.mxu0 0.0
    %3185 = vmatprep.subr.mxu0 0.0
    %3186 = vmatpush1.msra.mxu0 0.0
    %3187 = vmatprep.subr.mxu0 0.0
    %3188 = vmatpush1.msra.mxu0 0.0
    %3189 = vmatprep.mubr.f32.mxu0 0.0
    %3190 = vmatmul.mubr.f32.gmra.mrb[0].mxu0 %v2809
    %v3191 = vpop.f32.mrb[0].mxu0
    %v3192 = vadd.f32 0.0, %v3191
    %v3193 = vpop.f32.mrb[0].mxu0
    %v3194 = vadd.f32 0.0, %v3193
    %3195 = vmatprep.mubr.f32.mxu0 0.0
    %3196 = vmatmul.mubr.f32.gmra.mrb[0].mxu0 %v2812
    %v3197 = vpop.f32.mrb[0].mxu0
    %v3198 = vadd.f32 0.0, %v3197
    %v3199 = vpop.f32.mrb[0].mxu0
    %v3200 = vadd.f32 0.0, %v3199
    %3201 = vmatprep.mubr.f32.mxu0 0.0
    %3202 = vmatmul.mubr.f32.gmra.mrb[0].mxu0 %v2815
    %v3203 = vpop.f32.mrb[0].mxu0
    %v3204 = vadd.f32 0.0, %v3203
    %v3205 = vpop.f32.mrb[0].mxu0
    %v3206 = vadd.f32 0.0, %v3205
    %3207 = vmatprep.mubr.f32.mxu0 0.0
    %3208 = vmatmul.mubr.f32.gmra.mrb[0].mxu0 %v2818
    %v3209 = vpop.f32.mrb[0].mxu0
    %v3210 = vadd.f32 0.0, %v3209
    %v3211 = vpop.f32.mrb[0].mxu0
    %v3212 = vadd.f32 0.0, %v3211
    %3213 = vmatprep.mubr.f32.mxu0 0.0
    %3214 = vmatmul.mubr.f32.gmra.mrb[0].mxu0 %v2821
    %v3215 = vpop.f32.mrb[0].mxu0
    %v3216 = vadd.f32 0.0, %v3215
    %v3217 = vpop.f32.mrb[0].mxu0
    %v3218 = vadd.f32 0.0, %v3217
    %3219 = vmatprep.mubr.f32.mxu0 0.0
    %3220 = vmatmul.mubr.f32.gmra.mrb[0].mxu0 %v2824
    %v3221 = vpop.f32.mrb[0].mxu0
    %v3222 = vadd.f32 0.0, %v3221
    %v3223 = vpop.f32.mrb[0].mxu0
    %v3224 = vadd.f32 0.0, %v3223
    %3225 = vmatprep.mubr.f32.mxu0 0.0
    %3226 = vmatmul.mubr.f32.gmra.mrb[0].mxu0 %v2827
    %v3227 = vpop.f32.mrb[0].mxu0
    %v3228 = vadd.f32 0.0, %v3227
    %v3229 = vpop.f32.mrb[0].mxu0
    %v3230 = vadd.f32 0.0, %v3229
    %3231 = vmatprep.mubr.f32.mxu0 0.0
    %3232 = vmatmul.mubr.f32.gmra.mrb[0].mxu0 %v2830
    %v3233 = vpop.f32.mrb[0].mxu0
    %v3234 = vadd.f32 0.0, %v3233
    %v3235 = vpop.f32.mrb[0].mxu0
    %v3236 = vadd.f32 0.0, %v3235
    %3237 = vdwg.mxu0
    %3238 = vmatprep.subr.mxu0 %v2793
    %3239 = vmatpush1.msra.mxu0 %v2792
    %3240 = vmatprep.subr.mxu0 %v2795
    %3241 = vmatpush1.msra.mxu0 %v2794
    %3242 = vmatprep.subr.mxu0 %v2797
    %3243 = vmatpush1.msra.mxu0 %v2796
    %3244 = vmatprep.subr.mxu0 %v2799
    %3245 = vmatpush1.msra.mxu0 %v2798
    %3246 = vmatprep.subr.mxu0 0.0
    %3247 = vmatpush1.msra.mxu0 0.0
    %3248 = vmatprep.subr.mxu0 0.0
    %3249 = vmatpush1.msra.mxu0 0.0
    %3250 = vmatprep.subr.mxu0 0.0
    %3251 = vmatpush1.msra.mxu0 0.0
    %3252 = vmatprep.subr.mxu0 0.0
    %3253 = vmatpush1.msra.mxu0 0.0
    %3254 = vmatprep.subr.mxu0 0.0
    %3255 = vmatpush1.msra.mxu0 0.0
    %3256 = vmatprep.subr.mxu0 0.0
    %3257 = vmatpush1.msra.mxu0 0.0
    %3258 = vmatprep.subr.mxu0 0.0
    %3259 = vmatpush1.msra.mxu0 0.0
    %3260 = vmatprep.subr.mxu0 0.0
    %3261 = vmatpush1.msra.mxu0 0.0
    %3262 = vmatprep.subr.mxu0 0.0
    %3263 = vmatpush1.msra.mxu0 0.0
    %3264 = vmatprep.subr.mxu0 0.0
    %3265 = vmatpush1.msra.mxu0 0.0
    %3266 = vmatprep.subr.mxu0 0.0
    %3267 = vmatpush1.msra.mxu0 0.0
    %3268 = vmatprep.subr.mxu0 0.0
    %3269 = vmatpush1.msra.mxu0 0.0
    %3270 = vmatprep.subr.mxu0 0.0
    %3271 = vmatpush1.msra.mxu0 0.0
    %3272 = vmatprep.subr.mxu0 0.0
    %3273 = vmatpush1.msra.mxu0 0.0
    %3274 = vmatprep.subr.mxu0 0.0
    %3275 = vmatpush1.msra.mxu0 0.0
    %3276 = vmatprep.subr.mxu0 0.0
    %3277 = vmatpush1.msra.mxu0 0.0
    %3278 = vmatprep.subr.mxu0 0.0
    %3279 = vmatpush1.msra.mxu0 0.0
    %3280 = vmatprep.subr.mxu0 0.0
    %3281 = vmatpush1.msra.mxu0 0.0
    %3282 = vmatprep.subr.mxu0 0.0
    %3283 = vmatpush1.msra.mxu0 0.0
    %3284 = vmatprep.subr.mxu0 0.0
    %3285 = vmatpush1.msra.mxu0 0.0
    %3286 = vmatprep.subr.mxu0 0.0
    %3287 = vmatpush1.msra.mxu0 0.0
    %3288 = vmatprep.subr.mxu0 0.0
    %3289 = vmatpush1.msra.mxu0 0.0
    %3290 = vmatprep.subr.mxu0 0.0
    %3291 = vmatpush1.msra.mxu0 0.0
    %3292 = vmatprep.subr.mxu0 0.0
    %3293 = vmatpush1.msra.mxu0 0.0
    %3294 = vmatprep.subr.mxu0 0.0
    %3295 = vmatpush1.msra.mxu0 0.0
    %3296 = vmatprep.subr.mxu0 0.0
    %3297 = vmatpush1.msra.mxu0 0.0
    %3298 = vmatprep.subr.mxu0 0.0
    %3299 = vmatpush1.msra.mxu0 0.0
    %3300 = vmatprep.subr.mxu0 0.0
    %3301 = vmatpush1.msra.mxu0 0.0
    %3302 = vmatprep.mubr.f32.mxu0 0.0
    %3303 = vmatmul.mubr.f32.gmra.mrb[0].mxu0 %v2946
    %v3304 = vpop.f32.mrb[0].mxu0
    %v3305 = vadd.f32 %v3192, %v3304
    %v3306 = vpop.f32.mrb[0].mxu0
    %v3307 = vadd.f32 %v3194, %v3306
    %3308 = vmatprep.mubr.f32.mxu0 0.0
    %3309 = vmatmul.mubr.f32.gmra.mrb[0].mxu0 %v2949
    %v3310 = vpop.f32.mrb[0].mxu0
    %v3311 = vadd.f32 %v3198, %v3310
    %v3312 = vpop.f32.mrb[0].mxu0
    %v3313 = vadd.f32 %v3200, %v3312
    %3314 = vmatprep.mubr.f32.mxu0 0.0
    %3315 = vmatmul.mubr.f32.gmra.mrb[0].mxu0 %v2952
    %v3316 = vpop.f32.mrb[0].mxu0
    %v3317 = vadd.f32 %v3204, %v3316
    %v3318 = vpop.f32.mrb[0].mxu0
    %v3319 = vadd.f32 %v3206, %v3318
    %3320 = vmatprep.mubr.f32.mxu0 0.0
    %3321 = vmatmul.mubr.f32.gmra.mrb[0].mxu0 %v2955
    %v3322 = vpop.f32.mrb[0].mxu0
    %v3323 = vadd.f32 %v3210, %v3322
    %v3324 = vpop.f32.mrb[0].mxu0
    %v3325 = vadd.f32 %v3212, %v3324
    %3326 = vmatprep.mubr.f32.mxu0 0.0
    %3327 = vmatmul.mubr.f32.gmra.mrb[0].mxu0 %v2958
    %v3328 = vpop.f32.mrb[0].mxu0
    %v3329 = vadd.f32 %v3216, %v3328
    %v3330 = vpop.f32.mrb[0].mxu0
    %v3331 = vadd.f32 %v3218, %v3330
    %3332 = vmatprep.mubr.f32.mxu0 0.0
    %3333 = vmatmul.mubr.f32.gmra.mrb[0].mxu0 %v2961
    %v3334 = vpop.f32.mrb[0].mxu0
    %v3335 = vadd.f32 %v3222, %v3334
    %v3336 = vpop.f32.mrb[0].mxu0
    %v3337 = vadd.f32 %v3224, %v3336
    %3338 = vmatprep.mubr.f32.mxu0 0.0
    %3339 = vmatmul.mubr.f32.gmra.mrb[0].mxu0 %v2964
    %v3340 = vpop.f32.mrb[0].mxu0
    %v3341 = vadd.f32 %v3228, %v3340
    %v3342 = vpop.f32.mrb[0].mxu0
    %v3343 = vadd.f32 %v3230, %v3342
    %3344 = vmatprep.mubr.f32.mxu0 0.0
    %3345 = vmatmul.mubr.f32.gmra.mrb[0].mxu0 %v2967
    %v3346 = vpop.f32.mrb[0].mxu0
    %v3347 = vadd.f32 %v3234, %v3346
    %v3348 = vpop.f32.mrb[0].mxu0
    %v3349 = vadd.f32 %v3236, %v3348
    %3350 = vdwg.mxu0
    %v3352 = vlaneseq
    %v3353 = vshrl.u32 %v3352, 7
    %v3354 = vsub.s32 0, %v3353
    %v3355 = vrot.slane %v2759, %v3354
    %v3356 = vlaneseq
    %v3357 = vshrl.u32 %v3356, 7
    %v3358 = vsub.s32 1, %v3357
    %v3359 = vrot.slane %v2759, %v3358
    %v3362 = vadd.f32 %v3305, %v3355
    %v3363 = vadd.f32 %v3307, %v3359
    %v3364 = vadd.f32 %v3311, %v3355
    %v3365 = vadd.f32 %v3313, %v3359
    %v3366 = vadd.f32 %v3317, %v3355
    %v3367 = vadd.f32 %v3319, %v3359
    %v3368 = vadd.f32 %v3323, %v3355
    %v3369 = vadd.f32 %v3325, %v3359
    %v3370 = vadd.f32 %v3329, %v3355
    %v3371 = vadd.f32 %v3331, %v3359
    %v3372 = vadd.f32 %v3335, %v3355
    %v3373 = vadd.f32 %v3337, %v3359
    %v3374 = vadd.f32 %v3341, %v3355
    %v3375 = vadd.f32 %v3343, %v3359
    %v3376 = vadd.f32 %v3347, %v3355
    %v3377 = vadd.f32 %v3349, %v3359
    %3378 = vst [vmem:[#allocation3] sm:$0xff] %v3362
    %3379 = vst [vmem:[#allocation3 + $0x8] sm:$0xff] %v3363
    %3380 = vst [vmem:[#allocation3 + $0x10] sm:$0xff] %v3364
    %3381 = vst [vmem:[#allocation3 + $0x18] sm:$0xff] %v3365
    %3382 = vst [vmem:[#allocation3 + $0x20] sm:$0xff] %v3366
    %3383 = vst [vmem:[#allocation3 + $0x28] sm:$0xff] %v3367
    %3384 = vst [vmem:[#allocation3 + $0x30] sm:$0xff] %v3368
    %3385 = vst [vmem:[#allocation3 + $0x38] sm:$0xff] %v3369
    %3386 = vst [vmem:[#allocation3 + $0x40] sm:$0xff] %v3370
    %3387 = vst [vmem:[#allocation3 + $0x48] sm:$0xff] %v3371
    %3388 = vst [vmem:[#allocation3 + $0x50] sm:$0xff] %v3372
    %3389 = vst [vmem:[#allocation3 + $0x58] sm:$0xff] %v3373
    %3390 = vst [vmem:[#allocation3 + $0x60] sm:$0xff] %v3374
    %3391 = vst [vmem:[#allocation3 + $0x68] sm:$0xff] %v3375
    %3392 = vst [vmem:[#allocation3 + $0x70] sm:$0xff] %v3376
    %3393 = vst [vmem:[#allocation3 + $0x78] sm:$0xff] %v3377
    %v3394 = vld [vmem:[#allocation2] sm:$0xff]
    %v3395 = vld [vmem:[#allocation2 + $0x8] sm:$0xff]
    %v3396 = vld [vmem:[#allocation3 + $0x70] sm:$0xff]
    %v3397 = vld [vmem:[#allocation3 + $0x78] sm:$0xff]
    %v3398 = vadd.f32 %v3394, %v3396
    %v3399 = vadd.f32 %v3395, %v3397
    %v3400 = vxor.u32 %v3398, 2147483648
    %v3401 = vxor.u32 %v3399, 2147483648
    %v3402 = vmul.f32 %v3400, 1.442695
    %v3403 = vpow.pop %v3402
    %v3404 = vmul.f32 %v3401, 1.442695
    %v3405 = vpow.pop %v3404
    %v3406 = vadd.f32 %v3403, 1.0
    %v3407 = vadd.f32 %v3405, 1.0
    %v3408 = vrcp.pop %v3406
    %v3409 = vmul.f32 1.0, %v3408
    %v3410 = vrcp.pop %v3407
    %v3411 = vmul.f32 1.0, %v3410
    %v3412 = vtanh.pop %v3399
    %v3413 = vmul.f32 %v3409, 0.0
    %3415 = vrot.lane.b32.xlu0 %v3412, 64
    %v3416 = vpop.permute.xlu0 %3415
    %v3418 = vmul.f32 %v3409, %v3416
    %3420 = vrot.lane.b32.xlu0 %v3418, 64
    %v3421 = vpop.permute.xlu0 %3420
    %v3423 = vadd.f32 %v3413, %v3421
    %v3424 = vtanh.pop %v3423
    %3426 = vrot.lane.b32.xlu0 %v3424, 64
    %v3427 = vpop.permute.xlu0 %3426
    %v3429 = vmul.f32 %v3411, %v3427
    %3430 = vst.msk [vmem:[#allocation4] sm:$0xff] %vm398, %v3429
    %3432 = vrot.lane.b32.xlu0 %v3429, 96
    %v3433 = vpop.permute.xlu0 %3432
    %3435 = vst.msk [vmem:[#allocation5 + $0x38] sm:$0xff] %vm398, %v3433
    %v3436 = vld [vmem:[#allocation2 + $0x10] sm:$0xff]
    %v3437 = vld [vmem:[#allocation2 + $0x18] sm:$0xff]
    %v3438 = vld [vmem:[#allocation3 + $0x60] sm:$0xff]
    %v3439 = vld [vmem:[#allocation3 + $0x68] sm:$0xff]
    %v3440 = vadd.f32 %v3436, %v3438
    %v3441 = vadd.f32 %v3437, %v3439
    %v3442 = vsel %vm411, %v3429, 0
    %3444 = vmatprep.subr.mxu0 %v2741
    %3445 = vmatpush1.msra.mxu0 %v2740
    %3446 = vmatprep.subr.mxu0 %v2743
    %3447 = vmatpush1.msra.mxu0 %v2742
    %3448 = vmatprep.subr.mxu0 %v2745
    %3449 = vmatpush1.msra.mxu0 %v2744
    %3450 = vmatprep.subr.mxu0 %v2747
    %3451 = vmatpush1.msra.mxu0 %v2746
    %3452 = vmatprep.subr.mxu0 %v2749
    %3453 = vmatpush1.msra.mxu0 %v2748
    %3454 = vmatprep.subr.mxu0 %v2751
    %3455 = vmatpush1.msra.mxu0 %v2750
    %3456 = vmatprep.subr.mxu0 %v2753
    %3457 = vmatpush1.msra.mxu0 %v2752
    %3458 = vmatprep.subr.mxu0 %v2755
    %3459 = vmatpush1.msra.mxu0 %v2754
    %3460 = vmatprep.subr.mxu0 0.0
    %3461 = vmatpush1.msra.mxu0 0.0
    %3462 = vmatprep.subr.mxu0 0.0
    %3463 = vmatpush1.msra.mxu0 0.0
    %3464 = vmatprep.subr.mxu0 0.0
    %3465 = vmatpush1.msra.mxu0 0.0
    %3466 = vmatprep.subr.mxu0 0.0
    %3467 = vmatpush1.msra.mxu0 0.0
    %3468 = vmatprep.subr.mxu0 0.0
    %3469 = vmatpush1.msra.mxu0 0.0
    %3470 = vmatprep.subr.mxu0 0.0
    %3471 = vmatpush1.msra.mxu0 0.0
    %3472 = vmatprep.subr.mxu0 0.0
    %3473 = vmatpush1.msra.mxu0 0.0
    %3474 = vmatprep.subr.mxu0 0.0
    %3475 = vmatpush1.msra.mxu0 0.0
    %3476 = vmatprep.subr.mxu0 0.0
    %3477 = vmatpush1.msra.mxu0 0.0
    %3478 = vmatprep.subr.mxu0 0.0
    %3479 = vmatpush1.msra.mxu0 0.0
    %3480 = vmatprep.subr.mxu0 0.0
    %3481 = vmatpush1.msra.mxu0 0.0
    %3482 = vmatprep.subr.mxu0 0.0
    %3483 = vmatpush1.msra.mxu0 0.0
    %3484 = vmatprep.subr.mxu0 0.0
    %3485 = vmatpush1.msra.mxu0 0.0
    %3486 = vmatprep.subr.mxu0 0.0
    %3487 = vmatpush1.msra.mxu0 0.0
    %3488 = vmatprep.subr.mxu0 0.0
    %3489 = vmatpush1.msra.mxu0 0.0
    %3490 = vmatprep.subr.mxu0 0.0
    %3491 = vmatpush1.msra.mxu0 0.0
    %3492 = vmatprep.subr.mxu0 0.0
    %3493 = vmatpush1.msra.mxu0 0.0
    %3494 = vmatprep.subr.mxu0 0.0
    %3495 = vmatpush1.msra.mxu0 0.0
    %3496 = vmatprep.subr.mxu0 0.0
    %3497 = vmatpush1.msra.mxu0 0.0
    %3498 = vmatprep.subr.mxu0 0.0
    %3499 = vmatpush1.msra.mxu0 0.0
    %3500 = vmatprep.subr.mxu0 0.0
    %3501 = vmatpush1.msra.mxu0 0.0
    %3502 = vmatprep.subr.mxu0 0.0
    %3503 = vmatpush1.msra.mxu0 0.0
    %3504 = vmatprep.subr.mxu0 0.0
    %3505 = vmatpush1.msra.mxu0 0.0
    %3506 = vmatprep.subr.mxu0 0.0
    %3507 = vmatpush1.msra.mxu0 0.0
    %3508 = vmatprep.mubr.f32.mxu0 0.0
    %3509 = vmatmul.mubr.f32.gmra.mrb[0].mxu0 %v3442
    %v3510 = vpop.f32.mrb[0].mxu0
    %v3511 = vadd.f32 0.0, %v3510
    %v3512 = vpop.f32.mrb[0].mxu0
    %v3513 = vadd.f32 0.0, %v3512
    %3514 = vdwg.mxu0
    %v3515 = vadd.f32 %v3440, %v3511
    %v3516 = vadd.f32 %v3441, %v3513
    %v3517 = vxor.u32 %v3515, 2147483648
    %v3518 = vxor.u32 %v3516, 2147483648
    %v3519 = vmul.f32 %v3517, 1.442695
    %v3520 = vpow.pop %v3519
    %v3521 = vmul.f32 %v3518, 1.442695
    %v3522 = vpow.pop %v3521
    %v3523 = vadd.f32 %v3520, 1.0
    %v3524 = vadd.f32 %v3522, 1.0
    %v3525 = vrcp.pop %v3523
    %v3526 = vmul.f32 1.0, %v3525
    %v3527 = vrcp.pop %v3524
    %v3528 = vmul.f32 1.0, %v3527
    %v3529 = vtanh.pop %v3516
    %v3530 = vmul.f32 %v3526, %v3423
    %3532 = vrot.lane.b32.xlu0 %v3529, 64
    %v3533 = vpop.permute.xlu0 %3532
    %v3535 = vmul.f32 %v3526, %v3533
    %3537 = vrot.lane.b32.xlu0 %v3535, 64
    %v3538 = vpop.permute.xlu0 %3537
    %v3540 = vadd.f32 %v3530, %v3538
    %v3541 = vtanh.pop %v3540
    %3543 = vrot.lane.b32.xlu0 %v3541, 64
    %v3544 = vpop.permute.xlu0 %3543
    %v3546 = vmul.f32 %v3528, %v3544
    %3547 = vst.msk [vmem:[#allocation4 + $0x8] sm:$0xff] %vm398, %v3546
    %3549 = vrot.lane.b32.xlu0 %v3546, 96
    %v3550 = vpop.permute.xlu0 %3549
    %3552 = vst.msk [vmem:[#allocation5 + $0x30] sm:$0xff] %vm398, %v3550
    %v3553 = vld [vmem:[#allocation2 + $0x20] sm:$0xff]
    %v3554 = vld [vmem:[#allocation2 + $0x28] sm:$0xff]
    %v3555 = vld [vmem:[#allocation3 + $0x50] sm:$0xff]
    %v3556 = vld [vmem:[#allocation3 + $0x58] sm:$0xff]
    %v3557 = vadd.f32 %v3553, %v3555
    %v3558 = vadd.f32 %v3554, %v3556
    %v3559 = vsel %vm411, %v3546, 0
    %3561 = vmatprep.subr.mxu0 %v2741
    %3562 = vmatpush1.msra.mxu0 %v2740
    %3563 = vmatprep.subr.mxu0 %v2743
    %3564 = vmatpush1.msra.mxu0 %v2742
    %3565 = vmatprep.subr.mxu0 %v2745
    %3566 = vmatpush1.msra.mxu0 %v2744
    %3567 = vmatprep.subr.mxu0 %v2747
    %3568 = vmatpush1.msra.mxu0 %v2746
    %3569 = vmatprep.subr.mxu0 %v2749
    %3570 = vmatpush1.msra.mxu0 %v2748
    %3571 = vmatprep.subr.mxu0 %v2751
    %3572 = vmatpush1.msra.mxu0 %v2750
    %3573 = vmatprep.subr.mxu0 %v2753
    %3574 = vmatpush1.msra.mxu0 %v2752
    %3575 = vmatprep.subr.mxu0 %v2755
    %3576 = vmatpush1.msra.mxu0 %v2754
    %3577 = vmatprep.subr.mxu0 0.0
    %3578 = vmatpush1.msra.mxu0 0.0
    %3579 = vmatprep.subr.mxu0 0.0
    %3580 = vmatpush1.msra.mxu0 0.0
    %3581 = vmatprep.subr.mxu0 0.0
    %3582 = vmatpush1.msra.mxu0 0.0
    %3583 = vmatprep.subr.mxu0 0.0
    %3584 = vmatpush1.msra.mxu0 0.0
    %3585 = vmatprep.subr.mxu0 0.0
    %3586 = vmatpush1.msra.mxu0 0.0
    %3587 = vmatprep.subr.mxu0 0.0
    %3588 = vmatpush1.msra.mxu0 0.0
    %3589 = vmatprep.subr.mxu0 0.0
    %3590 = vmatpush1.msra.mxu0 0.0
    %3591 = vmatprep.subr.mxu0 0.0
    %3592 = vmatpush1.msra.mxu0 0.0
    %3593 = vmatprep.subr.mxu0 0.0
    %3594 = vmatpush1.msra.mxu0 0.0
    %3595 = vmatprep.subr.mxu0 0.0
    %3596 = vmatpush1.msra.mxu0 0.0
    %3597 = vmatprep.subr.mxu0 0.0
    %3598 = vmatpush1.msra.mxu0 0.0
    %3599 = vmatprep.subr.mxu0 0.0
    %3600 = vmatpush1.msra.mxu0 0.0
    %3601 = vmatprep.subr.mxu0 0.0
    %3602 = vmatpush1.msra.mxu0 0.0
    %3603 = vmatprep.subr.mxu0 0.0
    %3604 = vmatpush1.msra.mxu0 0.0
    %3605 = vmatprep.subr.mxu0 0.0
    %3606 = vmatpush1.msra.mxu0 0.0
    %3607 = vmatprep.subr.mxu0 0.0
    %3608 = vmatpush1.msra.mxu0 0.0
    %3609 = vmatprep.subr.mxu0 0.0
    %3610 = vmatpush1.msra.mxu0 0.0
    %3611 = vmatprep.subr.mxu0 0.0
    %3612 = vmatpush1.msra.mxu0 0.0
    %3613 = vmatprep.subr.mxu0 0.0
    %3614 = vmatpush1.msra.mxu0 0.0
    %3615 = vmatprep.subr.mxu0 0.0
    %3616 = vmatpush1.msra.mxu0 0.0
    %3617 = vmatprep.subr.mxu0 0.0
    %3618 = vmatpush1.msra.mxu0 0.0
    %3619 = vmatprep.subr.mxu0 0.0
    %3620 = vmatpush1.msra.mxu0 0.0
    %3621 = vmatprep.subr.mxu0 0.0
    %3622 = vmatpush1.msra.mxu0 0.0
    %3623 = vmatprep.subr.mxu0 0.0
    %3624 = vmatpush1.msra.mxu0 0.0
    %3625 = vmatprep.mubr.f32.mxu0 0.0
    %3626 = vmatmul.mubr.f32.gmra.mrb[0].mxu0 %v3559
    %v3627 = vpop.f32.mrb[0].mxu0
    %v3628 = vadd.f32 0.0, %v3627
    %v3629 = vpop.f32.mrb[0].mxu0
    %v3630 = vadd.f32 0.0, %v3629
    %3631 = vdwg.mxu0
    %v3632 = vadd.f32 %v3557, %v3628
    %v3633 = vadd.f32 %v3558, %v3630
    %v3634 = vxor.u32 %v3632, 2147483648
    %v3635 = vxor.u32 %v3633, 2147483648
    %v3636 = vmul.f32 %v3634, 1.442695
    %v3637 = vpow.pop %v3636
    %v3638 = vmul.f32 %v3635, 1.442695
    %v3639 = vpow.pop %v3638
    %v3640 = vadd.f32 %v3637, 1.0
    %v3641 = vadd.f32 %v3639, 1.0
    %v3642 = vrcp.pop %v3640
    %v3643 = vmul.f32 1.0, %v3642
    %v3644 = vrcp.pop %v3641
    %v3645 = vmul.f32 1.0, %v3644
    %v3646 = vtanh.pop %v3633
    %v3647 = vmul.f32 %v3643, %v3540
    %3649 = vrot.lane.b32.xlu0 %v3646, 64
    %v3650 = vpop.permute.xlu0 %3649
    %v3652 = vmul.f32 %v3643, %v3650
    %3654 = vrot.lane.b32.xlu0 %v3652, 64
    %v3655 = vpop.permute.xlu0 %3654
    %v3657 = vadd.f32 %v3647, %v3655
    %v3658 = vtanh.pop %v3657
    %3660 = vrot.lane.b32.xlu0 %v3658, 64
    %v3661 = vpop.permute.xlu0 %3660
    %v3663 = vmul.f32 %v3645, %v3661
    %3664 = vst.msk [vmem:[#allocation4 + $0x10] sm:$0xff] %vm398, %v3663
    %3666 = vrot.lane.b32.xlu0 %v3663, 96
    %v3667 = vpop.permute.xlu0 %3666
    %3669 = vst.msk [vmem:[#allocation5 + $0x28] sm:$0xff] %vm398, %v3667
    %v3670 = vld [vmem:[#allocation2 + $0x30] sm:$0xff]
    %v3671 = vld [vmem:[#allocation2 + $0x38] sm:$0xff]
    %v3672 = vld [vmem:[#allocation3 + $0x40] sm:$0xff]
    %v3673 = vld [vmem:[#allocation3 + $0x48] sm:$0xff]
    %v3674 = vadd.f32 %v3670, %v3672
    %v3675 = vadd.f32 %v3671, %v3673
    %v3676 = vsel %vm411, %v3663, 0
    %3678 = vmatprep.subr.mxu0 %v2741
    %3679 = vmatpush1.msra.mxu0 %v2740
    %3680 = vmatprep.subr.mxu0 %v2743
    %3681 = vmatpush1.msra.mxu0 %v2742
    %3682 = vmatprep.subr.mxu0 %v2745
    %3683 = vmatpush1.msra.mxu0 %v2744
    %3684 = vmatprep.subr.mxu0 %v2747
    %3685 = vmatpush1.msra.mxu0 %v2746
    %3686 = vmatprep.subr.mxu0 %v2749
    %3687 = vmatpush1.msra.mxu0 %v2748
    %3688 = vmatprep.subr.mxu0 %v2751
    %3689 = vmatpush1.msra.mxu0 %v2750
    %3690 = vmatprep.subr.mxu0 %v2753
    %3691 = vmatpush1.msra.mxu0 %v2752
    %3692 = vmatprep.subr.mxu0 %v2755
    %3693 = vmatpush1.msra.mxu0 %v2754
    %3694 = vmatprep.subr.mxu0 0.0
    %3695 = vmatpush1.msra.mxu0 0.0
    %3696 = vmatprep.subr.mxu0 0.0
    %3697 = vmatpush1.msra.mxu0 0.0
    %3698 = vmatprep.subr.mxu0 0.0
    %3699 = vmatpush1.msra.mxu0 0.0
    %3700 = vmatprep.subr.mxu0 0.0
    %3701 = vmatpush1.msra.mxu0 0.0
    %3702 = vmatprep.subr.mxu0 0.0
    %3703 = vmatpush1.msra.mxu0 0.0
    %3704 = vmatprep.subr.mxu0 0.0
    %3705 = vmatpush1.msra.mxu0 0.0
    %3706 = vmatprep.subr.mxu0 0.0
    %3707 = vmatpush1.msra.mxu0 0.0
    %3708 = vmatprep.subr.mxu0 0.0
    %3709 = vmatpush1.msra.mxu0 0.0
    %3710 = vmatprep.subr.mxu0 0.0
    %3711 = vmatpush1.msra.mxu0 0.0
    %3712 = vmatprep.subr.mxu0 0.0
    %3713 = vmatpush1.msra.mxu0 0.0
    %3714 = vmatprep.subr.mxu0 0.0
    %3715 = vmatpush1.msra.mxu0 0.0
    %3716 = vmatprep.subr.mxu0 0.0
    %3717 = vmatpush1.msra.mxu0 0.0
    %3718 = vmatprep.subr.mxu0 0.0
    %3719 = vmatpush1.msra.mxu0 0.0
    %3720 = vmatprep.subr.mxu0 0.0
    %3721 = vmatpush1.msra.mxu0 0.0
    %3722 = vmatprep.subr.mxu0 0.0
    %3723 = vmatpush1.msra.mxu0 0.0
    %3724 = vmatprep.subr.mxu0 0.0
    %3725 = vmatpush1.msra.mxu0 0.0
    %3726 = vmatprep.subr.mxu0 0.0
    %3727 = vmatpush1.msra.mxu0 0.0
    %3728 = vmatprep.subr.mxu0 0.0
    %3729 = vmatpush1.msra.mxu0 0.0
    %3730 = vmatprep.subr.mxu0 0.0
    %3731 = vmatpush1.msra.mxu0 0.0
    %3732 = vmatprep.subr.mxu0 0.0
    %3733 = vmatpush1.msra.mxu0 0.0
    %3734 = vmatprep.subr.mxu0 0.0
    %3735 = vmatpush1.msra.mxu0 0.0
    %3736 = vmatprep.subr.mxu0 0.0
    %3737 = vmatpush1.msra.mxu0 0.0
    %3738 = vmatprep.subr.mxu0 0.0
    %3739 = vmatpush1.msra.mxu0 0.0
    %3740 = vmatprep.subr.mxu0 0.0
    %3741 = vmatpush1.msra.mxu0 0.0
    %3742 = vmatprep.mubr.f32.mxu0 0.0
    %3743 = vmatmul.mubr.f32.gmra.mrb[0].mxu0 %v3676
    %v3744 = vpop.f32.mrb[0].mxu0
    %v3745 = vadd.f32 0.0, %v3744
    %v3746 = vpop.f32.mrb[0].mxu0
    %v3747 = vadd.f32 0.0, %v3746
    %3748 = vdwg.mxu0
    %v3749 = vadd.f32 %v3674, %v3745
    %v3750 = vadd.f32 %v3675, %v3747
    %v3751 = vxor.u32 %v3749, 2147483648
    %v3752 = vxor.u32 %v3750, 2147483648
    %v3753 = vmul.f32 %v3751, 1.442695
    %v3754 = vpow.pop %v3753
    %v3755 = vmul.f32 %v3752, 1.442695
    %v3756 = vpow.pop %v3755
    %v3757 = vadd.f32 %v3754, 1.0
    %v3758 = vadd.f32 %v3756, 1.0
    %v3759 = vrcp.pop %v3757
    %v3760 = vmul.f32 1.0, %v3759
    %v3761 = vrcp.pop %v3758
    %v3762 = vmul.f32 1.0, %v3761
    %v3763 = vtanh.pop %v3750
    %v3764 = vmul.f32 %v3760, %v3657
    %3766 = vrot.lane.b32.xlu0 %v3763, 64
    %v3767 = vpop.permute.xlu0 %3766
    %v3769 = vmul.f32 %v3760, %v3767
    %3771 = vrot.lane.b32.xlu0 %v3769, 64
    %v3772 = vpop.permute.xlu0 %3771
    %v3774 = vadd.f32 %v3764, %v3772
    %v3775 = vtanh.pop %v3774
    %3777 = vrot.lane.b32.xlu0 %v3775, 64
    %v3778 = vpop.permute.xlu0 %3777
    %v3780 = vmul.f32 %v3762, %v3778
    %3781 = vst.msk [vmem:[#allocation4 + $0x18] sm:$0xff] %vm398, %v3780
    %3783 = vrot.lane.b32.xlu0 %v3780, 96
    %v3784 = vpop.permute.xlu0 %3783
    %3786 = vst.msk [vmem:[#allocation5 + $0x20] sm:$0xff] %vm398, %v3784
    %v3787 = vld [vmem:[#allocation2 + $0x40] sm:$0xff]
    %v3788 = vld [vmem:[#allocation2 + $0x48] sm:$0xff]
    %v3789 = vld [vmem:[#allocation3 + $0x30] sm:$0xff]
    %v3790 = vld [vmem:[#allocation3 + $0x38] sm:$0xff]
    %v3791 = vadd.f32 %v3787, %v3789
    %v3792 = vadd.f32 %v3788, %v3790
    %v3793 = vsel %vm411, %v3780, 0
    %3795 = vmatprep.subr.mxu0 %v2741
    %3796 = vmatpush1.msra.mxu0 %v2740
    %3797 = vmatprep.subr.mxu0 %v2743
    %3798 = vmatpush1.msra.mxu0 %v2742
    %3799 = vmatprep.subr.mxu0 %v2745
    %3800 = vmatpush1.msra.mxu0 %v2744
    %3801 = vmatprep.subr.mxu0 %v2747
    %3802 = vmatpush1.msra.mxu0 %v2746
    %3803 = vmatprep.subr.mxu0 %v2749
    %3804 = vmatpush1.msra.mxu0 %v2748
    %3805 = vmatprep.subr.mxu0 %v2751
    %3806 = vmatpush1.msra.mxu0 %v2750
    %3807 = vmatprep.subr.mxu0 %v2753
    %3808 = vmatpush1.msra.mxu0 %v2752
    %3809 = vmatprep.subr.mxu0 %v2755
    %3810 = vmatpush1.msra.mxu0 %v2754
    %3811 = vmatprep.subr.mxu0 0.0
    %3812 = vmatpush1.msra.mxu0 0.0
    %3813 = vmatprep.subr.mxu0 0.0
    %3814 = vmatpush1.msra.mxu0 0.0
    %3815 = vmatprep.subr.mxu0 0.0
    %3816 = vmatpush1.msra.mxu0 0.0
    %3817 = vmatprep.subr.mxu0 0.0
    %3818 = vmatpush1.msra.mxu0 0.0
    %3819 = vmatprep.subr.mxu0 0.0
    %3820 = vmatpush1.msra.mxu0 0.0
    %3821 = vmatprep.subr.mxu0 0.0
    %3822 = vmatpush1.msra.mxu0 0.0
    %3823 = vmatprep.subr.mxu0 0.0
    %3824 = vmatpush1.msra.mxu0 0.0
    %3825 = vmatprep.subr.mxu0 0.0
    %3826 = vmatpush1.msra.mxu0 0.0
    %3827 = vmatprep.subr.mxu0 0.0
    %3828 = vmatpush1.msra.mxu0 0.0
    %3829 = vmatprep.subr.mxu0 0.0
    %3830 = vmatpush1.msra.mxu0 0.0
    %3831 = vmatprep.subr.mxu0 0.0
    %3832 = vmatpush1.msra.mxu0 0.0
    %3833 = vmatprep.subr.mxu0 0.0
    %3834 = vmatpush1.msra.mxu0 0.0
    %3835 = vmatprep.subr.mxu0 0.0
    %3836 = vmatpush1.msra.mxu0 0.0
    %3837 = vmatprep.subr.mxu0 0.0
    %3838 = vmatpush1.msra.mxu0 0.0
    %3839 = vmatprep.subr.mxu0 0.0
    %3840 = vmatpush1.msra.mxu0 0.0
    %3841 = vmatprep.subr.mxu0 0.0
    %3842 = vmatpush1.msra.mxu0 0.0
    %3843 = vmatprep.subr.mxu0 0.0
    %3844 = vmatpush1.msra.mxu0 0.0
    %3845 = vmatprep.subr.mxu0 0.0
    %3846 = vmatpush1.msra.mxu0 0.0
    %3847 = vmatprep.subr.mxu0 0.0
    %3848 = vmatpush1.msra.mxu0 0.0
    %3849 = vmatprep.subr.mxu0 0.0
    %3850 = vmatpush1.msra.mxu0 0.0
    %3851 = vmatprep.subr.mxu0 0.0
    %3852 = vmatpush1.msra.mxu0 0.0
    %3853 = vmatprep.subr.mxu0 0.0
    %3854 = vmatpush1.msra.mxu0 0.0
    %3855 = vmatprep.subr.mxu0 0.0
    %3856 = vmatpush1.msra.mxu0 0.0
    %3857 = vmatprep.subr.mxu0 0.0
    %3858 = vmatpush1.msra.mxu0 0.0
    %3859 = vmatprep.mubr.f32.mxu0 0.0
    %3860 = vmatmul.mubr.f32.gmra.mrb[0].mxu0 %v3793
    %v3861 = vpop.f32.mrb[0].mxu0
    %v3862 = vadd.f32 0.0, %v3861
    %v3863 = vpop.f32.mrb[0].mxu0
    %v3864 = vadd.f32 0.0, %v3863
    %3865 = vdwg.mxu0
    %v3866 = vadd.f32 %v3791, %v3862
    %v3867 = vadd.f32 %v3792, %v3864
    %v3868 = vxor.u32 %v3866, 2147483648
    %v3869 = vxor.u32 %v3867, 2147483648
    %v3870 = vmul.f32 %v3868, 1.442695
    %v3871 = vpow.pop %v3870
    %v3872 = vmul.f32 %v3869, 1.442695
    %v3873 = vpow.pop %v3872
    %v3874 = vadd.f32 %v3871, 1.0
    %v3875 = vadd.f32 %v3873, 1.0
    %v3876 = vrcp.pop %v3874
    %v3877 = vmul.f32 1.0, %v3876
    %v3878 = vrcp.pop %v3875
    %v3879 = vmul.f32 1.0, %v3878
    %v3880 = vtanh.pop %v3867
    %v3881 = vmul.f32 %v3877, %v3774
    %3883 = vrot.lane.b32.xlu0 %v3880, 64
    %v3884 = vpop.permute.xlu0 %3883
    %v3886 = vmul.f32 %v3877, %v3884
    %3888 = vrot.lane.b32.xlu0 %v3886, 64
    %v3889 = vpop.permute.xlu0 %3888
    %v3891 = vadd.f32 %v3881, %v3889
    %v3892 = vtanh.pop %v3891
    %3894 = vrot.lane.b32.xlu0 %v3892, 64
    %v3895 = vpop.permute.xlu0 %3894
    %v3897 = vmul.f32 %v3879, %v3895
    %3898 = vst.msk [vmem:[#allocation4 + $0x20] sm:$0xff] %vm398, %v3897
    %3900 = vrot.lane.b32.xlu0 %v3897, 96
    %v3901 = vpop.permute.xlu0 %3900
    %3903 = vst.msk [vmem:[#allocation5 + $0x18] sm:$0xff] %vm398, %v3901
    %v3904 = vld [vmem:[#allocation2 + $0x50] sm:$0xff]
    %v3905 = vld [vmem:[#allocation2 + $0x58] sm:$0xff]
    %v3906 = vld [vmem:[#allocation3 + $0x20] sm:$0xff]
    %v3907 = vld [vmem:[#allocation3 + $0x28] sm:$0xff]
    %v3908 = vadd.f32 %v3904, %v3906
    %v3909 = vadd.f32 %v3905, %v3907
    %v3910 = vsel %vm411, %v3897, 0
    %3912 = vmatprep.subr.mxu0 %v2741
    %3913 = vmatpush1.msra.mxu0 %v2740
    %3914 = vmatprep.subr.mxu0 %v2743
    %3915 = vmatpush1.msra.mxu0 %v2742
    %3916 = vmatprep.subr.mxu0 %v2745
    %3917 = vmatpush1.msra.mxu0 %v2744
    %3918 = vmatprep.subr.mxu0 %v2747
    %3919 = vmatpush1.msra.mxu0 %v2746
    %3920 = vmatprep.subr.mxu0 %v2749
    %3921 = vmatpush1.msra.mxu0 %v2748
    %3922 = vmatprep.subr.mxu0 %v2751
    %3923 = vmatpush1.msra.mxu0 %v2750
    %3924 = vmatprep.subr.mxu0 %v2753
    %3925 = vmatpush1.msra.mxu0 %v2752
    %3926 = vmatprep.subr.mxu0 %v2755
    %3927 = vmatpush1.msra.mxu0 %v2754
    %3928 = vmatprep.subr.mxu0 0.0
    %3929 = vmatpush1.msra.mxu0 0.0
    %3930 = vmatprep.subr.mxu0 0.0
    %3931 = vmatpush1.msra.mxu0 0.0
    %3932 = vmatprep.subr.mxu0 0.0
    %3933 = vmatpush1.msra.mxu0 0.0
    %3934 = vmatprep.subr.mxu0 0.0
    %3935 = vmatpush1.msra.mxu0 0.0
    %3936 = vmatprep.subr.mxu0 0.0
    %3937 = vmatpush1.msra.mxu0 0.0
    %3938 = vmatprep.subr.mxu0 0.0
    %3939 = vmatpush1.msra.mxu0 0.0
    %3940 = vmatprep.subr.mxu0 0.0
    %3941 = vmatpush1.msra.mxu0 0.0
    %3942 = vmatprep.subr.mxu0 0.0
    %3943 = vmatpush1.msra.mxu0 0.0
    %3944 = vmatprep.subr.mxu0 0.0
    %3945 = vmatpush1.msra.mxu0 0.0
    %3946 = vmatprep.subr.mxu0 0.0
    %3947 = vmatpush1.msra.mxu0 0.0
    %3948 = vmatprep.subr.mxu0 0.0
    %3949 = vmatpush1.msra.mxu0 0.0
    %3950 = vmatprep.subr.mxu0 0.0
    %3951 = vmatpush1.msra.mxu0 0.0
    %3952 = vmatprep.subr.mxu0 0.0
    %3953 = vmatpush1.msra.mxu0 0.0
    %3954 = vmatprep.subr.mxu0 0.0
    %3955 = vmatpush1.msra.mxu0 0.0
    %3956 = vmatprep.subr.mxu0 0.0
    %3957 = vmatpush1.msra.mxu0 0.0
    %3958 = vmatprep.subr.mxu0 0.0
    %3959 = vmatpush1.msra.mxu0 0.0
    %3960 = vmatprep.subr.mxu0 0.0
    %3961 = vmatpush1.msra.mxu0 0.0
    %3962 = vmatprep.subr.mxu0 0.0
    %3963 = vmatpush1.msra.mxu0 0.0
    %3964 = vmatprep.subr.mxu0 0.0
    %3965 = vmatpush1.msra.mxu0 0.0
    %3966 = vmatprep.subr.mxu0 0.0
    %3967 = vmatpush1.msra.mxu0 0.0
    %3968 = vmatprep.subr.mxu0 0.0
    %3969 = vmatpush1.msra.mxu0 0.0
    %3970 = vmatprep.subr.mxu0 0.0
    %3971 = vmatpush1.msra.mxu0 0.0
    %3972 = vmatprep.subr.mxu0 0.0
    %3973 = vmatpush1.msra.mxu0 0.0
    %3974 = vmatprep.subr.mxu0 0.0
    %3975 = vmatpush1.msra.mxu0 0.0
    %3976 = vmatprep.mubr.f32.mxu0 0.0
    %3977 = vmatmul.mubr.f32.gmra.mrb[0].mxu0 %v3910
    %v3978 = vpop.f32.mrb[0].mxu0
    %v3979 = vadd.f32 0.0, %v3978
    %v3980 = vpop.f32.mrb[0].mxu0
    %v3981 = vadd.f32 0.0, %v3980
    %3982 = vdwg.mxu0
    %v3983 = vadd.f32 %v3908, %v3979
    %v3984 = vadd.f32 %v3909, %v3981
    %v3985 = vxor.u32 %v3983, 2147483648
    %v3986 = vxor.u32 %v3984, 2147483648
    %v3987 = vmul.f32 %v3985, 1.442695
    %v3988 = vpow.pop %v3987
    %v3989 = vmul.f32 %v3986, 1.442695
    %v3990 = vpow.pop %v3989
    %v3991 = vadd.f32 %v3988, 1.0
    %v3992 = vadd.f32 %v3990, 1.0
    %v3993 = vrcp.pop %v3991
    %v3994 = vmul.f32 1.0, %v3993
    %v3995 = vrcp.pop %v3992
    %v3996 = vmul.f32 1.0, %v3995
    %v3997 = vtanh.pop %v3984
    %v3998 = vmul.f32 %v3994, %v3891
    %4000 = vrot.lane.b32.xlu0 %v3997, 64
    %v4001 = vpop.permute.xlu0 %4000
    %v4003 = vmul.f32 %v3994, %v4001
    %4005 = vrot.lane.b32.xlu0 %v4003, 64
    %v4006 = vpop.permute.xlu0 %4005
    %v4008 = vadd.f32 %v3998, %v4006
    %v4009 = vtanh.pop %v4008
    %4011 = vrot.lane.b32.xlu0 %v4009, 64
    %v4012 = vpop.permute.xlu0 %4011
    %v4014 = vmul.f32 %v3996, %v4012
    %4015 = vst.msk [vmem:[#allocation4 + $0x28] sm:$0xff] %vm398, %v4014
    %4017 = vrot.lane.b32.xlu0 %v4014, 96
    %v4018 = vpop.permute.xlu0 %4017
    %4020 = vst.msk [vmem:[#allocation5 + $0x10] sm:$0xff] %vm398, %v4018
    %v4021 = vld [vmem:[#allocation2 + $0x60] sm:$0xff]
    %v4022 = vld [vmem:[#allocation2 + $0x68] sm:$0xff]
    %v4023 = vld [vmem:[#allocation3 + $0x10] sm:$0xff]
    %v4024 = vld [vmem:[#allocation3 + $0x18] sm:$0xff]
    %v4025 = vadd.f32 %v4021, %v4023
    %v4026 = vadd.f32 %v4022, %v4024
    %v4027 = vsel %vm411, %v4014, 0
    %4029 = vmatprep.subr.mxu0 %v2741
    %4030 = vmatpush1.msra.mxu0 %v2740
    %4031 = vmatprep.subr.mxu0 %v2743
    %4032 = vmatpush1.msra.mxu0 %v2742
    %4033 = vmatprep.subr.mxu0 %v2745
    %4034 = vmatpush1.msra.mxu0 %v2744
    %4035 = vmatprep.subr.mxu0 %v2747
    %4036 = vmatpush1.msra.mxu0 %v2746
    %4037 = vmatprep.subr.mxu0 %v2749
    %4038 = vmatpush1.msra.mxu0 %v2748
    %4039 = vmatprep.subr.mxu0 %v2751
    %4040 = vmatpush1.msra.mxu0 %v2750
    %4041 = vmatprep.subr.mxu0 %v2753
    %4042 = vmatpush1.msra.mxu0 %v2752
    %4043 = vmatprep.subr.mxu0 %v2755
    %4044 = vmatpush1.msra.mxu0 %v2754
    %4045 = vmatprep.subr.mxu0 0.0
    %4046 = vmatpush1.msra.mxu0 0.0
    %4047 = vmatprep.subr.mxu0 0.0
    %4048 = vmatpush1.msra.mxu0 0.0
    %4049 = vmatprep.subr.mxu0 0.0
    %4050 = vmatpush1.msra.mxu0 0.0
    %4051 = vmatprep.subr.mxu0 0.0
    %4052 = vmatpush1.msra.mxu0 0.0
    %4053 = vmatprep.subr.mxu0 0.0
    %4054 = vmatpush1.msra.mxu0 0.0
    %4055 = vmatprep.subr.mxu0 0.0
    %4056 = vmatpush1.msra.mxu0 0.0
    %4057 = vmatprep.subr.mxu0 0.0
    %4058 = vmatpush1.msra.mxu0 0.0
    %4059 = vmatprep.subr.mxu0 0.0
    %4060 = vmatpush1.msra.mxu0 0.0
    %4061 = vmatprep.subr.mxu0 0.0
    %4062 = vmatpush1.msra.mxu0 0.0
    %4063 = vmatprep.subr.mxu0 0.0
    %4064 = vmatpush1.msra.mxu0 0.0
    %4065 = vmatprep.subr.mxu0 0.0
    %4066 = vmatpush1.msra.mxu0 0.0
    %4067 = vmatprep.subr.mxu0 0.0
    %4068 = vmatpush1.msra.mxu0 0.0
    %4069 = vmatprep.subr.mxu0 0.0
    %4070 = vmatpush1.msra.mxu0 0.0
    %4071 = vmatprep.subr.mxu0 0.0
    %4072 = vmatpush1.msra.mxu0 0.0
    %4073 = vmatprep.subr.mxu0 0.0
    %4074 = vmatpush1.msra.mxu0 0.0
    %4075 = vmatprep.subr.mxu0 0.0
    %4076 = vmatpush1.msra.mxu0 0.0
    %4077 = vmatprep.subr.mxu0 0.0
    %4078 = vmatpush1.msra.mxu0 0.0
    %4079 = vmatprep.subr.mxu0 0.0
    %4080 = vmatpush1.msra.mxu0 0.0
    %4081 = vmatprep.subr.mxu0 0.0
    %4082 = vmatpush1.msra.mxu0 0.0
    %4083 = vmatprep.subr.mxu0 0.0
    %4084 = vmatpush1.msra.mxu0 0.0
    %4085 = vmatprep.subr.mxu0 0.0
    %4086 = vmatpush1.msra.mxu0 0.0
    %4087 = vmatprep.subr.mxu0 0.0
    %4088 = vmatpush1.msra.mxu0 0.0
    %4089 = vmatprep.subr.mxu0 0.0
    %4090 = vmatpush1.msra.mxu0 0.0
    %4091 = vmatprep.subr.mxu0 0.0
    %4092 = vmatpush1.msra.mxu0 0.0
    %4093 = vmatprep.mubr.f32.mxu0 0.0
    %4094 = vmatmul.mubr.f32.gmra.mrb[0].mxu0 %v4027
    %v4095 = vpop.f32.mrb[0].mxu0
    %v4096 = vadd.f32 0.0, %v4095
    %v4097 = vpop.f32.mrb[0].mxu0
    %v4098 = vadd.f32 0.0, %v4097
    %4099 = vdwg.mxu0
    %v4100 = vadd.f32 %v4025, %v4096
    %v4101 = vadd.f32 %v4026, %v4098
    %v4102 = vxor.u32 %v4100, 2147483648
    %v4103 = vxor.u32 %v4101, 2147483648
    %v4104 = vmul.f32 %v4102, 1.442695
    %v4105 = vpow.pop %v4104
    %v4106 = vmul.f32 %v4103, 1.442695
    %v4107 = vpow.pop %v4106
    %v4108 = vadd.f32 %v4105, 1.0
    %v4109 = vadd.f32 %v4107, 1.0
    %v4110 = vrcp.pop %v4108
    %v4111 = vmul.f32 1.0, %v4110
    %v4112 = vrcp.pop %v4109
    %v4113 = vmul.f32 1.0, %v4112
    %v4114 = vtanh.pop %v4101
    %v4115 = vmul.f32 %v4111, %v4008
    %4117 = vrot.lane.b32.xlu0 %v4114, 64
    %v4118 = vpop.permute.xlu0 %4117
    %v4120 = vmul.f32 %v4111, %v4118
    %4122 = vrot.lane.b32.xlu0 %v4120, 64
    %v4123 = vpop.permute.xlu0 %4122
    %v4125 = vadd.f32 %v4115, %v4123
    %v4126 = vtanh.pop %v4125
    %4128 = vrot.lane.b32.xlu0 %v4126, 64
    %v4129 = vpop.permute.xlu0 %4128
    %v4131 = vmul.f32 %v4113, %v4129
    %4132 = vst.msk [vmem:[#allocation4 + $0x30] sm:$0xff] %vm398, %v4131
    %4134 = vrot.lane.b32.xlu0 %v4131, 96
    %v4135 = vpop.permute.xlu0 %4134
    %4137 = vst.msk [vmem:[#allocation5 + $0x8] sm:$0xff] %vm398, %v4135
    %v4138 = vld [vmem:[#allocation2 + $0x70] sm:$0xff]
    %v4139 = vld [vmem:[#allocation2 + $0x78] sm:$0xff]
    %v4140 = vld [vmem:[#allocation3] sm:$0xff]
    %v4141 = vld [vmem:[#allocation3 + $0x8] sm:$0xff]
    %v4142 = vadd.f32 %v4138, %v4140
    %v4143 = vadd.f32 %v4139, %v4141
    %v4144 = vsel %vm411, %v4131, 0
    %4146 = vmatprep.subr.mxu0 %v2741
    %4147 = vmatpush1.msra.mxu0 %v2740
    %4148 = vmatprep.subr.mxu0 %v2743
    %4149 = vmatpush1.msra.mxu0 %v2742
    %4150 = vmatprep.subr.mxu0 %v2745
    %4151 = vmatpush1.msra.mxu0 %v2744
    %4152 = vmatprep.subr.mxu0 %v2747
    %4153 = vmatpush1.msra.mxu0 %v2746
    %4154 = vmatprep.subr.mxu0 %v2749
    %4155 = vmatpush1.msra.mxu0 %v2748
    %4156 = vmatprep.subr.mxu0 %v2751
    %4157 = vmatpush1.msra.mxu0 %v2750
    %4158 = vmatprep.subr.mxu0 %v2753
    %4159 = vmatpush1.msra.mxu0 %v2752
    %4160 = vmatprep.subr.mxu0 %v2755
    %4161 = vmatpush1.msra.mxu0 %v2754
    %4162 = vmatprep.subr.mxu0 0.0
    %4163 = vmatpush1.msra.mxu0 0.0
    %4164 = vmatprep.subr.mxu0 0.0
    %4165 = vmatpush1.msra.mxu0 0.0
    %4166 = vmatprep.subr.mxu0 0.0
    %4167 = vmatpush1.msra.mxu0 0.0
    %4168 = vmatprep.subr.mxu0 0.0
    %4169 = vmatpush1.msra.mxu0 0.0
    %4170 = vmatprep.subr.mxu0 0.0
    %4171 = vmatpush1.msra.mxu0 0.0
    %4172 = vmatprep.subr.mxu0 0.0
    %4173 = vmatpush1.msra.mxu0 0.0
    %4174 = vmatprep.subr.mxu0 0.0
    %4175 = vmatpush1.msra.mxu0 0.0
    %4176 = vmatprep.subr.mxu0 0.0
    %4177 = vmatpush1.msra.mxu0 0.0
    %4178 = vmatprep.subr.mxu0 0.0
    %4179 = vmatpush1.msra.mxu0 0.0
    %4180 = vmatprep.subr.mxu0 0.0
    %4181 = vmatpush1.msra.mxu0 0.0
    %4182 = vmatprep.subr.mxu0 0.0
    %4183 = vmatpush1.msra.mxu0 0.0
    %4184 = vmatprep.subr.mxu0 0.0
    %4185 = vmatpush1.msra.mxu0 0.0
    %4186 = vmatprep.subr.mxu0 0.0
    %4187 = vmatpush1.msra.mxu0 0.0
    %4188 = vmatprep.subr.mxu0 0.0
    %4189 = vmatpush1.msra.mxu0 0.0
    %4190 = vmatprep.subr.mxu0 0.0
    %4191 = vmatpush1.msra.mxu0 0.0
    %4192 = vmatprep.subr.mxu0 0.0
    %4193 = vmatpush1.msra.mxu0 0.0
    %4194 = vmatprep.subr.mxu0 0.0
    %4195 = vmatpush1.msra.mxu0 0.0
    %4196 = vmatprep.subr.mxu0 0.0
    %4197 = vmatpush1.msra.mxu0 0.0
    %4198 = vmatprep.subr.mxu0 0.0
    %4199 = vmatpush1.msra.mxu0 0.0
    %4200 = vmatprep.subr.mxu0 0.0
    %4201 = vmatpush1.msra.mxu0 0.0
    %4202 = vmatprep.subr.mxu0 0.0
    %4203 = vmatpush1.msra.mxu0 0.0
    %4204 = vmatprep.subr.mxu0 0.0
    %4205 = vmatpush1.msra.mxu0 0.0
    %4206 = vmatprep.subr.mxu0 0.0
    %4207 = vmatpush1.msra.mxu0 0.0
    %4208 = vmatprep.subr.mxu0 0.0
    %4209 = vmatpush1.msra.mxu0 0.0
    %4210 = vmatprep.mubr.f32.mxu0 0.0
    %4211 = vmatmul.mubr.f32.gmra.mrb[0].mxu0 %v4144
    %v4212 = vpop.f32.mrb[0].mxu0
    %v4213 = vadd.f32 0.0, %v4212
    %v4214 = vpop.f32.mrb[0].mxu0
    %v4215 = vadd.f32 0.0, %v4214
    %4216 = vdwg.mxu0
    %v4217 = vadd.f32 %v4142, %v4213
    %v4218 = vadd.f32 %v4143, %v4215
    %v4219 = vxor.u32 %v4217, 2147483648
    %v4220 = vxor.u32 %v4218, 2147483648
    %v4221 = vmul.f32 %v4219, 1.442695
    %v4222 = vpow.pop %v4221
    %v4223 = vmul.f32 %v4220, 1.442695
    %v4224 = vpow.pop %v4223
    %v4225 = vadd.f32 %v4222, 1.0
    %v4226 = vadd.f32 %v4224, 1.0
    %v4227 = vrcp.pop %v4225
    %v4228 = vmul.f32 1.0, %v4227
    %v4229 = vrcp.pop %v4226
    %v4230 = vmul.f32 1.0, %v4229
    %v4231 = vtanh.pop %v4218
    %v4232 = vmul.f32 %v4228, %v4125
    %4234 = vrot.lane.b32.xlu0 %v4231, 64
    %v4235 = vpop.permute.xlu0 %4234
    %v4237 = vmul.f32 %v4228, %v4235
    %4239 = vrot.lane.b32.xlu0 %v4237, 64
    %v4240 = vpop.permute.xlu0 %4239
    %v4242 = vadd.f32 %v4232, %v4240
    %v4243 = vtanh.pop %v4242
    %4245 = vrot.lane.b32.xlu0 %v4243, 64
    %v4246 = vpop.permute.xlu0 %4245
    %v4248 = vmul.f32 %v4230, %v4246
    %4249 = vst.msk [vmem:[#allocation4 + $0x38] sm:$0xff] %vm398, %v4248
    %4251 = vrot.lane.b32.xlu0 %v4248, 96
    %v4252 = vpop.permute.xlu0 %4251
    %4254 = vst.msk [vmem:[#allocation5] sm:$0xff] %vm398, %v4252
    %v4255 = vld [vmem:[#allocation6 + $0x500] sm:$0xff]
    %v4256 = vld [vmem:[#allocation6 + $0x508] sm:$0xff]
    %v4257 = vld [vmem:[#allocation6 + $0x510] sm:$0xff]
    %v4258 = vld [vmem:[#allocation6 + $0x518] sm:$0xff]
    %v4259 = vld [vmem:[#allocation6 + $0x520] sm:$0xff]
    %v4260 = vld [vmem:[#allocation6 + $0x528] sm:$0xff]
    %v4261 = vld [vmem:[#allocation6 + $0x530] sm:$0xff]
    %v4262 = vld [vmem:[#allocation6 + $0x538] sm:$0xff]
    %v4263 = vld [vmem:[#allocation6 + $0x540] sm:$0xff]
    %v4264 = vld [vmem:[#allocation6 + $0x548] sm:$0xff]
    %v4265 = vld [vmem:[#allocation6 + $0x550] sm:$0xff]
    %v4266 = vld [vmem:[#allocation6 + $0x558] sm:$0xff]
    %v4267 = vld [vmem:[#allocation6 + $0x560] sm:$0xff]
    %v4268 = vld [vmem:[#allocation6 + $0x568] sm:$0xff]
    %v4269 = vld [vmem:[#allocation6 + $0x570] sm:$0xff]
    %v4270 = vld [vmem:[#allocation6 + $0x578] sm:$0xff]
    %s4271 = scalar_lea.vmem [#allocation6], 1408
    %v4272 = vld [vmem:[%s4271] ss:$8 sm:$0x3]
    %s4273 = scalar_lea.vmem [#allocation6], 1424
    %v4274 = vld [vmem:[%s4273] ss:$8 sm:$0x3]
    %v4275 = vld [vmem:[#allocation4] sm:$0xff]
    %v4276 = vld [vmem:[#allocation4 + $0x8] sm:$0xff]
    %v4277 = vld [vmem:[#allocation4 + $0x10] sm:$0xff]
    %v4278 = vld [vmem:[#allocation4 + $0x18] sm:$0xff]
    %v4279 = vld [vmem:[#allocation4 + $0x20] sm:$0xff]
    %v4280 = vld [vmem:[#allocation4 + $0x28] sm:$0xff]
    %v4281 = vld [vmem:[#allocation4 + $0x30] sm:$0xff]
    %v4282 = vld [vmem:[#allocation4 + $0x38] sm:$0xff]
    %v4283 = vld [vmem:[#allocation5] sm:$0xff]
    %v4284 = vld [vmem:[#allocation5 + $0x8] sm:$0xff]
    %v4285 = vld [vmem:[#allocation5 + $0x10] sm:$0xff]
    %v4286 = vld [vmem:[#allocation5 + $0x18] sm:$0xff]
    %v4287 = vld [vmem:[#allocation5 + $0x20] sm:$0xff]
    %v4288 = vld [vmem:[#allocation5 + $0x28] sm:$0xff]
    %v4289 = vld [vmem:[#allocation5 + $0x30] sm:$0xff]
    %v4290 = vld [vmem:[#allocation5 + $0x38] sm:$0xff]
    %v4291 = vld [vmem:[#allocation6 + $0x400] sm:$0xff]
    %v4292 = vld [vmem:[#allocation6 + $0x408] sm:$0xff]
    %v4293 = vld [vmem:[#allocation6 + $0x410] sm:$0xff]
    %v4294 = vld [vmem:[#allocation6 + $0x418] sm:$0xff]
    %v4295 = vld [vmem:[#allocation6 + $0x420] sm:$0xff]
    %v4296 = vld [vmem:[#allocation6 + $0x428] sm:$0xff]
    %v4297 = vld [vmem:[#allocation6 + $0x430] sm:$0xff]
    %v4298 = vld [vmem:[#allocation6 + $0x438] sm:$0xff]
    %v4299 = vld [vmem:[#allocation6 + $0x440] sm:$0xff]
    %v4300 = vld [vmem:[#allocation6 + $0x448] sm:$0xff]
    %v4301 = vld [vmem:[#allocation6 + $0x450] sm:$0xff]
    %v4302 = vld [vmem:[#allocation6 + $0x458] sm:$0xff]
    %v4303 = vld [vmem:[#allocation6 + $0x460] sm:$0xff]
    %v4304 = vld [vmem:[#allocation6 + $0x468] sm:$0xff]
    %v4305 = vld [vmem:[#allocation6 + $0x470] sm:$0xff]
    %v4306 = vld [vmem:[#allocation6 + $0x478] sm:$0xff]
    %v4307 = vld [vmem:[#allocation6 + $0x480] sm:$0xff]
    %v4308 = vld [vmem:[#allocation6 + $0x488] sm:$0xff]
    %v4309 = vld [vmem:[#allocation6 + $0x490] sm:$0xff]
    %v4310 = vld [vmem:[#allocation6 + $0x498] sm:$0xff]
    %v4311 = vld [vmem:[#allocation6 + $0x4a0] sm:$0xff]
    %v4312 = vld [vmem:[#allocation6 + $0x4a8] sm:$0xff]
    %v4313 = vld [vmem:[#allocation6 + $0x4b0] sm:$0xff]
    %v4314 = vld [vmem:[#allocation6 + $0x4b8] sm:$0xff]
    %v4315 = vld [vmem:[#allocation6 + $0x4c0] sm:$0xff]
    %v4316 = vld [vmem:[#allocation6 + $0x4c8] sm:$0xff]
    %v4317 = vld [vmem:[#allocation6 + $0x4d0] sm:$0xff]
    %v4318 = vld [vmem:[#allocation6 + $0x4d8] sm:$0xff]
    %v4319 = vld [vmem:[#allocation6 + $0x4e0] sm:$0xff]
    %v4320 = vld [vmem:[#allocation6 + $0x4e8] sm:$0xff]
    %v4321 = vld [vmem:[#allocation6 + $0x4f0] sm:$0xff]
    %v4322 = vld [vmem:[#allocation6 + $0x4f8] sm:$0xff]
    %v4324 = vsel %vm398, %v4283, 0
    %v4327 = vsel %vm398, %v4284, 0
    %v4330 = vsel %vm398, %v4285, 0
    %v4333 = vsel %vm398, %v4286, 0
    %v4336 = vsel %vm398, %v4287, 0
    %v4339 = vsel %vm398, %v4288, 0
    %v4342 = vsel %vm398, %v4289, 0
    %v4345 = vsel %vm398, %v4290, 0
    %4347 = vmatprep.subr.mxu0 %v4300
    %4348 = vmatpush1.msra.mxu0 %v4299
    %4349 = vmatprep.subr.mxu0 %v4302
    %4350 = vmatpush1.msra.mxu0 %v4301
    %4351 = vmatprep.subr.mxu0 %v4304
    %4352 = vmatpush1.msra.mxu0 %v4303
    %4353 = vmatprep.subr.mxu0 %v4306
    %4354 = vmatpush1.msra.mxu0 %v4305
    %4355 = vmatprep.subr.mxu0 0.0
    %4356 = vmatpush1.msra.mxu0 0.0
    %4357 = vmatprep.subr.mxu0 0.0
    %4358 = vmatpush1.msra.mxu0 0.0
    %4359 = vmatprep.subr.mxu0 0.0
    %4360 = vmatpush1.msra.mxu0 0.0
    %4361 = vmatprep.subr.mxu0 0.0
    %4362 = vmatpush1.msra.mxu0 0.0
    %4363 = vmatprep.subr.mxu0 0.0
    %4364 = vmatpush1.msra.mxu0 0.0
    %4365 = vmatprep.subr.mxu0 0.0
    %4366 = vmatpush1.msra.mxu0 0.0
    %4367 = vmatprep.subr.mxu0 0.0
    %4368 = vmatpush1.msra.mxu0 0.0
    %4369 = vmatprep.subr.mxu0 0.0
    %4370 = vmatpush1.msra.mxu0 0.0
    %4371 = vmatprep.subr.mxu0 0.0
    %4372 = vmatpush1.msra.mxu0 0.0
    %4373 = vmatprep.subr.mxu0 0.0
    %4374 = vmatpush1.msra.mxu0 0.0
    %4375 = vmatprep.subr.mxu0 0.0
    %4376 = vmatpush1.msra.mxu0 0.0
    %4377 = vmatprep.subr.mxu0 0.0
    %4378 = vmatpush1.msra.mxu0 0.0
    %4379 = vmatprep.subr.mxu0 0.0
    %4380 = vmatpush1.msra.mxu0 0.0
    %4381 = vmatprep.subr.mxu0 0.0
    %4382 = vmatpush1.msra.mxu0 0.0
    %4383 = vmatprep.subr.mxu0 0.0
    %4384 = vmatpush1.msra.mxu0 0.0
    %4385 = vmatprep.subr.mxu0 0.0
    %4386 = vmatpush1.msra.mxu0 0.0
    %4387 = vmatprep.subr.mxu0 0.0
    %4388 = vmatpush1.msra.mxu0 0.0
    %4389 = vmatprep.subr.mxu0 0.0
    %4390 = vmatpush1.msra.mxu0 0.0
    %4391 = vmatprep.subr.mxu0 0.0
    %4392 = vmatpush1.msra.mxu0 0.0
    %4393 = vmatprep.subr.mxu0 0.0
    %4394 = vmatpush1.msra.mxu0 0.0
    %4395 = vmatprep.subr.mxu0 0.0
    %4396 = vmatpush1.msra.mxu0 0.0
    %4397 = vmatprep.subr.mxu0 0.0
    %4398 = vmatpush1.msra.mxu0 0.0
    %4399 = vmatprep.subr.mxu0 0.0
    %4400 = vmatpush1.msra.mxu0 0.0
    %4401 = vmatprep.subr.mxu0 0.0
    %4402 = vmatpush1.msra.mxu0 0.0
    %4403 = vmatprep.subr.mxu0 0.0
    %4404 = vmatpush1.msra.mxu0 0.0
    %4405 = vmatprep.subr.mxu0 0.0
    %4406 = vmatpush1.msra.mxu0 0.0
    %4407 = vmatprep.subr.mxu0 0.0
    %4408 = vmatpush1.msra.mxu0 0.0
    %4409 = vmatprep.subr.mxu0 0.0
    %4410 = vmatpush1.msra.mxu0 0.0
    %4411 = vmatprep.mubr.f32.mxu0 0.0
    %4412 = vmatmul.mubr.f32.gmra.mrb[0].mxu0 %v4324
    %v4413 = vpop.f32.mrb[0].mxu0
    %v4414 = vadd.f32 0.0, %v4413
    %v4415 = vpop.f32.mrb[0].mxu0
    %v4416 = vadd.f32 0.0, %v4415
    %4417 = vmatprep.mubr.f32.mxu0 0.0
    %4418 = vmatmul.mubr.f32.gmra.mrb[0].mxu0 %v4327
    %v4419 = vpop.f32.mrb[0].mxu0
    %v4420 = vadd.f32 0.0, %v4419
    %v4421 = vpop.f32.mrb[0].mxu0
    %v4422 = vadd.f32 0.0, %v4421
    %4423 = vmatprep.mubr.f32.mxu0 0.0
    %4424 = vmatmul.mubr.f32.gmra.mrb[0].mxu0 %v4330
    %v4425 = vpop.f32.mrb[0].mxu0
    %v4426 = vadd.f32 0.0, %v4425
    %v4427 = vpop.f32.mrb[0].mxu0
    %v4428 = vadd.f32 0.0, %v4427
    %4429 = vmatprep.mubr.f32.mxu0 0.0
    %4430 = vmatmul.mubr.f32.gmra.mrb[0].mxu0 %v4333
    %v4431 = vpop.f32.mrb[0].mxu0
    %v4432 = vadd.f32 0.0, %v4431
    %v4433 = vpop.f32.mrb[0].mxu0
    %v4434 = vadd.f32 0.0, %v4433
    %4435 = vmatprep.mubr.f32.mxu0 0.0
    %4436 = vmatmul.mubr.f32.gmra.mrb[0].mxu0 %v4336
    %v4437 = vpop.f32.mrb[0].mxu0
    %v4438 = vadd.f32 0.0, %v4437
    %v4439 = vpop.f32.mrb[0].mxu0
    %v4440 = vadd.f32 0.0, %v4439
    %4441 = vmatprep.mubr.f32.mxu0 0.0
    %4442 = vmatmul.mubr.f32.gmra.mrb[0].mxu0 %v4339
    %v4443 = vpop.f32.mrb[0].mxu0
    %v4444 = vadd.f32 0.0, %v4443
    %v4445 = vpop.f32.mrb[0].mxu0
    %v4446 = vadd.f32 0.0, %v4445
    %4447 = vmatprep.mubr.f32.mxu0 0.0
    %4448 = vmatmul.mubr.f32.gmra.mrb[0].mxu0 %v4342
    %v4449 = vpop.f32.mrb[0].mxu0
    %v4450 = vadd.f32 0.0, %v4449
    %v4451 = vpop.f32.mrb[0].mxu0
    %v4452 = vadd.f32 0.0, %v4451
    %4453 = vmatprep.mubr.f32.mxu0 0.0
    %4454 = vmatmul.mubr.f32.gmra.mrb[0].mxu0 %v4345
    %v4455 = vpop.f32.mrb[0].mxu0
    %v4456 = vadd.f32 0.0, %v4455
    %v4457 = vpop.f32.mrb[0].mxu0
    %v4458 = vadd.f32 0.0, %v4457
    %4459 = vdwg.mxu0
    %v4461 = vsel %vm398, %v4275, 0
    %v4464 = vsel %vm398, %v4276, 0
    %v4467 = vsel %vm398, %v4277, 0
    %v4470 = vsel %vm398, %v4278, 0
    %v4473 = vsel %vm398, %v4279, 0
    %v4476 = vsel %vm398, %v4280, 0
    %v4479 = vsel %vm398, %v4281, 0
    %v4482 = vsel %vm398, %v4282, 0
    %4484 = vmatprep.subr.mxu0 %v4292
    %4485 = vmatpush1.msra.mxu0 %v4291
    %4486 = vmatprep.subr.mxu0 %v4294
    %4487 = vmatpush1.msra.mxu0 %v4293
    %4488 = vmatprep.subr.mxu0 %v4296
    %4489 = vmatpush1.msra.mxu0 %v4295
    %4490 = vmatprep.subr.mxu0 %v4298
    %4491 = vmatpush1.msra.mxu0 %v4297
    %4492 = vmatprep.subr.mxu0 0.0
    %4493 = vmatpush1.msra.mxu0 0.0
    %4494 = vmatprep.subr.mxu0 0.0
    %4495 = vmatpush1.msra.mxu0 0.0
    %4496 = vmatprep.subr.mxu0 0.0
    %4497 = vmatpush1.msra.mxu0 0.0
    %4498 = vmatprep.subr.mxu0 0.0
    %4499 = vmatpush1.msra.mxu0 0.0
    %4500 = vmatprep.subr.mxu0 0.0
    %4501 = vmatpush1.msra.mxu0 0.0
    %4502 = vmatprep.subr.mxu0 0.0
    %4503 = vmatpush1.msra.mxu0 0.0
    %4504 = vmatprep.subr.mxu0 0.0
    %4505 = vmatpush1.msra.mxu0 0.0
    %4506 = vmatprep.subr.mxu0 0.0
    %4507 = vmatpush1.msra.mxu0 0.0
    %4508 = vmatprep.subr.mxu0 0.0
    %4509 = vmatpush1.msra.mxu0 0.0
    %4510 = vmatprep.subr.mxu0 0.0
    %4511 = vmatpush1.msra.mxu0 0.0
    %4512 = vmatprep.subr.mxu0 0.0
    %4513 = vmatpush1.msra.mxu0 0.0
    %4514 = vmatprep.subr.mxu0 0.0
    %4515 = vmatpush1.msra.mxu0 0.0
    %4516 = vmatprep.subr.mxu0 0.0
    %4517 = vmatpush1.msra.mxu0 0.0
    %4518 = vmatprep.subr.mxu0 0.0
    %4519 = vmatpush1.msra.mxu0 0.0
    %4520 = vmatprep.subr.mxu0 0.0
    %4521 = vmatpush1.msra.mxu0 0.0
    %4522 = vmatprep.subr.mxu0 0.0
    %4523 = vmatpush1.msra.mxu0 0.0
    %4524 = vmatprep.subr.mxu0 0.0
    %4525 = vmatpush1.msra.mxu0 0.0
    %4526 = vmatprep.subr.mxu0 0.0
    %4527 = vmatpush1.msra.mxu0 0.0
    %4528 = vmatprep.subr.mxu0 0.0
    %4529 = vmatpush1.msra.mxu0 0.0
    %4530 = vmatprep.subr.mxu0 0.0
    %4531 = vmatpush1.msra.mxu0 0.0
    %4532 = vmatprep.subr.mxu0 0.0
    %4533 = vmatpush1.msra.mxu0 0.0
    %4534 = vmatprep.subr.mxu0 0.0
    %4535 = vmatpush1.msra.mxu0 0.0
    %4536 = vmatprep.subr.mxu0 0.0
    %4537 = vmatpush1.msra.mxu0 0.0
    %4538 = vmatprep.subr.mxu0 0.0
    %4539 = vmatpush1.msra.mxu0 0.0
    %4540 = vmatprep.subr.mxu0 0.0
    %4541 = vmatpush1.msra.mxu0 0.0
    %4542 = vmatprep.subr.mxu0 0.0
    %4543 = vmatpush1.msra.mxu0 0.0
    %4544 = vmatprep.subr.mxu0 0.0
    %4545 = vmatpush1.msra.mxu0 0.0
    %4546 = vmatprep.subr.mxu0 0.0
    %4547 = vmatpush1.msra.mxu0 0.0
    %4548 = vmatprep.mubr.f32.mxu0 0.0
    %4549 = vmatmul.mubr.f32.gmra.mrb[0].mxu0 %v4461
    %v4550 = vpop.f32.mrb[0].mxu0
    %v4551 = vadd.f32 %v4414, %v4550
    %v4552 = vpop.f32.mrb[0].mxu0
    %v4553 = vadd.f32 %v4416, %v4552
    %4554 = vmatprep.mubr.f32.mxu0 0.0
    %4555 = vmatmul.mubr.f32.gmra.mrb[0].mxu0 %v4464
    %v4556 = vpop.f32.mrb[0].mxu0
    %v4557 = vadd.f32 %v4420, %v4556
    %v4558 = vpop.f32.mrb[0].mxu0
    %v4559 = vadd.f32 %v4422, %v4558
    %4560 = vmatprep.mubr.f32.mxu0 0.0
    %4561 = vmatmul.mubr.f32.gmra.mrb[0].mxu0 %v4467
    %v4562 = vpop.f32.mrb[0].mxu0
    %v4563 = vadd.f32 %v4426, %v4562
    %v4564 = vpop.f32.mrb[0].mxu0
    %v4565 = vadd.f32 %v4428, %v4564
    %4566 = vmatprep.mubr.f32.mxu0 0.0
    %4567 = vmatmul.mubr.f32.gmra.mrb[0].mxu0 %v4470
    %v4568 = vpop.f32.mrb[0].mxu0
    %v4569 = vadd.f32 %v4432, %v4568
    %v4570 = vpop.f32.mrb[0].mxu0
    %v4571 = vadd.f32 %v4434, %v4570
    %4572 = vmatprep.mubr.f32.mxu0 0.0
    %4573 = vmatmul.mubr.f32.gmra.mrb[0].mxu0 %v4473
    %v4574 = vpop.f32.mrb[0].mxu0
    %v4575 = vadd.f32 %v4438, %v4574
    %v4576 = vpop.f32.mrb[0].mxu0
    %v4577 = vadd.f32 %v4440, %v4576
    %4578 = vmatprep.mubr.f32.mxu0 0.0
    %4579 = vmatmul.mubr.f32.gmra.mrb[0].mxu0 %v4476
    %v4580 = vpop.f32.mrb[0].mxu0
    %v4581 = vadd.f32 %v4444, %v4580
    %v4582 = vpop.f32.mrb[0].mxu0
    %v4583 = vadd.f32 %v4446, %v4582
    %4584 = vmatprep.mubr.f32.mxu0 0.0
    %4585 = vmatmul.mubr.f32.gmra.mrb[0].mxu0 %v4479
    %v4586 = vpop.f32.mrb[0].mxu0
    %v4587 = vadd.f32 %v4450, %v4586
    %v4588 = vpop.f32.mrb[0].mxu0
    %v4589 = vadd.f32 %v4452, %v4588
    %4590 = vmatprep.mubr.f32.mxu0 0.0
    %4591 = vmatmul.mubr.f32.gmra.mrb[0].mxu0 %v4482
    %v4592 = vpop.f32.mrb[0].mxu0
    %v4593 = vadd.f32 %v4456, %v4592
    %v4594 = vpop.f32.mrb[0].mxu0
    %v4595 = vadd.f32 %v4458, %v4594
    %4596 = vdwg.mxu0
    %v4598 = vlaneseq
    %v4599 = vshrl.u32 %v4598, 7
    %v4600 = vsub.s32 0, %v4599
    %v4601 = vrot.slane %v4272, %v4600
    %v4602 = vlaneseq
    %v4603 = vshrl.u32 %v4602, 7
    %v4604 = vsub.s32 1, %v4603
    %v4605 = vrot.slane %v4272, %v4604
    %v4608 = vadd.f32 %v4551, %v4601
    %v4609 = vadd.f32 %v4553, %v4605
    %v4610 = vadd.f32 %v4557, %v4601
    %v4611 = vadd.f32 %v4559, %v4605
    %v4612 = vadd.f32 %v4563, %v4601
    %v4613 = vadd.f32 %v4565, %v4605
    %v4614 = vadd.f32 %v4569, %v4601
    %v4615 = vadd.f32 %v4571, %v4605
    %v4616 = vadd.f32 %v4575, %v4601
    %v4617 = vadd.f32 %v4577, %v4605
    %v4618 = vadd.f32 %v4581, %v4601
    %v4619 = vadd.f32 %v4583, %v4605
    %v4620 = vadd.f32 %v4587, %v4601
    %v4621 = vadd.f32 %v4589, %v4605
    %v4622 = vadd.f32 %v4593, %v4601
    %v4623 = vadd.f32 %v4595, %v4605
    %4624 = vst [vmem:[#allocation2] sm:$0xff] %v4608
    %4625 = vst [vmem:[#allocation2 + $0x8] sm:$0xff] %v4609
    %4626 = vst [vmem:[#allocation2 + $0x10] sm:$0xff] %v4610
    %4627 = vst [vmem:[#allocation2 + $0x18] sm:$0xff] %v4611
    %4628 = vst [vmem:[#allocation2 + $0x20] sm:$0xff] %v4612
    %4629 = vst [vmem:[#allocation2 + $0x28] sm:$0xff] %v4613
    %4630 = vst [vmem:[#allocation2 + $0x30] sm:$0xff] %v4614
    %4631 = vst [vmem:[#allocation2 + $0x38] sm:$0xff] %v4615
    %4632 = vst [vmem:[#allocation2 + $0x40] sm:$0xff] %v4616
    %4633 = vst [vmem:[#allocation2 + $0x48] sm:$0xff] %v4617
    %4634 = vst [vmem:[#allocation2 + $0x50] sm:$0xff] %v4618
    %4635 = vst [vmem:[#allocation2 + $0x58] sm:$0xff] %v4619
    %4636 = vst [vmem:[#allocation2 + $0x60] sm:$0xff] %v4620
    %4637 = vst [vmem:[#allocation2 + $0x68] sm:$0xff] %v4621
    %4638 = vst [vmem:[#allocation2 + $0x70] sm:$0xff] %v4622
    %4639 = vst [vmem:[#allocation2 + $0x78] sm:$0xff] %v4623
    %4640 = vmatprep.subr.mxu0 %v4316
    %4641 = vmatpush1.msra.mxu0 %v4315
    %4642 = vmatprep.subr.mxu0 %v4318
    %4643 = vmatpush1.msra.mxu0 %v4317
    %4644 = vmatprep.subr.mxu0 %v4320
    %4645 = vmatpush1.msra.mxu0 %v4319
    %4646 = vmatprep.subr.mxu0 %v4322
    %4647 = vmatpush1.msra.mxu0 %v4321
    %4648 = vmatprep.subr.mxu0 0.0
    %4649 = vmatpush1.msra.mxu0 0.0
    %4650 = vmatprep.subr.mxu0 0.0
    %4651 = vmatpush1.msra.mxu0 0.0
    %4652 = vmatprep.subr.mxu0 0.0
    %4653 = vmatpush1.msra.mxu0 0.0
    %4654 = vmatprep.subr.mxu0 0.0
    %4655 = vmatpush1.msra.mxu0 0.0
    %4656 = vmatprep.subr.mxu0 0.0
    %4657 = vmatpush1.msra.mxu0 0.0
    %4658 = vmatprep.subr.mxu0 0.0
    %4659 = vmatpush1.msra.mxu0 0.0
    %4660 = vmatprep.subr.mxu0 0.0
    %4661 = vmatpush1.msra.mxu0 0.0
    %4662 = vmatprep.subr.mxu0 0.0
    %4663 = vmatpush1.msra.mxu0 0.0
    %4664 = vmatprep.subr.mxu0 0.0
    %4665 = vmatpush1.msra.mxu0 0.0
    %4666 = vmatprep.subr.mxu0 0.0
    %4667 = vmatpush1.msra.mxu0 0.0
    %4668 = vmatprep.subr.mxu0 0.0
    %4669 = vmatpush1.msra.mxu0 0.0
    %4670 = vmatprep.subr.mxu0 0.0
    %4671 = vmatpush1.msra.mxu0 0.0
    %4672 = vmatprep.subr.mxu0 0.0
    %4673 = vmatpush1.msra.mxu0 0.0
    %4674 = vmatprep.subr.mxu0 0.0
    %4675 = vmatpush1.msra.mxu0 0.0
    %4676 = vmatprep.subr.mxu0 0.0
    %4677 = vmatpush1.msra.mxu0 0.0
    %4678 = vmatprep.subr.mxu0 0.0
    %4679 = vmatpush1.msra.mxu0 0.0
    %4680 = vmatprep.subr.mxu0 0.0
    %4681 = vmatpush1.msra.mxu0 0.0
    %4682 = vmatprep.subr.mxu0 0.0
    %4683 = vmatpush1.msra.mxu0 0.0
    %4684 = vmatprep.subr.mxu0 0.0
    %4685 = vmatpush1.msra.mxu0 0.0
    %4686 = vmatprep.subr.mxu0 0.0
    %4687 = vmatpush1.msra.mxu0 0.0
    %4688 = vmatprep.subr.mxu0 0.0
    %4689 = vmatpush1.msra.mxu0 0.0
    %4690 = vmatprep.subr.mxu0 0.0
    %4691 = vmatpush1.msra.mxu0 0.0
    %4692 = vmatprep.subr.mxu0 0.0
    %4693 = vmatpush1.msra.mxu0 0.0
    %4694 = vmatprep.subr.mxu0 0.0
    %4695 = vmatpush1.msra.mxu0 0.0
    %4696 = vmatprep.subr.mxu0 0.0
    %4697 = vmatpush1.msra.mxu0 0.0
    %4698 = vmatprep.subr.mxu0 0.0
    %4699 = vmatpush1.msra.mxu0 0.0
    %4700 = vmatprep.subr.mxu0 0.0
    %4701 = vmatpush1.msra.mxu0 0.0
    %4702 = vmatprep.subr.mxu0 0.0
    %4703 = vmatpush1.msra.mxu0 0.0
    %4704 = vmatprep.mubr.f32.mxu0 0.0
    %4705 = vmatmul.mubr.f32.gmra.mrb[0].mxu0 %v4324
    %v4706 = vpop.f32.mrb[0].mxu0
    %v4707 = vadd.f32 0.0, %v4706
    %v4708 = vpop.f32.mrb[0].mxu0
    %v4709 = vadd.f32 0.0, %v4708
    %4710 = vmatprep.mubr.f32.mxu0 0.0
    %4711 = vmatmul.mubr.f32.gmra.mrb[0].mxu0 %v4327
    %v4712 = vpop.f32.mrb[0].mxu0
    %v4713 = vadd.f32 0.0, %v4712
    %v4714 = vpop.f32.mrb[0].mxu0
    %v4715 = vadd.f32 0.0, %v4714
    %4716 = vmatprep.mubr.f32.mxu0 0.0
    %4717 = vmatmul.mubr.f32.gmra.mrb[0].mxu0 %v4330
    %v4718 = vpop.f32.mrb[0].mxu0
    %v4719 = vadd.f32 0.0, %v4718
    %v4720 = vpop.f32.mrb[0].mxu0
    %v4721 = vadd.f32 0.0, %v4720
    %4722 = vmatprep.mubr.f32.mxu0 0.0
    %4723 = vmatmul.mubr.f32.gmra.mrb[0].mxu0 %v4333
    %v4724 = vpop.f32.mrb[0].mxu0
    %v4725 = vadd.f32 0.0, %v4724
    %v4726 = vpop.f32.mrb[0].mxu0
    %v4727 = vadd.f32 0.0, %v4726
    %4728 = vmatprep.mubr.f32.mxu0 0.0
    %4729 = vmatmul.mubr.f32.gmra.mrb[0].mxu0 %v4336
    %v4730 = vpop.f32.mrb[0].mxu0
    %v4731 = vadd.f32 0.0, %v4730
    %v4732 = vpop.f32.mrb[0].mxu0
    %v4733 = vadd.f32 0.0, %v4732
    %4734 = vmatprep.mubr.f32.mxu0 0.0
    %4735 = vmatmul.mubr.f32.gmra.mrb[0].mxu0 %v4339
    %v4736 = vpop.f32.mrb[0].mxu0
    %v4737 = vadd.f32 0.0, %v4736
    %v4738 = vpop.f32.mrb[0].mxu0
    %v4739 = vadd.f32 0.0, %v4738
    %4740 = vmatprep.mubr.f32.mxu0 0.0
    %4741 = vmatmul.mubr.f32.gmra.mrb[0].mxu0 %v4342
    %v4742 = vpop.f32.mrb[0].mxu0
    %v4743 = vadd.f32 0.0, %v4742
    %v4744 = vpop.f32.mrb[0].mxu0
    %v4745 = vadd.f32 0.0, %v4744
    %4746 = vmatprep.mubr.f32.mxu0 0.0
    %4747 = vmatmul.mubr.f32.gmra.mrb[0].mxu0 %v4345
    %v4748 = vpop.f32.mrb[0].mxu0
    %v4749 = vadd.f32 0.0, %v4748
    %v4750 = vpop.f32.mrb[0].mxu0
    %v4751 = vadd.f32 0.0, %v4750
    %4752 = vdwg.mxu0
    %4753 = vmatprep.subr.mxu0 %v4308
    %4754 = vmatpush1.msra.mxu0 %v4307
    %4755 = vmatprep.subr.mxu0 %v4310
    %4756 = vmatpush1.msra.mxu0 %v4309
    %4757 = vmatprep.subr.mxu0 %v4312
    %4758 = vmatpush1.msra.mxu0 %v4311
    %4759 = vmatprep.subr.mxu0 %v4314
    %4760 = vmatpush1.msra.mxu0 %v4313
    %4761 = vmatprep.subr.mxu0 0.0
    %4762 = vmatpush1.msra.mxu0 0.0
    %4763 = vmatprep.subr.mxu0 0.0
    %4764 = vmatpush1.msra.mxu0 0.0
    %4765 = vmatprep.subr.mxu0 0.0
    %4766 = vmatpush1.msra.mxu0 0.0
    %4767 = vmatprep.subr.mxu0 0.0
    %4768 = vmatpush1.msra.mxu0 0.0
    %4769 = vmatprep.subr.mxu0 0.0
    %4770 = vmatpush1.msra.mxu0 0.0
    %4771 = vmatprep.subr.mxu0 0.0
    %4772 = vmatpush1.msra.mxu0 0.0
    %4773 = vmatprep.subr.mxu0 0.0
    %4774 = vmatpush1.msra.mxu0 0.0
    %4775 = vmatprep.subr.mxu0 0.0
    %4776 = vmatpush1.msra.mxu0 0.0
    %4777 = vmatprep.subr.mxu0 0.0
    %4778 = vmatpush1.msra.mxu0 0.0
    %4779 = vmatprep.subr.mxu0 0.0
    %4780 = vmatpush1.msra.mxu0 0.0
    %4781 = vmatprep.subr.mxu0 0.0
    %4782 = vmatpush1.msra.mxu0 0.0
    %4783 = vmatprep.subr.mxu0 0.0
    %4784 = vmatpush1.msra.mxu0 0.0
    %4785 = vmatprep.subr.mxu0 0.0
    %4786 = vmatpush1.msra.mxu0 0.0
    %4787 = vmatprep.subr.mxu0 0.0
    %4788 = vmatpush1.msra.mxu0 0.0
    %4789 = vmatprep.subr.mxu0 0.0
    %4790 = vmatpush1.msra.mxu0 0.0
    %4791 = vmatprep.subr.mxu0 0.0
    %4792 = vmatpush1.msra.mxu0 0.0
    %4793 = vmatprep.subr.mxu0 0.0
    %4794 = vmatpush1.msra.mxu0 0.0
    %4795 = vmatprep.subr.mxu0 0.0
    %4796 = vmatpush1.msra.mxu0 0.0
    %4797 = vmatprep.subr.mxu0 0.0
    %4798 = vmatpush1.msra.mxu0 0.0
    %4799 = vmatprep.subr.mxu0 0.0
    %4800 = vmatpush1.msra.mxu0 0.0
    %4801 = vmatprep.subr.mxu0 0.0
    %4802 = vmatpush1.msra.mxu0 0.0
    %4803 = vmatprep.subr.mxu0 0.0
    %4804 = vmatpush1.msra.mxu0 0.0
    %4805 = vmatprep.subr.mxu0 0.0
    %4806 = vmatpush1.msra.mxu0 0.0
    %4807 = vmatprep.subr.mxu0 0.0
    %4808 = vmatpush1.msra.mxu0 0.0
    %4809 = vmatprep.subr.mxu0 0.0
    %4810 = vmatpush1.msra.mxu0 0.0
    %4811 = vmatprep.subr.mxu0 0.0
    %4812 = vmatpush1.msra.mxu0 0.0
    %4813 = vmatprep.subr.mxu0 0.0
    %4814 = vmatpush1.msra.mxu0 0.0
    %4815 = vmatprep.subr.mxu0 0.0
    %4816 = vmatpush1.msra.mxu0 0.0
    %4817 = vmatprep.mubr.f32.mxu0 0.0
    %4818 = vmatmul.mubr.f32.gmra.mrb[0].mxu0 %v4461
    %v4819 = vpop.f32.mrb[0].mxu0
    %v4820 = vadd.f32 %v4707, %v4819
    %v4821 = vpop.f32.mrb[0].mxu0
    %v4822 = vadd.f32 %v4709, %v4821
    %4823 = vmatprep.mubr.f32.mxu0 0.0
    %4824 = vmatmul.mubr.f32.gmra.mrb[0].mxu0 %v4464
    %v4825 = vpop.f32.mrb[0].mxu0
    %v4826 = vadd.f32 %v4713, %v4825
    %v4827 = vpop.f32.mrb[0].mxu0
    %v4828 = vadd.f32 %v4715, %v4827
    %4829 = vmatprep.mubr.f32.mxu0 0.0
    %4830 = vmatmul.mubr.f32.gmra.mrb[0].mxu0 %v4467
    %v4831 = vpop.f32.mrb[0].mxu0
    %v4832 = vadd.f32 %v4719, %v4831
    %v4833 = vpop.f32.mrb[0].mxu0
    %v4834 = vadd.f32 %v4721, %v4833
    %4835 = vmatprep.mubr.f32.mxu0 0.0
    %4836 = vmatmul.mubr.f32.gmra.mrb[0].mxu0 %v4470
    %v4837 = vpop.f32.mrb[0].mxu0
    %v4838 = vadd.f32 %v4725, %v4837
    %v4839 = vpop.f32.mrb[0].mxu0
    %v4840 = vadd.f32 %v4727, %v4839
    %4841 = vmatprep.mubr.f32.mxu0 0.0
    %4842 = vmatmul.mubr.f32.gmra.mrb[0].mxu0 %v4473
    %v4843 = vpop.f32.mrb[0].mxu0
    %v4844 = vadd.f32 %v4731, %v4843
    %v4845 = vpop.f32.mrb[0].mxu0
    %v4846 = vadd.f32 %v4733, %v4845
    %4847 = vmatprep.mubr.f32.mxu0 0.0
    %4848 = vmatmul.mubr.f32.gmra.mrb[0].mxu0 %v4476
    %v4849 = vpop.f32.mrb[0].mxu0
    %v4850 = vadd.f32 %v4737, %v4849
    %v4851 = vpop.f32.mrb[0].mxu0
    %v4852 = vadd.f32 %v4739, %v4851
    %4853 = vmatprep.mubr.f32.mxu0 0.0
    %4854 = vmatmul.mubr.f32.gmra.mrb[0].mxu0 %v4479
    %v4855 = vpop.f32.mrb[0].mxu0
    %v4856 = vadd.f32 %v4743, %v4855
    %v4857 = vpop.f32.mrb[0].mxu0
    %v4858 = vadd.f32 %v4745, %v4857
    %4859 = vmatprep.mubr.f32.mxu0 0.0
    %4860 = vmatmul.mubr.f32.gmra.mrb[0].mxu0 %v4482
    %v4861 = vpop.f32.mrb[0].mxu0
    %v4862 = vadd.f32 %v4749, %v4861
    %v4863 = vpop.f32.mrb[0].mxu0
    %v4864 = vadd.f32 %v4751, %v4863
    %4865 = vdwg.mxu0
    %v4867 = vlaneseq
    %v4868 = vshrl.u32 %v4867, 7
    %v4869 = vsub.s32 0, %v4868
    %v4870 = vrot.slane %v4274, %v4869
    %v4871 = vlaneseq
    %v4872 = vshrl.u32 %v4871, 7
    %v4873 = vsub.s32 1, %v4872
    %v4874 = vrot.slane %v4274, %v4873
    %v4877 = vadd.f32 %v4820, %v4870
    %v4878 = vadd.f32 %v4822, %v4874
    %v4879 = vadd.f32 %v4826, %v4870
    %v4880 = vadd.f32 %v4828, %v4874
    %v4881 = vadd.f32 %v4832, %v4870
    %v4882 = vadd.f32 %v4834, %v4874
    %v4883 = vadd.f32 %v4838, %v4870
    %v4884 = vadd.f32 %v4840, %v4874
    %v4885 = vadd.f32 %v4844, %v4870
    %v4886 = vadd.f32 %v4846, %v4874
    %v4887 = vadd.f32 %v4850, %v4870
    %v4888 = vadd.f32 %v4852, %v4874
    %v4889 = vadd.f32 %v4856, %v4870
    %v4890 = vadd.f32 %v4858, %v4874
    %v4891 = vadd.f32 %v4862, %v4870
    %v4892 = vadd.f32 %v4864, %v4874
    %4893 = vst [vmem:[#allocation3] sm:$0xff] %v4877
    %4894 = vst [vmem:[#allocation3 + $0x8] sm:$0xff] %v4878
    %4895 = vst [vmem:[#allocation3 + $0x10] sm:$0xff] %v4879
    %4896 = vst [vmem:[#allocation3 + $0x18] sm:$0xff] %v4880
    %4897 = vst [vmem:[#allocation3 + $0x20] sm:$0xff] %v4881
    %4898 = vst [vmem:[#allocation3 + $0x28] sm:$0xff] %v4882
    %4899 = vst [vmem:[#allocation3 + $0x30] sm:$0xff] %v4883
    %4900 = vst [vmem:[#allocation3 + $0x38] sm:$0xff] %v4884
    %4901 = vst [vmem:[#allocation3 + $0x40] sm:$0xff] %v4885
    %4902 = vst [vmem:[#allocation3 + $0x48] sm:$0xff] %v4886
    %4903 = vst [vmem:[#allocation3 + $0x50] sm:$0xff] %v4887
    %4904 = vst [vmem:[#allocation3 + $0x58] sm:$0xff] %v4888
    %4905 = vst [vmem:[#allocation3 + $0x60] sm:$0xff] %v4889
    %4906 = vst [vmem:[#allocation3 + $0x68] sm:$0xff] %v4890
    %4907 = vst [vmem:[#allocation3 + $0x70] sm:$0xff] %v4891
    %4908 = vst [vmem:[#allocation3 + $0x78] sm:$0xff] %v4892
    %v4909 = vld [vmem:[#allocation2] sm:$0xff]
    %v4910 = vld [vmem:[#allocation2 + $0x8] sm:$0xff]
    %v4911 = vld [vmem:[#allocation3 + $0x70] sm:$0xff]
    %v4912 = vld [vmem:[#allocation3 + $0x78] sm:$0xff]
    %v4913 = vadd.f32 %v4909, %v4911
    %v4914 = vadd.f32 %v4910, %v4912
    %v4915 = vxor.u32 %v4913, 2147483648
    %v4916 = vxor.u32 %v4914, 2147483648
    %v4917 = vmul.f32 %v4915, 1.442695
    %v4918 = vpow.pop %v4917
    %v4919 = vmul.f32 %v4916, 1.442695
    %v4920 = vpow.pop %v4919
    %v4921 = vadd.f32 %v4918, 1.0
    %v4922 = vadd.f32 %v4920, 1.0
    %v4923 = vrcp.pop %v4921
    %v4924 = vmul.f32 1.0, %v4923
    %v4925 = vrcp.pop %v4922
    %v4926 = vmul.f32 1.0, %v4925
    %v4927 = vtanh.pop %v4914
    %v4928 = vmul.f32 %v4924, 0.0
    %4930 = vrot.lane.b32.xlu0 %v4927, 64
    %v4931 = vpop.permute.xlu0 %4930
    %v4933 = vmul.f32 %v4924, %v4931
    %4935 = vrot.lane.b32.xlu0 %v4933, 64
    %v4936 = vpop.permute.xlu0 %4935
    %v4938 = vadd.f32 %v4928, %v4936
    %v4939 = vtanh.pop %v4938
    %4941 = vrot.lane.b32.xlu0 %v4939, 64
    %v4942 = vpop.permute.xlu0 %4941
    %v4944 = vmul.f32 %v4926, %v4942
    %4945 = vst.msk [vmem:[#allocation4] sm:$0xff] %vm398, %v4944
    %4947 = vrot.lane.b32.xlu0 %v4944, 96
    %v4948 = vpop.permute.xlu0 %4947
    %4950 = vst.msk [vmem:[#allocation5 + $0x38] sm:$0xff] %vm398, %v4948
    %v4951 = vld [vmem:[#allocation2 + $0x10] sm:$0xff]
    %v4952 = vld [vmem:[#allocation2 + $0x18] sm:$0xff]
    %v4953 = vld [vmem:[#allocation3 + $0x60] sm:$0xff]
    %v4954 = vld [vmem:[#allocation3 + $0x68] sm:$0xff]
    %v4955 = vadd.f32 %v4951, %v4953
    %v4956 = vadd.f32 %v4952, %v4954
    %v4957 = vsel %vm411, %v4944, 0
    %4959 = vmatprep.subr.mxu0 %v4256
    %4960 = vmatpush1.msra.mxu0 %v4255
    %4961 = vmatprep.subr.mxu0 %v4258
    %4962 = vmatpush1.msra.mxu0 %v4257
    %4963 = vmatprep.subr.mxu0 %v4260
    %4964 = vmatpush1.msra.mxu0 %v4259
    %4965 = vmatprep.subr.mxu0 %v4262
    %4966 = vmatpush1.msra.mxu0 %v4261
    %4967 = vmatprep.subr.mxu0 %v4264
    %4968 = vmatpush1.msra.mxu0 %v4263
    %4969 = vmatprep.subr.mxu0 %v4266
    %4970 = vmatpush1.msra.mxu0 %v4265
    %4971 = vmatprep.subr.mxu0 %v4268
    %4972 = vmatpush1.msra.mxu0 %v4267
    %4973 = vmatprep.subr.mxu0 %v4270
    %4974 = vmatpush1.msra.mxu0 %v4269
    %4975 = vmatprep.subr.mxu0 0.0
    %4976 = vmatpush1.msra.mxu0 0.0
    %4977 = vmatprep.subr.mxu0 0.0
    %4978 = vmatpush1.msra.mxu0 0.0
    %4979 = vmatprep.subr.mxu0 0.0
    %4980 = vmatpush1.msra.mxu0 0.0
    %4981 = vmatprep.subr.mxu0 0.0
    %4982 = vmatpush1.msra.mxu0 0.0
    %4983 = vmatprep.subr.mxu0 0.0
    %4984 = vmatpush1.msra.mxu0 0.0
    %4985 = vmatprep.subr.mxu0 0.0
    %4986 = vmatpush1.msra.mxu0 0.0
    %4987 = vmatprep.subr.mxu0 0.0
    %4988 = vmatpush1.msra.mxu0 0.0
    %4989 = vmatprep.subr.mxu0 0.0
    %4990 = vmatpush1.msra.mxu0 0.0
    %4991 = vmatprep.subr.mxu0 0.0
    %4992 = vmatpush1.msra.mxu0 0.0
    %4993 = vmatprep.subr.mxu0 0.0
    %4994 = vmatpush1.msra.mxu0 0.0
    %4995 = vmatprep.subr.mxu0 0.0
    %4996 = vmatpush1.msra.mxu0 0.0
    %4997 = vmatprep.subr.mxu0 0.0
    %4998 = vmatpush1.msra.mxu0 0.0
    %4999 = vmatprep.subr.mxu0 0.0
    %5000 = vmatpush1.msra.mxu0 0.0
    %5001 = vmatprep.subr.mxu0 0.0
    %5002 = vmatpush1.msra.mxu0 0.0
    %5003 = vmatprep.subr.mxu0 0.0
    %5004 = vmatpush1.msra.mxu0 0.0
    %5005 = vmatprep.subr.mxu0 0.0
    %5006 = vmatpush1.msra.mxu0 0.0
    %5007 = vmatprep.subr.mxu0 0.0
    %5008 = vmatpush1.msra.mxu0 0.0
    %5009 = vmatprep.subr.mxu0 0.0
    %5010 = vmatpush1.msra.mxu0 0.0
    %5011 = vmatprep.subr.mxu0 0.0
    %5012 = vmatpush1.msra.mxu0 0.0
    %5013 = vmatprep.subr.mxu0 0.0
    %5014 = vmatpush1.msra.mxu0 0.0
    %5015 = vmatprep.subr.mxu0 0.0
    %5016 = vmatpush1.msra.mxu0 0.0
    %5017 = vmatprep.subr.mxu0 0.0
    %5018 = vmatpush1.msra.mxu0 0.0
    %5019 = vmatprep.subr.mxu0 0.0
    %5020 = vmatpush1.msra.mxu0 0.0
    %5021 = vmatprep.subr.mxu0 0.0
    %5022 = vmatpush1.msra.mxu0 0.0
    %5023 = vmatprep.mubr.f32.mxu0 0.0
    %5024 = vmatmul.mubr.f32.gmra.mrb[0].mxu0 %v4957
    %v5025 = vpop.f32.mrb[0].mxu0
    %v5026 = vadd.f32 0.0, %v5025
    %v5027 = vpop.f32.mrb[0].mxu0
    %v5028 = vadd.f32 0.0, %v5027
    %5029 = vdwg.mxu0
    %v5030 = vadd.f32 %v4955, %v5026
    %v5031 = vadd.f32 %v4956, %v5028
    %v5032 = vxor.u32 %v5030, 2147483648
    %v5033 = vxor.u32 %v5031, 2147483648
    %v5034 = vmul.f32 %v5032, 1.442695
    %v5035 = vpow.pop %v5034
    %v5036 = vmul.f32 %v5033, 1.442695
    %v5037 = vpow.pop %v5036
    %v5038 = vadd.f32 %v5035, 1.0
    %v5039 = vadd.f32 %v5037, 1.0
    %v5040 = vrcp.pop %v5038
    %v5041 = vmul.f32 1.0, %v5040
    %v5042 = vrcp.pop %v5039
    %v5043 = vmul.f32 1.0, %v5042
    %v5044 = vtanh.pop %v5031
    %v5045 = vmul.f32 %v5041, %v4938
    %5047 = vrot.lane.b32.xlu0 %v5044, 64
    %v5048 = vpop.permute.xlu0 %5047
    %v5050 = vmul.f32 %v5041, %v5048
    %5052 = vrot.lane.b32.xlu0 %v5050, 64
    %v5053 = vpop.permute.xlu0 %5052
    %v5055 = vadd.f32 %v5045, %v5053
    %v5056 = vtanh.pop %v5055
    %5058 = vrot.lane.b32.xlu0 %v5056, 64
    %v5059 = vpop.permute.xlu0 %5058
    %v5061 = vmul.f32 %v5043, %v5059
    %5062 = vst.msk [vmem:[#allocation4 + $0x8] sm:$0xff] %vm398, %v5061
    %5064 = vrot.lane.b32.xlu0 %v5061, 96
    %v5065 = vpop.permute.xlu0 %5064
    %5067 = vst.msk [vmem:[#allocation5 + $0x30] sm:$0xff] %vm398, %v5065
    %v5068 = vld [vmem:[#allocation2 + $0x20] sm:$0xff]
    %v5069 = vld [vmem:[#allocation2 + $0x28] sm:$0xff]
    %v5070 = vld [vmem:[#allocation3 + $0x50] sm:$0xff]
    %v5071 = vld [vmem:[#allocation3 + $0x58] sm:$0xff]
    %v5072 = vadd.f32 %v5068, %v5070
    %v5073 = vadd.f32 %v5069, %v5071
    %v5074 = vsel %vm411, %v5061, 0
    %5076 = vmatprep.subr.mxu0 %v4256
    %5077 = vmatpush1.msra.mxu0 %v4255
    %5078 = vmatprep.subr.mxu0 %v4258
    %5079 = vmatpush1.msra.mxu0 %v4257
    %5080 = vmatprep.subr.mxu0 %v4260
    %5081 = vmatpush1.msra.mxu0 %v4259
    %5082 = vmatprep.subr.mxu0 %v4262
    %5083 = vmatpush1.msra.mxu0 %v4261
    %5084 = vmatprep.subr.mxu0 %v4264
    %5085 = vmatpush1.msra.mxu0 %v4263
    %5086 = vmatprep.subr.mxu0 %v4266
    %5087 = vmatpush1.msra.mxu0 %v4265
    %5088 = vmatprep.subr.mxu0 %v4268
    %5089 = vmatpush1.msra.mxu0 %v4267
    %5090 = vmatprep.subr.mxu0 %v4270
    %5091 = vmatpush1.msra.mxu0 %v4269
    %5092 = vmatprep.subr.mxu0 0.0
    %5093 = vmatpush1.msra.mxu0 0.0
    %5094 = vmatprep.subr.mxu0 0.0
    %5095 = vmatpush1.msra.mxu0 0.0
    %5096 = vmatprep.subr.mxu0 0.0
    %5097 = vmatpush1.msra.mxu0 0.0
    %5098 = vmatprep.subr.mxu0 0.0
    %5099 = vmatpush1.msra.mxu0 0.0
    %5100 = vmatprep.subr.mxu0 0.0
    %5101 = vmatpush1.msra.mxu0 0.0
    %5102 = vmatprep.subr.mxu0 0.0
    %5103 = vmatpush1.msra.mxu0 0.0
    %5104 = vmatprep.subr.mxu0 0.0
    %5105 = vmatpush1.msra.mxu0 0.0
    %5106 = vmatprep.subr.mxu0 0.0
    %5107 = vmatpush1.msra.mxu0 0.0
    %5108 = vmatprep.subr.mxu0 0.0
    %5109 = vmatpush1.msra.mxu0 0.0
    %5110 = vmatprep.subr.mxu0 0.0
    %5111 = vmatpush1.msra.mxu0 0.0
    %5112 = vmatprep.subr.mxu0 0.0
    %5113 = vmatpush1.msra.mxu0 0.0
    %5114 = vmatprep.subr.mxu0 0.0
    %5115 = vmatpush1.msra.mxu0 0.0
    %5116 = vmatprep.subr.mxu0 0.0
    %5117 = vmatpush1.msra.mxu0 0.0
    %5118 = vmatprep.subr.mxu0 0.0
    %5119 = vmatpush1.msra.mxu0 0.0
    %5120 = vmatprep.subr.mxu0 0.0
    %5121 = vmatpush1.msra.mxu0 0.0
    %5122 = vmatprep.subr.mxu0 0.0
    %5123 = vmatpush1.msra.mxu0 0.0
    %5124 = vmatprep.subr.mxu0 0.0
    %5125 = vmatpush1.msra.mxu0 0.0
    %5126 = vmatprep.subr.mxu0 0.0
    %5127 = vmatpush1.msra.mxu0 0.0
    %5128 = vmatprep.subr.mxu0 0.0
    %5129 = vmatpush1.msra.mxu0 0.0
    %5130 = vmatprep.subr.mxu0 0.0
    %5131 = vmatpush1.msra.mxu0 0.0
    %5132 = vmatprep.subr.mxu0 0.0
    %5133 = vmatpush1.msra.mxu0 0.0
    %5134 = vmatprep.subr.mxu0 0.0
    %5135 = vmatpush1.msra.mxu0 0.0
    %5136 = vmatprep.subr.mxu0 0.0
    %5137 = vmatpush1.msra.mxu0 0.0
    %5138 = vmatprep.subr.mxu0 0.0
    %5139 = vmatpush1.msra.mxu0 0.0
    %5140 = vmatprep.mubr.f32.mxu0 0.0
    %5141 = vmatmul.mubr.f32.gmra.mrb[0].mxu0 %v5074
    %v5142 = vpop.f32.mrb[0].mxu0
    %v5143 = vadd.f32 0.0, %v5142
    %v5144 = vpop.f32.mrb[0].mxu0
    %v5145 = vadd.f32 0.0, %v5144
    %5146 = vdwg.mxu0
    %v5147 = vadd.f32 %v5072, %v5143
    %v5148 = vadd.f32 %v5073, %v5145
    %v5149 = vxor.u32 %v5147, 2147483648
    %v5150 = vxor.u32 %v5148, 2147483648
    %v5151 = vmul.f32 %v5149, 1.442695
    %v5152 = vpow.pop %v5151
    %v5153 = vmul.f32 %v5150, 1.442695
    %v5154 = vpow.pop %v5153
    %v5155 = vadd.f32 %v5152, 1.0
    %v5156 = vadd.f32 %v5154, 1.0
    %v5157 = vrcp.pop %v5155
    %v5158 = vmul.f32 1.0, %v5157
    %v5159 = vrcp.pop %v5156
    %v5160 = vmul.f32 1.0, %v5159
    %v5161 = vtanh.pop %v5148
    %v5162 = vmul.f32 %v5158, %v5055
    %5164 = vrot.lane.b32.xlu0 %v5161, 64
    %v5165 = vpop.permute.xlu0 %5164
    %v5167 = vmul.f32 %v5158, %v5165
    %5169 = vrot.lane.b32.xlu0 %v5167, 64
    %v5170 = vpop.permute.xlu0 %5169
    %v5172 = vadd.f32 %v5162, %v5170
    %v5173 = vtanh.pop %v5172
    %5175 = vrot.lane.b32.xlu0 %v5173, 64
    %v5176 = vpop.permute.xlu0 %5175
    %v5178 = vmul.f32 %v5160, %v5176
    %5179 = vst.msk [vmem:[#allocation4 + $0x10] sm:$0xff] %vm398, %v5178
    %5181 = vrot.lane.b32.xlu0 %v5178, 96
    %v5182 = vpop.permute.xlu0 %5181
    %5184 = vst.msk [vmem:[#allocation5 + $0x28] sm:$0xff] %vm398, %v5182
    %v5185 = vld [vmem:[#allocation2 + $0x30] sm:$0xff]
    %v5186 = vld [vmem:[#allocation2 + $0x38] sm:$0xff]
    %v5187 = vld [vmem:[#allocation3 + $0x40] sm:$0xff]
    %v5188 = vld [vmem:[#allocation3 + $0x48] sm:$0xff]
    %v5189 = vadd.f32 %v5185, %v5187
    %v5190 = vadd.f32 %v5186, %v5188
    %v5191 = vsel %vm411, %v5178, 0
    %5193 = vmatprep.subr.mxu0 %v4256
    %5194 = vmatpush1.msra.mxu0 %v4255
    %5195 = vmatprep.subr.mxu0 %v4258
    %5196 = vmatpush1.msra.mxu0 %v4257
    %5197 = vmatprep.subr.mxu0 %v4260
    %5198 = vmatpush1.msra.mxu0 %v4259
    %5199 = vmatprep.subr.mxu0 %v4262
    %5200 = vmatpush1.msra.mxu0 %v4261
    %5201 = vmatprep.subr.mxu0 %v4264
    %5202 = vmatpush1.msra.mxu0 %v4263
    %5203 = vmatprep.subr.mxu0 %v4266
    %5204 = vmatpush1.msra.mxu0 %v4265
    %5205 = vmatprep.subr.mxu0 %v4268
    %5206 = vmatpush1.msra.mxu0 %v4267
    %5207 = vmatprep.subr.mxu0 %v4270
    %5208 = vmatpush1.msra.mxu0 %v4269
    %5209 = vmatprep.subr.mxu0 0.0
    %5210 = vmatpush1.msra.mxu0 0.0
    %5211 = vmatprep.subr.mxu0 0.0
    %5212 = vmatpush1.msra.mxu0 0.0
    %5213 = vmatprep.subr.mxu0 0.0
    %5214 = vmatpush1.msra.mxu0 0.0
    %5215 = vmatprep.subr.mxu0 0.0
    %5216 = vmatpush1.msra.mxu0 0.0
    %5217 = vmatprep.subr.mxu0 0.0
    %5218 = vmatpush1.msra.mxu0 0.0
    %5219 = vmatprep.subr.mxu0 0.0
    %5220 = vmatpush1.msra.mxu0 0.0
    %5221 = vmatprep.subr.mxu0 0.0
    %5222 = vmatpush1.msra.mxu0 0.0
    %5223 = vmatprep.subr.mxu0 0.0
    %5224 = vmatpush1.msra.mxu0 0.0
    %5225 = vmatprep.subr.mxu0 0.0
    %5226 = vmatpush1.msra.mxu0 0.0
    %5227 = vmatprep.subr.mxu0 0.0
    %5228 = vmatpush1.msra.mxu0 0.0
    %5229 = vmatprep.subr.mxu0 0.0
    %5230 = vmatpush1.msra.mxu0 0.0
    %5231 = vmatprep.subr.mxu0 0.0
    %5232 = vmatpush1.msra.mxu0 0.0
    %5233 = vmatprep.subr.mxu0 0.0
    %5234 = vmatpush1.msra.mxu0 0.0
    %5235 = vmatprep.subr.mxu0 0.0
    %5236 = vmatpush1.msra.mxu0 0.0
    %5237 = vmatprep.subr.mxu0 0.0
    %5238 = vmatpush1.msra.mxu0 0.0
    %5239 = vmatprep.subr.mxu0 0.0
    %5240 = vmatpush1.msra.mxu0 0.0
    %5241 = vmatprep.subr.mxu0 0.0
    %5242 = vmatpush1.msra.mxu0 0.0
    %5243 = vmatprep.subr.mxu0 0.0
    %5244 = vmatpush1.msra.mxu0 0.0
    %5245 = vmatprep.subr.mxu0 0.0
    %5246 = vmatpush1.msra.mxu0 0.0
    %5247 = vmatprep.subr.mxu0 0.0
    %5248 = vmatpush1.msra.mxu0 0.0
    %5249 = vmatprep.subr.mxu0 0.0
    %5250 = vmatpush1.msra.mxu0 0.0
    %5251 = vmatprep.subr.mxu0 0.0
    %5252 = vmatpush1.msra.mxu0 0.0
    %5253 = vmatprep.subr.mxu0 0.0
    %5254 = vmatpush1.msra.mxu0 0.0
    %5255 = vmatprep.subr.mxu0 0.0
    %5256 = vmatpush1.msra.mxu0 0.0
    %5257 = vmatprep.mubr.f32.mxu0 0.0
    %5258 = vmatmul.mubr.f32.gmra.mrb[0].mxu0 %v5191
    %v5259 = vpop.f32.mrb[0].mxu0
    %v5260 = vadd.f32 0.0, %v5259
    %v5261 = vpop.f32.mrb[0].mxu0
    %v5262 = vadd.f32 0.0, %v5261
    %5263 = vdwg.mxu0
    %v5264 = vadd.f32 %v5189, %v5260
    %v5265 = vadd.f32 %v5190, %v5262
    %v5266 = vxor.u32 %v5264, 2147483648
    %v5267 = vxor.u32 %v5265, 2147483648
    %v5268 = vmul.f32 %v5266, 1.442695
    %v5269 = vpow.pop %v5268
    %v5270 = vmul.f32 %v5267, 1.442695
    %v5271 = vpow.pop %v5270
    %v5272 = vadd.f32 %v5269, 1.0
    %v5273 = vadd.f32 %v5271, 1.0
    %v5274 = vrcp.pop %v5272
    %v5275 = vmul.f32 1.0, %v5274
    %v5276 = vrcp.pop %v5273
    %v5277 = vmul.f32 1.0, %v5276
    %v5278 = vtanh.pop %v5265
    %v5279 = vmul.f32 %v5275, %v5172
    %5281 = vrot.lane.b32.xlu0 %v5278, 64
    %v5282 = vpop.permute.xlu0 %5281
    %v5284 = vmul.f32 %v5275, %v5282
    %5286 = vrot.lane.b32.xlu0 %v5284, 64
    %v5287 = vpop.permute.xlu0 %5286
    %v5289 = vadd.f32 %v5279, %v5287
    %v5290 = vtanh.pop %v5289
    %5292 = vrot.lane.b32.xlu0 %v5290, 64
    %v5293 = vpop.permute.xlu0 %5292
    %v5295 = vmul.f32 %v5277, %v5293
    %5296 = vst.msk [vmem:[#allocation4 + $0x18] sm:$0xff] %vm398, %v5295
    %5298 = vrot.lane.b32.xlu0 %v5295, 96
    %v5299 = vpop.permute.xlu0 %5298
    %5301 = vst.msk [vmem:[#allocation5 + $0x20] sm:$0xff] %vm398, %v5299
    %v5302 = vld [vmem:[#allocation2 + $0x40] sm:$0xff]
    %v5303 = vld [vmem:[#allocation2 + $0x48] sm:$0xff]
    %v5304 = vld [vmem:[#allocation3 + $0x30] sm:$0xff]
    %v5305 = vld [vmem:[#allocation3 + $0x38] sm:$0xff]
    %v5306 = vadd.f32 %v5302, %v5304
    %v5307 = vadd.f32 %v5303, %v5305
    %v5308 = vsel %vm411, %v5295, 0
    %5310 = vmatprep.subr.mxu0 %v4256
    %5311 = vmatpush1.msra.mxu0 %v4255
    %5312 = vmatprep.subr.mxu0 %v4258
    %5313 = vmatpush1.msra.mxu0 %v4257
    %5314 = vmatprep.subr.mxu0 %v4260
    %5315 = vmatpush1.msra.mxu0 %v4259
    %5316 = vmatprep.subr.mxu0 %v4262
    %5317 = vmatpush1.msra.mxu0 %v4261
    %5318 = vmatprep.subr.mxu0 %v4264
    %5319 = vmatpush1.msra.mxu0 %v4263
    %5320 = vmatprep.subr.mxu0 %v4266
    %5321 = vmatpush1.msra.mxu0 %v4265
    %5322 = vmatprep.subr.mxu0 %v4268
    %5323 = vmatpush1.msra.mxu0 %v4267
    %5324 = vmatprep.subr.mxu0 %v4270
    %5325 = vmatpush1.msra.mxu0 %v4269
    %5326 = vmatprep.subr.mxu0 0.0
    %5327 = vmatpush1.msra.mxu0 0.0
    %5328 = vmatprep.subr.mxu0 0.0
    %5329 = vmatpush1.msra.mxu0 0.0
    %5330 = vmatprep.subr.mxu0 0.0
    %5331 = vmatpush1.msra.mxu0 0.0
    %5332 = vmatprep.subr.mxu0 0.0
    %5333 = vmatpush1.msra.mxu0 0.0
    %5334 = vmatprep.subr.mxu0 0.0
    %5335 = vmatpush1.msra.mxu0 0.0
    %5336 = vmatprep.subr.mxu0 0.0
    %5337 = vmatpush1.msra.mxu0 0.0
    %5338 = vmatprep.subr.mxu0 0.0
    %5339 = vmatpush1.msra.mxu0 0.0
    %5340 = vmatprep.subr.mxu0 0.0
    %5341 = vmatpush1.msra.mxu0 0.0
    %5342 = vmatprep.subr.mxu0 0.0
    %5343 = vmatpush1.msra.mxu0 0.0
    %5344 = vmatprep.subr.mxu0 0.0
    %5345 = vmatpush1.msra.mxu0 0.0
    %5346 = vmatprep.subr.mxu0 0.0
    %5347 = vmatpush1.msra.mxu0 0.0
    %5348 = vmatprep.subr.mxu0 0.0
    %5349 = vmatpush1.msra.mxu0 0.0
    %5350 = vmatprep.subr.mxu0 0.0
    %5351 = vmatpush1.msra.mxu0 0.0
    %5352 = vmatprep.subr.mxu0 0.0
    %5353 = vmatpush1.msra.mxu0 0.0
    %5354 = vmatprep.subr.mxu0 0.0
    %5355 = vmatpush1.msra.mxu0 0.0
    %5356 = vmatprep.subr.mxu0 0.0
    %5357 = vmatpush1.msra.mxu0 0.0
    %5358 = vmatprep.subr.mxu0 0.0
    %5359 = vmatpush1.msra.mxu0 0.0
    %5360 = vmatprep.subr.mxu0 0.0
    %5361 = vmatpush1.msra.mxu0 0.0
    %5362 = vmatprep.subr.mxu0 0.0
    %5363 = vmatpush1.msra.mxu0 0.0
    %5364 = vmatprep.subr.mxu0 0.0
    %5365 = vmatpush1.msra.mxu0 0.0
    %5366 = vmatprep.subr.mxu0 0.0
    %5367 = vmatpush1.msra.mxu0 0.0
    %5368 = vmatprep.subr.mxu0 0.0
    %5369 = vmatpush1.msra.mxu0 0.0
    %5370 = vmatprep.subr.mxu0 0.0
    %5371 = vmatpush1.msra.mxu0 0.0
    %5372 = vmatprep.subr.mxu0 0.0
    %5373 = vmatpush1.msra.mxu0 0.0
    %5374 = vmatprep.mubr.f32.mxu0 0.0
    %5375 = vmatmul.mubr.f32.gmra.mrb[0].mxu0 %v5308
    %v5376 = vpop.f32.mrb[0].mxu0
    %v5377 = vadd.f32 0.0, %v5376
    %v5378 = vpop.f32.mrb[0].mxu0
    %v5379 = vadd.f32 0.0, %v5378
    %5380 = vdwg.mxu0
    %v5381 = vadd.f32 %v5306, %v5377
    %v5382 = vadd.f32 %v5307, %v5379
    %v5383 = vxor.u32 %v5381, 2147483648
    %v5384 = vxor.u32 %v5382, 2147483648
    %v5385 = vmul.f32 %v5383, 1.442695
    %v5386 = vpow.pop %v5385
    %v5387 = vmul.f32 %v5384, 1.442695
    %v5388 = vpow.pop %v5387
    %v5389 = vadd.f32 %v5386, 1.0
    %v5390 = vadd.f32 %v5388, 1.0
    %v5391 = vrcp.pop %v5389
    %v5392 = vmul.f32 1.0, %v5391
    %v5393 = vrcp.pop %v5390
    %v5394 = vmul.f32 1.0, %v5393
    %v5395 = vtanh.pop %v5382
    %v5396 = vmul.f32 %v5392, %v5289
    %5398 = vrot.lane.b32.xlu0 %v5395, 64
    %v5399 = vpop.permute.xlu0 %5398
    %v5401 = vmul.f32 %v5392, %v5399
    %5403 = vrot.lane.b32.xlu0 %v5401, 64
    %v5404 = vpop.permute.xlu0 %5403
    %v5406 = vadd.f32 %v5396, %v5404
    %v5407 = vtanh.pop %v5406
    %5409 = vrot.lane.b32.xlu0 %v5407, 64
    %v5410 = vpop.permute.xlu0 %5409
    %v5412 = vmul.f32 %v5394, %v5410
    %5413 = vst.msk [vmem:[#allocation4 + $0x20] sm:$0xff] %vm398, %v5412
    %5415 = vrot.lane.b32.xlu0 %v5412, 96
    %v5416 = vpop.permute.xlu0 %5415
    %5418 = vst.msk [vmem:[#allocation5 + $0x18] sm:$0xff] %vm398, %v5416
    %v5419 = vld [vmem:[#allocation2 + $0x50] sm:$0xff]
    %v5420 = vld [vmem:[#allocation2 + $0x58] sm:$0xff]
    %v5421 = vld [vmem:[#allocation3 + $0x20] sm:$0xff]
    %v5422 = vld [vmem:[#allocation3 + $0x28] sm:$0xff]
    %v5423 = vadd.f32 %v5419, %v5421
    %v5424 = vadd.f32 %v5420, %v5422
    %v5425 = vsel %vm411, %v5412, 0
    %5427 = vmatprep.subr.mxu0 %v4256
    %5428 = vmatpush1.msra.mxu0 %v4255
    %5429 = vmatprep.subr.mxu0 %v4258
    %5430 = vmatpush1.msra.mxu0 %v4257
    %5431 = vmatprep.subr.mxu0 %v4260
    %5432 = vmatpush1.msra.mxu0 %v4259
    %5433 = vmatprep.subr.mxu0 %v4262
    %5434 = vmatpush1.msra.mxu0 %v4261
    %5435 = vmatprep.subr.mxu0 %v4264
    %5436 = vmatpush1.msra.mxu0 %v4263
    %5437 = vmatprep.subr.mxu0 %v4266
    %5438 = vmatpush1.msra.mxu0 %v4265
    %5439 = vmatprep.subr.mxu0 %v4268
    %5440 = vmatpush1.msra.mxu0 %v4267
    %5441 = vmatprep.subr.mxu0 %v4270
    %5442 = vmatpush1.msra.mxu0 %v4269
    %5443 = vmatprep.subr.mxu0 0.0
    %5444 = vmatpush1.msra.mxu0 0.0
    %5445 = vmatprep.subr.mxu0 0.0
    %5446 = vmatpush1.msra.mxu0 0.0
    %5447 = vmatprep.subr.mxu0 0.0
    %5448 = vmatpush1.msra.mxu0 0.0
    %5449 = vmatprep.subr.mxu0 0.0
    %5450 = vmatpush1.msra.mxu0 0.0
    %5451 = vmatprep.subr.mxu0 0.0
    %5452 = vmatpush1.msra.mxu0 0.0
    %5453 = vmatprep.subr.mxu0 0.0
    %5454 = vmatpush1.msra.mxu0 0.0
    %5455 = vmatprep.subr.mxu0 0.0
    %5456 = vmatpush1.msra.mxu0 0.0
    %5457 = vmatprep.subr.mxu0 0.0
    %5458 = vmatpush1.msra.mxu0 0.0
    %5459 = vmatprep.subr.mxu0 0.0
    %5460 = vmatpush1.msra.mxu0 0.0
    %5461 = vmatprep.subr.mxu0 0.0
    %5462 = vmatpush1.msra.mxu0 0.0
    %5463 = vmatprep.subr.mxu0 0.0
    %5464 = vmatpush1.msra.mxu0 0.0
    %5465 = vmatprep.subr.mxu0 0.0
    %5466 = vmatpush1.msra.mxu0 0.0
    %5467 = vmatprep.subr.mxu0 0.0
    %5468 = vmatpush1.msra.mxu0 0.0
    %5469 = vmatprep.subr.mxu0 0.0
    %5470 = vmatpush1.msra.mxu0 0.0
    %5471 = vmatprep.subr.mxu0 0.0
    %5472 = vmatpush1.msra.mxu0 0.0
    %5473 = vmatprep.subr.mxu0 0.0
    %5474 = vmatpush1.msra.mxu0 0.0
    %5475 = vmatprep.subr.mxu0 0.0
    %5476 = vmatpush1.msra.mxu0 0.0
    %5477 = vmatprep.subr.mxu0 0.0
    %5478 = vmatpush1.msra.mxu0 0.0
    %5479 = vmatprep.subr.mxu0 0.0
    %5480 = vmatpush1.msra.mxu0 0.0
    %5481 = vmatprep.subr.mxu0 0.0
    %5482 = vmatpush1.msra.mxu0 0.0
    %5483 = vmatprep.subr.mxu0 0.0
    %5484 = vmatpush1.msra.mxu0 0.0
    %5485 = vmatprep.subr.mxu0 0.0
    %5486 = vmatpush1.msra.mxu0 0.0
    %5487 = vmatprep.subr.mxu0 0.0
    %5488 = vmatpush1.msra.mxu0 0.0
    %5489 = vmatprep.subr.mxu0 0.0
    %5490 = vmatpush1.msra.mxu0 0.0
    %5491 = vmatprep.mubr.f32.mxu0 0.0
    %5492 = vmatmul.mubr.f32.gmra.mrb[0].mxu0 %v5425
    %v5493 = vpop.f32.mrb[0].mxu0
    %v5494 = vadd.f32 0.0, %v5493
    %v5495 = vpop.f32.mrb[0].mxu0
    %v5496 = vadd.f32 0.0, %v5495
    %5497 = vdwg.mxu0
    %v5498 = vadd.f32 %v5423, %v5494
    %v5499 = vadd.f32 %v5424, %v5496
    %v5500 = vxor.u32 %v5498, 2147483648
    %v5501 = vxor.u32 %v5499, 2147483648
    %v5502 = vmul.f32 %v5500, 1.442695
    %v5503 = vpow.pop %v5502
    %v5504 = vmul.f32 %v5501, 1.442695
    %v5505 = vpow.pop %v5504
    %v5506 = vadd.f32 %v5503, 1.0
    %v5507 = vadd.f32 %v5505, 1.0
    %v5508 = vrcp.pop %v5506
    %v5509 = vmul.f32 1.0, %v5508
    %v5510 = vrcp.pop %v5507
    %v5511 = vmul.f32 1.0, %v5510
    %v5512 = vtanh.pop %v5499
    %v5513 = vmul.f32 %v5509, %v5406
    %5515 = vrot.lane.b32.xlu0 %v5512, 64
    %v5516 = vpop.permute.xlu0 %5515
    %v5518 = vmul.f32 %v5509, %v5516
    %5520 = vrot.lane.b32.xlu0 %v5518, 64
    %v5521 = vpop.permute.xlu0 %5520
    %v5523 = vadd.f32 %v5513, %v5521
    %v5524 = vtanh.pop %v5523
    %5526 = vrot.lane.b32.xlu0 %v5524, 64
    %v5527 = vpop.permute.xlu0 %5526
    %v5529 = vmul.f32 %v5511, %v5527
    %5530 = vst.msk [vmem:[#allocation4 + $0x28] sm:$0xff] %vm398, %v5529
    %5532 = vrot.lane.b32.xlu0 %v5529, 96
    %v5533 = vpop.permute.xlu0 %5532
    %5535 = vst.msk [vmem:[#allocation5 + $0x10] sm:$0xff] %vm398, %v5533
    %v5536 = vld [vmem:[#allocation2 + $0x60] sm:$0xff]
    %v5537 = vld [vmem:[#allocation2 + $0x68] sm:$0xff]
    %v5538 = vld [vmem:[#allocation3 + $0x10] sm:$0xff]
    %v5539 = vld [vmem:[#allocation3 + $0x18] sm:$0xff]
    %v5540 = vadd.f32 %v5536, %v5538
    %v5541 = vadd.f32 %v5537, %v5539
    %v5542 = vsel %vm411, %v5529, 0
    %5544 = vmatprep.subr.mxu0 %v4256
    %5545 = vmatpush1.msra.mxu0 %v4255
    %5546 = vmatprep.subr.mxu0 %v4258
    %5547 = vmatpush1.msra.mxu0 %v4257
    %5548 = vmatprep.subr.mxu0 %v4260
    %5549 = vmatpush1.msra.mxu0 %v4259
    %5550 = vmatprep.subr.mxu0 %v4262
    %5551 = vmatpush1.msra.mxu0 %v4261
    %5552 = vmatprep.subr.mxu0 %v4264
    %5553 = vmatpush1.msra.mxu0 %v4263
    %5554 = vmatprep.subr.mxu0 %v4266
    %5555 = vmatpush1.msra.mxu0 %v4265
    %5556 = vmatprep.subr.mxu0 %v4268
    %5557 = vmatpush1.msra.mxu0 %v4267
    %5558 = vmatprep.subr.mxu0 %v4270
    %5559 = vmatpush1.msra.mxu0 %v4269
    %5560 = vmatprep.subr.mxu0 0.0
    %5561 = vmatpush1.msra.mxu0 0.0
    %5562 = vmatprep.subr.mxu0 0.0
    %5563 = vmatpush1.msra.mxu0 0.0
    %5564 = vmatprep.subr.mxu0 0.0
    %5565 = vmatpush1.msra.mxu0 0.0
    %5566 = vmatprep.subr.mxu0 0.0
    %5567 = vmatpush1.msra.mxu0 0.0
    %5568 = vmatprep.subr.mxu0 0.0
    %5569 = vmatpush1.msra.mxu0 0.0
    %5570 = vmatprep.subr.mxu0 0.0
    %5571 = vmatpush1.msra.mxu0 0.0
    %5572 = vmatprep.subr.mxu0 0.0
    %5573 = vmatpush1.msra.mxu0 0.0
    %5574 = vmatprep.subr.mxu0 0.0
    %5575 = vmatpush1.msra.mxu0 0.0
    %5576 = vmatprep.subr.mxu0 0.0
    %5577 = vmatpush1.msra.mxu0 0.0
    %5578 = vmatprep.subr.mxu0 0.0
    %5579 = vmatpush1.msra.mxu0 0.0
    %5580 = vmatprep.subr.mxu0 0.0
    %5581 = vmatpush1.msra.mxu0 0.0
    %5582 = vmatprep.subr.mxu0 0.0
    %5583 = vmatpush1.msra.mxu0 0.0
    %5584 = vmatprep.subr.mxu0 0.0
    %5585 = vmatpush1.msra.mxu0 0.0
    %5586 = vmatprep.subr.mxu0 0.0
    %5587 = vmatpush1.msra.mxu0 0.0
    %5588 = vmatprep.subr.mxu0 0.0
    %5589 = vmatpush1.msra.mxu0 0.0
    %5590 = vmatprep.subr.mxu0 0.0
    %5591 = vmatpush1.msra.mxu0 0.0
    %5592 = vmatprep.subr.mxu0 0.0
    %5593 = vmatpush1.msra.mxu0 0.0
    %5594 = vmatprep.subr.mxu0 0.0
    %5595 = vmatpush1.msra.mxu0 0.0
    %5596 = vmatprep.subr.mxu0 0.0
    %5597 = vmatpush1.msra.mxu0 0.0
    %5598 = vmatprep.subr.mxu0 0.0
    %5599 = vmatpush1.msra.mxu0 0.0
    %5600 = vmatprep.subr.mxu0 0.0
    %5601 = vmatpush1.msra.mxu0 0.0
    %5602 = vmatprep.subr.mxu0 0.0
    %5603 = vmatpush1.msra.mxu0 0.0
    %5604 = vmatprep.subr.mxu0 0.0
    %5605 = vmatpush1.msra.mxu0 0.0
    %5606 = vmatprep.subr.mxu0 0.0
    %5607 = vmatpush1.msra.mxu0 0.0
    %5608 = vmatprep.mubr.f32.mxu0 0.0
    %5609 = vmatmul.mubr.f32.gmra.mrb[0].mxu0 %v5542
    %v5610 = vpop.f32.mrb[0].mxu0
    %v5611 = vadd.f32 0.0, %v5610
    %v5612 = vpop.f32.mrb[0].mxu0
    %v5613 = vadd.f32 0.0, %v5612
    %5614 = vdwg.mxu0
    %v5615 = vadd.f32 %v5540, %v5611
    %v5616 = vadd.f32 %v5541, %v5613
    %v5617 = vxor.u32 %v5615, 2147483648
    %v5618 = vxor.u32 %v5616, 2147483648
    %v5619 = vmul.f32 %v5617, 1.442695
    %v5620 = vpow.pop %v5619
    %v5621 = vmul.f32 %v5618, 1.442695
    %v5622 = vpow.pop %v5621
    %v5623 = vadd.f32 %v5620, 1.0
    %v5624 = vadd.f32 %v5622, 1.0
    %v5625 = vrcp.pop %v5623
    %v5626 = vmul.f32 1.0, %v5625
    %v5627 = vrcp.pop %v5624
    %v5628 = vmul.f32 1.0, %v5627
    %v5629 = vtanh.pop %v5616
    %v5630 = vmul.f32 %v5626, %v5523
    %5632 = vrot.lane.b32.xlu0 %v5629, 64
    %v5633 = vpop.permute.xlu0 %5632
    %v5635 = vmul.f32 %v5626, %v5633
    %5637 = vrot.lane.b32.xlu0 %v5635, 64
    %v5638 = vpop.permute.xlu0 %5637
    %v5640 = vadd.f32 %v5630, %v5638
    %v5641 = vtanh.pop %v5640
    %5643 = vrot.lane.b32.xlu0 %v5641, 64
    %v5644 = vpop.permute.xlu0 %5643
    %v5646 = vmul.f32 %v5628, %v5644
    %5647 = vst.msk [vmem:[#allocation4 + $0x30] sm:$0xff] %vm398, %v5646
    %5649 = vrot.lane.b32.xlu0 %v5646, 96
    %v5650 = vpop.permute.xlu0 %5649
    %5652 = vst.msk [vmem:[#allocation5 + $0x8] sm:$0xff] %vm398, %v5650
    %v5653 = vld [vmem:[#allocation2 + $0x70] sm:$0xff]
    %v5654 = vld [vmem:[#allocation2 + $0x78] sm:$0xff]
    %v5655 = vld [vmem:[#allocation3] sm:$0xff]
    %v5656 = vld [vmem:[#allocation3 + $0x8] sm:$0xff]
    %v5657 = vadd.f32 %v5653, %v5655
    %v5658 = vadd.f32 %v5654, %v5656
    %v5659 = vsel %vm411, %v5646, 0
    %5661 = vmatprep.subr.mxu0 %v4256
    %5662 = vmatpush1.msra.mxu0 %v4255
    %5663 = vmatprep.subr.mxu0 %v4258
    %5664 = vmatpush1.msra.mxu0 %v4257
    %5665 = vmatprep.subr.mxu0 %v4260
    %5666 = vmatpush1.msra.mxu0 %v4259
    %5667 = vmatprep.subr.mxu0 %v4262
    %5668 = vmatpush1.msra.mxu0 %v4261
    %5669 = vmatprep.subr.mxu0 %v4264
    %5670 = vmatpush1.msra.mxu0 %v4263
    %5671 = vmatprep.subr.mxu0 %v4266
    %5672 = vmatpush1.msra.mxu0 %v4265
    %5673 = vmatprep.subr.mxu0 %v4268
    %5674 = vmatpush1.msra.mxu0 %v4267
    %5675 = vmatprep.subr.mxu0 %v4270
    %5676 = vmatpush1.msra.mxu0 %v4269
    %5677 = vmatprep.subr.mxu0 0.0
    %5678 = vmatpush1.msra.mxu0 0.0
    %5679 = vmatprep.subr.mxu0 0.0
    %5680 = vmatpush1.msra.mxu0 0.0
    %5681 = vmatprep.subr.mxu0 0.0
    %5682 = vmatpush1.msra.mxu0 0.0
    %5683 = vmatprep.subr.mxu0 0.0
    %5684 = vmatpush1.msra.mxu0 0.0
    %5685 = vmatprep.subr.mxu0 0.0
    %5686 = vmatpush1.msra.mxu0 0.0
    %5687 = vmatprep.subr.mxu0 0.0
    %5688 = vmatpush1.msra.mxu0 0.0
    %5689 = vmatprep.subr.mxu0 0.0
    %5690 = vmatpush1.msra.mxu0 0.0
    %5691 = vmatprep.subr.mxu0 0.0
    %5692 = vmatpush1.msra.mxu0 0.0
    %5693 = vmatprep.subr.mxu0 0.0
    %5694 = vmatpush1.msra.mxu0 0.0
    %5695 = vmatprep.subr.mxu0 0.0
    %5696 = vmatpush1.msra.mxu0 0.0
    %5697 = vmatprep.subr.mxu0 0.0
    %5698 = vmatpush1.msra.mxu0 0.0
    %5699 = vmatprep.subr.mxu0 0.0
    %5700 = vmatpush1.msra.mxu0 0.0
    %5701 = vmatprep.subr.mxu0 0.0
    %5702 = vmatpush1.msra.mxu0 0.0
    %5703 = vmatprep.subr.mxu0 0.0
    %5704 = vmatpush1.msra.mxu0 0.0
    %5705 = vmatprep.subr.mxu0 0.0
    %5706 = vmatpush1.msra.mxu0 0.0
    %5707 = vmatprep.subr.mxu0 0.0
    %5708 = vmatpush1.msra.mxu0 0.0
    %5709 = vmatprep.subr.mxu0 0.0
    %5710 = vmatpush1.msra.mxu0 0.0
    %5711 = vmatprep.subr.mxu0 0.0
    %5712 = vmatpush1.msra.mxu0 0.0
    %5713 = vmatprep.subr.mxu0 0.0
    %5714 = vmatpush1.msra.mxu0 0.0
    %5715 = vmatprep.subr.mxu0 0.0
    %5716 = vmatpush1.msra.mxu0 0.0
    %5717 = vmatprep.subr.mxu0 0.0
    %5718 = vmatpush1.msra.mxu0 0.0
    %5719 = vmatprep.subr.mxu0 0.0
    %5720 = vmatpush1.msra.mxu0 0.0
    %5721 = vmatprep.subr.mxu0 0.0
    %5722 = vmatpush1.msra.mxu0 0.0
    %5723 = vmatprep.subr.mxu0 0.0
    %5724 = vmatpush1.msra.mxu0 0.0
    %5725 = vmatprep.mubr.f32.mxu0 0.0
    %5726 = vmatmul.mubr.f32.gmra.mrb[0].mxu0 %v5659
    %v5727 = vpop.f32.mrb[0].mxu0
    %v5728 = vadd.f32 0.0, %v5727
    %v5729 = vpop.f32.mrb[0].mxu0
    %v5730 = vadd.f32 0.0, %v5729
    %5731 = vdwg.mxu0
    %v5732 = vadd.f32 %v5657, %v5728
    %v5733 = vadd.f32 %v5658, %v5730
    %v5734 = vxor.u32 %v5732, 2147483648
    %v5735 = vxor.u32 %v5733, 2147483648
    %v5736 = vmul.f32 %v5734, 1.442695
    %v5737 = vpow.pop %v5736
    %v5738 = vmul.f32 %v5735, 1.442695
    %v5739 = vpow.pop %v5738
    %v5740 = vadd.f32 %v5737, 1.0
    %v5741 = vadd.f32 %v5739, 1.0
    %v5742 = vrcp.pop %v5740
    %v5743 = vmul.f32 1.0, %v5742
    %v5744 = vrcp.pop %v5741
    %v5745 = vmul.f32 1.0, %v5744
    %v5746 = vtanh.pop %v5733
    %v5747 = vmul.f32 %v5743, %v5640
    %5749 = vrot.lane.b32.xlu0 %v5746, 64
    %v5750 = vpop.permute.xlu0 %5749
    %v5752 = vmul.f32 %v5743, %v5750
    %5754 = vrot.lane.b32.xlu0 %v5752, 64
    %v5755 = vpop.permute.xlu0 %5754
    %v5757 = vadd.f32 %v5747, %v5755
    %v5758 = vtanh.pop %v5757
    %5760 = vrot.lane.b32.xlu0 %v5758, 64
    %v5761 = vpop.permute.xlu0 %5760
    %v5763 = vmul.f32 %v5745, %v5761
    %5764 = vst.msk [vmem:[#allocation4 + $0x38] sm:$0xff] %vm398, %v5763
    %5766 = vrot.lane.b32.xlu0 %v5763, 96
    %v5767 = vpop.permute.xlu0 %5766
    %5769 = vst.msk [vmem:[#allocation5] sm:$0xff] %vm398, %v5767
    %v5770 = vld [vmem:[#allocation4 + $0x38] sm:$0xff]
    %v5771 = vld [vmem:[#allocation5 + $0x38] sm:$0xff]
    %v5772 = vld [vmem:[#allocation6 + $0x5a0] sm:$0xff]
    %v5773 = vld [vmem:[#allocation6 + $0x5b0] sm:$0xff]
    %v5774 = vld [vmem:[#allocation6 + $0x5c0] sm:$0xff]
    %v5775 = vld [vmem:[#allocation6 + $0x5d0] sm:$0xff]
    %v5776 = vld [vmem:[#allocation6 + $0x5e0] sm:$0xff]
    %v5777 = vld [vmem:[#allocation6 + $0x5f0] sm:$0xff]
    %v5778 = vld [vmem:[#allocation6 + $0x600] sm:$0xff]
    %v5779 = vld [vmem:[#allocation6 + $0x610] sm:$0xff]
    %v5780 = vld [vmem:[#allocation6 + $0x680] ss:$0 sm:$0xff]
    %v5781 = vld [vmem:[#allocation6 + $0x620] sm:$0xff]
    %v5782 = vld [vmem:[#allocation6 + $0x630] sm:$0xff]
    %v5783 = vld [vmem:[#allocation6 + $0x640] sm:$0xff]
    %v5784 = vld [vmem:[#allocation6 + $0x650] sm:$0xff]
    %v5785 = vld [vmem:[#allocation6 + $0x690] ss:$0 sm:$0xff]
    %v5786 = vld [vmem:[#allocation6 + $0x660] sm:$0xff]
    %v5787 = vld [vmem:[#allocation6 + $0x670] sm:$0xff]
    %v5788 = vld [vmem:[#allocation6 + $0x6a0] ss:$0 sm:$0xff]
    %v5790 = vsel %vm398, %v5771, 0
    %5792 = vmatprep.subr.mxu0 0.0
    %5793 = vmatpush1.msra.mxu0 %v5776
    %5794 = vmatprep.subr.mxu0 0.0
    %5795 = vmatpush1.msra.mxu0 %v5777
    %5796 = vmatprep.subr.mxu0 0.0
    %5797 = vmatpush1.msra.mxu0 %v5778
    %5798 = vmatprep.subr.mxu0 0.0
    %5799 = vmatpush1.msra.mxu0 %v5779
    %5800 = vmatprep.subr.mxu0 0.0
    %5801 = vmatpush1.msra.mxu0 0.0
    %5802 = vmatprep.subr.mxu0 0.0
    %5803 = vmatpush1.msra.mxu0 0.0
    %5804 = vmatprep.subr.mxu0 0.0
    %5805 = vmatpush1.msra.mxu0 0.0
    %5806 = vmatprep.subr.mxu0 0.0
    %5807 = vmatpush1.msra.mxu0 0.0
    %5808 = vmatprep.subr.mxu0 0.0
    %5809 = vmatpush1.msra.mxu0 0.0
    %5810 = vmatprep.subr.mxu0 0.0
    %5811 = vmatpush1.msra.mxu0 0.0
    %5812 = vmatprep.subr.mxu0 0.0
    %5813 = vmatpush1.msra.mxu0 0.0
    %5814 = vmatprep.subr.mxu0 0.0
    %5815 = vmatpush1.msra.mxu0 0.0
    %5816 = vmatprep.subr.mxu0 0.0
    %5817 = vmatpush1.msra.mxu0 0.0
    %5818 = vmatprep.subr.mxu0 0.0
    %5819 = vmatpush1.msra.mxu0 0.0
    %5820 = vmatprep.subr.mxu0 0.0
    %5821 = vmatpush1.msra.mxu0 0.0
    %5822 = vmatprep.subr.mxu0 0.0
    %5823 = vmatpush1.msra.mxu0 0.0
    %5824 = vmatprep.subr.mxu0 0.0
    %5825 = vmatpush1.msra.mxu0 0.0
    %5826 = vmatprep.subr.mxu0 0.0
    %5827 = vmatpush1.msra.mxu0 0.0
    %5828 = vmatprep.subr.mxu0 0.0
    %5829 = vmatpush1.msra.mxu0 0.0
    %5830 = vmatprep.subr.mxu0 0.0
    %5831 = vmatpush1.msra.mxu0 0.0
    %5832 = vmatprep.subr.mxu0 0.0
    %5833 = vmatpush1.msra.mxu0 0.0
    %5834 = vmatprep.subr.mxu0 0.0
    %5835 = vmatpush1.msra.mxu0 0.0
    %5836 = vmatprep.subr.mxu0 0.0
    %5837 = vmatpush1.msra.mxu0 0.0
    %5838 = vmatprep.subr.mxu0 0.0
    %5839 = vmatpush1.msra.mxu0 0.0
    %5840 = vmatprep.subr.mxu0 0.0
    %5841 = vmatpush1.msra.mxu0 0.0
    %5842 = vmatprep.subr.mxu0 0.0
    %5843 = vmatpush1.msra.mxu0 0.0
    %5844 = vmatprep.subr.mxu0 0.0
    %5845 = vmatpush1.msra.mxu0 0.0
    %5846 = vmatprep.subr.mxu0 0.0
    %5847 = vmatpush1.msra.mxu0 0.0
    %5848 = vmatprep.subr.mxu0 0.0
    %5849 = vmatpush1.msra.mxu0 0.0
    %5850 = vmatprep.subr.mxu0 0.0
    %5851 = vmatpush1.msra.mxu0 0.0
    %5852 = vmatprep.subr.mxu0 0.0
    %5853 = vmatpush1.msra.mxu0 0.0
    %5854 = vmatprep.subr.mxu0 0.0
    %5855 = vmatpush1.msra.mxu0 0.0
    %5856 = vmatprep.mubr.f32.mxu0 0.0
    %5857 = vmatmul.mubr.f32.gmra.mrb[0].mxu0 %v5790
    %v5858 = vpop.f32.mrb[0].mxu0
    %v5859 = vadd.f32 0.0, %v5858
    %v5860 = vpop.f32.mrb[0].mxu0
    %5861 = vdwg.mxu0
    %v5863 = vsel %vm398, %v5770, 0
    %5865 = vmatprep.subr.mxu0 0.0
    %5866 = vmatpush1.msra.mxu0 %v5772
    %5867 = vmatprep.subr.mxu0 0.0
    %5868 = vmatpush1.msra.mxu0 %v5773
    %5869 = vmatprep.subr.mxu0 0.0
    %5870 = vmatpush1.msra.mxu0 %v5774
    %5871 = vmatprep.subr.mxu0 0.0
    %5872 = vmatpush1.msra.mxu0 %v5775
    %5873 = vmatprep.subr.mxu0 0.0
    %5874 = vmatpush1.msra.mxu0 0.0
    %5875 = vmatprep.subr.mxu0 0.0
    %5876 = vmatpush1.msra.mxu0 0.0
    %5877 = vmatprep.subr.mxu0 0.0
    %5878 = vmatpush1.msra.mxu0 0.0
    %5879 = vmatprep.subr.mxu0 0.0
    %5880 = vmatpush1.msra.mxu0 0.0
    %5881 = vmatprep.subr.mxu0 0.0
    %5882 = vmatpush1.msra.mxu0 0.0
    %5883 = vmatprep.subr.mxu0 0.0
    %5884 = vmatpush1.msra.mxu0 0.0
    %5885 = vmatprep.subr.mxu0 0.0
    %5886 = vmatpush1.msra.mxu0 0.0
    %5887 = vmatprep.subr.mxu0 0.0
    %5888 = vmatpush1.msra.mxu0 0.0
    %5889 = vmatprep.subr.mxu0 0.0
    %5890 = vmatpush1.msra.mxu0 0.0
    %5891 = vmatprep.subr.mxu0 0.0
    %5892 = vmatpush1.msra.mxu0 0.0
    %5893 = vmatprep.subr.mxu0 0.0
    %5894 = vmatpush1.msra.mxu0 0.0
    %5895 = vmatprep.subr.mxu0 0.0
    %5896 = vmatpush1.msra.mxu0 0.0
    %5897 = vmatprep.subr.mxu0 0.0
    %5898 = vmatpush1.msra.mxu0 0.0
    %5899 = vmatprep.subr.mxu0 0.0
    %5900 = vmatpush1.msra.mxu0 0.0
    %5901 = vmatprep.subr.mxu0 0.0
    %5902 = vmatpush1.msra.mxu0 0.0
    %5903 = vmatprep.subr.mxu0 0.0
    %5904 = vmatpush1.msra.mxu0 0.0
    %5905 = vmatprep.subr.mxu0 0.0
    %5906 = vmatpush1.msra.mxu0 0.0
    %5907 = vmatprep.subr.mxu0 0.0
    %5908 = vmatpush1.msra.mxu0 0.0
    %5909 = vmatprep.subr.mxu0 0.0
    %5910 = vmatpush1.msra.mxu0 0.0
    %5911 = vmatprep.subr.mxu0 0.0
    %5912 = vmatpush1.msra.mxu0 0.0
    %5913 = vmatprep.subr.mxu0 0.0
    %5914 = vmatpush1.msra.mxu0 0.0
    %5915 = vmatprep.subr.mxu0 0.0
    %5916 = vmatpush1.msra.mxu0 0.0
    %5917 = vmatprep.subr.mxu0 0.0
    %5918 = vmatpush1.msra.mxu0 0.0
    %5919 = vmatprep.subr.mxu0 0.0
    %5920 = vmatpush1.msra.mxu0 0.0
    %5921 = vmatprep.subr.mxu0 0.0
    %5922 = vmatpush1.msra.mxu0 0.0
    %5923 = vmatprep.subr.mxu0 0.0
    %5924 = vmatpush1.msra.mxu0 0.0
    %5925 = vmatprep.subr.mxu0 0.0
    %5926 = vmatpush1.msra.mxu0 0.0
    %5927 = vmatprep.subr.mxu0 0.0
    %5928 = vmatpush1.msra.mxu0 0.0
    %5929 = vmatprep.mubr.f32.mxu0 0.0
    %5930 = vmatmul.mubr.f32.gmra.mrb[0].mxu0 %v5863
    %v5931 = vpop.f32.mrb[0].mxu0
    %v5932 = vadd.f32 %v5859, %v5931
    %v5933 = vpop.f32.mrb[0].mxu0
    %5934 = vdwg.mxu0
    %v5935 = vadd.f32 %v5932, %v5780
    %v5936 = vmax.f32 %v5935, 0.0
    %v5938 = vsel %vm398, %v5936, 0
    %5940 = vmatprep.subr.mxu0 0.0
    %5941 = vmatpush1.msra.mxu0 %v5781
    %5942 = vmatprep.subr.mxu0 0.0
    %5943 = vmatpush1.msra.mxu0 %v5782
    %5944 = vmatprep.subr.mxu0 0.0
    %5945 = vmatpush1.msra.mxu0 %v5783
    %5946 = vmatprep.subr.mxu0 0.0
    %5947 = vmatpush1.msra.mxu0 %v5784
    %5948 = vmatprep.subr.mxu0 0.0
    %5949 = vmatpush1.msra.mxu0 0.0
    %5950 = vmatprep.subr.mxu0 0.0
    %5951 = vmatpush1.msra.mxu0 0.0
    %5952 = vmatprep.subr.mxu0 0.0
    %5953 = vmatpush1.msra.mxu0 0.0
    %5954 = vmatprep.subr.mxu0 0.0
    %5955 = vmatpush1.msra.mxu0 0.0
    %5956 = vmatprep.subr.mxu0 0.0
    %5957 = vmatpush1.msra.mxu0 0.0
    %5958 = vmatprep.subr.mxu0 0.0
    %5959 = vmatpush1.msra.mxu0 0.0
    %5960 = vmatprep.subr.mxu0 0.0
    %5961 = vmatpush1.msra.mxu0 0.0
    %5962 = vmatprep.subr.mxu0 0.0
    %5963 = vmatpush1.msra.mxu0 0.0
    %5964 = vmatprep.subr.mxu0 0.0
    %5965 = vmatpush1.msra.mxu0 0.0
    %5966 = vmatprep.subr.mxu0 0.0
    %5967 = vmatpush1.msra.mxu0 0.0
    %5968 = vmatprep.subr.mxu0 0.0
    %5969 = vmatpush1.msra.mxu0 0.0
    %5970 = vmatprep.subr.mxu0 0.0
    %5971 = vmatpush1.msra.mxu0 0.0
    %5972 = vmatprep.subr.mxu0 0.0
    %5973 = vmatpush1.msra.mxu0 0.0
    %5974 = vmatprep.subr.mxu0 0.0
    %5975 = vmatpush1.msra.mxu0 0.0
    %5976 = vmatprep.subr.mxu0 0.0
    %5977 = vmatpush1.msra.mxu0 0.0
    %5978 = vmatprep.subr.mxu0 0.0
    %5979 = vmatpush1.msra.mxu0 0.0
    %5980 = vmatprep.subr.mxu0 0.0
    %5981 = vmatpush1.msra.mxu0 0.0
    %5982 = vmatprep.subr.mxu0 0.0
    %5983 = vmatpush1.msra.mxu0 0.0
    %5984 = vmatprep.subr.mxu0 0.0
    %5985 = vmatpush1.msra.mxu0 0.0
    %5986 = vmatprep.subr.mxu0 0.0
    %5987 = vmatpush1.msra.mxu0 0.0
    %5988 = vmatprep.subr.mxu0 0.0
    %5989 = vmatpush1.msra.mxu0 0.0
    %5990 = vmatprep.subr.mxu0 0.0
    %5991 = vmatpush1.msra.mxu0 0.0
    %5992 = vmatprep.subr.mxu0 0.0
    %5993 = vmatpush1.msra.mxu0 0.0
    %5994 = vmatprep.subr.mxu0 0.0
    %5995 = vmatpush1.msra.mxu0 0.0
    %5996 = vmatprep.subr.mxu0 0.0
    %5997 = vmatpush1.msra.mxu0 0.0
    %5998 = vmatprep.subr.mxu0 0.0
    %5999 = vmatpush1.msra.mxu0 0.0
    %6000 = vmatprep.subr.mxu0 0.0
    %6001 = vmatpush1.msra.mxu0 0.0
    %6002 = vmatprep.subr.mxu0 0.0
    %6003 = vmatpush1.msra.mxu0 0.0
    %6004 = vmatprep.mubr.f32.mxu0 0.0
    %6005 = vmatmul.mubr.f32.gmra.mrb[0].mxu0 %v5938
    %v6006 = vpop.f32.mrb[0].mxu0
    %v6007 = vadd.f32 %v5785, %v6006
    %v6008 = vpop.f32.mrb[0].mxu0
    %6009 = vdwg.mxu0
    %v6010 = vmax.f32 %v6007, 0.0
    %vm6011 = vcmask 130048
    %v6013 = vsel %vm6011, %v6010, 0
    %6015 = vmatprep.subr.mxu0 0.0
    %6016 = vmatpush1.msra.mxu0 %v5786
    %6017 = vmatprep.subr.mxu0 0.0
    %6018 = vmatpush1.msra.mxu0 %v5787
    %6019 = vmatprep.subr.mxu0 0.0
    %6020 = vmatpush1.msra.mxu0 0.0
    %6021 = vmatprep.subr.mxu0 0.0
    %6022 = vmatpush1.msra.mxu0 0.0
    %6023 = vmatprep.subr.mxu0 0.0
    %6024 = vmatpush1.msra.mxu0 0.0
    %6025 = vmatprep.subr.mxu0 0.0
    %6026 = vmatpush1.msra.mxu0 0.0
    %6027 = vmatprep.subr.mxu0 0.0
    %6028 = vmatpush1.msra.mxu0 0.0
    %6029 = vmatprep.subr.mxu0 0.0
    %6030 = vmatpush1.msra.mxu0 0.0
    %6031 = vmatprep.subr.mxu0 0.0
    %6032 = vmatpush1.msra.mxu0 0.0
    %6033 = vmatprep.subr.mxu0 0.0
    %6034 = vmatpush1.msra.mxu0 0.0
    %6035 = vmatprep.subr.mxu0 0.0
    %6036 = vmatpush1.msra.mxu0 0.0
    %6037 = vmatprep.subr.mxu0 0.0
    %6038 = vmatpush1.msra.mxu0 0.0
    %6039 = vmatprep.subr.mxu0 0.0
    %6040 = vmatpush1.msra.mxu0 0.0
    %6041 = vmatprep.subr.mxu0 0.0
    %6042 = vmatpush1.msra.mxu0 0.0
    %6043 = vmatprep.subr.mxu0 0.0
    %6044 = vmatpush1.msra.mxu0 0.0
    %6045 = vmatprep.subr.mxu0 0.0
    %6046 = vmatpush1.msra.mxu0 0.0
    %6047 = vmatprep.subr.mxu0 0.0
    %6048 = vmatpush1.msra.mxu0 0.0
    %6049 = vmatprep.subr.mxu0 0.0
    %6050 = vmatpush1.msra.mxu0 0.0
    %6051 = vmatprep.subr.mxu0 0.0
    %6052 = vmatpush1.msra.mxu0 0.0
    %6053 = vmatprep.subr.mxu0 0.0
    %6054 = vmatpush1.msra.mxu0 0.0
    %6055 = vmatprep.subr.mxu0 0.0
    %6056 = vmatpush1.msra.mxu0 0.0
    %6057 = vmatprep.subr.mxu0 0.0
    %6058 = vmatpush1.msra.mxu0 0.0
    %6059 = vmatprep.subr.mxu0 0.0
    %6060 = vmatpush1.msra.mxu0 0.0
    %6061 = vmatprep.subr.mxu0 0.0
    %6062 = vmatpush1.msra.mxu0 0.0
    %6063 = vmatprep.subr.mxu0 0.0
    %6064 = vmatpush1.msra.mxu0 0.0
    %6065 = vmatprep.subr.mxu0 0.0
    %6066 = vmatpush1.msra.mxu0 0.0
    %6067 = vmatprep.subr.mxu0 0.0
    %6068 = vmatpush1.msra.mxu0 0.0
    %6069 = vmatprep.subr.mxu0 0.0
    %6070 = vmatpush1.msra.mxu0 0.0
    %6071 = vmatprep.subr.mxu0 0.0
    %6072 = vmatpush1.msra.mxu0 0.0
    %6073 = vmatprep.subr.mxu0 0.0
    %6074 = vmatpush1.msra.mxu0 0.0
    %6075 = vmatprep.subr.mxu0 0.0
    %6076 = vmatpush1.msra.mxu0 0.0
    %6077 = vmatprep.subr.mxu0 0.0
    %6078 = vmatpush1.msra.mxu0 0.0
    %6079 = vmatprep.mubr.f32.mxu0 0.0
    %6080 = vmatmul.mubr.f32.gmra.mrb[0].mxu0 %v6013
    %v6081 = vpop.f32.mrb[0].mxu0
    %v6082 = vadd.f32 %v5788, %v6081
    %v6083 = vpop.f32.mrb[0].mxu0
    %6084 = vdwg.mxu0
    %vm6085 = vcmask 7168
    %6086 = vst.msk [vmem:[%s2] sm:$0xff] %vm6085, %v6082
    // Predicated region
    $region14: #{forward.1} parent=1 // pred_check
      _
    $region15: #{forward.1} parent=1 // pred_check_branch
      %6088 = sbr.rel (0) target = $region17
    $region16: #{forward.1} parent=1 // pred_region
      _
    $region17: #{forward.1} parent=1 // pred_fallthru
      _
    // Predicated region
    $region18: #{forward.1} parent=1 // pred_check
      _
    $region19: #{forward.1} parent=1 // pred_check_branch
      %6090 = sbr.rel (0) target = $region21
    $region20: #{forward.1} parent=1 // pred_region
      _
    $region21: #{forward.1} parent=1 // pred_fallthru
      _
    %6091 = vsyncpa [#allocation7], 1

</llo_original>
